<compile_context>
chip_gen: v7x
topology: tpu7x:2x2x1
jax: 0.10.0
libtpu: 0.0.40
codegen_flags: <defaults>
</compile_context>

<pallas_src>
import functools

import jax
import jax.numpy as jnp
from jax.experimental import pallas as pl
from jax.experimental.pallas import tpu as pltpu

LANE = 128


def _round_up(x, m):
    return (x + m - 1) // m * m


def _build_taps(dilations, H, W):
    """Unique, non-dead taps.

    Returns (offsets, groups):
      offsets: list of (dh, dw) row/col shifts (output[i,j] += W_tap . x[i+dh, j+dw])
      groups:  per offset, list of (branch, kh, kw) whose weights get summed.
    Taps whose valid output region is empty (receptive field entirely in the
    zero padding) are dropped; taps sharing an offset (the centre tap of every
    branch) are merged.
    """
    taps = {}
    for bi, d in enumerate(dilations):
        for kh in range(3):
            for kw in range(3):
                dh = (kh - 1) * d
                dw = (kw - 1) * d
                if max(0, -dh) >= min(H, H - dh):   # empty row range -> pure zeros
                    continue
                if max(0, -dw) >= min(W, W - dw):   # empty col range -> pure zeros
                    continue
                taps.setdefault((dh, dw), []).append((bi, kh, kw))
    offsets = sorted(taps.keys())
    return offsets, [taps[o] for o in offsets]


# --------------------------------------------------------------------------
# Pallas kernel: one batch element per grid step.
# --------------------------------------------------------------------------
def _aspp_kernel(x_ref, w_ref, b_ref, o_ref, acc_ref, *, H, W, Kp, offsets):
    # x_ref : (1, H, W, Cp)      bf16   (one batch element, channel-padded)
    # w_ref : (n_taps, Cp, Kp)   bf16   (deduplicated / merged tap weights)
    # b_ref : (1, Kp)            f32    (sum of branch biases, channel-padded)
    # o_ref : (1, H, W, Kp)      f32
    # acc_ref: VMEM scratch (H, W, Kp) f32
    acc_ref[...] = jnp.broadcast_to(b_ref[...], (H, W, Kp))

    x = x_ref[0]                                    # (H, W, Cp) bf16
    for ti, (dh, dw) in enumerate(offsets):         # static tap loop (trace time)
        oh0, oh1 = max(0, -dh), min(H, H - dh)      # valid output rows
        ow0, ow1 = max(0, -dw), min(W, W - dw)      # valid output cols
        th, tw = oh1 - oh0, ow1 - ow0
        patch = x[oh0 + dh:oh1 + dh, ow0 + dw:ow1 + dw, :]        # (th, tw, Cp)
        contrib = jnp.dot(patch.reshape(th * tw, patch.shape[-1]),
                          w_ref[ti],
                          preferred_element_type=jnp.float32)     # MXU, f32 acc
        acc_ref[oh0:oh1, ow0:ow1, :] += contrib.reshape(th, tw, Kp)

    o_ref[0] = acc_ref[...]


# --------------------------------------------------------------------------
# Wrapper: NCHW in / NCHW out, lane padding, bf16 casts, tap fusion.
# --------------------------------------------------------------------------
def aspp_v2_forward(x_nchw, weights, biases, *, dilations):
    """ASPP_V2 forward.

    x_nchw : (N, Cin, H, W) f32
    weights: (n_branch, 3, 3, Cin, K) f32   (HWIO layout per branch)
    biases : (n_branch, K) f32
    returns: (N, K, H, W) f32
    """
    N, Cin, H, W = x_nchw.shape
    n_branch = weights.shape[0]
    K = weights.shape[4]
    assert n_branch == len(dilations)

    Cp = _round_up(Cin, LANE)
    Kp = _round_up(K, LANE)

    # NCHW -> NHWC, zero-pad channels to lane width, bf16 for the MXU.
    x = jnp.transpose(x_nchw, (0, 2, 3, 1))
    x = jnp.pad(x, ((0, 0), (0, 0), (0, 0), (0, Cp - Cin))).astype(jnp.bfloat16)

    # Prune dead taps & merge shared-offset taps (static, decided at trace time).
    offsets, groups = _build_taps(dilations, H, W)
    n_taps = len(offsets)

    w_taps = jnp.zeros((n_taps, Cp, Kp), jnp.float32)
    for ti, grp in enumerate(groups):
        w_sum = jnp.zeros((Cin, K), jnp.float32)
        for (bi, kh, kw) in grp:
            w_sum = w_sum + weights[bi, kh, kw]
        w_taps = w_taps.at[ti, :Cin, :K].set(w_sum)
    w_taps = w_taps.astype(jnp.bfloat16)

    # Pre-summed branch biases (review: hoist out of kernel), lane-padded.
    b_sum = jnp.zeros((1, Kp), jnp.float32).at[0, :K].set(jnp.sum(biases, axis=0))

    kernel = functools.partial(_aspp_kernel, H=H, W=W, Kp=Kp,
                               offsets=tuple(offsets))

    out = pl.pallas_call(
        kernel,
        out_shape=jax.ShapeDtypeStruct((N, H, W, Kp), jnp.float32),
        grid_spec=pltpu.PrefetchScalarGridSpec(
            num_scalar_prefetch=0,
            grid=(N,),
            in_specs=[
                pl.BlockSpec((1, H, W, Cp), lambda n: (n, 0, 0, 0)),
                pl.BlockSpec((n_taps, Cp, Kp), lambda n: (0, 0, 0)),
                pl.BlockSpec((1, Kp), lambda n: (0, 0)),
            ],
            out_specs=pl.BlockSpec((1, H, W, Kp), lambda n: (n, 0, 0, 0)),
            scratch_shapes=[pltpu.VMEM((H, W, Kp), jnp.float32)],
        ),
        compiler_params=pltpu.CompilerParams(
            dimension_semantics=("parallel",)),
    )(x, w_taps, b_sum)

    # NHWC -> NCHW, drop lane padding on the class dim.
    return jnp.transpose(out[..., :K], (0, 3, 1, 2))


# --------------------------------------------------------------------------
# Pure-JAX reference (for correctness check only).
# --------------------------------------------------------------------------
def aspp_v2_reference(x_nchw, weights, biases, dilations):
    out = None
    for bi, d in enumerate(dilations):
        y = jax.lax.conv_general_dilated(
            x_nchw, weights[bi],
            window_strides=(1, 1),
            padding=((d, d), (d, d)),
            rhs_dilation=(d, d),
            dimension_numbers=("NCHW", "HWIO", "NCHW"))
        y = y + biases[bi][None, :, None, None]
        out = y if out is None else out + y
    return out


if __name__ == "__main__":
    key = jax.random.PRNGKey(0)
    kx, kw_, kb = jax.random.split(key, 3)

    N, Cin, H, W = 2, 4, 16, 16
    num_classes = 5
    dilations = (6, 12, 18, 24)

    x = jax.random.normal(kx, (N, Cin, H, W), jnp.float32)
    # Conv weights init ~ N(0, 0.01) as in the PyTorch module; biases kept small.
    weights = 0.01 * jax.random.normal(
        kw_, (len(dilations), 3, 3, Cin, num_classes), jnp.float32)
    biases = 0.1 * jax.random.normal(kb, (len(dilations), num_classes), jnp.float32)

    fwd = jax.jit(functools.partial(aspp_v2_forward, dilations=dilations))
    y = fwd(x, weights, biases)
    jax.block_until_ready(y)
    assert y.shape == (N, num_classes, H, W), y.shape

    y_ref = aspp_v2_reference(x, weights, biases, dilations)
    max_err = float(jnp.max(jnp.abs(y - y_ref)))
    assert max_err < 1e-2, f"max abs err {max_err}"

    print("KERNEL_OK")
</pallas_src>

<mosaic_0001>
module attributes {stable_mosaic.version = 11 : i64} {
  func.func @_aspp_kernel(%arg0: i32, %arg1: memref<1x16x16x128xbf16, #tpu.memory_space<vmem>>, %arg2: memref<17x128x128xbf16, #tpu.memory_space<vmem>>, %arg3: memref<1x128xf32, #tpu.memory_space<vmem>>, %arg4: memref<1x16x16x128xf32, #tpu.memory_space<vmem>>, %arg5: memref<16x16x128xf32, #tpu.memory_space<vmem>>) attributes {dimension_semantics = [#tpu.dimension_semantics<parallel>], iteration_bounds = array<i64: 2>, scalar_prefetch = 0 : i64, scratch_operands = 1 : i64, tpu.core_type = #tpu.core_type<tc>, window_params = [{transform_indices = @transform_0, window_bounds = array<i64: 1, 16, 16, 128>}, {pipeline_mode = #tpu.pipeline_mode<synchronous>, transform_indices = @transform_1, window_bounds = array<i64: 17, 128, 128>}, {pipeline_mode = #tpu.pipeline_mode<synchronous>, transform_indices = @transform_2, window_bounds = array<i64: 1, 128>}, {transform_indices = @transform_3, window_bounds = array<i64: 1, 16, 16, 128>}]} {
    %c0 = arith.constant 0 : index
    %c0_0 = arith.constant 0 : index
    %0 = vector.load %arg3[%c0, %c0_0] : memref<1x128xf32, #tpu.memory_space<vmem>>, vector<1x128xf32>
    %1 = vector.shape_cast %0 : vector<1x128xf32> to vector<1x1x128xf32>
    %2 = vector.broadcast %1 : vector<1x1x128xf32> to vector<16x16x128xf32>
    %c0_1 = arith.constant 0 : index
    %c0_2 = arith.constant 0 : index
    %c0_3 = arith.constant 0 : index
    %3 = vector.load %arg5[%c0_1, %c0_2, %c0_3] : memref<16x16x128xf32, #tpu.memory_space<vmem>>, vector<16x16x128xf32>
    tpu.vector_store %arg5[%c0_1, %c0_2, %c0_3], %2 {strides = array<i32>} : memref<16x16x128xf32, #tpu.memory_space<vmem>>, vector<16x16x128xf32>,
    %c0_4 = arith.constant 0 : index
    %c0_5 = arith.constant 0 : index
    %c0_6 = arith.constant 0 : index
    %c0_7 = arith.constant 0 : index
    %4 = vector.load %arg1[%c0_4, %c0_5, %c0_6, %c0_7] : memref<1x16x16x128xbf16, #tpu.memory_space<vmem>>, vector<1x16x16x128xbf16>
    %5 = vector.shape_cast %4 : vector<1x16x16x128xbf16> to vector<16x16x128xbf16>
    %6 = vector.extract_strided_slice %5 {offsets = [0, 0, 0], sizes = [4, 4, 128], strides = [1, 1, 1]} : vector<16x16x128xbf16> to vector<4x4x128xbf16>
    %7 = vector.shape_cast %6 : vector<4x4x128xbf16> to vector<16x128xbf16>
    %c0_8 = arith.constant 0 : index
    %c0_9 = arith.constant 0 : index
    %c0_10 = arith.constant 0 : index
    %8 = vector.load %arg2[%c0_8, %c0_9, %c0_10] : memref<17x128x128xbf16, #tpu.memory_space<vmem>>, vector<1x128x128xbf16>
    %9 = vector.shape_cast %8 : vector<1x128x128xbf16> to vector<128x128xbf16>
    %cst = arith.constant dense<0.000000e+00> : vector<16x128xf32>
    %10 = tpu.matmul %7, %9, %cst {dimension_numbers = #tpu.dot_dimension_numbers<[1], [0], [0], [1], [0, 0, 1, 1], [], []>} : vector<16x128xbf16>, vector<128x128xbf16>, vector<16x128xf32> -> vector<16x128xf32>
    %c12 = arith.constant 12 : index
    %c12_11 = arith.constant 12 : index
    %c0_12 = arith.constant 0 : index
    %11 = vector.load %arg5[%c12, %c12_11, %c0_12] : memref<16x16x128xf32, #tpu.memory_space<vmem>>, vector<4x4x128xf32>
    %12 = vector.shape_cast %10 : vector<16x128xf32> to vector<4x4x128xf32>
    %13 = arith.addf %11, %12 : vector<4x4x128xf32>
    %c12_13 = arith.constant 12 : index
    %c12_14 = arith.constant 12 : index
    %c0_15 = arith.constant 0 : index
    %14 = vector.load %arg5[%c12_13, %c12_14, %c0_15] : memref<16x16x128xf32, #tpu.memory_space<vmem>>, vector<4x4x128xf32>
    tpu.vector_store %arg5[%c12_13, %c12_14, %c0_15], %13 {strides = array<i32>} : memref<16x16x128xf32, #tpu.memory_space<vmem>>, vector<4x4x128xf32>,
    %15 = vector.extract_strided_slice %5 {offsets = [0, 0, 0], sizes = [4, 16, 128], strides = [1, 1, 1]} : vector<16x16x128xbf16> to vector<4x16x128xbf16>
    %16 = vector.shape_cast %15 : vector<4x16x128xbf16> to vector<64x128xbf16>
    %c1 = arith.constant 1 : index
    %c0_16 = arith.constant 0 : index
    %c0_17 = arith.constant 0 : index
    %17 = vector.load %arg2[%c1, %c0_16, %c0_17] : memref<17x128x128xbf16, #tpu.memory_space<vmem>>, vector<1x128x128xbf16>
    %18 = vector.shape_cast %17 : vector<1x128x128xbf16> to vector<128x128xbf16>
    %cst_18 = arith.constant dense<0.000000e+00> : vector<64x128xf32>
    %19 = tpu.matmul %16, %18, %cst_18 {dimension_numbers = #tpu.dot_dimension_numbers<[1], [0], [0], [1], [0, 0, 1, 1], [], []>} : vector<64x128xbf16>, vector<128x128xbf16>, vector<64x128xf32> -> vector<64x128xf32>
    %c12_19 = arith.constant 12 : index
    %c0_20 = arith.constant 0 : index
    %c0_21 = arith.constant 0 : index
    %20 = vector.load %arg5[%c12_19, %c0_20, %c0_21] : memref<16x16x128xf32, #tpu.memory_space<vmem>>, vector<4x16x128xf32>
    %21 = vector.shape_cast %19 : vector<64x128xf32> to vector<4x16x128xf32>
    %22 = arith.addf %20, %21 : vector<4x16x128xf32>
    %c12_22 = arith.constant 12 : index
    %c0_23 = arith.constant 0 : index
    %c0_24 = arith.constant 0 : index
    %23 = vector.load %arg5[%c12_22, %c0_23, %c0_24] : memref<16x16x128xf32, #tpu.memory_space<vmem>>, vector<4x16x128xf32>
    tpu.vector_store %arg5[%c12_22, %c0_23, %c0_24], %22 {strides = array<i32>} : memref<16x16x128xf32, #tpu.memory_space<vmem>>, vector<4x16x128xf32>,
    %24 = vector.extract_strided_slice %5 {offsets = [0, 12, 0], sizes = [4, 4, 128], strides = [1, 1, 1]} : vector<16x16x128xbf16> to vector<4x4x128xbf16>
    %25 = vector.shape_cast %24 : vector<4x4x128xbf16> to vector<16x128xbf16>
    %c2 = arith.constant 2 : index
    %c0_25 = arith.constant 0 : index
    %c0_26 = arith.constant 0 : index
    %26 = vector.load %arg2[%c2, %c0_25, %c0_26] : memref<17x128x128xbf16, #tpu.memory_space<vmem>>, vector<1x128x128xbf16>
    %27 = vector.shape_cast %26 : vector<1x128x128xbf16> to vector<128x128xbf16>
    %cst_27 = arith.constant dense<0.000000e+00> : vector<16x128xf32>
    %28 = tpu.matmul %25, %27, %cst_27 {dimension_numbers = #tpu.dot_dimension_numbers<[1], [0], [0], [1], [0, 0, 1, 1], [], []>} : vector<16x128xbf16>, vector<128x128xbf16>, vector<16x128xf32> -> vector<16x128xf32>
    %c12_28 = arith.constant 12 : index
    %c0_29 = arith.constant 0 : index
    %c0_30 = arith.constant 0 : index
    %29 = vector.load %arg5[%c12_28, %c0_29, %c0_30] : memref<16x16x128xf32, #tpu.memory_space<vmem>>, vector<4x4x128xf32>
    %30 = vector.shape_cast %28 : vector<16x128xf32> to vector<4x4x128xf32>
    %31 = arith.addf %29, %30 : vector<4x4x128xf32>
    %c12_31 = arith.constant 12 : index
    %c0_32 = arith.constant 0 : index
    %c0_33 = arith.constant 0 : index
    %32 = vector.load %arg5[%c12_31, %c0_32, %c0_33] : memref<16x16x128xf32, #tpu.memory_space<vmem>>, vector<4x4x128xf32>
    tpu.vector_store %arg5[%c12_31, %c0_32, %c0_33], %31 {strides = array<i32>} : memref<16x16x128xf32, #tpu.memory_space<vmem>>, vector<4x4x128xf32>,
    %33 = vector.extract_strided_slice %5 {offsets = [0, 0, 0], sizes = [10, 10, 128], strides = [1, 1, 1]} : vector<16x16x128xbf16> to vector<10x10x128xbf16>
    %34 = vector.shape_cast %33 : vector<10x10x128xbf16> to vector<100x128xbf16>
    %c3 = arith.constant 3 : index
    %c0_34 = arith.constant 0 : index
    %c0_35 = arith.constant 0 : index
    %35 = vector.load %arg2[%c3, %c0_34, %c0_35] : memref<17x128x128xbf16, #tpu.memory_space<vmem>>, vector<1x128x128xbf16>
    %36 = vector.shape_cast %35 : vector<1x128x128xbf16> to vector<128x128xbf16>
    %cst_36 = arith.constant dense<0.000000e+00> : vector<100x128xf32>
    %37 = tpu.matmul %34, %36, %cst_36 {dimension_numbers = #tpu.dot_dimension_numbers<[1], [0], [0], [1], [0, 0, 1, 1], [], []>} : vector<100x128xbf16>, vector<128x128xbf16>, vector<100x128xf32> -> vector<100x128xf32>
    %c6 = arith.constant 6 : index
    %c6_37 = arith.constant 6 : index
    %c0_38 = arith.constant 0 : index
    %38 = vector.load %arg5[%c6, %c6_37, %c0_38] : memref<16x16x128xf32, #tpu.memory_space<vmem>>, vector<10x10x128xf32>
    %39 = vector.shape_cast %37 : vector<100x128xf32> to vector<10x10x128xf32>
    %40 = arith.addf %38, %39 : vector<10x10x128xf32>
    %c6_39 = arith.constant 6 : index
    %c6_40 = arith.constant 6 : index
    %c0_41 = arith.constant 0 : index
    %41 = vector.load %arg5[%c6_39, %c6_40, %c0_41] : memref<16x16x128xf32, #tpu.memory_space<vmem>>, vector<10x10x128xf32>
    tpu.vector_store %arg5[%c6_39, %c6_40, %c0_41], %40 {strides = array<i32>} : memref<16x16x128xf32, #tpu.memory_space<vmem>>, vector<10x10x128xf32>,
    %42 = vector.extract_strided_slice %5 {offsets = [0, 0, 0], sizes = [10, 16, 128], strides = [1, 1, 1]} : vector<16x16x128xbf16> to vector<10x16x128xbf16>
    %43 = vector.shape_cast %42 : vector<10x16x128xbf16> to vector<160x128xbf16>
    %c4 = arith.constant 4 : index
    %c0_42 = arith.constant 0 : index
    %c0_43 = arith.constant 0 : index
    %44 = vector.load %arg2[%c4, %c0_42, %c0_43] : memref<17x128x128xbf16, #tpu.memory_space<vmem>>, vector<1x128x128xbf16>
    %45 = vector.shape_cast %44 : vector<1x128x128xbf16> to vector<128x128xbf16>
    %cst_44 = arith.constant dense<0.000000e+00> : vector<160x128xf32>
    %46 = tpu.matmul %43, %45, %cst_44 {dimension_numbers = #tpu.dot_dimension_numbers<[1], [0], [0], [1], [0, 0, 1, 1], [], []>} : vector<160x128xbf16>, vector<128x128xbf16>, vector<160x128xf32> -> vector<160x128xf32>
    %c6_45 = arith.constant 6 : index
    %c0_46 = arith.constant 0 : index
    %c0_47 = arith.constant 0 : index
    %47 = vector.load %arg5[%c6_45, %c0_46, %c0_47] : memref<16x16x128xf32, #tpu.memory_space<vmem>>, vector<10x16x128xf32>
    %48 = vector.shape_cast %46 : vector<160x128xf32> to vector<10x16x128xf32>
    %49 = arith.addf %47, %48 : vector<10x16x128xf32>
    %c6_48 = arith.constant 6 : index
    %c0_49 = arith.constant 0 : index
    %c0_50 = arith.constant 0 : index
    %50 = vector.load %arg5[%c6_48, %c0_49, %c0_50] : memref<16x16x128xf32, #tpu.memory_space<vmem>>, vector<10x16x128xf32>
    tpu.vector_store %arg5[%c6_48, %c0_49, %c0_50], %49 {strides = array<i32>} : memref<16x16x128xf32, #tpu.memory_space<vmem>>, vector<10x16x128xf32>,
    %51 = vector.extract_strided_slice %5 {offsets = [0, 6, 0], sizes = [10, 10, 128], strides = [1, 1, 1]} : vector<16x16x128xbf16> to vector<10x10x128xbf16>
    %52 = vector.shape_cast %51 : vector<10x10x128xbf16> to vector<100x128xbf16>
    %c5 = arith.constant 5 : index
    %c0_51 = arith.constant 0 : index
    %c0_52 = arith.constant 0 : index
    %53 = vector.load %arg2[%c5, %c0_51, %c0_52] : memref<17x128x128xbf16, #tpu.memory_space<vmem>>, vector<1x128x128xbf16>
    %54 = vector.shape_cast %53 : vector<1x128x128xbf16> to vector<128x128xbf16>
    %cst_53 = arith.constant dense<0.000000e+00> : vector<100x128xf32>
    %55 = tpu.matmul %52, %54, %cst_53 {dimension_numbers = #tpu.dot_dimension_numbers<[1], [0], [0], [1], [0, 0, 1, 1], [], []>} : vector<100x128xbf16>, vector<128x128xbf16>, vector<100x128xf32> -> vector<100x128xf32>
    %c6_54 = arith.constant 6 : index
    %c0_55 = arith.constant 0 : index
    %c0_56 = arith.constant 0 : index
    %56 = vector.load %arg5[%c6_54, %c0_55, %c0_56] : memref<16x16x128xf32, #tpu.memory_space<vmem>>, vector<10x10x128xf32>
    %57 = vector.shape_cast %55 : vector<100x128xf32> to vector<10x10x128xf32>
    %58 = arith.addf %56, %57 : vector<10x10x128xf32>
    %c6_57 = arith.constant 6 : index
    %c0_58 = arith.constant 0 : index
    %c0_59 = arith.constant 0 : index
    %59 = vector.load %arg5[%c6_57, %c0_58, %c0_59] : memref<16x16x128xf32, #tpu.memory_space<vmem>>, vector<10x10x128xf32>
    tpu.vector_store %arg5[%c6_57, %c0_58, %c0_59], %58 {strides = array<i32>} : memref<16x16x128xf32, #tpu.memory_space<vmem>>, vector<10x10x128xf32>,
    %60 = vector.extract_strided_slice %5 {offsets = [0, 0, 0], sizes = [16, 4, 128], strides = [1, 1, 1]} : vector<16x16x128xbf16> to vector<16x4x128xbf16>
    %61 = vector.shape_cast %60 : vector<16x4x128xbf16> to vector<64x128xbf16>
    %c6_60 = arith.constant 6 : index
    %c0_61 = arith.constant 0 : index
    %c0_62 = arith.constant 0 : index
    %62 = vector.load %arg2[%c6_60, %c0_61, %c0_62] : memref<17x128x128xbf16, #tpu.memory_space<vmem>>, vector<1x128x128xbf16>
    %63 = vector.shape_cast %62 : vector<1x128x128xbf16> to vector<128x128xbf16>
    %cst_63 = arith.constant dense<0.000000e+00> : vector<64x128xf32>
    %64 = tpu.matmul %61, %63, %cst_63 {dimension_numbers = #tpu.dot_dimension_numbers<[1], [0], [0], [1], [0, 0, 1, 1], [], []>} : vector<64x128xbf16>, vector<128x128xbf16>, vector<64x128xf32> -> vector<64x128xf32>
    %c0_64 = arith.constant 0 : index
    %c12_65 = arith.constant 12 : index
    %c0_66 = arith.constant 0 : index
    %65 = vector.load %arg5[%c0_64, %c12_65, %c0_66] : memref<16x16x128xf32, #tpu.memory_space<vmem>>, vector<16x4x128xf32>
    %66 = vector.shape_cast %64 : vector<64x128xf32> to vector<16x4x128xf32>
    %67 = arith.addf %65, %66 : vector<16x4x128xf32>
    %c0_67 = arith.constant 0 : index
    %c12_68 = arith.constant 12 : index
    %c0_69 = arith.constant 0 : index
    %68 = vector.load %arg5[%c0_67, %c12_68, %c0_69] : memref<16x16x128xf32, #tpu.memory_space<vmem>>, vector<16x4x128xf32>
    tpu.vector_store %arg5[%c0_67, %c12_68, %c0_69], %67 {strides = array<i32>} : memref<16x16x128xf32, #tpu.memory_space<vmem>>, vector<16x4x128xf32>,
    %69 = vector.extract_strided_slice %5 {offsets = [0, 0, 0], sizes = [16, 10, 128], strides = [1, 1, 1]} : vector<16x16x128xbf16> to vector<16x10x128xbf16>
    %70 = vector.shape_cast %69 : vector<16x10x128xbf16> to vector<160x128xbf16>
    %c7 = arith.constant 7 : index
    %c0_70 = arith.constant 0 : index
    %c0_71 = arith.constant 0 : index
    %71 = vector.load %arg2[%c7, %c0_70, %c0_71] : memref<17x128x128xbf16, #tpu.memory_space<vmem>>, vector<1x128x128xbf16>
    %72 = vector.shape_cast %71 : vector<1x128x128xbf16> to vector<128x128xbf16>
    %cst_72 = arith.constant dense<0.000000e+00> : vector<160x128xf32>
    %73 = tpu.matmul %70, %72, %cst_72 {dimension_numbers = #tpu.dot_dimension_numbers<[1], [0], [0], [1], [0, 0, 1, 1], [], []>} : vector<160x128xbf16>, vector<128x128xbf16>, vector<160x128xf32> -> vector<160x128xf32>
    %c0_73 = arith.constant 0 : index
    %c6_74 = arith.constant 6 : index
    %c0_75 = arith.constant 0 : index
    %74 = vector.load %arg5[%c0_73, %c6_74, %c0_75] : memref<16x16x128xf32, #tpu.memory_space<vmem>>, vector<16x10x128xf32>
    %75 = vector.shape_cast %73 : vector<160x128xf32> to vector<16x10x128xf32>
    %76 = arith.addf %74, %75 : vector<16x10x128xf32>
    %c0_76 = arith.constant 0 : index
    %c6_77 = arith.constant 6 : index
    %c0_78 = arith.constant 0 : index
    %77 = vector.load %arg5[%c0_76, %c6_77, %c0_78] : memref<16x16x128xf32, #tpu.memory_space<vmem>>, vector<16x10x128xf32>
    tpu.vector_store %arg5[%c0_76, %c6_77, %c0_78], %76 {strides = array<i32>} : memref<16x16x128xf32, #tpu.memory_space<vmem>>, vector<16x10x128xf32>,
    %78 = vector.shape_cast %5 : vector<16x16x128xbf16> to vector<256x128xbf16>
    %c8 = arith.constant 8 : index
    %c0_79 = arith.constant 0 : index
    %c0_80 = arith.constant 0 : index
    %79 = vector.load %arg2[%c8, %c0_79, %c0_80] : memref<17x128x128xbf16, #tpu.memory_space<vmem>>, vector<1x128x128xbf16>
    %80 = vector.shape_cast %79 : vector<1x128x128xbf16> to vector<128x128xbf16>
    %cst_81 = arith.constant dense<0.000000e+00> : vector<256x128xf32>
    %81 = tpu.matmul %78, %80, %cst_81 {dimension_numbers = #tpu.dot_dimension_numbers<[1], [0], [0], [1], [0, 0, 1, 1], [], []>} : vector<256x128xbf16>, vector<128x128xbf16>, vector<256x128xf32> -> vector<256x128xf32>
    %c0_82 = arith.constant 0 : index
    %c0_83 = arith.constant 0 : index
    %c0_84 = arith.constant 0 : index
    %82 = vector.load %arg5[%c0_82, %c0_83, %c0_84] : memref<16x16x128xf32, #tpu.memory_space<vmem>>, vector<16x16x128xf32>
    %83 = vector.shape_cast %81 : vector<256x128xf32> to vector<16x16x128xf32>
    %84 = arith.addf %82, %83 : vector<16x16x128xf32>
    %c0_85 = arith.constant 0 : index
    %c0_86 = arith.constant 0 : index
    %c0_87 = arith.constant 0 : index
    %85 = vector.load %arg5[%c0_85, %c0_86, %c0_87] : memref<16x16x128xf32, #tpu.memory_space<vmem>>, vector<16x16x128xf32>
    tpu.vector_store %arg5[%c0_85, %c0_86, %c0_87], %84 {strides = array<i32>} : memref<16x16x128xf32, #tpu.memory_space<vmem>>, vector<16x16x128xf32>,
    %86 = vector.extract_strided_slice %5 {offsets = [0, 6, 0], sizes = [16, 10, 128], strides = [1, 1, 1]} : vector<16x16x128xbf16> to vector<16x10x128xbf16>
    %87 = vector.shape_cast %86 : vector<16x10x128xbf16> to vector<160x128xbf16>
    %c9 = arith.constant 9 : index
    %c0_88 = arith.constant 0 : index
    %c0_89 = arith.constant 0 : index
    %88 = vector.load %arg2[%c9, %c0_88, %c0_89] : memref<17x128x128xbf16, #tpu.memory_space<vmem>>, vector<1x128x128xbf16>
    %89 = vector.shape_cast %88 : vector<1x128x128xbf16> to vector<128x128xbf16>
    %cst_90 = arith.constant dense<0.000000e+00> : vector<160x128xf32>
    %90 = tpu.matmul %87, %89, %cst_90 {dimension_numbers = #tpu.dot_dimension_numbers<[1], [0], [0], [1], [0, 0, 1, 1], [], []>} : vector<160x128xbf16>, vector<128x128xbf16>, vector<160x128xf32> -> vector<160x128xf32>
    %c0_91 = arith.constant 0 : index
    %c0_92 = arith.constant 0 : index
    %c0_93 = arith.constant 0 : index
    %91 = vector.load %arg5[%c0_91, %c0_92, %c0_93] : memref<16x16x128xf32, #tpu.memory_space<vmem>>, vector<16x10x128xf32>
    %92 = vector.shape_cast %90 : vector<160x128xf32> to vector<16x10x128xf32>
    %93 = arith.addf %91, %92 : vector<16x10x128xf32>
    %c0_94 = arith.constant 0 : index
    %c0_95 = arith.constant 0 : index
    %c0_96 = arith.constant 0 : index
    %94 = vector.load %arg5[%c0_94, %c0_95, %c0_96] : memref<16x16x128xf32, #tpu.memory_space<vmem>>, vector<16x10x128xf32>
    tpu.vector_store %arg5[%c0_94, %c0_95, %c0_96], %93 {strides = array<i32>} : memref<16x16x128xf32, #tpu.memory_space<vmem>>, vector<16x10x128xf32>,
    %95 = vector.extract_strided_slice %5 {offsets = [0, 12, 0], sizes = [16, 4, 128], strides = [1, 1, 1]} : vector<16x16x128xbf16> to vector<16x4x128xbf16>
    %96 = vector.shape_cast %95 : vector<16x4x128xbf16> to vector<64x128xbf16>
    %c10 = arith.constant 10 : index
    %c0_97 = arith.constant 0 : index
    %c0_98 = arith.constant 0 : index
    %97 = vector.load %arg2[%c10, %c0_97, %c0_98] : memref<17x128x128xbf16, #tpu.memory_space<vmem>>, vector<1x128x128xbf16>
    %98 = vector.shape_cast %97 : vector<1x128x128xbf16> to vector<128x128xbf16>
    %cst_99 = arith.constant dense<0.000000e+00> : vector<64x128xf32>
    %99 = tpu.matmul %96, %98, %cst_99 {dimension_numbers = #tpu.dot_dimension_numbers<[1], [0], [0], [1], [0, 0, 1, 1], [], []>} : vector<64x128xbf16>, vector<128x128xbf16>, vector<64x128xf32> -> vector<64x128xf32>
    %c0_100 = arith.constant 0 : index
    %c0_101 = arith.constant 0 : index
    %c0_102 = arith.constant 0 : index
    %100 = vector.load %arg5[%c0_100, %c0_101, %c0_102] : memref<16x16x128xf32, #tpu.memory_space<vmem>>, vector<16x4x128xf32>
    %101 = vector.shape_cast %99 : vector<64x128xf32> to vector<16x4x128xf32>
    %102 = arith.addf %100, %101 : vector<16x4x128xf32>
    %c0_103 = arith.constant 0 : index
    %c0_104 = arith.constant 0 : index
    %c0_105 = arith.constant 0 : index
    %103 = vector.load %arg5[%c0_103, %c0_104, %c0_105] : memref<16x16x128xf32, #tpu.memory_space<vmem>>, vector<16x4x128xf32>
    tpu.vector_store %arg5[%c0_103, %c0_104, %c0_105], %102 {strides = array<i32>} : memref<16x16x128xf32, #tpu.memory_space<vmem>>, vector<16x4x128xf32>,
    %104 = vector.extract_strided_slice %5 {offsets = [6, 0, 0], sizes = [10, 10, 128], strides = [1, 1, 1]} : vector<16x16x128xbf16> to vector<10x10x128xbf16>
    %105 = vector.shape_cast %104 : vector<10x10x128xbf16> to vector<100x128xbf16>
    %c11 = arith.constant 11 : index
    %c0_106 = arith.constant 0 : index
    %c0_107 = arith.constant 0 : index
    %106 = vector.load %arg2[%c11, %c0_106, %c0_107] : memref<17x128x128xbf16, #tpu.memory_space<vmem>>, vector<1x128x128xbf16>
    %107 = vector.shape_cast %106 : vector<1x128x128xbf16> to vector<128x128xbf16>
    %cst_108 = arith.constant dense<0.000000e+00> : vector<100x128xf32>
    %108 = tpu.matmul %105, %107, %cst_108 {dimension_numbers = #tpu.dot_dimension_numbers<[1], [0], [0], [1], [0, 0, 1, 1], [], []>} : vector<100x128xbf16>, vector<128x128xbf16>, vector<100x128xf32> -> vector<100x128xf32>
    %c0_109 = arith.constant 0 : index
    %c6_110 = arith.constant 6 : index
    %c0_111 = arith.constant 0 : index
    %109 = vector.load %arg5[%c0_109, %c6_110, %c0_111] : memref<16x16x128xf32, #tpu.memory_space<vmem>>, vector<10x10x128xf32>
    %110 = vector.shape_cast %108 : vector<100x128xf32> to vector<10x10x128xf32>
    %111 = arith.addf %109, %110 : vector<10x10x128xf32>
    %c0_112 = arith.constant 0 : index
    %c6_113 = arith.constant 6 : index
    %c0_114 = arith.constant 0 : index
    %112 = vector.load %arg5[%c0_112, %c6_113, %c0_114] : memref<16x16x128xf32, #tpu.memory_space<vmem>>, vector<10x10x128xf32>
    tpu.vector_store %arg5[%c0_112, %c6_113, %c0_114], %111 {strides = array<i32>} : memref<16x16x128xf32, #tpu.memory_space<vmem>>, vector<10x10x128xf32>,
    %113 = vector.extract_strided_slice %5 {offsets = [6, 0, 0], sizes = [10, 16, 128], strides = [1, 1, 1]} : vector<16x16x128xbf16> to vector<10x16x128xbf16>
    %114 = vector.shape_cast %113 : vector<10x16x128xbf16> to vector<160x128xbf16>
    %c12_115 = arith.constant 12 : index
    %c0_116 = arith.constant 0 : index
    %c0_117 = arith.constant 0 : index
    %115 = vector.load %arg2[%c12_115, %c0_116, %c0_117] : memref<17x128x128xbf16, #tpu.memory_space<vmem>>, vector<1x128x128xbf16>
    %116 = vector.shape_cast %115 : vector<1x128x128xbf16> to vector<128x128xbf16>
    %cst_118 = arith.constant dense<0.000000e+00> : vector<160x128xf32>
    %117 = tpu.matmul %114, %116, %cst_118 {dimension_numbers = #tpu.dot_dimension_numbers<[1], [0], [0], [1], [0, 0, 1, 1], [], []>} : vector<160x128xbf16>, vector<128x128xbf16>, vector<160x128xf32> -> vector<160x128xf32>
    %c0_119 = arith.constant 0 : index
    %c0_120 = arith.constant 0 : index
    %c0_121 = arith.constant 0 : index
    %118 = vector.load %arg5[%c0_119, %c0_120, %c0_121] : memref<16x16x128xf32, #tpu.memory_space<vmem>>, vector<10x16x128xf32>
    %119 = vector.shape_cast %117 : vector<160x128xf32> to vector<10x16x128xf32>
    %120 = arith.addf %118, %119 : vector<10x16x128xf32>
    %c0_122 = arith.constant 0 : index
    %c0_123 = arith.constant 0 : index
    %c0_124 = arith.constant 0 : index
    %121 = vector.load %arg5[%c0_122, %c0_123, %c0_124] : memref<16x16x128xf32, #tpu.memory_space<vmem>>, vector<10x16x128xf32>
    tpu.vector_store %arg5[%c0_122, %c0_123, %c0_124], %120 {strides = array<i32>} : memref<16x16x128xf32, #tpu.memory_space<vmem>>, vector<10x16x128xf32>,
    %122 = vector.extract_strided_slice %5 {offsets = [6, 6, 0], sizes = [10, 10, 128], strides = [1, 1, 1]} : vector<16x16x128xbf16> to vector<10x10x128xbf16>
    %123 = vector.shape_cast %122 : vector<10x10x128xbf16> to vector<100x128xbf16>
    %c13 = arith.constant 13 : index
    %c0_125 = arith.constant 0 : index
    %c0_126 = arith.constant 0 : index
    %124 = vector.load %arg2[%c13, %c0_125, %c0_126] : memref<17x128x128xbf16, #tpu.memory_space<vmem>>, vector<1x128x128xbf16>
    %125 = vector.shape_cast %124 : vector<1x128x128xbf16> to vector<128x128xbf16>
    %cst_127 = arith.constant dense<0.000000e+00> : vector<100x128xf32>
    %126 = tpu.matmul %123, %125, %cst_127 {dimension_numbers = #tpu.dot_dimension_numbers<[1], [0], [0], [1], [0, 0, 1, 1], [], []>} : vector<100x128xbf16>, vector<128x128xbf16>, vector<100x128xf32> -> vector<100x128xf32>
    %c0_128 = arith.constant 0 : index
    %c0_129 = arith.constant 0 : index
    %c0_130 = arith.constant 0 : index
    %127 = vector.load %arg5[%c0_128, %c0_129, %c0_130] : memref<16x16x128xf32, #tpu.memory_space<vmem>>, vector<10x10x128xf32>
    %128 = vector.shape_cast %126 : vector<100x128xf32> to vector<10x10x128xf32>
    %129 = arith.addf %127, %128 : vector<10x10x128xf32>
    %c0_131 = arith.constant 0 : index
    %c0_132 = arith.constant 0 : index
    %c0_133 = arith.constant 0 : index
    %130 = vector.load %arg5[%c0_131, %c0_132, %c0_133] : memref<16x16x128xf32, #tpu.memory_space<vmem>>, vector<10x10x128xf32>
    tpu.vector_store %arg5[%c0_131, %c0_132, %c0_133], %129 {strides = array<i32>} : memref<16x16x128xf32, #tpu.memory_space<vmem>>, vector<10x10x128xf32>,
    %131 = vector.extract_strided_slice %5 {offsets = [12, 0, 0], sizes = [4, 4, 128], strides = [1, 1, 1]} : vector<16x16x128xbf16> to vector<4x4x128xbf16>
    %132 = vector.shape_cast %131 : vector<4x4x128xbf16> to vector<16x128xbf16>
    %c14 = arith.constant 14 : index
    %c0_134 = arith.constant 0 : index
    %c0_135 = arith.constant 0 : index
    %133 = vector.load %arg2[%c14, %c0_134, %c0_135] : memref<17x128x128xbf16, #tpu.memory_space<vmem>>, vector<1x128x128xbf16>
    %134 = vector.shape_cast %133 : vector<1x128x128xbf16> to vector<128x128xbf16>
    %cst_136 = arith.constant dense<0.000000e+00> : vector<16x128xf32>
    %135 = tpu.matmul %132, %134, %cst_136 {dimension_numbers = #tpu.dot_dimension_numbers<[1], [0], [0], [1], [0, 0, 1, 1], [], []>} : vector<16x128xbf16>, vector<128x128xbf16>, vector<16x128xf32> -> vector<16x128xf32>
    %c0_137 = arith.constant 0 : index
    %c12_138 = arith.constant 12 : index
    %c0_139 = arith.constant 0 : index
    %136 = vector.load %arg5[%c0_137, %c12_138, %c0_139] : memref<16x16x128xf32, #tpu.memory_space<vmem>>, vector<4x4x128xf32>
    %137 = vector.shape_cast %135 : vector<16x128xf32> to vector<4x4x128xf32>
    %138 = arith.addf %136, %137 : vector<4x4x128xf32>
    %c0_140 = arith.constant 0 : index
    %c12_141 = arith.constant 12 : index
    %c0_142 = arith.constant 0 : index
    %139 = vector.load %arg5[%c0_140, %c12_141, %c0_142] : memref<16x16x128xf32, #tpu.memory_space<vmem>>, vector<4x4x128xf32>
    tpu.vector_store %arg5[%c0_140, %c12_141, %c0_142], %138 {strides = array<i32>} : memref<16x16x128xf32, #tpu.memory_space<vmem>>, vector<4x4x128xf32>,
    %140 = vector.extract_strided_slice %5 {offsets = [12, 0, 0], sizes = [4, 16, 128], strides = [1, 1, 1]} : vector<16x16x128xbf16> to vector<4x16x128xbf16>
    %141 = vector.shape_cast %140 : vector<4x16x128xbf16> to vector<64x128xbf16>
    %c15 = arith.constant 15 : index
    %c0_143 = arith.constant 0 : index
    %c0_144 = arith.constant 0 : index
    %142 = vector.load %arg2[%c15, %c0_143, %c0_144] : memref<17x128x128xbf16, #tpu.memory_space<vmem>>, vector<1x128x128xbf16>
    %143 = vector.shape_cast %142 : vector<1x128x128xbf16> to vector<128x128xbf16>
    %cst_145 = arith.constant dense<0.000000e+00> : vector<64x128xf32>
    %144 = tpu.matmul %141, %143, %cst_145 {dimension_numbers = #tpu.dot_dimension_numbers<[1], [0], [0], [1], [0, 0, 1, 1], [], []>} : vector<64x128xbf16>, vector<128x128xbf16>, vector<64x128xf32> -> vector<64x128xf32>
    %c0_146 = arith.constant 0 : index
    %c0_147 = arith.constant 0 : index
    %c0_148 = arith.constant 0 : index
    %145 = vector.load %arg5[%c0_146, %c0_147, %c0_148] : memref<16x16x128xf32, #tpu.memory_space<vmem>>, vector<4x16x128xf32>
    %146 = vector.shape_cast %144 : vector<64x128xf32> to vector<4x16x128xf32>
    %147 = arith.addf %145, %146 : vector<4x16x128xf32>
    %c0_149 = arith.constant 0 : index
    %c0_150 = arith.constant 0 : index
    %c0_151 = arith.constant 0 : index
    %148 = vector.load %arg5[%c0_149, %c0_150, %c0_151] : memref<16x16x128xf32, #tpu.memory_space<vmem>>, vector<4x16x128xf32>
    tpu.vector_store %arg5[%c0_149, %c0_150, %c0_151], %147 {strides = array<i32>} : memref<16x16x128xf32, #tpu.memory_space<vmem>>, vector<4x16x128xf32>,
    %149 = vector.extract_strided_slice %5 {offsets = [12, 12, 0], sizes = [4, 4, 128], strides = [1, 1, 1]} : vector<16x16x128xbf16> to vector<4x4x128xbf16>
    %150 = vector.shape_cast %149 : vector<4x4x128xbf16> to vector<16x128xbf16>
    %c16 = arith.constant 16 : index
    %c0_152 = arith.constant 0 : index
    %c0_153 = arith.constant 0 : index
    %151 = vector.load %arg2[%c16, %c0_152, %c0_153] : memref<17x128x128xbf16, #tpu.memory_space<vmem>>, vector<1x128x128xbf16>
    %152 = vector.shape_cast %151 : vector<1x128x128xbf16> to vector<128x128xbf16>
    %cst_154 = arith.constant dense<0.000000e+00> : vector<16x128xf32>
    %153 = tpu.matmul %150, %152, %cst_154 {dimension_numbers = #tpu.dot_dimension_numbers<[1], [0], [0], [1], [0, 0, 1, 1], [], []>} : vector<16x128xbf16>, vector<128x128xbf16>, vector<16x128xf32> -> vector<16x128xf32>
    %c0_155 = arith.constant 0 : index
    %c0_156 = arith.constant 0 : index
    %c0_157 = arith.constant 0 : index
    %154 = vector.load %arg5[%c0_155, %c0_156, %c0_157] : memref<16x16x128xf32, #tpu.memory_space<vmem>>, vector<4x4x128xf32>
    %155 = vector.shape_cast %153 : vector<16x128xf32> to vector<4x4x128xf32>
    %156 = arith.addf %154, %155 : vector<4x4x128xf32>
    %c0_158 = arith.constant 0 : index
    %c0_159 = arith.constant 0 : index
    %c0_160 = arith.constant 0 : index
    %157 = vector.load %arg5[%c0_158, %c0_159, %c0_160] : memref<16x16x128xf32, #tpu.memory_space<vmem>>, vector<4x4x128xf32>
    tpu.vector_store %arg5[%c0_158, %c0_159, %c0_160], %156 {strides = array<i32>} : memref<16x16x128xf32, #tpu.memory_space<vmem>>, vector<4x4x128xf32>,
    %c0_161 = arith.constant 0 : index
    %c0_162 = arith.constant 0 : index
    %c0_163 = arith.constant 0 : index
    %158 = vector.load %arg5[%c0_161, %c0_162, %c0_163] : memref<16x16x128xf32, #tpu.memory_space<vmem>>, vector<16x16x128xf32>
    %c0_164 = arith.constant 0 : index
    %c0_165 = arith.constant 0 : index
    %c0_166 = arith.constant 0 : index
    %c0_167 = arith.constant 0 : index
    %159 = vector.load %arg4[%c0_164, %c0_165, %c0_166, %c0_167] : memref<1x16x16x128xf32, #tpu.memory_space<vmem>>, vector<1x16x16x128xf32>
    %160 = vector.shape_cast %159 : vector<1x16x16x128xf32> to vector<16x16x128xf32>
    %161 = vector.shape_cast %158 : vector<16x16x128xf32> to vector<1x16x16x128xf32>
    tpu.vector_store %arg4[%c0_164, %c0_165, %c0_166, %c0_167], %161 {strides = array<i32>} : memref<1x16x16x128xf32, #tpu.memory_space<vmem>>, vector<1x16x16x128xf32>,
    return
  }
  func.func @transform_0(%arg0: i32) -> (i32, i32, i32, i32) {
    %c0_i32 = arith.constant 0 : i32
    %c0_i32_0 = arith.constant 0 : i32
    %c0_i32_1 = arith.constant 0 : i32
    %c0_i32_2 = arith.constant 0 : i32
    return %arg0, %c0_i32, %c0_i32_0, %c0_i32_1 : i32, i32, i32, i32
  }
  func.func @transform_1(%arg0: i32) -> (i32, i32, i32) {
    %c0_i32 = arith.constant 0 : i32
    %c0_i32_0 = arith.constant 0 : i32
    %c0_i32_1 = arith.constant 0 : i32
    %c0_i32_2 = arith.constant 0 : i32
    return %c0_i32, %c0_i32_0, %c0_i32_1 : i32, i32, i32
  }
  func.func @transform_2(%arg0: i32) -> (i32, i32) {
    %c0_i32 = arith.constant 0 : i32
    %c0_i32_0 = arith.constant 0 : i32
    %c0_i32_1 = arith.constant 0 : i32
    return %c0_i32, %c0_i32_0 : i32, i32
  }
  func.func @transform_3(%arg0: i32) -> (i32, i32, i32, i32) {
    %c0_i32 = arith.constant 0 : i32
    %c0_i32_0 = arith.constant 0 : i32
    %c0_i32_1 = arith.constant 0 : i32
    %c0_i32_2 = arith.constant 0 : i32
    return %arg0, %c0_i32, %c0_i32_0, %c0_i32_1 : i32, i32, i32, i32
  }
}

</mosaic_0001>

<llo_original>
// kernel: aspp_v2_forward.1
$region0: #{aspp_v2_forward.1}
  #allocation0 [shape = 'u32[]', space=smem, size = 0x4, offset = 0x4, fixed_abs, tag = 'smem constant byte address 0x4 - core index']
  #allocation1 [shape = 'u32[144,128]{1,0:T(1,128)}', space=vmem, size = 0x12000, scoped, tag = 'internal scratch']
  #allocation2 [shape = 'f32[16,16,128]{2,1,0:T(8,128)}', space=vmem, size = 0x20000, scoped, tag = 'scratch operand']
  %s0 = inlined_call_operand.vmem [shape: bf16[2,16,16,128], index: 0, kind: input, shape index: {}]
  %s1 = inlined_call_operand.vmem [shape: bf16[17,128,128], index: 1, kind: input, shape index: {}]
  %s2 = inlined_call_operand.vmem [shape: f32[1,128], index: 2, kind: input, shape index: {}]
  %s3 = inlined_call_operand.vmem [shape: f32[2,16,16,128], index: 3, kind: output, shape index: {}]
  %s4 = sld [smem:[#allocation0]]
  $region45: #{aspp_v2_forward.1} parent=0
    _
  %s6 = ssub.s32 1, %s4
  %s7 = scalar_select 0, %s6, %s4
  loop: start=0, step=1, limit=4
  $region2: #{aspp_v2_forward.1} parent=0 // loop_pre_header
    _
  $region3: #{aspp_v2_forward.1} parent=0 // loop_header
    %s9 = sphi 0, %s13
    %p10 = scmp.ge.s32.totalorder %s9, 4
    %s19 = sphi 0, %s21
    %s22 = sphi 0, %s19
    %s23 = sphi 0, %s22
    %s39 = sphi 0, %s23
    %s43 = sphi 0, %s43
    %s45 = sphi 0, %s43
    %s46 = sphi 0, %s45
    %s60 = sphi 0, %s46
    %s64 = sphi 0, %s64
    %s66 = sphi 0, %s64
    %s67 = sphi 0, %s66
    %s81 = sphi 0, %s67
    %s87 = sphi 0, %s89
    %s90 = sphi 0, %s87
    %s91 = sphi 0, %s90
    %s107 = sphi 0, %s91
  $region4: #{aspp_v2_forward.1} parent=0 // loop_header_branch
    %12 = sbr.rel (%p10) target = $region8
  $region5: #{aspp_v2_forward.1} parent=0 // loop_body
    %s14 = ssub.s32 %s9, 1
    %s15 = ssub.s32 %s9, 2
    %s16 = sadd.s32 %s9, 1
    %s17 = ssub.s32 %s9, %s16
    %p18 = scmp.eq.s32.totalorder %s17, 0
    %s20 = sadd.s32 %s19, 1
    %s21 = scalar_select %p18, %s19, %s20
    %p24 = pneg %p18
    %p25 = scmp.eq.s32.totalorder %s9, 1
    %p26 = por %p24, %p25
    %p27 = scmp.ne.s32.totalorder %s19, %s22
    %p28 = scmp.eq.s32.totalorder %s9, 0
    %p29 = por %p27, %p28
    %p30 = scmp.ne.s32.totalorder %s19, %s22
    %p31 = scmp.eq.s32.totalorder %s14, 1
    %p32 = por %p30, %p31
    %p33 = scmp.ne.s32.totalorder %s22, %s23
    %p34 = scmp.eq.s32.totalorder %s14, 0
    %p35 = por %p33, %p34
    %p36 = scmp.ne.s32.totalorder %s22, %s23
    %p37 = scmp.eq.s32.totalorder %s15, 1
    %p38 = por %p36, %p37
    %p40 = scmp.ne.s32.totalorder %s23, %s39
    %p41 = scmp.eq.s32.totalorder %s15, 0
    %p42 = por %p40, %p41
    %s44 = sadd.s32 %s43, 1
    %p47 = scmp.eq.s32.totalorder %s9, 1
    %p48 = scmp.ne.s32.totalorder %s43, %s45
    %p49 = scmp.eq.s32.totalorder %s9, 0
    %p50 = por %p48, %p49
    %p51 = scmp.ne.s32.totalorder %s43, %s45
    %p52 = scmp.eq.s32.totalorder %s14, 1
    %p53 = por %p51, %p52
    %p54 = scmp.ne.s32.totalorder %s45, %s46
    %p55 = scmp.eq.s32.totalorder %s14, 0
    %p56 = por %p54, %p55
    %p57 = scmp.ne.s32.totalorder %s45, %s46
    %p58 = scmp.eq.s32.totalorder %s15, 1
    %p59 = por %p57, %p58
    %p61 = scmp.ne.s32.totalorder %s46, %s60
    %p62 = scmp.eq.s32.totalorder %s15, 0
    %p63 = por %p61, %p62
    %s65 = sadd.s32 %s64, 1
    %p68 = scmp.eq.s32.totalorder %s9, 1
    %p69 = scmp.ne.s32.totalorder %s64, %s66
    %p70 = scmp.eq.s32.totalorder %s9, 0
    %p71 = por %p69, %p70
    %p72 = scmp.ne.s32.totalorder %s64, %s66
    %p73 = scmp.eq.s32.totalorder %s14, 1
    %p74 = por %p72, %p73
    %p75 = scmp.ne.s32.totalorder %s66, %s67
    %p76 = scmp.eq.s32.totalorder %s14, 0
    %p77 = por %p75, %p76
    %p78 = scmp.ne.s32.totalorder %s66, %s67
    %p79 = scmp.eq.s32.totalorder %s15, 1
    %p80 = por %p78, %p79
    %p82 = scmp.ne.s32.totalorder %s67, %s81
    %p83 = scmp.eq.s32.totalorder %s15, 0
    %p84 = por %p82, %p83
    %s85 = ssub.s32 %s9, %s16
    %p86 = scmp.eq.s32.totalorder %s85, 0
    %s88 = sadd.s32 %s87, 1
    %s89 = scalar_select %p86, %s87, %s88
    %p92 = pneg %p86
    %p93 = scmp.eq.s32.totalorder %s9, 1
    %p94 = por %p92, %p93
    %p95 = scmp.ne.s32.totalorder %s87, %s90
    %p96 = scmp.eq.s32.totalorder %s9, 0
    %p97 = por %p95, %p96
    %p98 = scmp.ne.s32.totalorder %s87, %s90
    %p99 = scmp.eq.s32.totalorder %s14, 1
    %p100 = por %p98, %p99
    %p101 = scmp.ne.s32.totalorder %s90, %s91
    %p102 = scmp.eq.s32.totalorder %s14, 0
    %p103 = por %p101, %p102
    %p104 = scmp.ne.s32.totalorder %s90, %s91
    %p105 = scmp.eq.s32.totalorder %s15, 1
    %p106 = por %p104, %p105
    %p108 = scmp.ne.s32.totalorder %s91, %s107
    %p109 = scmp.eq.s32.totalorder %s15, 0
    %p110 = por %p108, %p109
    %p111 = scmp.le.s32.totalorder 1, %s9
    %p112 = scmp.lt.s32.totalorder %s9, 3
    %p113 = pnand %p111, %p112
    %p114 = pneg %p113
    // Predicated region
    $region9: #{aspp_v2_forward.1} parent=5 // pred_check
      _
    $region10: #{aspp_v2_forward.1} parent=5 // pred_check_branch
      %116 = sbr.rel (%p113) target = $region12
    $region11: #{aspp_v2_forward.1} parent=5 // pred_region
      %s117 = ssub.s32 %s9, 1
      // Predicated region
      $region13: #{aspp_v2_forward.1} parent=11 // pred_check
        %p118 = pneg %p56
      $region14: #{aspp_v2_forward.1} parent=11 // pred_check_branch
        %120 = sbr.rel (%p118) target = $region16
      $region15: #{aspp_v2_forward.1} parent=11 // pred_region
        _
      $region16: #{aspp_v2_forward.1} parent=11 // pred_fallthru
        _
      // Predicated region
      $region17: #{aspp_v2_forward.1} parent=11 // pred_check
        %p121 = pneg %p77
      $region18: #{aspp_v2_forward.1} parent=11 // pred_check_branch
        %123 = sbr.rel (%p121) target = $region20
      $region19: #{aspp_v2_forward.1} parent=11 // pred_region
        _
      $region20: #{aspp_v2_forward.1} parent=11 // pred_fallthru
        _
    $region12: #{aspp_v2_forward.1} parent=5 // pred_fallthru
      _
    %p124 = scmp.lt.s32.totalorder %s9, 2
    // Predicated region
    $region21: #{aspp_v2_forward.1} parent=5 // pred_check
      %p125 = pneg %p124
    $region22: #{aspp_v2_forward.1} parent=5 // pred_check_branch
      %127 = sbr.rel (%p125) target = $region24
    $region23: #{aspp_v2_forward.1} parent=5 // pred_region
      // Predicated region
      $region25: #{aspp_v2_forward.1} parent=23 // pred_check
        %p128 = pneg %p29
      $region26: #{aspp_v2_forward.1} parent=23 // pred_check_branch
        %130 = sbr.rel (%p128) target = $region28
      $region27: #{aspp_v2_forward.1} parent=23 // pred_region
        %p131 = scmp.lt.s32.totalorder %s9, 1
        %s132 = scalar_select %p131, %s9, 1
        %s133 = smul.addr %s132, 32
        %s134 = smul.addr %s133, 4
        %s135 = scalar_lea.vmem %s0, %s134
      $region28: #{aspp_v2_forward.1} parent=23 // pred_fallthru
        _
    $region24: #{aspp_v2_forward.1} parent=5 // pred_fallthru
      _
    %p136 = scmp.le.s32.totalorder 1, %s9
    %p137 = scmp.lt.s32.totalorder %s9, 3
    %p138 = pnand %p136, %p137
    %p139 = pneg %p138
    // Predicated region
    $region29: #{aspp_v2_forward.1} parent=5 // pred_check
      _
    $region30: #{aspp_v2_forward.1} parent=5 // pred_check_branch
      %141 = sbr.rel (%p138) target = $region32
    $region31: #{aspp_v2_forward.1} parent=5 // pred_region
      %s142 = ssub.s32 %s9, 1
      %p143 = scmp.lt.s32.totalorder %s14, 1
      %s144 = scalar_select %p143, %s14, 1
      %s145 = smul.addr %s144, 32
      %s146 = smul.addr %s145, 4
      %s147 = scalar_lea.vmem %s0, %s146
      %p148 = pneg %p35
      %p149 = pneg %p32
      %p150 = pneg %p56
      %p151 = pneg %p53
      %p152 = pneg %p77
      %p153 = pneg %p74
      %p154 = pneg %p103
      %p155 = pneg %p100
      %p156 = scmp.lt.s32.totalorder %s14, 1
      %s157 = scalar_select %p156, %s14, 1
      %s158 = smul.addr %s157, 32
      %s159 = smul.addr %s158, 8
      %s160 = scalar_lea.vmem %s3, %s159
      %p161 = scmp.lt.s32.totalorder %s14, 1
      %s162 = scalar_select %p161, %s14, 1
      %s163 = smul.addr %s162, 32
      %s164 = smul.addr %s163, 4
      %s165 = scalar_lea.vmem %s0, %s164
      %p166 = scmp.lt.s32.totalorder %s14, 1
      %s167 = scalar_select %p166, %s14, 1
      %s168 = smul.addr %s167, 32
      %s169 = smul.addr %s168, 8
      %s170 = scalar_lea.vmem %s3, %s169
      %v172 = vld [vmem:[%s2] sm:$0x1]
      %v174 = vlaneseq
      %v175 = vshrl.u32 %v174, 7
      %v176 = vsub.s32 0, %v175
      %v177 = vrot.slane %v172, %v176
      %179 = vst [vmem:[#allocation2] sm:$0xff] %v177
      %180 = vst [vmem:[#allocation2 + $0x8] sm:$0xff] %v177
      %181 = vst [vmem:[#allocation2 + $0x10] sm:$0xff] %v177
      %182 = vst [vmem:[#allocation2 + $0x18] sm:$0xff] %v177
      %183 = vst [vmem:[#allocation2 + $0x20] sm:$0xff] %v177
      %184 = vst [vmem:[#allocation2 + $0x28] sm:$0xff] %v177
      %185 = vst [vmem:[#allocation2 + $0x30] sm:$0xff] %v177
      %186 = vst [vmem:[#allocation2 + $0x38] sm:$0xff] %v177
      %187 = vst [vmem:[#allocation2 + $0x40] sm:$0xff] %v177
      %188 = vst [vmem:[#allocation2 + $0x48] sm:$0xff] %v177
      %189 = vst [vmem:[#allocation2 + $0x50] sm:$0xff] %v177
      %190 = vst [vmem:[#allocation2 + $0x58] sm:$0xff] %v177
      %191 = vst [vmem:[#allocation2 + $0x60] sm:$0xff] %v177
      %192 = vst [vmem:[#allocation2 + $0x68] sm:$0xff] %v177
      %193 = vst [vmem:[#allocation2 + $0x70] sm:$0xff] %v177
      %194 = vst [vmem:[#allocation2 + $0x78] sm:$0xff] %v177
      %195 = vst [vmem:[#allocation2 + $0x80] sm:$0xff] %v177
      %196 = vst [vmem:[#allocation2 + $0x88] sm:$0xff] %v177
      %197 = vst [vmem:[#allocation2 + $0x90] sm:$0xff] %v177
      %198 = vst [vmem:[#allocation2 + $0x98] sm:$0xff] %v177
      %199 = vst [vmem:[#allocation2 + $0xa0] sm:$0xff] %v177
      %200 = vst [vmem:[#allocation2 + $0xa8] sm:$0xff] %v177
      %201 = vst [vmem:[#allocation2 + $0xb0] sm:$0xff] %v177
      %202 = vst [vmem:[#allocation2 + $0xb8] sm:$0xff] %v177
      %203 = vst [vmem:[#allocation2 + $0xc0] sm:$0xff] %v177
      %204 = vst [vmem:[#allocation2 + $0xc8] sm:$0xff] %v177
      %205 = vst [vmem:[#allocation2 + $0xd0] sm:$0xff] %v177
      %206 = vst [vmem:[#allocation2 + $0xd8] sm:$0xff] %v177
      %207 = vst [vmem:[#allocation2 + $0xe0] sm:$0xff] %v177
      %208 = vst [vmem:[#allocation2 + $0xe8] sm:$0xff] %v177
      %209 = vst [vmem:[#allocation2 + $0xf0] sm:$0xff] %v177
      %210 = vst [vmem:[#allocation2 + $0xf8] sm:$0xff] %v177
      %v211 = vld [vmem:[%s165] sm:$0xf]
      %v212 = vld [vmem:[%s165 + $0x4] sm:$0xf]
      %v213 = vld [vmem:[%s165 + $0x8] sm:$0xf]
      %v214 = vld [vmem:[%s165 + $0xc] sm:$0xf]
      %v215 = vld [vmem:[%s165 + $0x10] sm:$0xf]
      %v216 = vld [vmem:[%s165 + $0x14] sm:$0xf]
      %v217 = vld [vmem:[%s165 + $0x18] sm:$0xf]
      %v218 = vld [vmem:[%s165 + $0x1c] sm:$0xf]
      %v219 = vld [vmem:[%s165 + $0x20] sm:$0xf]
      %v220 = vld [vmem:[%s165 + $0x24] sm:$0xf]
      %v221 = vld [vmem:[%s165 + $0x28] sm:$0xf]
      %v222 = vld [vmem:[%s165 + $0x2c] sm:$0xf]
      %v223 = vld [vmem:[%s165 + $0x30] sm:$0xf]
      %v224 = vld [vmem:[%s165 + $0x34] sm:$0xf]
      %v225 = vld [vmem:[%s165 + $0x38] sm:$0xf]
      %v226 = vld [vmem:[%s165 + $0x3c] sm:$0xf]
      %v227 = vld [vmem:[%s165 + $0x40] sm:$0xf]
      %v228 = vld [vmem:[%s165 + $0x44] sm:$0xf]
      %v229 = vld [vmem:[%s165 + $0x48] sm:$0xf]
      %v230 = vld [vmem:[%s165 + $0x4c] sm:$0xf]
      %v231 = vld [vmem:[%s165 + $0x50] sm:$0xf]
      %v232 = vld [vmem:[%s165 + $0x54] sm:$0xf]
      %v233 = vld [vmem:[%s165 + $0x58] sm:$0xf]
      %v234 = vld [vmem:[%s165 + $0x5c] sm:$0xf]
      %v235 = vld [vmem:[%s165 + $0x60] sm:$0xf]
      %v236 = vld [vmem:[%s165 + $0x64] sm:$0xf]
      %v237 = vld [vmem:[%s165 + $0x68] sm:$0xf]
      %v238 = vld [vmem:[%s165 + $0x6c] sm:$0xf]
      %v239 = vld [vmem:[%s165 + $0x70] sm:$0xf]
      %v240 = vld [vmem:[%s165 + $0x74] sm:$0xf]
      %v241 = vld [vmem:[%s165 + $0x78] sm:$0xf]
      %v242 = vld [vmem:[%s165 + $0x7c] sm:$0xf]
      %v243 = vld [vmem:[%s1] sm:$0xf]
      %v244 = vld [vmem:[%s1 + $0x4] sm:$0xf]
      %v245 = vld [vmem:[%s1 + $0x8] sm:$0xf]
      %v246 = vld [vmem:[%s1 + $0xc] sm:$0xf]
      %v247 = vld [vmem:[%s1 + $0x10] sm:$0xf]
      %v248 = vld [vmem:[%s1 + $0x14] sm:$0xf]
      %v249 = vld [vmem:[%s1 + $0x18] sm:$0xf]
      %v250 = vld [vmem:[%s1 + $0x1c] sm:$0xf]
      %v251 = vld [vmem:[%s1 + $0x20] sm:$0xf]
      %v252 = vld [vmem:[%s1 + $0x24] sm:$0xf]
      %v253 = vld [vmem:[%s1 + $0x28] sm:$0xf]
      %v254 = vld [vmem:[%s1 + $0x2c] sm:$0xf]
      %v255 = vld [vmem:[%s1 + $0x30] sm:$0xf]
      %v256 = vld [vmem:[%s1 + $0x34] sm:$0xf]
      %v257 = vld [vmem:[%s1 + $0x38] sm:$0xf]
      %v258 = vld [vmem:[%s1 + $0x3c] sm:$0xf]
      %v263 = vcombine.low %v211, %v213
      %v264 = vcombine.low %v215, %v217
      %v266 = vunpack.c.l.s4 1983009808
      %v267 = vunpack.c.0.s8 %v266
      %v268 = vlaneseq
      %v269 = vshrl.u32 %v268, 7
      %v270 = vsub.s32 %v267, %v269
      %v271 = vrot.slane %v263, %v270
      %v273 = vunpack.c.l.s4 1983009808
      %v274 = vunpack.c.0.s8 %v273
      %v275 = vlaneseq
      %v276 = vshrl.u32 %v275, 7
      %v277 = vsub.s32 %v274, %v276
      %v278 = vrot.slane %v264, %v277
      %v279 = vcombine.low %v271, %v278
      %v297 = vunpack.c.l.b16 %v243
      %v298 = vunpack.c.l.b16 %v244
      %v299 = vunpack.c.l.b16 %v245
      %v300 = vunpack.c.l.b16 %v246
      %v301 = vunpack.c.l.b16 %v247
      %v302 = vunpack.c.l.b16 %v248
      %v303 = vunpack.c.l.b16 %v249
      %v304 = vunpack.c.l.b16 %v250
      %v305 = vunpack.c.l.b16 %v251
      %v306 = vunpack.c.l.b16 %v252
      %v307 = vunpack.c.l.b16 %v253
      %v308 = vunpack.c.l.b16 %v254
      %v309 = vunpack.c.l.b16 %v255
      %v310 = vunpack.c.l.b16 %v256
      %v311 = vunpack.c.l.b16 %v257
      %v312 = vunpack.c.l.b16 %v258
      %v313 = vpack.c.b16 %v298, %v297
      %v314 = vpack.c.b16 %v300, %v299
      %v315 = vpack.c.b16 %v302, %v301
      %v316 = vpack.c.b16 %v304, %v303
      %v317 = vpack.c.b16 %v306, %v305
      %v318 = vpack.c.b16 %v308, %v307
      %v319 = vpack.c.b16 %v310, %v309
      %v320 = vpack.c.b16 %v312, %v311
      %329 = vmatprep.subr.bf16.mxu0 0
      %330 = vmatpush1.bf16.msra.mxu0 %v313
      %331 = vmatprep.subr.bf16.mxu0 0
      %332 = vmatpush1.bf16.msra.mxu0 %v314
      %333 = vmatprep.subr.bf16.mxu0 0
      %334 = vmatpush1.bf16.msra.mxu0 %v315
      %335 = vmatprep.subr.bf16.mxu0 0
      %336 = vmatpush1.bf16.msra.mxu0 %v316
      %337 = vmatprep.subr.bf16.mxu0 0
      %338 = vmatpush1.bf16.msra.mxu0 %v317
      %339 = vmatprep.subr.bf16.mxu0 0
      %340 = vmatpush1.bf16.msra.mxu0 %v318
      %341 = vmatprep.subr.bf16.mxu0 0
      %342 = vmatpush1.bf16.msra.mxu0 %v319
      %343 = vmatprep.subr.bf16.mxu0 0
      %344 = vmatpush1.bf16.msra.mxu0 %v320
      %345 = vmatprep.subr.bf16.mxu0 0
      %346 = vmatpush1.bf16.msra.mxu0 0
      %347 = vmatprep.subr.bf16.mxu0 0
      %348 = vmatpush1.bf16.msra.mxu0 0
      %349 = vmatprep.subr.bf16.mxu0 0
      %350 = vmatpush1.bf16.msra.mxu0 0
      %351 = vmatprep.subr.bf16.mxu0 0
      %352 = vmatpush1.bf16.msra.mxu0 0
      %353 = vmatprep.subr.bf16.mxu0 0
      %354 = vmatpush1.bf16.msra.mxu0 0
      %355 = vmatprep.subr.bf16.mxu0 0
      %356 = vmatpush1.bf16.msra.mxu0 0
      %357 = vmatprep.subr.bf16.mxu0 0
      %358 = vmatpush1.bf16.msra.mxu0 0
      %359 = vmatprep.subr.bf16.mxu0 0
      %360 = vmatpush1.bf16.msra.mxu0 0
      %361 = vmatprep.mubr.bf16.mxu0 0
      %362 = vmatmul.mubr.bf16.gmra.mrb[0].mxu0 %v279
      %v363 = vpop.f32.mrb[0].mxu0
      %v364 = vadd.f32 0.0, %v363
      %v365 = vpop.f32.mrb[0].mxu0
      %v366 = vpop.f32.mrb[0].mxu0
      %v367 = vadd.f32 0.0, %v366
      %v368 = vpop.f32.mrb[0].mxu0
      %369 = vdwg.mxu0
      %s370 = scalar_lea.vmem [#allocation2], 192
      %v371 = vld [vmem:[%s370 + $0xc] sm:$0xf]
      %v372 = vld [vmem:[%s370 + $0x1c] sm:$0xf]
      %v373 = vld [vmem:[%s370 + $0x2c] sm:$0xf]
      %v374 = vld [vmem:[%s370 + $0x3c] sm:$0xf]
      %v377 = vcombine.high %v364, %v364
      %v378 = vcombine.high %v367, %v367
      %v381 = vadd.f32 %v371, %v364
      %v382 = vadd.f32 %v372, %v377
      %v383 = vadd.f32 %v373, %v367
      %v384 = vadd.f32 %v374, %v378
      %385 = vst [vmem:[%s370 + $0xc] sm:$0xf] %v381
      %386 = vst [vmem:[%s370 + $0x1c] sm:$0xf] %v382
      %387 = vst [vmem:[%s370 + $0x2c] sm:$0xf] %v383
      %388 = vst [vmem:[%s370 + $0x3c] sm:$0xf] %v384
      %s389 = scalar_lea.vmem %s1, 64
      %v390 = vld [vmem:[%s389] sm:$0xf]
      %v391 = vld [vmem:[%s389 + $0x4] sm:$0xf]
      %v392 = vld [vmem:[%s389 + $0x8] sm:$0xf]
      %v393 = vld [vmem:[%s389 + $0xc] sm:$0xf]
      %v394 = vld [vmem:[%s389 + $0x10] sm:$0xf]
      %v395 = vld [vmem:[%s389 + $0x14] sm:$0xf]
      %v396 = vld [vmem:[%s389 + $0x18] sm:$0xf]
      %v397 = vld [vmem:[%s389 + $0x1c] sm:$0xf]
      %v398 = vld [vmem:[%s389 + $0x20] sm:$0xf]
      %v399 = vld [vmem:[%s389 + $0x24] sm:$0xf]
      %v400 = vld [vmem:[%s389 + $0x28] sm:$0xf]
      %v401 = vld [vmem:[%s389 + $0x2c] sm:$0xf]
      %v402 = vld [vmem:[%s389 + $0x30] sm:$0xf]
      %v403 = vld [vmem:[%s389 + $0x34] sm:$0xf]
      %v404 = vld [vmem:[%s389 + $0x38] sm:$0xf]
      %v405 = vld [vmem:[%s389 + $0x3c] sm:$0xf]
      %v410 = vunpack.c.l.b16 %v211
      %v411 = vunpack.c.l.b16 %v212
      %v412 = vunpack.c.l.b16 %v213
      %v413 = vunpack.c.l.b16 %v214
      %v414 = vunpack.c.l.b16 %v215
      %v415 = vunpack.c.l.b16 %v216
      %v416 = vunpack.c.l.b16 %v217
      %v417 = vunpack.c.l.b16 %v218
      %v418 = vpack.c.b16 %v411, %v410
      %v419 = vpack.c.b16 %v413, %v412
      %v420 = vpack.c.b16 %v415, %v414
      %v421 = vpack.c.b16 %v417, %v416
      %v442 = vunpack.c.l.b16 %v390
      %v443 = vunpack.c.l.b16 %v391
      %v444 = vunpack.c.l.b16 %v392
      %v445 = vunpack.c.l.b16 %v393
      %v446 = vunpack.c.l.b16 %v394
      %v447 = vunpack.c.l.b16 %v395
      %v448 = vunpack.c.l.b16 %v396
      %v449 = vunpack.c.l.b16 %v397
      %v450 = vunpack.c.l.b16 %v398
      %v451 = vunpack.c.l.b16 %v399
      %v452 = vunpack.c.l.b16 %v400
      %v453 = vunpack.c.l.b16 %v401
      %v454 = vunpack.c.l.b16 %v402
      %v455 = vunpack.c.l.b16 %v403
      %v456 = vunpack.c.l.b16 %v404
      %v457 = vunpack.c.l.b16 %v405
      %v458 = vpack.c.b16 %v443, %v442
      %v459 = vpack.c.b16 %v445, %v444
      %v460 = vpack.c.b16 %v447, %v446
      %v461 = vpack.c.b16 %v449, %v448
      %v462 = vpack.c.b16 %v451, %v450
      %v463 = vpack.c.b16 %v453, %v452
      %v464 = vpack.c.b16 %v455, %v454
      %v465 = vpack.c.b16 %v457, %v456
      %474 = vmatprep.subr.bf16.mxu0 0
      %475 = vmatpush1.bf16.msra.mxu0 %v458
      %476 = vmatprep.subr.bf16.mxu0 0
      %477 = vmatpush1.bf16.msra.mxu0 %v459
      %478 = vmatprep.subr.bf16.mxu0 0
      %479 = vmatpush1.bf16.msra.mxu0 %v460
      %480 = vmatprep.subr.bf16.mxu0 0
      %481 = vmatpush1.bf16.msra.mxu0 %v461
      %482 = vmatprep.subr.bf16.mxu0 0
      %483 = vmatpush1.bf16.msra.mxu0 %v462
      %484 = vmatprep.subr.bf16.mxu0 0
      %485 = vmatpush1.bf16.msra.mxu0 %v463
      %486 = vmatprep.subr.bf16.mxu0 0
      %487 = vmatpush1.bf16.msra.mxu0 %v464
      %488 = vmatprep.subr.bf16.mxu0 0
      %489 = vmatpush1.bf16.msra.mxu0 %v465
      %490 = vmatprep.subr.bf16.mxu0 0
      %491 = vmatpush1.bf16.msra.mxu0 0
      %492 = vmatprep.subr.bf16.mxu0 0
      %493 = vmatpush1.bf16.msra.mxu0 0
      %494 = vmatprep.subr.bf16.mxu0 0
      %495 = vmatpush1.bf16.msra.mxu0 0
      %496 = vmatprep.subr.bf16.mxu0 0
      %497 = vmatpush1.bf16.msra.mxu0 0
      %498 = vmatprep.subr.bf16.mxu0 0
      %499 = vmatpush1.bf16.msra.mxu0 0
      %500 = vmatprep.subr.bf16.mxu0 0
      %501 = vmatpush1.bf16.msra.mxu0 0
      %502 = vmatprep.subr.bf16.mxu0 0
      %503 = vmatpush1.bf16.msra.mxu0 0
      %504 = vmatprep.subr.bf16.mxu0 0
      %505 = vmatpush1.bf16.msra.mxu0 0
      %506 = vmatprep.mubr.bf16.mxu0 0
      %507 = vmatmul.mubr.bf16.gmra.mrb[0].mxu0 %v418
      %v508 = vpop.f32.mrb[0].mxu0
      %v509 = vadd.f32 0.0, %v508
      %v510 = vpop.f32.mrb[0].mxu0
      %v511 = vpop.f32.mrb[0].mxu0
      %v512 = vadd.f32 0.0, %v511
      %v513 = vpop.f32.mrb[0].mxu0
      %514 = vmatprep.mubr.bf16.mxu0 0
      %515 = vmatmul.mubr.bf16.gmra.mrb[0].mxu0 %v419
      %v516 = vpop.f32.mrb[0].mxu0
      %v517 = vadd.f32 0.0, %v516
      %v518 = vpop.f32.mrb[0].mxu0
      %v519 = vpop.f32.mrb[0].mxu0
      %v520 = vadd.f32 0.0, %v519
      %v521 = vpop.f32.mrb[0].mxu0
      %522 = vmatprep.mubr.bf16.mxu0 0
      %523 = vmatmul.mubr.bf16.gmra.mrb[0].mxu0 %v420
      %v524 = vpop.f32.mrb[0].mxu0
      %v525 = vadd.f32 0.0, %v524
      %v526 = vpop.f32.mrb[0].mxu0
      %v527 = vpop.f32.mrb[0].mxu0
      %v528 = vadd.f32 0.0, %v527
      %v529 = vpop.f32.mrb[0].mxu0
      %530 = vmatprep.mubr.bf16.mxu0 0
      %531 = vmatmul.mubr.bf16.gmra.mrb[0].mxu0 %v421
      %v532 = vpop.f32.mrb[0].mxu0
      %v533 = vadd.f32 0.0, %v532
      %v534 = vpop.f32.mrb[0].mxu0
      %v535 = vpop.f32.mrb[0].mxu0
      %v536 = vadd.f32 0.0, %v535
      %v537 = vpop.f32.mrb[0].mxu0
      %538 = vdwg.mxu0
      %v539 = vld [vmem:[%s370] sm:$0xff]
      %v540 = vld [vmem:[%s370 + $0x8] sm:$0xff]
      %v541 = vld [vmem:[%s370 + $0x10] sm:$0xff]
      %v542 = vld [vmem:[%s370 + $0x18] sm:$0xff]
      %v543 = vld [vmem:[%s370 + $0x20] sm:$0xff]
      %v544 = vld [vmem:[%s370 + $0x28] sm:$0xff]
      %v545 = vld [vmem:[%s370 + $0x30] sm:$0xff]
      %v546 = vld [vmem:[%s370 + $0x38] sm:$0xff]
      %v547 = vadd.f32 %v539, %v509
      %v548 = vadd.f32 %v540, %v512
      %v549 = vadd.f32 %v541, %v517
      %v550 = vadd.f32 %v542, %v520
      %v551 = vadd.f32 %v543, %v525
      %v552 = vadd.f32 %v544, %v528
      %v553 = vadd.f32 %v545, %v533
      %v554 = vadd.f32 %v546, %v536
      %555 = vst [vmem:[%s370] sm:$0xff] %v547
      %556 = vst [vmem:[%s370 + $0x8] sm:$0xff] %v548
      %557 = vst [vmem:[%s370 + $0x10] sm:$0xff] %v549
      %558 = vst [vmem:[%s370 + $0x18] sm:$0xff] %v550
      %559 = vst [vmem:[%s370 + $0x20] sm:$0xff] %v551
      %560 = vst [vmem:[%s370 + $0x28] sm:$0xff] %v552
      %561 = vst [vmem:[%s370 + $0x30] sm:$0xff] %v553
      %562 = vst [vmem:[%s370 + $0x38] sm:$0xff] %v554
      %v564 = vunpack.c.l.s4 1983009808
      %v565 = vunpack.c.0.s8 %v564
      %v566 = vlaneseq
      %v567 = vshrl.u32 %v566, 7
      %v568 = vsub.s32 %v565, %v567
      %v569 = vrot.slane %v212, %v568
      %v570 = vcombine.high %v569, %v569
      %v572 = vunpack.c.l.s4 1983009808
      %v573 = vunpack.c.0.s8 %v572
      %v574 = vlaneseq
      %v575 = vshrl.u32 %v574, 7
      %v576 = vsub.s32 %v573, %v575
      %v577 = vrot.slane %v214, %v576
      %v578 = vcombine.high %v577, %v577
      %v580 = vunpack.c.l.s4 1983009808
      %v581 = vunpack.c.0.s8 %v580
      %v582 = vlaneseq
      %v583 = vshrl.u32 %v582, 7
      %v584 = vsub.s32 %v581, %v583
      %v585 = vrot.slane %v216, %v584
      %v586 = vcombine.high %v585, %v585
      %v588 = vunpack.c.l.s4 1983009808
      %v589 = vunpack.c.0.s8 %v588
      %v590 = vlaneseq
      %v591 = vshrl.u32 %v590, 7
      %v592 = vsub.s32 %v589, %v591
      %v593 = vrot.slane %v218, %v592
      %v594 = vcombine.high %v593, %v593
      %s595 = scalar_lea.vmem %s1, 128
      %v596 = vld [vmem:[%s595] sm:$0xf]
      %v597 = vld [vmem:[%s595 + $0x4] sm:$0xf]
      %v598 = vld [vmem:[%s595 + $0x8] sm:$0xf]
      %v599 = vld [vmem:[%s595 + $0xc] sm:$0xf]
      %v600 = vld [vmem:[%s595 + $0x10] sm:$0xf]
      %v601 = vld [vmem:[%s595 + $0x14] sm:$0xf]
      %v602 = vld [vmem:[%s595 + $0x18] sm:$0xf]
      %v603 = vld [vmem:[%s595 + $0x1c] sm:$0xf]
      %v604 = vld [vmem:[%s595 + $0x20] sm:$0xf]
      %v605 = vld [vmem:[%s595 + $0x24] sm:$0xf]
      %v606 = vld [vmem:[%s595 + $0x28] sm:$0xf]
      %v607 = vld [vmem:[%s595 + $0x2c] sm:$0xf]
      %v608 = vld [vmem:[%s595 + $0x30] sm:$0xf]
      %v609 = vld [vmem:[%s595 + $0x34] sm:$0xf]
      %v610 = vld [vmem:[%s595 + $0x38] sm:$0xf]
      %v611 = vld [vmem:[%s595 + $0x3c] sm:$0xf]
      %v612 = vcombine.low %v570, %v578
      %v613 = vcombine.low %v586, %v594
      %v615 = vunpack.c.l.s4 1983009808
      %v616 = vunpack.c.0.s8 %v615
      %v617 = vlaneseq
      %v618 = vshrl.u32 %v617, 7
      %v619 = vsub.s32 %v616, %v618
      %v620 = vrot.slane %v612, %v619
      %v622 = vunpack.c.l.s4 1983009808
      %v623 = vunpack.c.0.s8 %v622
      %v624 = vlaneseq
      %v625 = vshrl.u32 %v624, 7
      %v626 = vsub.s32 %v623, %v625
      %v627 = vrot.slane %v613, %v626
      %v628 = vcombine.low %v620, %v627
      %v646 = vunpack.c.l.b16 %v596
      %v647 = vunpack.c.l.b16 %v597
      %v648 = vunpack.c.l.b16 %v598
      %v649 = vunpack.c.l.b16 %v599
      %v650 = vunpack.c.l.b16 %v600
      %v651 = vunpack.c.l.b16 %v601
      %v652 = vunpack.c.l.b16 %v602
      %v653 = vunpack.c.l.b16 %v603
      %v654 = vunpack.c.l.b16 %v604
      %v655 = vunpack.c.l.b16 %v605
      %v656 = vunpack.c.l.b16 %v606
      %v657 = vunpack.c.l.b16 %v607
      %v658 = vunpack.c.l.b16 %v608
      %v659 = vunpack.c.l.b16 %v609
      %v660 = vunpack.c.l.b16 %v610
      %v661 = vunpack.c.l.b16 %v611
      %v662 = vpack.c.b16 %v647, %v646
      %v663 = vpack.c.b16 %v649, %v648
      %v664 = vpack.c.b16 %v651, %v650
      %v665 = vpack.c.b16 %v653, %v652
      %v666 = vpack.c.b16 %v655, %v654
      %v667 = vpack.c.b16 %v657, %v656
      %v668 = vpack.c.b16 %v659, %v658
      %v669 = vpack.c.b16 %v661, %v660
      %678 = vmatprep.subr.bf16.mxu0 0
      %679 = vmatpush1.bf16.msra.mxu0 %v662
      %680 = vmatprep.subr.bf16.mxu0 0
      %681 = vmatpush1.bf16.msra.mxu0 %v663
      %682 = vmatprep.subr.bf16.mxu0 0
      %683 = vmatpush1.bf16.msra.mxu0 %v664
      %684 = vmatprep.subr.bf16.mxu0 0
      %685 = vmatpush1.bf16.msra.mxu0 %v665
      %686 = vmatprep.subr.bf16.mxu0 0
      %687 = vmatpush1.bf16.msra.mxu0 %v666
      %688 = vmatprep.subr.bf16.mxu0 0
      %689 = vmatpush1.bf16.msra.mxu0 %v667
      %690 = vmatprep.subr.bf16.mxu0 0
      %691 = vmatpush1.bf16.msra.mxu0 %v668
      %692 = vmatprep.subr.bf16.mxu0 0
      %693 = vmatpush1.bf16.msra.mxu0 %v669
      %694 = vmatprep.subr.bf16.mxu0 0
      %695 = vmatpush1.bf16.msra.mxu0 0
      %696 = vmatprep.subr.bf16.mxu0 0
      %697 = vmatpush1.bf16.msra.mxu0 0
      %698 = vmatprep.subr.bf16.mxu0 0
      %699 = vmatpush1.bf16.msra.mxu0 0
      %700 = vmatprep.subr.bf16.mxu0 0
      %701 = vmatpush1.bf16.msra.mxu0 0
      %702 = vmatprep.subr.bf16.mxu0 0
      %703 = vmatpush1.bf16.msra.mxu0 0
      %704 = vmatprep.subr.bf16.mxu0 0
      %705 = vmatpush1.bf16.msra.mxu0 0
      %706 = vmatprep.subr.bf16.mxu0 0
      %707 = vmatpush1.bf16.msra.mxu0 0
      %708 = vmatprep.subr.bf16.mxu0 0
      %709 = vmatpush1.bf16.msra.mxu0 0
      %710 = vmatprep.mubr.bf16.mxu0 0
      %711 = vmatmul.mubr.bf16.gmra.mrb[0].mxu0 %v628
      %v712 = vpop.f32.mrb[0].mxu0
      %v713 = vadd.f32 0.0, %v712
      %v714 = vpop.f32.mrb[0].mxu0
      %v715 = vpop.f32.mrb[0].mxu0
      %v716 = vadd.f32 0.0, %v715
      %v717 = vpop.f32.mrb[0].mxu0
      %718 = vdwg.mxu0
      %v719 = vld [vmem:[%s370] sm:$0xf]
      %v720 = vld [vmem:[%s370 + $0x10] sm:$0xf]
      %v721 = vld [vmem:[%s370 + $0x20] sm:$0xf]
      %v722 = vld [vmem:[%s370 + $0x30] sm:$0xf]
      %v725 = vcombine.high %v713, %v713
      %v726 = vcombine.high %v716, %v716
      %v729 = vadd.f32 %v719, %v713
      %v730 = vadd.f32 %v720, %v725
      %v731 = vadd.f32 %v721, %v716
      %v732 = vadd.f32 %v722, %v726
      %733 = vst [vmem:[%s370] sm:$0xf] %v729
      %734 = vst [vmem:[%s370 + $0x10] sm:$0xf] %v730
      %735 = vst [vmem:[%s370 + $0x20] sm:$0xf] %v731
      %736 = vst [vmem:[%s370 + $0x30] sm:$0xf] %v732
      %v750 = vunpack.c.l.s4 1966171168
      %v751 = vunpack.c.0.s8 %v750
      %v752 = vlaneseq
      %v753 = vshrl.u32 %v752, 7
      %v754 = vsub.s32 %v751, %v753
      %v755 = vrot.slane %v211, %v754
      %v756 = vcombine.high %v755, %v755
      %v758 = vunpack.c.l.s4 1966171168
      %v759 = vunpack.c.0.s8 %v758
      %v760 = vlaneseq
      %v761 = vshrl.u32 %v760, 7
      %v762 = vsub.s32 %v759, %v761
      %v763 = vrot.slane %v755, %v762
      %v765 = vunpack.c.l.s4 1966171168
      %v766 = vunpack.c.0.s8 %v765
      %v767 = vlaneseq
      %v768 = vshrl.u32 %v767, 7
      %v769 = vsub.s32 %v766, %v768
      %v770 = vrot.slane %v756, %v769
      %v771 = vcombine.high %v763, %v763
      %v772 = vcombine.high %v770, %v770
      %v774 = vunpack.c.l.s4 1966171168
      %v775 = vunpack.c.0.s8 %v774
      %v776 = vlaneseq
      %v777 = vshrl.u32 %v776, 7
      %v778 = vsub.s32 %v775, %v777
      %v779 = vrot.slane %v212, %v778
      %v781 = vunpack.c.l.s4 1966171168
      %v782 = vunpack.c.0.s8 %v781
      %v783 = vlaneseq
      %v784 = vshrl.u32 %v783, 7
      %v785 = vsub.s32 %v782, %v784
      %v786 = vrot.slane %v779, %v785
      %v788 = vunpack.c.l.s4 1966171168
      %v789 = vunpack.c.0.s8 %v788
      %v790 = vlaneseq
      %v791 = vshrl.u32 %v790, 7
      %v792 = vsub.s32 %v789, %v791
      %v793 = vrot.slane %v213, %v792
      %v794 = vcombine.high %v793, %v793
      %v796 = vunpack.c.l.s4 1966171168
      %v797 = vunpack.c.0.s8 %v796
      %v798 = vlaneseq
      %v799 = vshrl.u32 %v798, 7
      %v800 = vsub.s32 %v797, %v799
      %v801 = vrot.slane %v793, %v800
      %v803 = vunpack.c.l.s4 1966171168
      %v804 = vunpack.c.0.s8 %v803
      %v805 = vlaneseq
      %v806 = vshrl.u32 %v805, 7
      %v807 = vsub.s32 %v804, %v806
      %v808 = vrot.slane %v794, %v807
      %v809 = vcombine.high %v801, %v801
      %v810 = vcombine.high %v808, %v808
      %v812 = vunpack.c.l.s4 1966171168
      %v813 = vunpack.c.0.s8 %v812
      %v814 = vlaneseq
      %v815 = vshrl.u32 %v814, 7
      %v816 = vsub.s32 %v813, %v815
      %v817 = vrot.slane %v214, %v816
      %v819 = vunpack.c.l.s4 1966171168
      %v820 = vunpack.c.0.s8 %v819
      %v821 = vlaneseq
      %v822 = vshrl.u32 %v821, 7
      %v823 = vsub.s32 %v820, %v822
      %v824 = vrot.slane %v817, %v823
      %v826 = vunpack.c.l.s4 1966171168
      %v827 = vunpack.c.0.s8 %v826
      %v828 = vlaneseq
      %v829 = vshrl.u32 %v828, 7
      %v830 = vsub.s32 %v827, %v829
      %v831 = vrot.slane %v215, %v830
      %v832 = vcombine.high %v831, %v831
      %v834 = vunpack.c.l.s4 1966171168
      %v835 = vunpack.c.0.s8 %v834
      %v836 = vlaneseq
      %v837 = vshrl.u32 %v836, 7
      %v838 = vsub.s32 %v835, %v837
      %v839 = vrot.slane %v831, %v838
      %v841 = vunpack.c.l.s4 1966171168
      %v842 = vunpack.c.0.s8 %v841
      %v843 = vlaneseq
      %v844 = vshrl.u32 %v843, 7
      %v845 = vsub.s32 %v842, %v844
      %v846 = vrot.slane %v832, %v845
      %v847 = vcombine.high %v839, %v839
      %v848 = vcombine.high %v846, %v846
      %v850 = vunpack.c.l.s4 1966171168
      %v851 = vunpack.c.0.s8 %v850
      %v852 = vlaneseq
      %v853 = vshrl.u32 %v852, 7
      %v854 = vsub.s32 %v851, %v853
      %v855 = vrot.slane %v216, %v854
      %v857 = vunpack.c.l.s4 1966171168
      %v858 = vunpack.c.0.s8 %v857
      %v859 = vlaneseq
      %v860 = vshrl.u32 %v859, 7
      %v861 = vsub.s32 %v858, %v860
      %v862 = vrot.slane %v855, %v861
      %v864 = vunpack.c.l.s4 1966171168
      %v865 = vunpack.c.0.s8 %v864
      %v866 = vlaneseq
      %v867 = vshrl.u32 %v866, 7
      %v868 = vsub.s32 %v865, %v867
      %v869 = vrot.slane %v217, %v868
      %v870 = vcombine.high %v869, %v869
      %v872 = vunpack.c.l.s4 1966171168
      %v873 = vunpack.c.0.s8 %v872
      %v874 = vlaneseq
      %v875 = vshrl.u32 %v874, 7
      %v876 = vsub.s32 %v873, %v875
      %v877 = vrot.slane %v869, %v876
      %v879 = vunpack.c.l.s4 1966171168
      %v880 = vunpack.c.0.s8 %v879
      %v881 = vlaneseq
      %v882 = vshrl.u32 %v881, 7
      %v883 = vsub.s32 %v880, %v882
      %v884 = vrot.slane %v870, %v883
      %v885 = vcombine.high %v877, %v877
      %v886 = vcombine.high %v884, %v884
      %v888 = vunpack.c.l.s4 1966171168
      %v889 = vunpack.c.0.s8 %v888
      %v890 = vlaneseq
      %v891 = vshrl.u32 %v890, 7
      %v892 = vsub.s32 %v889, %v891
      %v893 = vrot.slane %v218, %v892
      %v895 = vunpack.c.l.s4 1966171168
      %v896 = vunpack.c.0.s8 %v895
      %v897 = vlaneseq
      %v898 = vshrl.u32 %v897, 7
      %v899 = vsub.s32 %v896, %v898
      %v900 = vrot.slane %v893, %v899
      %v902 = vunpack.c.l.s4 1966171168
      %v903 = vunpack.c.0.s8 %v902
      %v904 = vlaneseq
      %v905 = vshrl.u32 %v904, 7
      %v906 = vsub.s32 %v903, %v905
      %v907 = vrot.slane %v219, %v906
      %v908 = vcombine.high %v907, %v907
      %v910 = vunpack.c.l.s4 1966171168
      %v911 = vunpack.c.0.s8 %v910
      %v912 = vlaneseq
      %v913 = vshrl.u32 %v912, 7
      %v914 = vsub.s32 %v911, %v913
      %v915 = vrot.slane %v907, %v914
      %v917 = vunpack.c.l.s4 1966171168
      %v918 = vunpack.c.0.s8 %v917
      %v919 = vlaneseq
      %v920 = vshrl.u32 %v919, 7
      %v921 = vsub.s32 %v918, %v920
      %v922 = vrot.slane %v908, %v921
      %v923 = vcombine.high %v915, %v915
      %v924 = vcombine.high %v922, %v922
      %v926 = vunpack.c.l.s4 1966171168
      %v927 = vunpack.c.0.s8 %v926
      %v928 = vlaneseq
      %v929 = vshrl.u32 %v928, 7
      %v930 = vsub.s32 %v927, %v929
      %v931 = vrot.slane %v220, %v930
      %v933 = vunpack.c.l.s4 1966171168
      %v934 = vunpack.c.0.s8 %v933
      %v935 = vlaneseq
      %v936 = vshrl.u32 %v935, 7
      %v937 = vsub.s32 %v934, %v936
      %v938 = vrot.slane %v931, %v937
      %v940 = vunpack.c.l.s4 1966171168
      %v941 = vunpack.c.0.s8 %v940
      %v942 = vlaneseq
      %v943 = vshrl.u32 %v942, 7
      %v944 = vsub.s32 %v941, %v943
      %v945 = vrot.slane %v221, %v944
      %v946 = vcombine.high %v945, %v945
      %v948 = vunpack.c.l.s4 1966171168
      %v949 = vunpack.c.0.s8 %v948
      %v950 = vlaneseq
      %v951 = vshrl.u32 %v950, 7
      %v952 = vsub.s32 %v949, %v951
      %v953 = vrot.slane %v945, %v952
      %v955 = vunpack.c.l.s4 1966171168
      %v956 = vunpack.c.0.s8 %v955
      %v957 = vlaneseq
      %v958 = vshrl.u32 %v957, 7
      %v959 = vsub.s32 %v956, %v958
      %v960 = vrot.slane %v946, %v959
      %v961 = vcombine.high %v953, %v953
      %v962 = vcombine.high %v960, %v960
      %v964 = vunpack.c.l.s4 1966171168
      %v965 = vunpack.c.0.s8 %v964
      %v966 = vlaneseq
      %v967 = vshrl.u32 %v966, 7
      %v968 = vsub.s32 %v965, %v967
      %v969 = vrot.slane %v222, %v968
      %v971 = vunpack.c.l.s4 1966171168
      %v972 = vunpack.c.0.s8 %v971
      %v973 = vlaneseq
      %v974 = vshrl.u32 %v973, 7
      %v975 = vsub.s32 %v972, %v974
      %v976 = vrot.slane %v969, %v975
      %v978 = vunpack.c.l.s4 1966171168
      %v979 = vunpack.c.0.s8 %v978
      %v980 = vlaneseq
      %v981 = vshrl.u32 %v980, 7
      %v982 = vsub.s32 %v979, %v981
      %v983 = vrot.slane %v223, %v982
      %v984 = vcombine.high %v983, %v983
      %v986 = vunpack.c.l.s4 1966171168
      %v987 = vunpack.c.0.s8 %v986
      %v988 = vlaneseq
      %v989 = vshrl.u32 %v988, 7
      %v990 = vsub.s32 %v987, %v989
      %v991 = vrot.slane %v983, %v990
      %v993 = vunpack.c.l.s4 1966171168
      %v994 = vunpack.c.0.s8 %v993
      %v995 = vlaneseq
      %v996 = vshrl.u32 %v995, 7
      %v997 = vsub.s32 %v994, %v996
      %v998 = vrot.slane %v984, %v997
      %v999 = vcombine.high %v991, %v991
      %v1000 = vcombine.high %v998, %v998
      %v1002 = vunpack.c.l.s4 1966171168
      %v1003 = vunpack.c.0.s8 %v1002
      %v1004 = vlaneseq
      %v1005 = vshrl.u32 %v1004, 7
      %v1006 = vsub.s32 %v1003, %v1005
      %v1007 = vrot.slane %v224, %v1006
      %v1009 = vunpack.c.l.s4 1966171168
      %v1010 = vunpack.c.0.s8 %v1009
      %v1011 = vlaneseq
      %v1012 = vshrl.u32 %v1011, 7
      %v1013 = vsub.s32 %v1010, %v1012
      %v1014 = vrot.slane %v1007, %v1013
      %v1016 = vunpack.c.l.s4 1966171168
      %v1017 = vunpack.c.0.s8 %v1016
      %v1018 = vlaneseq
      %v1019 = vshrl.u32 %v1018, 7
      %v1020 = vsub.s32 %v1017, %v1019
      %v1021 = vrot.slane %v225, %v1020
      %v1022 = vcombine.high %v1021, %v1021
      %v1024 = vunpack.c.l.s4 1966171168
      %v1025 = vunpack.c.0.s8 %v1024
      %v1026 = vlaneseq
      %v1027 = vshrl.u32 %v1026, 7
      %v1028 = vsub.s32 %v1025, %v1027
      %v1029 = vrot.slane %v1021, %v1028
      %v1031 = vunpack.c.l.s4 1966171168
      %v1032 = vunpack.c.0.s8 %v1031
      %v1033 = vlaneseq
      %v1034 = vshrl.u32 %v1033, 7
      %v1035 = vsub.s32 %v1032, %v1034
      %v1036 = vrot.slane %v1022, %v1035
      %v1037 = vcombine.high %v1029, %v1029
      %v1038 = vcombine.high %v1036, %v1036
      %v1040 = vunpack.c.l.s4 1966171168
      %v1041 = vunpack.c.0.s8 %v1040
      %v1042 = vlaneseq
      %v1043 = vshrl.u32 %v1042, 7
      %v1044 = vsub.s32 %v1041, %v1043
      %v1045 = vrot.slane %v226, %v1044
      %v1047 = vunpack.c.l.s4 1966171168
      %v1048 = vunpack.c.0.s8 %v1047
      %v1049 = vlaneseq
      %v1050 = vshrl.u32 %v1049, 7
      %v1051 = vsub.s32 %v1048, %v1050
      %v1052 = vrot.slane %v1045, %v1051
      %v1054 = vunpack.c.l.s4 1966171168
      %v1055 = vunpack.c.0.s8 %v1054
      %v1056 = vlaneseq
      %v1057 = vshrl.u32 %v1056, 7
      %v1058 = vsub.s32 %v1055, %v1057
      %v1059 = vrot.slane %v227, %v1058
      %v1060 = vcombine.high %v1059, %v1059
      %v1062 = vunpack.c.l.s4 1966171168
      %v1063 = vunpack.c.0.s8 %v1062
      %v1064 = vlaneseq
      %v1065 = vshrl.u32 %v1064, 7
      %v1066 = vsub.s32 %v1063, %v1065
      %v1067 = vrot.slane %v1059, %v1066
      %v1069 = vunpack.c.l.s4 1966171168
      %v1070 = vunpack.c.0.s8 %v1069
      %v1071 = vlaneseq
      %v1072 = vshrl.u32 %v1071, 7
      %v1073 = vsub.s32 %v1070, %v1072
      %v1074 = vrot.slane %v1060, %v1073
      %v1075 = vcombine.high %v1067, %v1067
      %v1076 = vcombine.high %v1074, %v1074
      %v1078 = vunpack.c.l.s4 1966171168
      %v1079 = vunpack.c.0.s8 %v1078
      %v1080 = vlaneseq
      %v1081 = vshrl.u32 %v1080, 7
      %v1082 = vsub.s32 %v1079, %v1081
      %v1083 = vrot.slane %v228, %v1082
      %v1085 = vunpack.c.l.s4 1966171168
      %v1086 = vunpack.c.0.s8 %v1085
      %v1087 = vlaneseq
      %v1088 = vshrl.u32 %v1087, 7
      %v1089 = vsub.s32 %v1086, %v1088
      %v1090 = vrot.slane %v1083, %v1089
      %v1092 = vunpack.c.l.s4 1966171168
      %v1093 = vunpack.c.0.s8 %v1092
      %v1094 = vlaneseq
      %v1095 = vshrl.u32 %v1094, 7
      %v1096 = vsub.s32 %v1093, %v1095
      %v1097 = vrot.slane %v229, %v1096
      %v1098 = vcombine.high %v1097, %v1097
      %v1100 = vunpack.c.l.s4 1966171168
      %v1101 = vunpack.c.0.s8 %v1100
      %v1102 = vlaneseq
      %v1103 = vshrl.u32 %v1102, 7
      %v1104 = vsub.s32 %v1101, %v1103
      %v1105 = vrot.slane %v1097, %v1104
      %v1107 = vunpack.c.l.s4 1966171168
      %v1108 = vunpack.c.0.s8 %v1107
      %v1109 = vlaneseq
      %v1110 = vshrl.u32 %v1109, 7
      %v1111 = vsub.s32 %v1108, %v1110
      %v1112 = vrot.slane %v1098, %v1111
      %v1113 = vcombine.high %v1105, %v1105
      %v1114 = vcombine.high %v1112, %v1112
      %v1116 = vunpack.c.l.s4 1966171168
      %v1117 = vunpack.c.0.s8 %v1116
      %v1118 = vlaneseq
      %v1119 = vshrl.u32 %v1118, 7
      %v1120 = vsub.s32 %v1117, %v1119
      %v1121 = vrot.slane %v230, %v1120
      %v1123 = vunpack.c.l.s4 1966171168
      %v1124 = vunpack.c.0.s8 %v1123
      %v1125 = vlaneseq
      %v1126 = vshrl.u32 %v1125, 7
      %v1127 = vsub.s32 %v1124, %v1126
      %v1128 = vrot.slane %v1121, %v1127
      %s1129 = scalar_lea.vmem %s1, 192
      %v1130 = vld [vmem:[%s1129] sm:$0xf]
      %v1131 = vld [vmem:[%s1129 + $0x4] sm:$0xf]
      %v1132 = vld [vmem:[%s1129 + $0x8] sm:$0xf]
      %v1133 = vld [vmem:[%s1129 + $0xc] sm:$0xf]
      %v1134 = vld [vmem:[%s1129 + $0x10] sm:$0xf]
      %v1135 = vld [vmem:[%s1129 + $0x14] sm:$0xf]
      %v1136 = vld [vmem:[%s1129 + $0x18] sm:$0xf]
      %v1137 = vld [vmem:[%s1129 + $0x1c] sm:$0xf]
      %v1138 = vld [vmem:[%s1129 + $0x20] sm:$0xf]
      %v1139 = vld [vmem:[%s1129 + $0x24] sm:$0xf]
      %v1140 = vld [vmem:[%s1129 + $0x28] sm:$0xf]
      %v1141 = vld [vmem:[%s1129 + $0x2c] sm:$0xf]
      %v1142 = vld [vmem:[%s1129 + $0x30] sm:$0xf]
      %v1143 = vld [vmem:[%s1129 + $0x34] sm:$0xf]
      %v1144 = vld [vmem:[%s1129 + $0x38] sm:$0xf]
      %v1145 = vld [vmem:[%s1129 + $0x3c] sm:$0xf]
      %v1146 = vcombine.low %v763, %v770
      %v1147 = vcombine.low %v771, %v772
      %v1148 = vcombine.low %v786, %v801
      %v1149 = vcombine.low %v808, %v809
      %v1151 = vunpack.c.l.s4 1966171168
      %v1152 = vunpack.c.0.s8 %v1151
      %v1153 = vlaneseq
      %v1154 = vshrl.u32 %v1153, 7
      %v1155 = vsub.s32 %v1152, %v1154
      %v1156 = vrot.slane %v1146, %v1155
      %v1158 = vunpack.c.l.s4 1966171168
      %v1159 = vunpack.c.0.s8 %v1158
      %v1160 = vlaneseq
      %v1161 = vshrl.u32 %v1160, 7
      %v1162 = vsub.s32 %v1159, %v1161
      %v1163 = vrot.slane %v1147, %v1162
      %v1165 = vunpack.c.l.s4 1966171168
      %v1166 = vunpack.c.0.s8 %v1165
      %v1167 = vlaneseq
      %v1168 = vshrl.u32 %v1167, 7
      %v1169 = vsub.s32 %v1166, %v1168
      %v1170 = vrot.slane %v1148, %v1169
      %v1172 = vunpack.c.l.s4 1966171168
      %v1173 = vunpack.c.0.s8 %v1172
      %v1174 = vlaneseq
      %v1175 = vshrl.u32 %v1174, 7
      %v1176 = vsub.s32 %v1173, %v1175
      %v1177 = vrot.slane %v1149, %v1176
      %v1178 = vcombine.low %v1156, %v1163
      %v1179 = vcombine.low %v1170, %v1177
      %v1181 = vunpack.c.l.s4 1966171168
      %v1182 = vunpack.c.0.s8 %v1181
      %v1183 = vlaneseq
      %v1184 = vshrl.u32 %v1183, 7
      %v1185 = vsub.s32 %v1182, %v1184
      %v1186 = vrot.slane %v1178, %v1185
      %v1188 = vunpack.c.l.s4 1966171168
      %v1189 = vunpack.c.0.s8 %v1188
      %v1190 = vlaneseq
      %v1191 = vshrl.u32 %v1190, 7
      %v1192 = vsub.s32 %v1189, %v1191
      %v1193 = vrot.slane %v1179, %v1192
      %v1194 = vcombine.low %v1186, %v1193
      %v1195 = vcombine.low %v810, %v824
      %v1196 = vcombine.low %v839, %v846
      %v1197 = vcombine.low %v847, %v848
      %v1198 = vcombine.low %v862, %v877
      %v1200 = vunpack.c.l.s4 1966171168
      %v1201 = vunpack.c.0.s8 %v1200
      %v1202 = vlaneseq
      %v1203 = vshrl.u32 %v1202, 7
      %v1204 = vsub.s32 %v1201, %v1203
      %v1205 = vrot.slane %v1195, %v1204
      %v1207 = vunpack.c.l.s4 1966171168
      %v1208 = vunpack.c.0.s8 %v1207
      %v1209 = vlaneseq
      %v1210 = vshrl.u32 %v1209, 7
      %v1211 = vsub.s32 %v1208, %v1210
      %v1212 = vrot.slane %v1196, %v1211
      %v1214 = vunpack.c.l.s4 1966171168
      %v1215 = vunpack.c.0.s8 %v1214
      %v1216 = vlaneseq
      %v1217 = vshrl.u32 %v1216, 7
      %v1218 = vsub.s32 %v1215, %v1217
      %v1219 = vrot.slane %v1197, %v1218
      %v1221 = vunpack.c.l.s4 1966171168
      %v1222 = vunpack.c.0.s8 %v1221
      %v1223 = vlaneseq
      %v1224 = vshrl.u32 %v1223, 7
      %v1225 = vsub.s32 %v1222, %v1224
      %v1226 = vrot.slane %v1198, %v1225
      %v1227 = vcombine.low %v1205, %v1212
      %v1228 = vcombine.low %v1219, %v1226
      %v1230 = vunpack.c.l.s4 1966171168
      %v1231 = vunpack.c.0.s8 %v1230
      %v1232 = vlaneseq
      %v1233 = vshrl.u32 %v1232, 7
      %v1234 = vsub.s32 %v1231, %v1233
      %v1235 = vrot.slane %v1227, %v1234
      %v1237 = vunpack.c.l.s4 1966171168
      %v1238 = vunpack.c.0.s8 %v1237
      %v1239 = vlaneseq
      %v1240 = vshrl.u32 %v1239, 7
      %v1241 = vsub.s32 %v1238, %v1240
      %v1242 = vrot.slane %v1228, %v1241
      %v1243 = vcombine.low %v1235, %v1242
      %v1244 = vcombine.low %v884, %v885
      %v1245 = vcombine.low %v886, %v900
      %v1246 = vcombine.low %v915, %v922
      %v1247 = vcombine.low %v923, %v924
      %v1249 = vunpack.c.l.s4 1966171168
      %v1250 = vunpack.c.0.s8 %v1249
      %v1251 = vlaneseq
      %v1252 = vshrl.u32 %v1251, 7
      %v1253 = vsub.s32 %v1250, %v1252
      %v1254 = vrot.slane %v1244, %v1253
      %v1256 = vunpack.c.l.s4 1966171168
      %v1257 = vunpack.c.0.s8 %v1256
      %v1258 = vlaneseq
      %v1259 = vshrl.u32 %v1258, 7
      %v1260 = vsub.s32 %v1257, %v1259
      %v1261 = vrot.slane %v1245, %v1260
      %v1263 = vunpack.c.l.s4 1966171168
      %v1264 = vunpack.c.0.s8 %v1263
      %v1265 = vlaneseq
      %v1266 = vshrl.u32 %v1265, 7
      %v1267 = vsub.s32 %v1264, %v1266
      %v1268 = vrot.slane %v1246, %v1267
      %v1270 = vunpack.c.l.s4 1966171168
      %v1271 = vunpack.c.0.s8 %v1270
      %v1272 = vlaneseq
      %v1273 = vshrl.u32 %v1272, 7
      %v1274 = vsub.s32 %v1271, %v1273
      %v1275 = vrot.slane %v1247, %v1274
      %v1276 = vcombine.low %v1254, %v1261
      %v1277 = vcombine.low %v1268, %v1275
      %v1279 = vunpack.c.l.s4 1966171168
      %v1280 = vunpack.c.0.s8 %v1279
      %v1281 = vlaneseq
      %v1282 = vshrl.u32 %v1281, 7
      %v1283 = vsub.s32 %v1280, %v1282
      %v1284 = vrot.slane %v1276, %v1283
      %v1286 = vunpack.c.l.s4 1966171168
      %v1287 = vunpack.c.0.s8 %v1286
      %v1288 = vlaneseq
      %v1289 = vshrl.u32 %v1288, 7
      %v1290 = vsub.s32 %v1287, %v1289
      %v1291 = vrot.slane %v1277, %v1290
      %v1292 = vcombine.low %v1284, %v1291
      %v1293 = vcombine.low %v938, %v953
      %v1294 = vcombine.low %v960, %v961
      %v1295 = vcombine.low %v962, %v976
      %v1296 = vcombine.low %v991, %v998
      %v1298 = vunpack.c.l.s4 1966171168
      %v1299 = vunpack.c.0.s8 %v1298
      %v1300 = vlaneseq
      %v1301 = vshrl.u32 %v1300, 7
      %v1302 = vsub.s32 %v1299, %v1301
      %v1303 = vrot.slane %v1293, %v1302
      %v1305 = vunpack.c.l.s4 1966171168
      %v1306 = vunpack.c.0.s8 %v1305
      %v1307 = vlaneseq
      %v1308 = vshrl.u32 %v1307, 7
      %v1309 = vsub.s32 %v1306, %v1308
      %v1310 = vrot.slane %v1294, %v1309
      %v1312 = vunpack.c.l.s4 1966171168
      %v1313 = vunpack.c.0.s8 %v1312
      %v1314 = vlaneseq
      %v1315 = vshrl.u32 %v1314, 7
      %v1316 = vsub.s32 %v1313, %v1315
      %v1317 = vrot.slane %v1295, %v1316
      %v1319 = vunpack.c.l.s4 1966171168
      %v1320 = vunpack.c.0.s8 %v1319
      %v1321 = vlaneseq
      %v1322 = vshrl.u32 %v1321, 7
      %v1323 = vsub.s32 %v1320, %v1322
      %v1324 = vrot.slane %v1296, %v1323
      %v1325 = vcombine.low %v1303, %v1310
      %v1326 = vcombine.low %v1317, %v1324
      %v1328 = vunpack.c.l.s4 1966171168
      %v1329 = vunpack.c.0.s8 %v1328
      %v1330 = vlaneseq
      %v1331 = vshrl.u32 %v1330, 7
      %v1332 = vsub.s32 %v1329, %v1331
      %v1333 = vrot.slane %v1325, %v1332
      %v1335 = vunpack.c.l.s4 1966171168
      %v1336 = vunpack.c.0.s8 %v1335
      %v1337 = vlaneseq
      %v1338 = vshrl.u32 %v1337, 7
      %v1339 = vsub.s32 %v1336, %v1338
      %v1340 = vrot.slane %v1326, %v1339
      %v1341 = vcombine.low %v1333, %v1340
      %v1342 = vcombine.low %v999, %v1000
      %v1343 = vcombine.low %v1014, %v1029
      %v1344 = vcombine.low %v1036, %v1037
      %v1345 = vcombine.low %v1038, %v1052
      %v1347 = vunpack.c.l.s4 1966171168
      %v1348 = vunpack.c.0.s8 %v1347
      %v1349 = vlaneseq
      %v1350 = vshrl.u32 %v1349, 7
      %v1351 = vsub.s32 %v1348, %v1350
      %v1352 = vrot.slane %v1342, %v1351
      %v1354 = vunpack.c.l.s4 1966171168
      %v1355 = vunpack.c.0.s8 %v1354
      %v1356 = vlaneseq
      %v1357 = vshrl.u32 %v1356, 7
      %v1358 = vsub.s32 %v1355, %v1357
      %v1359 = vrot.slane %v1343, %v1358
      %v1361 = vunpack.c.l.s4 1966171168
      %v1362 = vunpack.c.0.s8 %v1361
      %v1363 = vlaneseq
      %v1364 = vshrl.u32 %v1363, 7
      %v1365 = vsub.s32 %v1362, %v1364
      %v1366 = vrot.slane %v1344, %v1365
      %v1368 = vunpack.c.l.s4 1966171168
      %v1369 = vunpack.c.0.s8 %v1368
      %v1370 = vlaneseq
      %v1371 = vshrl.u32 %v1370, 7
      %v1372 = vsub.s32 %v1369, %v1371
      %v1373 = vrot.slane %v1345, %v1372
      %v1374 = vcombine.low %v1352, %v1359
      %v1375 = vcombine.low %v1366, %v1373
      %v1377 = vunpack.c.l.s4 1966171168
      %v1378 = vunpack.c.0.s8 %v1377
      %v1379 = vlaneseq
      %v1380 = vshrl.u32 %v1379, 7
      %v1381 = vsub.s32 %v1378, %v1380
      %v1382 = vrot.slane %v1374, %v1381
      %v1384 = vunpack.c.l.s4 1966171168
      %v1385 = vunpack.c.0.s8 %v1384
      %v1386 = vlaneseq
      %v1387 = vshrl.u32 %v1386, 7
      %v1388 = vsub.s32 %v1385, %v1387
      %v1389 = vrot.slane %v1375, %v1388
      %v1390 = vcombine.low %v1382, %v1389
      %v1391 = vcombine.low %v1067, %v1074
      %v1392 = vcombine.low %v1075, %v1076
      %v1393 = vcombine.low %v1090, %v1105
      %v1394 = vcombine.low %v1112, %v1113
      %v1396 = vunpack.c.l.s4 1966171168
      %v1397 = vunpack.c.0.s8 %v1396
      %v1398 = vlaneseq
      %v1399 = vshrl.u32 %v1398, 7
      %v1400 = vsub.s32 %v1397, %v1399
      %v1401 = vrot.slane %v1391, %v1400
      %v1403 = vunpack.c.l.s4 1966171168
      %v1404 = vunpack.c.0.s8 %v1403
      %v1405 = vlaneseq
      %v1406 = vshrl.u32 %v1405, 7
      %v1407 = vsub.s32 %v1404, %v1406
      %v1408 = vrot.slane %v1392, %v1407
      %v1410 = vunpack.c.l.s4 1966171168
      %v1411 = vunpack.c.0.s8 %v1410
      %v1412 = vlaneseq
      %v1413 = vshrl.u32 %v1412, 7
      %v1414 = vsub.s32 %v1411, %v1413
      %v1415 = vrot.slane %v1393, %v1414
      %v1417 = vunpack.c.l.s4 1966171168
      %v1418 = vunpack.c.0.s8 %v1417
      %v1419 = vlaneseq
      %v1420 = vshrl.u32 %v1419, 7
      %v1421 = vsub.s32 %v1418, %v1420
      %v1422 = vrot.slane %v1394, %v1421
      %v1423 = vcombine.low %v1401, %v1408
      %v1424 = vcombine.low %v1415, %v1422
      %v1426 = vunpack.c.l.s4 1966171168
      %v1427 = vunpack.c.0.s8 %v1426
      %v1428 = vlaneseq
      %v1429 = vshrl.u32 %v1428, 7
      %v1430 = vsub.s32 %v1427, %v1429
      %v1431 = vrot.slane %v1423, %v1430
      %v1433 = vunpack.c.l.s4 1966171168
      %v1434 = vunpack.c.0.s8 %v1433
      %v1435 = vlaneseq
      %v1436 = vshrl.u32 %v1435, 7
      %v1437 = vsub.s32 %v1434, %v1436
      %v1438 = vrot.slane %v1424, %v1437
      %v1439 = vcombine.low %v1431, %v1438
      %v1440 = vcombine.low %v1114, %v1128
      %v1442 = vunpack.c.l.s4 1966171168
      %v1443 = vunpack.c.0.s8 %v1442
      %v1444 = vlaneseq
      %v1445 = vshrl.u32 %v1444, 7
      %v1446 = vsub.s32 %v1443, %v1445
      %v1447 = vrot.slane %v1440, %v1446
      %v1449 = vunpack.c.l.s4 1966171168
      %v1450 = vunpack.c.0.s8 %v1449
      %v1451 = vlaneseq
      %v1452 = vshrl.u32 %v1451, 7
      %v1453 = vsub.s32 %v1450, %v1452
      %v1454 = vrot.slane %v1447, %v1453
      %v1478 = vunpack.c.l.b16 %v1130
      %v1479 = vunpack.c.l.b16 %v1131
      %v1480 = vunpack.c.l.b16 %v1132
      %v1481 = vunpack.c.l.b16 %v1133
      %v1482 = vunpack.c.l.b16 %v1134
      %v1483 = vunpack.c.l.b16 %v1135
      %v1484 = vunpack.c.l.b16 %v1136
      %v1485 = vunpack.c.l.b16 %v1137
      %v1486 = vunpack.c.l.b16 %v1138
      %v1487 = vunpack.c.l.b16 %v1139
      %v1488 = vunpack.c.l.b16 %v1140
      %v1489 = vunpack.c.l.b16 %v1141
      %v1490 = vunpack.c.l.b16 %v1142
      %v1491 = vunpack.c.l.b16 %v1143
      %v1492 = vunpack.c.l.b16 %v1144
      %v1493 = vunpack.c.l.b16 %v1145
      %v1494 = vpack.c.b16 %v1479, %v1478
      %v1495 = vpack.c.b16 %v1481, %v1480
      %v1496 = vpack.c.b16 %v1483, %v1482
      %v1497 = vpack.c.b16 %v1485, %v1484
      %v1498 = vpack.c.b16 %v1487, %v1486
      %v1499 = vpack.c.b16 %v1489, %v1488
      %v1500 = vpack.c.b16 %v1491, %v1490
      %v1501 = vpack.c.b16 %v1493, %v1492
      %1510 = vmatprep.subr.bf16.mxu0 0
      %1511 = vmatpush1.bf16.msra.mxu0 %v1494
      %1512 = vmatprep.subr.bf16.mxu0 0
      %1513 = vmatpush1.bf16.msra.mxu0 %v1495
      %1514 = vmatprep.subr.bf16.mxu0 0
      %1515 = vmatpush1.bf16.msra.mxu0 %v1496
      %1516 = vmatprep.subr.bf16.mxu0 0
      %1517 = vmatpush1.bf16.msra.mxu0 %v1497
      %1518 = vmatprep.subr.bf16.mxu0 0
      %1519 = vmatpush1.bf16.msra.mxu0 %v1498
      %1520 = vmatprep.subr.bf16.mxu0 0
      %1521 = vmatpush1.bf16.msra.mxu0 %v1499
      %1522 = vmatprep.subr.bf16.mxu0 0
      %1523 = vmatpush1.bf16.msra.mxu0 %v1500
      %1524 = vmatprep.subr.bf16.mxu0 0
      %1525 = vmatpush1.bf16.msra.mxu0 %v1501
      %1526 = vmatprep.subr.bf16.mxu0 0
      %1527 = vmatpush1.bf16.msra.mxu0 0
      %1528 = vmatprep.subr.bf16.mxu0 0
      %1529 = vmatpush1.bf16.msra.mxu0 0
      %1530 = vmatprep.subr.bf16.mxu0 0
      %1531 = vmatpush1.bf16.msra.mxu0 0
      %1532 = vmatprep.subr.bf16.mxu0 0
      %1533 = vmatpush1.bf16.msra.mxu0 0
      %1534 = vmatprep.subr.bf16.mxu0 0
      %1535 = vmatpush1.bf16.msra.mxu0 0
      %1536 = vmatprep.subr.bf16.mxu0 0
      %1537 = vmatpush1.bf16.msra.mxu0 0
      %1538 = vmatprep.subr.bf16.mxu0 0
      %1539 = vmatpush1.bf16.msra.mxu0 0
      %1540 = vmatprep.subr.bf16.mxu0 0
      %1541 = vmatpush1.bf16.msra.mxu0 0
      %1542 = vmatprep.mubr.bf16.mxu0 0
      %1543 = vmatmul.mubr.bf16.gmra.mrb[0].mxu0 %v1194
      %v1544 = vpop.f32.mrb[0].mxu0
      %v1545 = vadd.f32 0.0, %v1544
      %v1546 = vpop.f32.mrb[0].mxu0
      %v1547 = vpop.f32.mrb[0].mxu0
      %v1548 = vadd.f32 0.0, %v1547
      %v1549 = vpop.f32.mrb[0].mxu0
      %1550 = vmatprep.mubr.bf16.mxu0 0
      %1551 = vmatmul.mubr.bf16.gmra.mrb[0].mxu0 %v1243
      %v1552 = vpop.f32.mrb[0].mxu0
      %v1553 = vadd.f32 0.0, %v1552
      %v1554 = vpop.f32.mrb[0].mxu0
      %v1555 = vpop.f32.mrb[0].mxu0
      %v1556 = vadd.f32 0.0, %v1555
      %v1557 = vpop.f32.mrb[0].mxu0
      %1558 = vmatprep.mubr.bf16.mxu0 0
      %1559 = vmatmul.mubr.bf16.gmra.mrb[0].mxu0 %v1292
      %v1560 = vpop.f32.mrb[0].mxu0
      %v1561 = vadd.f32 0.0, %v1560
      %v1562 = vpop.f32.mrb[0].mxu0
      %v1563 = vpop.f32.mrb[0].mxu0
      %v1564 = vadd.f32 0.0, %v1563
      %v1565 = vpop.f32.mrb[0].mxu0
      %1566 = vmatprep.mubr.bf16.mxu0 0
      %1567 = vmatmul.mubr.bf16.gmra.mrb[0].mxu0 %v1341
      %v1568 = vpop.f32.mrb[0].mxu0
      %v1569 = vadd.f32 0.0, %v1568
      %v1570 = vpop.f32.mrb[0].mxu0
      %v1571 = vpop.f32.mrb[0].mxu0
      %v1572 = vadd.f32 0.0, %v1571
      %v1573 = vpop.f32.mrb[0].mxu0
      %1574 = vmatprep.mubr.bf16.mxu0 0
      %1575 = vmatmul.mubr.bf16.gmra.mrb[0].mxu0 %v1390
      %v1576 = vpop.f32.mrb[0].mxu0
      %v1577 = vadd.f32 0.0, %v1576
      %v1578 = vpop.f32.mrb[0].mxu0
      %v1579 = vpop.f32.mrb[0].mxu0
      %v1580 = vadd.f32 0.0, %v1579
      %v1581 = vpop.f32.mrb[0].mxu0
      %1582 = vmatprep.mubr.bf16.mxu0 0
      %1583 = vmatmul.mubr.bf16.gmra.mrb[0].mxu0 %v1439
      %v1584 = vpop.f32.mrb[0].mxu0
      %v1585 = vadd.f32 0.0, %v1584
      %v1586 = vpop.f32.mrb[0].mxu0
      %v1587 = vpop.f32.mrb[0].mxu0
      %v1588 = vadd.f32 0.0, %v1587
      %v1589 = vpop.f32.mrb[0].mxu0
      %1590 = vmatprep.mubr.bf16.mxu0 0
      %1591 = vmatmul.mubr.bf16.gmra.mrb[0].mxu0 %v1454
      %v1592 = vpop.f32.mrb[0].mxu0
      %v1593 = vadd.f32 0.0, %v1592
      %v1594 = vpop.f32.mrb[0].mxu0
      %v1595 = vpop.f32.mrb[0].mxu0
      %v1596 = vpop.f32.mrb[0].mxu0
      %1597 = vdwg.mxu0
      %s1598 = scalar_lea.vmem [#allocation2], 96
      %v1599 = vld [vmem:[%s1598 + $0x6] sm:$0xff]
      %v1600 = vld [vmem:[%s1598 + $0xe] sm:$0x3]
      %v1601 = vld [vmem:[%s1598 + $0x16] sm:$0xff]
      %v1602 = vld [vmem:[%s1598 + $0x1e] sm:$0x3]
      %v1603 = vld [vmem:[%s1598 + $0x26] sm:$0xff]
      %v1604 = vld [vmem:[%s1598 + $0x2e] sm:$0x3]
      %v1605 = vld [vmem:[%s1598 + $0x36] sm:$0xff]
      %v1606 = vld [vmem:[%s1598 + $0x3e] sm:$0x3]
      %v1607 = vld [vmem:[%s1598 + $0x46] sm:$0xff]
      %v1608 = vld [vmem:[%s1598 + $0x4e] sm:$0x3]
      %v1609 = vld [vmem:[%s1598 + $0x56] sm:$0xff]
      %v1610 = vld [vmem:[%s1598 + $0x5e] sm:$0x3]
      %v1611 = vld [vmem:[%s1598 + $0x66] sm:$0xff]
      %v1612 = vld [vmem:[%s1598 + $0x6e] sm:$0x3]
      %v1613 = vld [vmem:[%s1598 + $0x76] sm:$0xff]
      %v1614 = vld [vmem:[%s1598 + $0x7e] sm:$0x3]
      %v1615 = vld [vmem:[%s1598 + $0x86] sm:$0xff]
      %v1616 = vld [vmem:[%s1598 + $0x8e] sm:$0x3]
      %v1617 = vld [vmem:[%s1598 + $0x96] sm:$0xff]
      %v1618 = vld [vmem:[%s1598 + $0x9e] sm:$0x3]
      %v1632 = vcombine.high %v1545, %v1545
      %v1634 = vunpack.c.l.s4 1983009808
      %v1635 = vunpack.c.0.s8 %v1634
      %v1636 = vlaneseq
      %v1637 = vshrl.u32 %v1636, 7
      %v1638 = vsub.s32 %v1635, %v1637
      %v1639 = vrot.slane %v1545, %v1638
      %v1641 = vunpack.c.l.s4 1983009808
      %v1642 = vunpack.c.0.s8 %v1641
      %v1643 = vlaneseq
      %v1644 = vshrl.u32 %v1643, 7
      %v1645 = vsub.s32 %v1642, %v1644
      %v1646 = vrot.slane %v1632, %v1645
      %v1647 = vcombine.high %v1639, %v1639
      %v1648 = vcombine.high %v1646, %v1646
      %v1649 = vcombine.high %v1548, %v1548
      %v1651 = vunpack.c.l.s4 1983009808
      %v1652 = vunpack.c.0.s8 %v1651
      %v1653 = vlaneseq
      %v1654 = vshrl.u32 %v1653, 7
      %v1655 = vsub.s32 %v1652, %v1654
      %v1656 = vrot.slane %v1548, %v1655
      %v1658 = vunpack.c.l.s4 1983009808
      %v1659 = vunpack.c.0.s8 %v1658
      %v1660 = vlaneseq
      %v1661 = vshrl.u32 %v1660, 7
      %v1662 = vsub.s32 %v1659, %v1661
      %v1663 = vrot.slane %v1649, %v1662
      %v1664 = vcombine.high %v1656, %v1656
      %v1665 = vcombine.high %v1663, %v1663
      %v1666 = vcombine.high %v1553, %v1553
      %v1668 = vunpack.c.l.s4 1983009808
      %v1669 = vunpack.c.0.s8 %v1668
      %v1670 = vlaneseq
      %v1671 = vshrl.u32 %v1670, 7
      %v1672 = vsub.s32 %v1669, %v1671
      %v1673 = vrot.slane %v1553, %v1672
      %v1675 = vunpack.c.l.s4 1983009808
      %v1676 = vunpack.c.0.s8 %v1675
      %v1677 = vlaneseq
      %v1678 = vshrl.u32 %v1677, 7
      %v1679 = vsub.s32 %v1676, %v1678
      %v1680 = vrot.slane %v1666, %v1679
      %v1681 = vcombine.high %v1673, %v1673
      %v1682 = vcombine.high %v1680, %v1680
      %v1683 = vcombine.high %v1556, %v1556
      %v1685 = vunpack.c.l.s4 1983009808
      %v1686 = vunpack.c.0.s8 %v1685
      %v1687 = vlaneseq
      %v1688 = vshrl.u32 %v1687, 7
      %v1689 = vsub.s32 %v1686, %v1688
      %v1690 = vrot.slane %v1556, %v1689
      %v1692 = vunpack.c.l.s4 1983009808
      %v1693 = vunpack.c.0.s8 %v1692
      %v1694 = vlaneseq
      %v1695 = vshrl.u32 %v1694, 7
      %v1696 = vsub.s32 %v1693, %v1695
      %v1697 = vrot.slane %v1683, %v1696
      %v1698 = vcombine.high %v1690, %v1690
      %v1699 = vcombine.high %v1697, %v1697
      %v1700 = vcombine.high %v1561, %v1561
      %v1702 = vunpack.c.l.s4 1983009808
      %v1703 = vunpack.c.0.s8 %v1702
      %v1704 = vlaneseq
      %v1705 = vshrl.u32 %v1704, 7
      %v1706 = vsub.s32 %v1703, %v1705
      %v1707 = vrot.slane %v1561, %v1706
      %v1709 = vunpack.c.l.s4 1983009808
      %v1710 = vunpack.c.0.s8 %v1709
      %v1711 = vlaneseq
      %v1712 = vshrl.u32 %v1711, 7
      %v1713 = vsub.s32 %v1710, %v1712
      %v1714 = vrot.slane %v1700, %v1713
      %v1715 = vcombine.high %v1707, %v1707
      %v1716 = vcombine.high %v1714, %v1714
      %v1717 = vcombine.high %v1564, %v1564
      %v1719 = vunpack.c.l.s4 1983009808
      %v1720 = vunpack.c.0.s8 %v1719
      %v1721 = vlaneseq
      %v1722 = vshrl.u32 %v1721, 7
      %v1723 = vsub.s32 %v1720, %v1722
      %v1724 = vrot.slane %v1564, %v1723
      %v1726 = vunpack.c.l.s4 1983009808
      %v1727 = vunpack.c.0.s8 %v1726
      %v1728 = vlaneseq
      %v1729 = vshrl.u32 %v1728, 7
      %v1730 = vsub.s32 %v1727, %v1729
      %v1731 = vrot.slane %v1717, %v1730
      %v1732 = vcombine.high %v1724, %v1724
      %v1733 = vcombine.high %v1731, %v1731
      %v1734 = vcombine.high %v1569, %v1569
      %v1736 = vunpack.c.l.s4 1983009808
      %v1737 = vunpack.c.0.s8 %v1736
      %v1738 = vlaneseq
      %v1739 = vshrl.u32 %v1738, 7
      %v1740 = vsub.s32 %v1737, %v1739
      %v1741 = vrot.slane %v1569, %v1740
      %v1743 = vunpack.c.l.s4 1983009808
      %v1744 = vunpack.c.0.s8 %v1743
      %v1745 = vlaneseq
      %v1746 = vshrl.u32 %v1745, 7
      %v1747 = vsub.s32 %v1744, %v1746
      %v1748 = vrot.slane %v1734, %v1747
      %v1749 = vcombine.high %v1741, %v1741
      %v1750 = vcombine.high %v1748, %v1748
      %v1751 = vcombine.high %v1572, %v1572
      %v1753 = vunpack.c.l.s4 1983009808
      %v1754 = vunpack.c.0.s8 %v1753
      %v1755 = vlaneseq
      %v1756 = vshrl.u32 %v1755, 7
      %v1757 = vsub.s32 %v1754, %v1756
      %v1758 = vrot.slane %v1572, %v1757
      %v1760 = vunpack.c.l.s4 1983009808
      %v1761 = vunpack.c.0.s8 %v1760
      %v1762 = vlaneseq
      %v1763 = vshrl.u32 %v1762, 7
      %v1764 = vsub.s32 %v1761, %v1763
      %v1765 = vrot.slane %v1751, %v1764
      %v1766 = vcombine.high %v1758, %v1758
      %v1767 = vcombine.high %v1765, %v1765
      %v1768 = vcombine.high %v1577, %v1577
      %v1770 = vunpack.c.l.s4 1983009808
      %v1771 = vunpack.c.0.s8 %v1770
      %v1772 = vlaneseq
      %v1773 = vshrl.u32 %v1772, 7
      %v1774 = vsub.s32 %v1771, %v1773
      %v1775 = vrot.slane %v1577, %v1774
      %v1777 = vunpack.c.l.s4 1983009808
      %v1778 = vunpack.c.0.s8 %v1777
      %v1779 = vlaneseq
      %v1780 = vshrl.u32 %v1779, 7
      %v1781 = vsub.s32 %v1778, %v1780
      %v1782 = vrot.slane %v1768, %v1781
      %v1783 = vcombine.high %v1775, %v1775
      %v1784 = vcombine.high %v1782, %v1782
      %v1785 = vcombine.high %v1580, %v1580
      %v1787 = vunpack.c.l.s4 1983009808
      %v1788 = vunpack.c.0.s8 %v1787
      %v1789 = vlaneseq
      %v1790 = vshrl.u32 %v1789, 7
      %v1791 = vsub.s32 %v1788, %v1790
      %v1792 = vrot.slane %v1580, %v1791
      %v1794 = vunpack.c.l.s4 1983009808
      %v1795 = vunpack.c.0.s8 %v1794
      %v1796 = vlaneseq
      %v1797 = vshrl.u32 %v1796, 7
      %v1798 = vsub.s32 %v1795, %v1797
      %v1799 = vrot.slane %v1785, %v1798
      %v1800 = vcombine.high %v1792, %v1792
      %v1801 = vcombine.high %v1799, %v1799
      %v1802 = vcombine.high %v1585, %v1585
      %v1804 = vunpack.c.l.s4 1983009808
      %v1805 = vunpack.c.0.s8 %v1804
      %v1806 = vlaneseq
      %v1807 = vshrl.u32 %v1806, 7
      %v1808 = vsub.s32 %v1805, %v1807
      %v1809 = vrot.slane %v1585, %v1808
      %v1811 = vunpack.c.l.s4 1983009808
      %v1812 = vunpack.c.0.s8 %v1811
      %v1813 = vlaneseq
      %v1814 = vshrl.u32 %v1813, 7
      %v1815 = vsub.s32 %v1812, %v1814
      %v1816 = vrot.slane %v1802, %v1815
      %v1817 = vcombine.high %v1809, %v1809
      %v1818 = vcombine.high %v1816, %v1816
      %v1819 = vcombine.high %v1588, %v1588
      %v1821 = vunpack.c.l.s4 1983009808
      %v1822 = vunpack.c.0.s8 %v1821
      %v1823 = vlaneseq
      %v1824 = vshrl.u32 %v1823, 7
      %v1825 = vsub.s32 %v1822, %v1824
      %v1826 = vrot.slane %v1588, %v1825
      %v1828 = vunpack.c.l.s4 1983009808
      %v1829 = vunpack.c.0.s8 %v1828
      %v1830 = vlaneseq
      %v1831 = vshrl.u32 %v1830, 7
      %v1832 = vsub.s32 %v1829, %v1831
      %v1833 = vrot.slane %v1819, %v1832
      %v1834 = vcombine.high %v1826, %v1826
      %v1835 = vcombine.high %v1833, %v1833
      %v1837 = vunpack.c.l.s4 1983009808
      %v1838 = vunpack.c.0.s8 %v1837
      %v1839 = vlaneseq
      %v1840 = vshrl.u32 %v1839, 7
      %v1841 = vsub.s32 %v1838, %v1840
      %v1842 = vrot.slane %v1593, %v1841
      %v1843 = vcombine.high %v1842, %v1842
      %v1844 = vcombine.low %v1639, %v1647
      %v1845 = vcombine.low %v1646, %v1648
      %v1847 = vunpack.c.l.s4 1983009808
      %v1848 = vunpack.c.0.s8 %v1847
      %v1849 = vlaneseq
      %v1850 = vshrl.u32 %v1849, 7
      %v1851 = vsub.s32 %v1848, %v1850
      %v1852 = vrot.slane %v1844, %v1851
      %v1854 = vunpack.c.l.s4 1983009808
      %v1855 = vunpack.c.0.s8 %v1854
      %v1856 = vlaneseq
      %v1857 = vshrl.u32 %v1856, 7
      %v1858 = vsub.s32 %v1855, %v1857
      %v1859 = vrot.slane %v1845, %v1858
      %v1860 = vcombine.low %v1852, %v1859
      %v1862 = vunpack.c.l.s4 1983009808
      %v1863 = vunpack.c.0.s8 %v1862
      %v1864 = vlaneseq
      %v1865 = vshrl.u32 %v1864, 7
      %v1866 = vsub.s32 %v1863, %v1865
      %v1867 = vrot.slane %v1656, %v1866
      %v1868 = vcombine.low %v1664, %v1663
      %v1869 = vcombine.low %v1665, %v1673
      %v1871 = vunpack.c.l.s4 1983009808
      %v1872 = vunpack.c.0.s8 %v1871
      %v1873 = vlaneseq
      %v1874 = vshrl.u32 %v1873, 7
      %v1875 = vsub.s32 %v1872, %v1874
      %v1876 = vrot.slane %v1868, %v1875
      %v1878 = vunpack.c.l.s4 1983009808
      %v1879 = vunpack.c.0.s8 %v1878
      %v1880 = vlaneseq
      %v1881 = vshrl.u32 %v1880, 7
      %v1882 = vsub.s32 %v1879, %v1881
      %v1883 = vrot.slane %v1869, %v1882
      %v1884 = vcombine.low %v1876, %v1883
      %v1886 = vunpack.c.l.s4 1983009808
      %v1887 = vunpack.c.0.s8 %v1886
      %v1888 = vlaneseq
      %v1889 = vshrl.u32 %v1888, 7
      %v1890 = vsub.s32 %v1887, %v1889
      %v1891 = vrot.slane %v1681, %v1890
      %v1892 = vcombine.low %v1680, %v1682
      %v1893 = vcombine.low %v1690, %v1698
      %v1895 = vunpack.c.l.s4 1983009808
      %v1896 = vunpack.c.0.s8 %v1895
      %v1897 = vlaneseq
      %v1898 = vshrl.u32 %v1897, 7
      %v1899 = vsub.s32 %v1896, %v1898
      %v1900 = vrot.slane %v1892, %v1899
      %v1902 = vunpack.c.l.s4 1983009808
      %v1903 = vunpack.c.0.s8 %v1902
      %v1904 = vlaneseq
      %v1905 = vshrl.u32 %v1904, 7
      %v1906 = vsub.s32 %v1903, %v1905
      %v1907 = vrot.slane %v1893, %v1906
      %v1908 = vcombine.low %v1900, %v1907
      %v1910 = vunpack.c.l.s4 1983009808
      %v1911 = vunpack.c.0.s8 %v1910
      %v1912 = vlaneseq
      %v1913 = vshrl.u32 %v1912, 7
      %v1914 = vsub.s32 %v1911, %v1913
      %v1915 = vrot.slane %v1697, %v1914
      %v1916 = vcombine.low %v1699, %v1707
      %v1917 = vcombine.low %v1715, %v1714
      %v1919 = vunpack.c.l.s4 1983009808
      %v1920 = vunpack.c.0.s8 %v1919
      %v1921 = vlaneseq
      %v1922 = vshrl.u32 %v1921, 7
      %v1923 = vsub.s32 %v1920, %v1922
      %v1924 = vrot.slane %v1916, %v1923
      %v1926 = vunpack.c.l.s4 1983009808
      %v1927 = vunpack.c.0.s8 %v1926
      %v1928 = vlaneseq
      %v1929 = vshrl.u32 %v1928, 7
      %v1930 = vsub.s32 %v1927, %v1929
      %v1931 = vrot.slane %v1917, %v1930
      %v1932 = vcombine.low %v1924, %v1931
      %v1934 = vunpack.c.l.s4 1983009808
      %v1935 = vunpack.c.0.s8 %v1934
      %v1936 = vlaneseq
      %v1937 = vshrl.u32 %v1936, 7
      %v1938 = vsub.s32 %v1935, %v1937
      %v1939 = vrot.slane %v1716, %v1938
      %v1940 = vcombine.low %v1724, %v1732
      %v1941 = vcombine.low %v1731, %v1733
      %v1943 = vunpack.c.l.s4 1983009808
      %v1944 = vunpack.c.0.s8 %v1943
      %v1945 = vlaneseq
      %v1946 = vshrl.u32 %v1945, 7
      %v1947 = vsub.s32 %v1944, %v1946
      %v1948 = vrot.slane %v1940, %v1947
      %v1950 = vunpack.c.l.s4 1983009808
      %v1951 = vunpack.c.0.s8 %v1950
      %v1952 = vlaneseq
      %v1953 = vshrl.u32 %v1952, 7
      %v1954 = vsub.s32 %v1951, %v1953
      %v1955 = vrot.slane %v1941, %v1954
      %v1956 = vcombine.low %v1948, %v1955
      %v1958 = vunpack.c.l.s4 1983009808
      %v1959 = vunpack.c.0.s8 %v1958
      %v1960 = vlaneseq
      %v1961 = vshrl.u32 %v1960, 7
      %v1962 = vsub.s32 %v1959, %v1961
      %v1963 = vrot.slane %v1741, %v1962
      %v1964 = vcombine.low %v1749, %v1748
      %v1965 = vcombine.low %v1750, %v1758
      %v1967 = vunpack.c.l.s4 1983009808
      %v1968 = vunpack.c.0.s8 %v1967
      %v1969 = vlaneseq
      %v1970 = vshrl.u32 %v1969, 7
      %v1971 = vsub.s32 %v1968, %v1970
      %v1972 = vrot.slane %v1964, %v1971
      %v1974 = vunpack.c.l.s4 1983009808
      %v1975 = vunpack.c.0.s8 %v1974
      %v1976 = vlaneseq
      %v1977 = vshrl.u32 %v1976, 7
      %v1978 = vsub.s32 %v1975, %v1977
      %v1979 = vrot.slane %v1965, %v1978
      %v1980 = vcombine.low %v1972, %v1979
      %v1982 = vunpack.c.l.s4 1983009808
      %v1983 = vunpack.c.0.s8 %v1982
      %v1984 = vlaneseq
      %v1985 = vshrl.u32 %v1984, 7
      %v1986 = vsub.s32 %v1983, %v1985
      %v1987 = vrot.slane %v1766, %v1986
      %v1988 = vcombine.low %v1765, %v1767
      %v1989 = vcombine.low %v1775, %v1783
      %v1991 = vunpack.c.l.s4 1983009808
      %v1992 = vunpack.c.0.s8 %v1991
      %v1993 = vlaneseq
      %v1994 = vshrl.u32 %v1993, 7
      %v1995 = vsub.s32 %v1992, %v1994
      %v1996 = vrot.slane %v1988, %v1995
      %v1998 = vunpack.c.l.s4 1983009808
      %v1999 = vunpack.c.0.s8 %v1998
      %v2000 = vlaneseq
      %v2001 = vshrl.u32 %v2000, 7
      %v2002 = vsub.s32 %v1999, %v2001
      %v2003 = vrot.slane %v1989, %v2002
      %v2004 = vcombine.low %v1996, %v2003
      %v2006 = vunpack.c.l.s4 1983009808
      %v2007 = vunpack.c.0.s8 %v2006
      %v2008 = vlaneseq
      %v2009 = vshrl.u32 %v2008, 7
      %v2010 = vsub.s32 %v2007, %v2009
      %v2011 = vrot.slane %v1782, %v2010
      %v2012 = vcombine.low %v1784, %v1792
      %v2013 = vcombine.low %v1800, %v1799
      %v2015 = vunpack.c.l.s4 1983009808
      %v2016 = vunpack.c.0.s8 %v2015
      %v2017 = vlaneseq
      %v2018 = vshrl.u32 %v2017, 7
      %v2019 = vsub.s32 %v2016, %v2018
      %v2020 = vrot.slane %v2012, %v2019
      %v2022 = vunpack.c.l.s4 1983009808
      %v2023 = vunpack.c.0.s8 %v2022
      %v2024 = vlaneseq
      %v2025 = vshrl.u32 %v2024, 7
      %v2026 = vsub.s32 %v2023, %v2025
      %v2027 = vrot.slane %v2013, %v2026
      %v2028 = vcombine.low %v2020, %v2027
      %v2030 = vunpack.c.l.s4 1983009808
      %v2031 = vunpack.c.0.s8 %v2030
      %v2032 = vlaneseq
      %v2033 = vshrl.u32 %v2032, 7
      %v2034 = vsub.s32 %v2031, %v2033
      %v2035 = vrot.slane %v1801, %v2034
      %v2036 = vcombine.low %v1809, %v1817
      %v2037 = vcombine.low %v1816, %v1818
      %v2039 = vunpack.c.l.s4 1983009808
      %v2040 = vunpack.c.0.s8 %v2039
      %v2041 = vlaneseq
      %v2042 = vshrl.u32 %v2041, 7
      %v2043 = vsub.s32 %v2040, %v2042
      %v2044 = vrot.slane %v2036, %v2043
      %v2046 = vunpack.c.l.s4 1983009808
      %v2047 = vunpack.c.0.s8 %v2046
      %v2048 = vlaneseq
      %v2049 = vshrl.u32 %v2048, 7
      %v2050 = vsub.s32 %v2047, %v2049
      %v2051 = vrot.slane %v2037, %v2050
      %v2052 = vcombine.low %v2044, %v2051
      %v2054 = vunpack.c.l.s4 1983009808
      %v2055 = vunpack.c.0.s8 %v2054
      %v2056 = vlaneseq
      %v2057 = vshrl.u32 %v2056, 7
      %v2058 = vsub.s32 %v2055, %v2057
      %v2059 = vrot.slane %v1826, %v2058
      %v2060 = vcombine.low %v1834, %v1833
      %v2061 = vcombine.low %v1835, %v1842
      %v2063 = vunpack.c.l.s4 1983009808
      %v2064 = vunpack.c.0.s8 %v2063
      %v2065 = vlaneseq
      %v2066 = vshrl.u32 %v2065, 7
      %v2067 = vsub.s32 %v2064, %v2066
      %v2068 = vrot.slane %v2060, %v2067
      %v2070 = vunpack.c.l.s4 1983009808
      %v2071 = vunpack.c.0.s8 %v2070
      %v2072 = vlaneseq
      %v2073 = vshrl.u32 %v2072, 7
      %v2074 = vsub.s32 %v2071, %v2073
      %v2075 = vrot.slane %v2061, %v2074
      %v2076 = vcombine.low %v2068, %v2075
      %v2078 = vunpack.c.l.s4 1983009808
      %v2079 = vunpack.c.0.s8 %v2078
      %v2080 = vlaneseq
      %v2081 = vshrl.u32 %v2080, 7
      %v2082 = vsub.s32 %v2079, %v2081
      %v2083 = vrot.slane %v1843, %v2082
      %v2104 = vadd.f32 %v1599, %v1860
      %v2105 = vadd.f32 %v1600, %v1867
      %v2106 = vadd.f32 %v1601, %v1884
      %v2107 = vadd.f32 %v1602, %v1891
      %v2108 = vadd.f32 %v1603, %v1908
      %v2109 = vadd.f32 %v1604, %v1915
      %v2110 = vadd.f32 %v1605, %v1932
      %v2111 = vadd.f32 %v1606, %v1939
      %v2112 = vadd.f32 %v1607, %v1956
      %v2113 = vadd.f32 %v1608, %v1963
      %v2114 = vadd.f32 %v1609, %v1980
      %v2115 = vadd.f32 %v1610, %v1987
      %v2116 = vadd.f32 %v1611, %v2004
      %v2117 = vadd.f32 %v1612, %v2011
      %v2118 = vadd.f32 %v1613, %v2028
      %v2119 = vadd.f32 %v1614, %v2035
      %v2120 = vadd.f32 %v1615, %v2052
      %v2121 = vadd.f32 %v1616, %v2059
      %v2122 = vadd.f32 %v1617, %v2076
      %v2123 = vadd.f32 %v1618, %v2083
      %2124 = vst [vmem:[%s1598 + $0x6] sm:$0xff] %v2104
      %2125 = vst [vmem:[%s1598 + $0xe] sm:$0x3] %v2105
      %2126 = vst [vmem:[%s1598 + $0x16] sm:$0xff] %v2106
      %2127 = vst [vmem:[%s1598 + $0x1e] sm:$0x3] %v2107
      %2128 = vst [vmem:[%s1598 + $0x26] sm:$0xff] %v2108
      %2129 = vst [vmem:[%s1598 + $0x2e] sm:$0x3] %v2109
      %2130 = vst [vmem:[%s1598 + $0x36] sm:$0xff] %v2110
      %2131 = vst [vmem:[%s1598 + $0x3e] sm:$0x3] %v2111
      %2132 = vst [vmem:[%s1598 + $0x46] sm:$0xff] %v2112
      %2133 = vst [vmem:[%s1598 + $0x4e] sm:$0x3] %v2113
      %2134 = vst [vmem:[%s1598 + $0x56] sm:$0xff] %v2114
      %2135 = vst [vmem:[%s1598 + $0x5e] sm:$0x3] %v2115
      %2136 = vst [vmem:[%s1598 + $0x66] sm:$0xff] %v2116
      %2137 = vst [vmem:[%s1598 + $0x6e] sm:$0x3] %v2117
      %2138 = vst [vmem:[%s1598 + $0x76] sm:$0xff] %v2118
      %2139 = vst [vmem:[%s1598 + $0x7e] sm:$0x3] %v2119
      %2140 = vst [vmem:[%s1598 + $0x86] sm:$0xff] %v2120
      %2141 = vst [vmem:[%s1598 + $0x8e] sm:$0x3] %v2121
      %2142 = vst [vmem:[%s1598 + $0x96] sm:$0xff] %v2122
      %2143 = vst [vmem:[%s1598 + $0x9e] sm:$0x3] %v2123
      %s2144 = scalar_lea.vmem %s1, 256
      %v2145 = vld [vmem:[%s2144] sm:$0xf]
      %v2146 = vld [vmem:[%s2144 + $0x4] sm:$0xf]
      %v2147 = vld [vmem:[%s2144 + $0x8] sm:$0xf]
      %v2148 = vld [vmem:[%s2144 + $0xc] sm:$0xf]
      %v2149 = vld [vmem:[%s2144 + $0x10] sm:$0xf]
      %v2150 = vld [vmem:[%s2144 + $0x14] sm:$0xf]
      %v2151 = vld [vmem:[%s2144 + $0x18] sm:$0xf]
      %v2152 = vld [vmem:[%s2144 + $0x1c] sm:$0xf]
      %v2153 = vld [vmem:[%s2144 + $0x20] sm:$0xf]
      %v2154 = vld [vmem:[%s2144 + $0x24] sm:$0xf]
      %v2155 = vld [vmem:[%s2144 + $0x28] sm:$0xf]
      %v2156 = vld [vmem:[%s2144 + $0x2c] sm:$0xf]
      %v2157 = vld [vmem:[%s2144 + $0x30] sm:$0xf]
      %v2158 = vld [vmem:[%s2144 + $0x34] sm:$0xf]
      %v2159 = vld [vmem:[%s2144 + $0x38] sm:$0xf]
      %v2160 = vld [vmem:[%s2144 + $0x3c] sm:$0xf]
      %v2161 = vunpack.c.l.b16 %v219
      %v2162 = vunpack.c.l.b16 %v220
      %v2163 = vunpack.c.l.b16 %v221
      %v2164 = vunpack.c.l.b16 %v222
      %v2165 = vunpack.c.l.b16 %v223
      %v2166 = vunpack.c.l.b16 %v224
      %v2167 = vunpack.c.l.b16 %v225
      %v2168 = vunpack.c.l.b16 %v226
      %v2169 = vunpack.c.l.b16 %v227
      %v2170 = vunpack.c.l.b16 %v228
      %v2171 = vunpack.c.l.b16 %v229
      %v2172 = vunpack.c.l.b16 %v230
      %v2173 = vpack.c.b16 %v2162, %v2161
      %v2174 = vpack.c.b16 %v2164, %v2163
      %v2175 = vpack.c.b16 %v2166, %v2165
      %v2176 = vpack.c.b16 %v2168, %v2167
      %v2177 = vpack.c.b16 %v2170, %v2169
      %v2178 = vpack.c.b16 %v2172, %v2171
      %v2201 = vunpack.c.l.b16 %v2145
      %v2202 = vunpack.c.l.b16 %v2146
      %v2203 = vunpack.c.l.b16 %v2147
      %v2204 = vunpack.c.l.b16 %v2148
      %v2205 = vunpack.c.l.b16 %v2149
      %v2206 = vunpack.c.l.b16 %v2150
      %v2207 = vunpack.c.l.b16 %v2151
      %v2208 = vunpack.c.l.b16 %v2152
      %v2209 = vunpack.c.l.b16 %v2153
      %v2210 = vunpack.c.l.b16 %v2154
      %v2211 = vunpack.c.l.b16 %v2155
      %v2212 = vunpack.c.l.b16 %v2156
      %v2213 = vunpack.c.l.b16 %v2157
      %v2214 = vunpack.c.l.b16 %v2158
      %v2215 = vunpack.c.l.b16 %v2159
      %v2216 = vunpack.c.l.b16 %v2160
      %v2217 = vpack.c.b16 %v2202, %v2201
      %v2218 = vpack.c.b16 %v2204, %v2203
      %v2219 = vpack.c.b16 %v2206, %v2205
      %v2220 = vpack.c.b16 %v2208, %v2207
      %v2221 = vpack.c.b16 %v2210, %v2209
      %v2222 = vpack.c.b16 %v2212, %v2211
      %v2223 = vpack.c.b16 %v2214, %v2213
      %v2224 = vpack.c.b16 %v2216, %v2215
      %2233 = vmatprep.subr.bf16.mxu0 0
      %2234 = vmatpush1.bf16.msra.mxu0 %v2217
      %2235 = vmatprep.subr.bf16.mxu0 0
      %2236 = vmatpush1.bf16.msra.mxu0 %v2218
      %2237 = vmatprep.subr.bf16.mxu0 0
      %2238 = vmatpush1.bf16.msra.mxu0 %v2219
      %2239 = vmatprep.subr.bf16.mxu0 0
      %2240 = vmatpush1.bf16.msra.mxu0 %v2220
      %2241 = vmatprep.subr.bf16.mxu0 0
      %2242 = vmatpush1.bf16.msra.mxu0 %v2221
      %2243 = vmatprep.subr.bf16.mxu0 0
      %2244 = vmatpush1.bf16.msra.mxu0 %v2222
      %2245 = vmatprep.subr.bf16.mxu0 0
      %2246 = vmatpush1.bf16.msra.mxu0 %v2223
      %2247 = vmatprep.subr.bf16.mxu0 0
      %2248 = vmatpush1.bf16.msra.mxu0 %v2224
      %2249 = vmatprep.subr.bf16.mxu0 0
      %2250 = vmatpush1.bf16.msra.mxu0 0
      %2251 = vmatprep.subr.bf16.mxu0 0
      %2252 = vmatpush1.bf16.msra.mxu0 0
      %2253 = vmatprep.subr.bf16.mxu0 0
      %2254 = vmatpush1.bf16.msra.mxu0 0
      %2255 = vmatprep.subr.bf16.mxu0 0
      %2256 = vmatpush1.bf16.msra.mxu0 0
      %2257 = vmatprep.subr.bf16.mxu0 0
      %2258 = vmatpush1.bf16.msra.mxu0 0
      %2259 = vmatprep.subr.bf16.mxu0 0
      %2260 = vmatpush1.bf16.msra.mxu0 0
      %2261 = vmatprep.subr.bf16.mxu0 0
      %2262 = vmatpush1.bf16.msra.mxu0 0
      %2263 = vmatprep.subr.bf16.mxu0 0
      %2264 = vmatpush1.bf16.msra.mxu0 0
      %2265 = vmatprep.mubr.bf16.mxu0 0
      %2266 = vmatmul.mubr.bf16.gmra.mrb[0].mxu0 %v418
      %v2267 = vpop.f32.mrb[0].mxu0
      %v2268 = vadd.f32 0.0, %v2267
      %v2269 = vpop.f32.mrb[0].mxu0
      %v2270 = vpop.f32.mrb[0].mxu0
      %v2271 = vadd.f32 0.0, %v2270
      %v2272 = vpop.f32.mrb[0].mxu0
      %2273 = vmatprep.mubr.bf16.mxu0 0
      %2274 = vmatmul.mubr.bf16.gmra.mrb[0].mxu0 %v419
      %v2275 = vpop.f32.mrb[0].mxu0
      %v2276 = vadd.f32 0.0, %v2275
      %v2277 = vpop.f32.mrb[0].mxu0
      %v2278 = vpop.f32.mrb[0].mxu0
      %v2279 = vadd.f32 0.0, %v2278
      %v2280 = vpop.f32.mrb[0].mxu0
      %2281 = vmatprep.mubr.bf16.mxu0 0
      %2282 = vmatmul.mubr.bf16.gmra.mrb[0].mxu0 %v420
      %v2283 = vpop.f32.mrb[0].mxu0
      %v2284 = vadd.f32 0.0, %v2283
      %v2285 = vpop.f32.mrb[0].mxu0
      %v2286 = vpop.f32.mrb[0].mxu0
      %v2287 = vadd.f32 0.0, %v2286
      %v2288 = vpop.f32.mrb[0].mxu0
      %2289 = vmatprep.mubr.bf16.mxu0 0
      %2290 = vmatmul.mubr.bf16.gmra.mrb[0].mxu0 %v421
      %v2291 = vpop.f32.mrb[0].mxu0
      %v2292 = vadd.f32 0.0, %v2291
      %v2293 = vpop.f32.mrb[0].mxu0
      %v2294 = vpop.f32.mrb[0].mxu0
      %v2295 = vadd.f32 0.0, %v2294
      %v2296 = vpop.f32.mrb[0].mxu0
      %2297 = vmatprep.mubr.bf16.mxu0 0
      %2298 = vmatmul.mubr.bf16.gmra.mrb[0].mxu0 %v2173
      %v2299 = vpop.f32.mrb[0].mxu0
      %v2300 = vadd.f32 0.0, %v2299
      %v2301 = vpop.f32.mrb[0].mxu0
      %v2302 = vpop.f32.mrb[0].mxu0
      %v2303 = vadd.f32 0.0, %v2302
      %v2304 = vpop.f32.mrb[0].mxu0
      %2305 = vmatprep.mubr.bf16.mxu0 0
      %2306 = vmatmul.mubr.bf16.gmra.mrb[0].mxu0 %v2174
      %v2307 = vpop.f32.mrb[0].mxu0
      %v2308 = vadd.f32 0.0, %v2307
      %v2309 = vpop.f32.mrb[0].mxu0
      %v2310 = vpop.f32.mrb[0].mxu0
      %v2311 = vadd.f32 0.0, %v2310
      %v2312 = vpop.f32.mrb[0].mxu0
      %2313 = vmatprep.mubr.bf16.mxu0 0
      %2314 = vmatmul.mubr.bf16.gmra.mrb[0].mxu0 %v2175
      %v2315 = vpop.f32.mrb[0].mxu0
      %v2316 = vadd.f32 0.0, %v2315
      %v2317 = vpop.f32.mrb[0].mxu0
      %v2318 = vpop.f32.mrb[0].mxu0
      %v2319 = vadd.f32 0.0, %v2318
      %v2320 = vpop.f32.mrb[0].mxu0
      %2321 = vmatprep.mubr.bf16.mxu0 0
      %2322 = vmatmul.mubr.bf16.gmra.mrb[0].mxu0 %v2176
      %v2323 = vpop.f32.mrb[0].mxu0
      %v2324 = vadd.f32 0.0, %v2323
      %v2325 = vpop.f32.mrb[0].mxu0
      %v2326 = vpop.f32.mrb[0].mxu0
      %v2327 = vadd.f32 0.0, %v2326
      %v2328 = vpop.f32.mrb[0].mxu0
      %2329 = vmatprep.mubr.bf16.mxu0 0
      %2330 = vmatmul.mubr.bf16.gmra.mrb[0].mxu0 %v2177
      %v2331 = vpop.f32.mrb[0].mxu0
      %v2332 = vadd.f32 0.0, %v2331
      %v2333 = vpop.f32.mrb[0].mxu0
      %v2334 = vpop.f32.mrb[0].mxu0
      %v2335 = vadd.f32 0.0, %v2334
      %v2336 = vpop.f32.mrb[0].mxu0
      %2337 = vmatprep.mubr.bf16.mxu0 0
      %2338 = vmatmul.mubr.bf16.gmra.mrb[0].mxu0 %v2178
      %v2339 = vpop.f32.mrb[0].mxu0
      %v2340 = vadd.f32 0.0, %v2339
      %v2341 = vpop.f32.mrb[0].mxu0
      %v2342 = vpop.f32.mrb[0].mxu0
      %v2343 = vadd.f32 0.0, %v2342
      %v2344 = vpop.f32.mrb[0].mxu0
      %2345 = vdwg.mxu0
      %v2346 = vld [vmem:[%s1598] sm:$0xff]
      %v2347 = vld [vmem:[%s1598 + $0x8] sm:$0xff]
      %v2348 = vld [vmem:[%s1598 + $0x10] sm:$0xff]
      %v2349 = vld [vmem:[%s1598 + $0x18] sm:$0xff]
      %v2350 = vld [vmem:[%s1598 + $0x20] sm:$0xff]
      %v2351 = vld [vmem:[%s1598 + $0x28] sm:$0xff]
      %v2352 = vld [vmem:[%s1598 + $0x30] sm:$0xff]
      %v2353 = vld [vmem:[%s1598 + $0x38] sm:$0xff]
      %v2354 = vld [vmem:[%s1598 + $0x40] sm:$0xff]
      %v2355 = vld [vmem:[%s1598 + $0x48] sm:$0xff]
      %v2356 = vld [vmem:[%s1598 + $0x50] sm:$0xff]
      %v2357 = vld [vmem:[%s1598 + $0x58] sm:$0xff]
      %v2358 = vld [vmem:[%s1598 + $0x60] sm:$0xff]
      %v2359 = vld [vmem:[%s1598 + $0x68] sm:$0xff]
      %v2360 = vld [vmem:[%s1598 + $0x70] sm:$0xff]
      %v2361 = vld [vmem:[%s1598 + $0x78] sm:$0xff]
      %v2362 = vld [vmem:[%s1598 + $0x80] sm:$0xff]
      %v2363 = vld [vmem:[%s1598 + $0x88] sm:$0xff]
      %v2364 = vld [vmem:[%s1598 + $0x90] sm:$0xff]
      %v2365 = vld [vmem:[%s1598 + $0x98] sm:$0xff]
      %v2366 = vadd.f32 %v2346, %v2268
      %v2367 = vadd.f32 %v2347, %v2271
      %v2368 = vadd.f32 %v2348, %v2276
      %v2369 = vadd.f32 %v2349, %v2279
      %v2370 = vadd.f32 %v2350, %v2284
      %v2371 = vadd.f32 %v2351, %v2287
      %v2372 = vadd.f32 %v2352, %v2292
      %v2373 = vadd.f32 %v2353, %v2295
      %v2374 = vadd.f32 %v2354, %v2300
      %v2375 = vadd.f32 %v2355, %v2303
      %v2376 = vadd.f32 %v2356, %v2308
      %v2377 = vadd.f32 %v2357, %v2311
      %v2378 = vadd.f32 %v2358, %v2316
      %v2379 = vadd.f32 %v2359, %v2319
      %v2380 = vadd.f32 %v2360, %v2324
      %v2381 = vadd.f32 %v2361, %v2327
      %v2382 = vadd.f32 %v2362, %v2332
      %v2383 = vadd.f32 %v2363, %v2335
      %v2384 = vadd.f32 %v2364, %v2340
      %v2385 = vadd.f32 %v2365, %v2343
      %2386 = vst [vmem:[%s1598] sm:$0xff] %v2366
      %2387 = vst [vmem:[%s1598 + $0x8] sm:$0xff] %v2367
      %2388 = vst [vmem:[%s1598 + $0x10] sm:$0xff] %v2368
      %2389 = vst [vmem:[%s1598 + $0x18] sm:$0xff] %v2369
      %2390 = vst [vmem:[%s1598 + $0x20] sm:$0xff] %v2370
      %2391 = vst [vmem:[%s1598 + $0x28] sm:$0xff] %v2371
      %2392 = vst [vmem:[%s1598 + $0x30] sm:$0xff] %v2372
      %2393 = vst [vmem:[%s1598 + $0x38] sm:$0xff] %v2373
      %2394 = vst [vmem:[%s1598 + $0x40] sm:$0xff] %v2374
      %2395 = vst [vmem:[%s1598 + $0x48] sm:$0xff] %v2375
      %2396 = vst [vmem:[%s1598 + $0x50] sm:$0xff] %v2376
      %2397 = vst [vmem:[%s1598 + $0x58] sm:$0xff] %v2377
      %2398 = vst [vmem:[%s1598 + $0x60] sm:$0xff] %v2378
      %2399 = vst [vmem:[%s1598 + $0x68] sm:$0xff] %v2379
      %2400 = vst [vmem:[%s1598 + $0x70] sm:$0xff] %v2380
      %2401 = vst [vmem:[%s1598 + $0x78] sm:$0xff] %v2381
      %2402 = vst [vmem:[%s1598 + $0x80] sm:$0xff] %v2382
      %2403 = vst [vmem:[%s1598 + $0x88] sm:$0xff] %v2383
      %2404 = vst [vmem:[%s1598 + $0x90] sm:$0xff] %v2384
      %2405 = vst [vmem:[%s1598 + $0x98] sm:$0xff] %v2385
      %v2406 = vcombine.high %v779, %v779
      %v2408 = vunpack.c.l.s4 1966171168
      %v2409 = vunpack.c.0.s8 %v2408
      %v2410 = vlaneseq
      %v2411 = vshrl.u32 %v2410, 7
      %v2412 = vsub.s32 %v2409, %v2411
      %v2413 = vrot.slane %v2406, %v2412
      %v2414 = vcombine.high %v786, %v786
      %v2415 = vcombine.high %v2413, %v2413
      %v2416 = vcombine.high %v817, %v817
      %v2418 = vunpack.c.l.s4 1966171168
      %v2419 = vunpack.c.0.s8 %v2418
      %v2420 = vlaneseq
      %v2421 = vshrl.u32 %v2420, 7
      %v2422 = vsub.s32 %v2419, %v2421
      %v2423 = vrot.slane %v2416, %v2422
      %v2424 = vcombine.high %v824, %v824
      %v2425 = vcombine.high %v2423, %v2423
      %v2426 = vcombine.high %v855, %v855
      %v2428 = vunpack.c.l.s4 1966171168
      %v2429 = vunpack.c.0.s8 %v2428
      %v2430 = vlaneseq
      %v2431 = vshrl.u32 %v2430, 7
      %v2432 = vsub.s32 %v2429, %v2431
      %v2433 = vrot.slane %v2426, %v2432
      %v2434 = vcombine.high %v862, %v862
      %v2435 = vcombine.high %v2433, %v2433
      %v2436 = vcombine.high %v893, %v893
      %v2438 = vunpack.c.l.s4 1966171168
      %v2439 = vunpack.c.0.s8 %v2438
      %v2440 = vlaneseq
      %v2441 = vshrl.u32 %v2440, 7
      %v2442 = vsub.s32 %v2439, %v2441
      %v2443 = vrot.slane %v2436, %v2442
      %v2444 = vcombine.high %v900, %v900
      %v2445 = vcombine.high %v2443, %v2443
      %v2446 = vcombine.high %v931, %v931
      %v2448 = vunpack.c.l.s4 1966171168
      %v2449 = vunpack.c.0.s8 %v2448
      %v2450 = vlaneseq
      %v2451 = vshrl.u32 %v2450, 7
      %v2452 = vsub.s32 %v2449, %v2451
      %v2453 = vrot.slane %v2446, %v2452
      %v2454 = vcombine.high %v938, %v938
      %v2455 = vcombine.high %v2453, %v2453
      %v2456 = vcombine.high %v969, %v969
      %v2458 = vunpack.c.l.s4 1966171168
      %v2459 = vunpack.c.0.s8 %v2458
      %v2460 = vlaneseq
      %v2461 = vshrl.u32 %v2460, 7
      %v2462 = vsub.s32 %v2459, %v2461
      %v2463 = vrot.slane %v2456, %v2462
      %v2464 = vcombine.high %v976, %v976
      %v2465 = vcombine.high %v2463, %v2463
      %v2466 = vcombine.high %v1007, %v1007
      %v2468 = vunpack.c.l.s4 1966171168
      %v2469 = vunpack.c.0.s8 %v2468
      %v2470 = vlaneseq
      %v2471 = vshrl.u32 %v2470, 7
      %v2472 = vsub.s32 %v2469, %v2471
      %v2473 = vrot.slane %v2466, %v2472
      %v2474 = vcombine.high %v1014, %v1014
      %v2475 = vcombine.high %v2473, %v2473
      %v2476 = vcombine.high %v1045, %v1045
      %v2478 = vunpack.c.l.s4 1966171168
      %v2479 = vunpack.c.0.s8 %v2478
      %v2480 = vlaneseq
      %v2481 = vshrl.u32 %v2480, 7
      %v2482 = vsub.s32 %v2479, %v2481
      %v2483 = vrot.slane %v2476, %v2482
      %v2484 = vcombine.high %v1052, %v1052
      %v2485 = vcombine.high %v2483, %v2483
      %v2486 = vcombine.high %v1083, %v1083
      %v2488 = vunpack.c.l.s4 1966171168
      %v2489 = vunpack.c.0.s8 %v2488
      %v2490 = vlaneseq
      %v2491 = vshrl.u32 %v2490, 7
      %v2492 = vsub.s32 %v2489, %v2491
      %v2493 = vrot.slane %v2486, %v2492
      %v2494 = vcombine.high %v1090, %v1090
      %v2495 = vcombine.high %v2493, %v2493
      %v2496 = vcombine.high %v1121, %v1121
      %v2498 = vunpack.c.l.s4 1966171168
      %v2499 = vunpack.c.0.s8 %v2498
      %v2500 = vlaneseq
      %v2501 = vshrl.u32 %v2500, 7
      %v2502 = vsub.s32 %v2499, %v2501
      %v2503 = vrot.slane %v2496, %v2502
      %v2504 = vcombine.high %v1128, %v1128
      %v2505 = vcombine.high %v2503, %v2503
      %s2506 = scalar_lea.vmem %s1, 320
      %v2507 = vld [vmem:[%s2506] sm:$0xf]
      %v2508 = vld [vmem:[%s2506 + $0x4] sm:$0xf]
      %v2509 = vld [vmem:[%s2506 + $0x8] sm:$0xf]
      %v2510 = vld [vmem:[%s2506 + $0xc] sm:$0xf]
      %v2511 = vld [vmem:[%s2506 + $0x10] sm:$0xf]
      %v2512 = vld [vmem:[%s2506 + $0x14] sm:$0xf]
      %v2513 = vld [vmem:[%s2506 + $0x18] sm:$0xf]
      %v2514 = vld [vmem:[%s2506 + $0x1c] sm:$0xf]
      %v2515 = vld [vmem:[%s2506 + $0x20] sm:$0xf]
      %v2516 = vld [vmem:[%s2506 + $0x24] sm:$0xf]
      %v2517 = vld [vmem:[%s2506 + $0x28] sm:$0xf]
      %v2518 = vld [vmem:[%s2506 + $0x2c] sm:$0xf]
      %v2519 = vld [vmem:[%s2506 + $0x30] sm:$0xf]
      %v2520 = vld [vmem:[%s2506 + $0x34] sm:$0xf]
      %v2521 = vld [vmem:[%s2506 + $0x38] sm:$0xf]
      %v2522 = vld [vmem:[%s2506 + $0x3c] sm:$0xf]
      %v2523 = vcombine.low %v772, %v786
      %v2524 = vcombine.low %v2413, %v2414
      %v2525 = vcombine.low %v2415, %v810
      %v2526 = vcombine.low %v824, %v2423
      %v2528 = vunpack.c.l.s4 1966171168
      %v2529 = vunpack.c.0.s8 %v2528
      %v2530 = vlaneseq
      %v2531 = vshrl.u32 %v2530, 7
      %v2532 = vsub.s32 %v2529, %v2531
      %v2533 = vrot.slane %v2523, %v2532
      %v2535 = vunpack.c.l.s4 1966171168
      %v2536 = vunpack.c.0.s8 %v2535
      %v2537 = vlaneseq
      %v2538 = vshrl.u32 %v2537, 7
      %v2539 = vsub.s32 %v2536, %v2538
      %v2540 = vrot.slane %v2524, %v2539
      %v2542 = vunpack.c.l.s4 1966171168
      %v2543 = vunpack.c.0.s8 %v2542
      %v2544 = vlaneseq
      %v2545 = vshrl.u32 %v2544, 7
      %v2546 = vsub.s32 %v2543, %v2545
      %v2547 = vrot.slane %v2525, %v2546
      %v2549 = vunpack.c.l.s4 1966171168
      %v2550 = vunpack.c.0.s8 %v2549
      %v2551 = vlaneseq
      %v2552 = vshrl.u32 %v2551, 7
      %v2553 = vsub.s32 %v2550, %v2552
      %v2554 = vrot.slane %v2526, %v2553
      %v2555 = vcombine.low %v2533, %v2540
      %v2556 = vcombine.low %v2547, %v2554
      %v2558 = vunpack.c.l.s4 1966171168
      %v2559 = vunpack.c.0.s8 %v2558
      %v2560 = vlaneseq
      %v2561 = vshrl.u32 %v2560, 7
      %v2562 = vsub.s32 %v2559, %v2561
      %v2563 = vrot.slane %v2555, %v2562
      %v2565 = vunpack.c.l.s4 1966171168
      %v2566 = vunpack.c.0.s8 %v2565
      %v2567 = vlaneseq
      %v2568 = vshrl.u32 %v2567, 7
      %v2569 = vsub.s32 %v2566, %v2568
      %v2570 = vrot.slane %v2556, %v2569
      %v2571 = vcombine.low %v2563, %v2570
      %v2572 = vcombine.low %v2424, %v2425
      %v2573 = vcombine.low %v848, %v862
      %v2574 = vcombine.low %v2433, %v2434
      %v2575 = vcombine.low %v2435, %v886
      %v2577 = vunpack.c.l.s4 1966171168
      %v2578 = vunpack.c.0.s8 %v2577
      %v2579 = vlaneseq
      %v2580 = vshrl.u32 %v2579, 7
      %v2581 = vsub.s32 %v2578, %v2580
      %v2582 = vrot.slane %v2572, %v2581
      %v2584 = vunpack.c.l.s4 1966171168
      %v2585 = vunpack.c.0.s8 %v2584
      %v2586 = vlaneseq
      %v2587 = vshrl.u32 %v2586, 7
      %v2588 = vsub.s32 %v2585, %v2587
      %v2589 = vrot.slane %v2573, %v2588
      %v2591 = vunpack.c.l.s4 1966171168
      %v2592 = vunpack.c.0.s8 %v2591
      %v2593 = vlaneseq
      %v2594 = vshrl.u32 %v2593, 7
      %v2595 = vsub.s32 %v2592, %v2594
      %v2596 = vrot.slane %v2574, %v2595
      %v2598 = vunpack.c.l.s4 1966171168
      %v2599 = vunpack.c.0.s8 %v2598
      %v2600 = vlaneseq
      %v2601 = vshrl.u32 %v2600, 7
      %v2602 = vsub.s32 %v2599, %v2601
      %v2603 = vrot.slane %v2575, %v2602
      %v2604 = vcombine.low %v2582, %v2589
      %v2605 = vcombine.low %v2596, %v2603
      %v2607 = vunpack.c.l.s4 1966171168
      %v2608 = vunpack.c.0.s8 %v2607
      %v2609 = vlaneseq
      %v2610 = vshrl.u32 %v2609, 7
      %v2611 = vsub.s32 %v2608, %v2610
      %v2612 = vrot.slane %v2604, %v2611
      %v2614 = vunpack.c.l.s4 1966171168
      %v2615 = vunpack.c.0.s8 %v2614
      %v2616 = vlaneseq
      %v2617 = vshrl.u32 %v2616, 7
      %v2618 = vsub.s32 %v2615, %v2617
      %v2619 = vrot.slane %v2605, %v2618
      %v2620 = vcombine.low %v2612, %v2619
      %v2621 = vcombine.low %v900, %v2443
      %v2622 = vcombine.low %v2444, %v2445
      %v2623 = vcombine.low %v924, %v938
      %v2624 = vcombine.low %v2453, %v2454
      %v2626 = vunpack.c.l.s4 1966171168
      %v2627 = vunpack.c.0.s8 %v2626
      %v2628 = vlaneseq
      %v2629 = vshrl.u32 %v2628, 7
      %v2630 = vsub.s32 %v2627, %v2629
      %v2631 = vrot.slane %v2621, %v2630
      %v2633 = vunpack.c.l.s4 1966171168
      %v2634 = vunpack.c.0.s8 %v2633
      %v2635 = vlaneseq
      %v2636 = vshrl.u32 %v2635, 7
      %v2637 = vsub.s32 %v2634, %v2636
      %v2638 = vrot.slane %v2622, %v2637
      %v2640 = vunpack.c.l.s4 1966171168
      %v2641 = vunpack.c.0.s8 %v2640
      %v2642 = vlaneseq
      %v2643 = vshrl.u32 %v2642, 7
      %v2644 = vsub.s32 %v2641, %v2643
      %v2645 = vrot.slane %v2623, %v2644
      %v2647 = vunpack.c.l.s4 1966171168
      %v2648 = vunpack.c.0.s8 %v2647
      %v2649 = vlaneseq
      %v2650 = vshrl.u32 %v2649, 7
      %v2651 = vsub.s32 %v2648, %v2650
      %v2652 = vrot.slane %v2624, %v2651
      %v2653 = vcombine.low %v2631, %v2638
      %v2654 = vcombine.low %v2645, %v2652
      %v2656 = vunpack.c.l.s4 1966171168
      %v2657 = vunpack.c.0.s8 %v2656
      %v2658 = vlaneseq
      %v2659 = vshrl.u32 %v2658, 7
      %v2660 = vsub.s32 %v2657, %v2659
      %v2661 = vrot.slane %v2653, %v2660
      %v2663 = vunpack.c.l.s4 1966171168
      %v2664 = vunpack.c.0.s8 %v2663
      %v2665 = vlaneseq
      %v2666 = vshrl.u32 %v2665, 7
      %v2667 = vsub.s32 %v2664, %v2666
      %v2668 = vrot.slane %v2654, %v2667
      %v2669 = vcombine.low %v2661, %v2668
      %v2670 = vcombine.low %v2455, %v962
      %v2671 = vcombine.low %v976, %v2463
      %v2672 = vcombine.low %v2464, %v2465
      %v2673 = vcombine.low %v1000, %v1014
      %v2675 = vunpack.c.l.s4 1966171168
      %v2676 = vunpack.c.0.s8 %v2675
      %v2677 = vlaneseq
      %v2678 = vshrl.u32 %v2677, 7
      %v2679 = vsub.s32 %v2676, %v2678
      %v2680 = vrot.slane %v2670, %v2679
      %v2682 = vunpack.c.l.s4 1966171168
      %v2683 = vunpack.c.0.s8 %v2682
      %v2684 = vlaneseq
      %v2685 = vshrl.u32 %v2684, 7
      %v2686 = vsub.s32 %v2683, %v2685
      %v2687 = vrot.slane %v2671, %v2686
      %v2689 = vunpack.c.l.s4 1966171168
      %v2690 = vunpack.c.0.s8 %v2689
      %v2691 = vlaneseq
      %v2692 = vshrl.u32 %v2691, 7
      %v2693 = vsub.s32 %v2690, %v2692
      %v2694 = vrot.slane %v2672, %v2693
      %v2696 = vunpack.c.l.s4 1966171168
      %v2697 = vunpack.c.0.s8 %v2696
      %v2698 = vlaneseq
      %v2699 = vshrl.u32 %v2698, 7
      %v2700 = vsub.s32 %v2697, %v2699
      %v2701 = vrot.slane %v2673, %v2700
      %v2702 = vcombine.low %v2680, %v2687
      %v2703 = vcombine.low %v2694, %v2701
      %v2705 = vunpack.c.l.s4 1966171168
      %v2706 = vunpack.c.0.s8 %v2705
      %v2707 = vlaneseq
      %v2708 = vshrl.u32 %v2707, 7
      %v2709 = vsub.s32 %v2706, %v2708
      %v2710 = vrot.slane %v2702, %v2709
      %v2712 = vunpack.c.l.s4 1966171168
      %v2713 = vunpack.c.0.s8 %v2712
      %v2714 = vlaneseq
      %v2715 = vshrl.u32 %v2714, 7
      %v2716 = vsub.s32 %v2713, %v2715
      %v2717 = vrot.slane %v2703, %v2716
      %v2718 = vcombine.low %v2710, %v2717
      %v2719 = vcombine.low %v2473, %v2474
      %v2720 = vcombine.low %v2475, %v1038
      %v2721 = vcombine.low %v1052, %v2483
      %v2722 = vcombine.low %v2484, %v2485
      %v2724 = vunpack.c.l.s4 1966171168
      %v2725 = vunpack.c.0.s8 %v2724
      %v2726 = vlaneseq
      %v2727 = vshrl.u32 %v2726, 7
      %v2728 = vsub.s32 %v2725, %v2727
      %v2729 = vrot.slane %v2719, %v2728
      %v2731 = vunpack.c.l.s4 1966171168
      %v2732 = vunpack.c.0.s8 %v2731
      %v2733 = vlaneseq
      %v2734 = vshrl.u32 %v2733, 7
      %v2735 = vsub.s32 %v2732, %v2734
      %v2736 = vrot.slane %v2720, %v2735
      %v2738 = vunpack.c.l.s4 1966171168
      %v2739 = vunpack.c.0.s8 %v2738
      %v2740 = vlaneseq
      %v2741 = vshrl.u32 %v2740, 7
      %v2742 = vsub.s32 %v2739, %v2741
      %v2743 = vrot.slane %v2721, %v2742
      %v2745 = vunpack.c.l.s4 1966171168
      %v2746 = vunpack.c.0.s8 %v2745
      %v2747 = vlaneseq
      %v2748 = vshrl.u32 %v2747, 7
      %v2749 = vsub.s32 %v2746, %v2748
      %v2750 = vrot.slane %v2722, %v2749
      %v2751 = vcombine.low %v2729, %v2736
      %v2752 = vcombine.low %v2743, %v2750
      %v2754 = vunpack.c.l.s4 1966171168
      %v2755 = vunpack.c.0.s8 %v2754
      %v2756 = vlaneseq
      %v2757 = vshrl.u32 %v2756, 7
      %v2758 = vsub.s32 %v2755, %v2757
      %v2759 = vrot.slane %v2751, %v2758
      %v2761 = vunpack.c.l.s4 1966171168
      %v2762 = vunpack.c.0.s8 %v2761
      %v2763 = vlaneseq
      %v2764 = vshrl.u32 %v2763, 7
      %v2765 = vsub.s32 %v2762, %v2764
      %v2766 = vrot.slane %v2752, %v2765
      %v2767 = vcombine.low %v2759, %v2766
      %v2768 = vcombine.low %v1076, %v1090
      %v2769 = vcombine.low %v2493, %v2494
      %v2770 = vcombine.low %v2495, %v1114
      %v2771 = vcombine.low %v1128, %v2503
      %v2773 = vunpack.c.l.s4 1966171168
      %v2774 = vunpack.c.0.s8 %v2773
      %v2775 = vlaneseq
      %v2776 = vshrl.u32 %v2775, 7
      %v2777 = vsub.s32 %v2774, %v2776
      %v2778 = vrot.slane %v2768, %v2777
      %v2780 = vunpack.c.l.s4 1966171168
      %v2781 = vunpack.c.0.s8 %v2780
      %v2782 = vlaneseq
      %v2783 = vshrl.u32 %v2782, 7
      %v2784 = vsub.s32 %v2781, %v2783
      %v2785 = vrot.slane %v2769, %v2784
      %v2787 = vunpack.c.l.s4 1966171168
      %v2788 = vunpack.c.0.s8 %v2787
      %v2789 = vlaneseq
      %v2790 = vshrl.u32 %v2789, 7
      %v2791 = vsub.s32 %v2788, %v2790
      %v2792 = vrot.slane %v2770, %v2791
      %v2794 = vunpack.c.l.s4 1966171168
      %v2795 = vunpack.c.0.s8 %v2794
      %v2796 = vlaneseq
      %v2797 = vshrl.u32 %v2796, 7
      %v2798 = vsub.s32 %v2795, %v2797
      %v2799 = vrot.slane %v2771, %v2798
      %v2800 = vcombine.low %v2778, %v2785
      %v2801 = vcombine.low %v2792, %v2799
      %v2803 = vunpack.c.l.s4 1966171168
      %v2804 = vunpack.c.0.s8 %v2803
      %v2805 = vlaneseq
      %v2806 = vshrl.u32 %v2805, 7
      %v2807 = vsub.s32 %v2804, %v2806
      %v2808 = vrot.slane %v2800, %v2807
      %v2810 = vunpack.c.l.s4 1966171168
      %v2811 = vunpack.c.0.s8 %v2810
      %v2812 = vlaneseq
      %v2813 = vshrl.u32 %v2812, 7
      %v2814 = vsub.s32 %v2811, %v2813
      %v2815 = vrot.slane %v2801, %v2814
      %v2816 = vcombine.low %v2808, %v2815
      %v2817 = vcombine.low %v2504, %v2505
      %v2819 = vunpack.c.l.s4 1966171168
      %v2820 = vunpack.c.0.s8 %v2819
      %v2821 = vlaneseq
      %v2822 = vshrl.u32 %v2821, 7
      %v2823 = vsub.s32 %v2820, %v2822
      %v2824 = vrot.slane %v2817, %v2823
      %v2826 = vunpack.c.l.s4 1966171168
      %v2827 = vunpack.c.0.s8 %v2826
      %v2828 = vlaneseq
      %v2829 = vshrl.u32 %v2828, 7
      %v2830 = vsub.s32 %v2827, %v2829
      %v2831 = vrot.slane %v2824, %v2830
      %v2855 = vunpack.c.l.b16 %v2507
      %v2856 = vunpack.c.l.b16 %v2508
      %v2857 = vunpack.c.l.b16 %v2509
      %v2858 = vunpack.c.l.b16 %v2510
      %v2859 = vunpack.c.l.b16 %v2511
      %v2860 = vunpack.c.l.b16 %v2512
      %v2861 = vunpack.c.l.b16 %v2513
      %v2862 = vunpack.c.l.b16 %v2514
      %v2863 = vunpack.c.l.b16 %v2515
      %v2864 = vunpack.c.l.b16 %v2516
      %v2865 = vunpack.c.l.b16 %v2517
      %v2866 = vunpack.c.l.b16 %v2518
      %v2867 = vunpack.c.l.b16 %v2519
      %v2868 = vunpack.c.l.b16 %v2520
      %v2869 = vunpack.c.l.b16 %v2521
      %v2870 = vunpack.c.l.b16 %v2522
      %v2871 = vpack.c.b16 %v2856, %v2855
      %v2872 = vpack.c.b16 %v2858, %v2857
      %v2873 = vpack.c.b16 %v2860, %v2859
      %v2874 = vpack.c.b16 %v2862, %v2861
      %v2875 = vpack.c.b16 %v2864, %v2863
      %v2876 = vpack.c.b16 %v2866, %v2865
      %v2877 = vpack.c.b16 %v2868, %v2867
      %v2878 = vpack.c.b16 %v2870, %v2869
      %2887 = vmatprep.subr.bf16.mxu0 0
      %2888 = vmatpush1.bf16.msra.mxu0 %v2871
      %2889 = vmatprep.subr.bf16.mxu0 0
      %2890 = vmatpush1.bf16.msra.mxu0 %v2872
      %2891 = vmatprep.subr.bf16.mxu0 0
      %2892 = vmatpush1.bf16.msra.mxu0 %v2873
      %2893 = vmatprep.subr.bf16.mxu0 0
      %2894 = vmatpush1.bf16.msra.mxu0 %v2874
      %2895 = vmatprep.subr.bf16.mxu0 0
      %2896 = vmatpush1.bf16.msra.mxu0 %v2875
      %2897 = vmatprep.subr.bf16.mxu0 0
      %2898 = vmatpush1.bf16.msra.mxu0 %v2876
      %2899 = vmatprep.subr.bf16.mxu0 0
      %2900 = vmatpush1.bf16.msra.mxu0 %v2877
      %2901 = vmatprep.subr.bf16.mxu0 0
      %2902 = vmatpush1.bf16.msra.mxu0 %v2878
      %2903 = vmatprep.subr.bf16.mxu0 0
      %2904 = vmatpush1.bf16.msra.mxu0 0
      %2905 = vmatprep.subr.bf16.mxu0 0
      %2906 = vmatpush1.bf16.msra.mxu0 0
      %2907 = vmatprep.subr.bf16.mxu0 0
      %2908 = vmatpush1.bf16.msra.mxu0 0
      %2909 = vmatprep.subr.bf16.mxu0 0
      %2910 = vmatpush1.bf16.msra.mxu0 0
      %2911 = vmatprep.subr.bf16.mxu0 0
      %2912 = vmatpush1.bf16.msra.mxu0 0
      %2913 = vmatprep.subr.bf16.mxu0 0
      %2914 = vmatpush1.bf16.msra.mxu0 0
      %2915 = vmatprep.subr.bf16.mxu0 0
      %2916 = vmatpush1.bf16.msra.mxu0 0
      %2917 = vmatprep.subr.bf16.mxu0 0
      %2918 = vmatpush1.bf16.msra.mxu0 0
      %2919 = vmatprep.mubr.bf16.mxu0 0
      %2920 = vmatmul.mubr.bf16.gmra.mrb[0].mxu0 %v2571
      %v2921 = vpop.f32.mrb[0].mxu0
      %v2922 = vadd.f32 0.0, %v2921
      %v2923 = vpop.f32.mrb[0].mxu0
      %v2924 = vpop.f32.mrb[0].mxu0
      %v2925 = vadd.f32 0.0, %v2924
      %v2926 = vpop.f32.mrb[0].mxu0
      %2927 = vmatprep.mubr.bf16.mxu0 0
      %2928 = vmatmul.mubr.bf16.gmra.mrb[0].mxu0 %v2620
      %v2929 = vpop.f32.mrb[0].mxu0
      %v2930 = vadd.f32 0.0, %v2929
      %v2931 = vpop.f32.mrb[0].mxu0
      %v2932 = vpop.f32.mrb[0].mxu0
      %v2933 = vadd.f32 0.0, %v2932
      %v2934 = vpop.f32.mrb[0].mxu0
      %2935 = vmatprep.mubr.bf16.mxu0 0
      %2936 = vmatmul.mubr.bf16.gmra.mrb[0].mxu0 %v2669
      %v2937 = vpop.f32.mrb[0].mxu0
      %v2938 = vadd.f32 0.0, %v2937
      %v2939 = vpop.f32.mrb[0].mxu0
      %v2940 = vpop.f32.mrb[0].mxu0
      %v2941 = vadd.f32 0.0, %v2940
      %v2942 = vpop.f32.mrb[0].mxu0
      %2943 = vmatprep.mubr.bf16.mxu0 0
      %2944 = vmatmul.mubr.bf16.gmra.mrb[0].mxu0 %v2718
      %v2945 = vpop.f32.mrb[0].mxu0
      %v2946 = vadd.f32 0.0, %v2945
      %v2947 = vpop.f32.mrb[0].mxu0
      %v2948 = vpop.f32.mrb[0].mxu0
      %v2949 = vadd.f32 0.0, %v2948
      %v2950 = vpop.f32.mrb[0].mxu0
      %2951 = vmatprep.mubr.bf16.mxu0 0
      %2952 = vmatmul.mubr.bf16.gmra.mrb[0].mxu0 %v2767
      %v2953 = vpop.f32.mrb[0].mxu0
      %v2954 = vadd.f32 0.0, %v2953
      %v2955 = vpop.f32.mrb[0].mxu0
      %v2956 = vpop.f32.mrb[0].mxu0
      %v2957 = vadd.f32 0.0, %v2956
      %v2958 = vpop.f32.mrb[0].mxu0
      %2959 = vmatprep.mubr.bf16.mxu0 0
      %2960 = vmatmul.mubr.bf16.gmra.mrb[0].mxu0 %v2816
      %v2961 = vpop.f32.mrb[0].mxu0
      %v2962 = vadd.f32 0.0, %v2961
      %v2963 = vpop.f32.mrb[0].mxu0
      %v2964 = vpop.f32.mrb[0].mxu0
      %v2965 = vadd.f32 0.0, %v2964
      %v2966 = vpop.f32.mrb[0].mxu0
      %2967 = vmatprep.mubr.bf16.mxu0 0
      %2968 = vmatmul.mubr.bf16.gmra.mrb[0].mxu0 %v2831
      %v2969 = vpop.f32.mrb[0].mxu0
      %v2970 = vadd.f32 0.0, %v2969
      %v2971 = vpop.f32.mrb[0].mxu0
      %v2972 = vpop.f32.mrb[0].mxu0
      %v2973 = vpop.f32.mrb[0].mxu0
      %2974 = vdwg.mxu0
      %v2975 = vld [vmem:[%s1598] sm:$0xff]
      %v2976 = vld [vmem:[%s1598 + $0x8] sm:$0x3]
      %v2977 = vld [vmem:[%s1598 + $0x10] sm:$0xff]
      %v2978 = vld [vmem:[%s1598 + $0x18] sm:$0x3]
      %v2979 = vld [vmem:[%s1598 + $0x20] sm:$0xff]
      %v2980 = vld [vmem:[%s1598 + $0x28] sm:$0x3]
      %v2981 = vld [vmem:[%s1598 + $0x30] sm:$0xff]
      %v2982 = vld [vmem:[%s1598 + $0x38] sm:$0x3]
      %v2983 = vld [vmem:[%s1598 + $0x40] sm:$0xff]
      %v2984 = vld [vmem:[%s1598 + $0x48] sm:$0x3]
      %v2985 = vld [vmem:[%s1598 + $0x50] sm:$0xff]
      %v2986 = vld [vmem:[%s1598 + $0x58] sm:$0x3]
      %v2987 = vld [vmem:[%s1598 + $0x60] sm:$0xff]
      %v2988 = vld [vmem:[%s1598 + $0x68] sm:$0x3]
      %v2989 = vld [vmem:[%s1598 + $0x70] sm:$0xff]
      %v2990 = vld [vmem:[%s1598 + $0x78] sm:$0x3]
      %v2991 = vld [vmem:[%s1598 + $0x80] sm:$0xff]
      %v2992 = vld [vmem:[%s1598 + $0x88] sm:$0x3]
      %v2993 = vld [vmem:[%s1598 + $0x90] sm:$0xff]
      %v2994 = vld [vmem:[%s1598 + $0x98] sm:$0x3]
      %v3008 = vcombine.high %v2922, %v2922
      %v3010 = vunpack.c.l.s4 1983009808
      %v3011 = vunpack.c.0.s8 %v3010
      %v3012 = vlaneseq
      %v3013 = vshrl.u32 %v3012, 7
      %v3014 = vsub.s32 %v3011, %v3013
      %v3015 = vrot.slane %v2922, %v3014
      %v3017 = vunpack.c.l.s4 1983009808
      %v3018 = vunpack.c.0.s8 %v3017
      %v3019 = vlaneseq
      %v3020 = vshrl.u32 %v3019, 7
      %v3021 = vsub.s32 %v3018, %v3020
      %v3022 = vrot.slane %v3008, %v3021
      %v3023 = vcombine.high %v3015, %v3015
      %v3024 = vcombine.high %v3022, %v3022
      %v3025 = vcombine.high %v2925, %v2925
      %v3027 = vunpack.c.l.s4 1983009808
      %v3028 = vunpack.c.0.s8 %v3027
      %v3029 = vlaneseq
      %v3030 = vshrl.u32 %v3029, 7
      %v3031 = vsub.s32 %v3028, %v3030
      %v3032 = vrot.slane %v2925, %v3031
      %v3034 = vunpack.c.l.s4 1983009808
      %v3035 = vunpack.c.0.s8 %v3034
      %v3036 = vlaneseq
      %v3037 = vshrl.u32 %v3036, 7
      %v3038 = vsub.s32 %v3035, %v3037
      %v3039 = vrot.slane %v3025, %v3038
      %v3040 = vcombine.high %v3032, %v3032
      %v3041 = vcombine.high %v3039, %v3039
      %v3042 = vcombine.high %v2930, %v2930
      %v3044 = vunpack.c.l.s4 1983009808
      %v3045 = vunpack.c.0.s8 %v3044
      %v3046 = vlaneseq
      %v3047 = vshrl.u32 %v3046, 7
      %v3048 = vsub.s32 %v3045, %v3047
      %v3049 = vrot.slane %v2930, %v3048
      %v3051 = vunpack.c.l.s4 1983009808
      %v3052 = vunpack.c.0.s8 %v3051
      %v3053 = vlaneseq
      %v3054 = vshrl.u32 %v3053, 7
      %v3055 = vsub.s32 %v3052, %v3054
      %v3056 = vrot.slane %v3042, %v3055
      %v3057 = vcombine.high %v3049, %v3049
      %v3058 = vcombine.high %v3056, %v3056
      %v3059 = vcombine.high %v2933, %v2933
      %v3061 = vunpack.c.l.s4 1983009808
      %v3062 = vunpack.c.0.s8 %v3061
      %v3063 = vlaneseq
      %v3064 = vshrl.u32 %v3063, 7
      %v3065 = vsub.s32 %v3062, %v3064
      %v3066 = vrot.slane %v2933, %v3065
      %v3068 = vunpack.c.l.s4 1983009808
      %v3069 = vunpack.c.0.s8 %v3068
      %v3070 = vlaneseq
      %v3071 = vshrl.u32 %v3070, 7
      %v3072 = vsub.s32 %v3069, %v3071
      %v3073 = vrot.slane %v3059, %v3072
      %v3074 = vcombine.high %v3066, %v3066
      %v3075 = vcombine.high %v3073, %v3073
      %v3076 = vcombine.high %v2938, %v2938
      %v3078 = vunpack.c.l.s4 1983009808
      %v3079 = vunpack.c.0.s8 %v3078
      %v3080 = vlaneseq
      %v3081 = vshrl.u32 %v3080, 7
      %v3082 = vsub.s32 %v3079, %v3081
      %v3083 = vrot.slane %v2938, %v3082
      %v3085 = vunpack.c.l.s4 1983009808
      %v3086 = vunpack.c.0.s8 %v3085
      %v3087 = vlaneseq
      %v3088 = vshrl.u32 %v3087, 7
      %v3089 = vsub.s32 %v3086, %v3088
      %v3090 = vrot.slane %v3076, %v3089
      %v3091 = vcombine.high %v3083, %v3083
      %v3092 = vcombine.high %v3090, %v3090
      %v3093 = vcombine.high %v2941, %v2941
      %v3095 = vunpack.c.l.s4 1983009808
      %v3096 = vunpack.c.0.s8 %v3095
      %v3097 = vlaneseq
      %v3098 = vshrl.u32 %v3097, 7
      %v3099 = vsub.s32 %v3096, %v3098
      %v3100 = vrot.slane %v2941, %v3099
      %v3102 = vunpack.c.l.s4 1983009808
      %v3103 = vunpack.c.0.s8 %v3102
      %v3104 = vlaneseq
      %v3105 = vshrl.u32 %v3104, 7
      %v3106 = vsub.s32 %v3103, %v3105
      %v3107 = vrot.slane %v3093, %v3106
      %v3108 = vcombine.high %v3100, %v3100
      %v3109 = vcombine.high %v3107, %v3107
      %v3110 = vcombine.high %v2946, %v2946
      %v3112 = vunpack.c.l.s4 1983009808
      %v3113 = vunpack.c.0.s8 %v3112
      %v3114 = vlaneseq
      %v3115 = vshrl.u32 %v3114, 7
      %v3116 = vsub.s32 %v3113, %v3115
      %v3117 = vrot.slane %v2946, %v3116
      %v3119 = vunpack.c.l.s4 1983009808
      %v3120 = vunpack.c.0.s8 %v3119
      %v3121 = vlaneseq
      %v3122 = vshrl.u32 %v3121, 7
      %v3123 = vsub.s32 %v3120, %v3122
      %v3124 = vrot.slane %v3110, %v3123
      %v3125 = vcombine.high %v3117, %v3117
      %v3126 = vcombine.high %v3124, %v3124
      %v3127 = vcombine.high %v2949, %v2949
      %v3129 = vunpack.c.l.s4 1983009808
      %v3130 = vunpack.c.0.s8 %v3129
      %v3131 = vlaneseq
      %v3132 = vshrl.u32 %v3131, 7
      %v3133 = vsub.s32 %v3130, %v3132
      %v3134 = vrot.slane %v2949, %v3133
      %v3136 = vunpack.c.l.s4 1983009808
      %v3137 = vunpack.c.0.s8 %v3136
      %v3138 = vlaneseq
      %v3139 = vshrl.u32 %v3138, 7
      %v3140 = vsub.s32 %v3137, %v3139
      %v3141 = vrot.slane %v3127, %v3140
      %v3142 = vcombine.high %v3134, %v3134
      %v3143 = vcombine.high %v3141, %v3141
      %v3144 = vcombine.high %v2954, %v2954
      %v3146 = vunpack.c.l.s4 1983009808
      %v3147 = vunpack.c.0.s8 %v3146
      %v3148 = vlaneseq
      %v3149 = vshrl.u32 %v3148, 7
      %v3150 = vsub.s32 %v3147, %v3149
      %v3151 = vrot.slane %v2954, %v3150
      %v3153 = vunpack.c.l.s4 1983009808
      %v3154 = vunpack.c.0.s8 %v3153
      %v3155 = vlaneseq
      %v3156 = vshrl.u32 %v3155, 7
      %v3157 = vsub.s32 %v3154, %v3156
      %v3158 = vrot.slane %v3144, %v3157
      %v3159 = vcombine.high %v3151, %v3151
      %v3160 = vcombine.high %v3158, %v3158
      %v3161 = vcombine.high %v2957, %v2957
      %v3163 = vunpack.c.l.s4 1983009808
      %v3164 = vunpack.c.0.s8 %v3163
      %v3165 = vlaneseq
      %v3166 = vshrl.u32 %v3165, 7
      %v3167 = vsub.s32 %v3164, %v3166
      %v3168 = vrot.slane %v2957, %v3167
      %v3170 = vunpack.c.l.s4 1983009808
      %v3171 = vunpack.c.0.s8 %v3170
      %v3172 = vlaneseq
      %v3173 = vshrl.u32 %v3172, 7
      %v3174 = vsub.s32 %v3171, %v3173
      %v3175 = vrot.slane %v3161, %v3174
      %v3176 = vcombine.high %v3168, %v3168
      %v3177 = vcombine.high %v3175, %v3175
      %v3178 = vcombine.high %v2962, %v2962
      %v3180 = vunpack.c.l.s4 1983009808
      %v3181 = vunpack.c.0.s8 %v3180
      %v3182 = vlaneseq
      %v3183 = vshrl.u32 %v3182, 7
      %v3184 = vsub.s32 %v3181, %v3183
      %v3185 = vrot.slane %v2962, %v3184
      %v3187 = vunpack.c.l.s4 1983009808
      %v3188 = vunpack.c.0.s8 %v3187
      %v3189 = vlaneseq
      %v3190 = vshrl.u32 %v3189, 7
      %v3191 = vsub.s32 %v3188, %v3190
      %v3192 = vrot.slane %v3178, %v3191
      %v3193 = vcombine.high %v3185, %v3185
      %v3194 = vcombine.high %v3192, %v3192
      %v3195 = vcombine.high %v2965, %v2965
      %v3197 = vunpack.c.l.s4 1983009808
      %v3198 = vunpack.c.0.s8 %v3197
      %v3199 = vlaneseq
      %v3200 = vshrl.u32 %v3199, 7
      %v3201 = vsub.s32 %v3198, %v3200
      %v3202 = vrot.slane %v2965, %v3201
      %v3204 = vunpack.c.l.s4 1983009808
      %v3205 = vunpack.c.0.s8 %v3204
      %v3206 = vlaneseq
      %v3207 = vshrl.u32 %v3206, 7
      %v3208 = vsub.s32 %v3205, %v3207
      %v3209 = vrot.slane %v3195, %v3208
      %v3210 = vcombine.high %v3202, %v3202
      %v3211 = vcombine.high %v3209, %v3209
      %v3213 = vunpack.c.l.s4 1983009808
      %v3214 = vunpack.c.0.s8 %v3213
      %v3215 = vlaneseq
      %v3216 = vshrl.u32 %v3215, 7
      %v3217 = vsub.s32 %v3214, %v3216
      %v3218 = vrot.slane %v2970, %v3217
      %v3219 = vcombine.high %v3218, %v3218
      %v3220 = vcombine.low %v3015, %v3023
      %v3221 = vcombine.low %v3022, %v3024
      %v3223 = vunpack.c.l.s4 1983009808
      %v3224 = vunpack.c.0.s8 %v3223
      %v3225 = vlaneseq
      %v3226 = vshrl.u32 %v3225, 7
      %v3227 = vsub.s32 %v3224, %v3226
      %v3228 = vrot.slane %v3220, %v3227
      %v3230 = vunpack.c.l.s4 1983009808
      %v3231 = vunpack.c.0.s8 %v3230
      %v3232 = vlaneseq
      %v3233 = vshrl.u32 %v3232, 7
      %v3234 = vsub.s32 %v3231, %v3233
      %v3235 = vrot.slane %v3221, %v3234
      %v3236 = vcombine.low %v3228, %v3235
      %v3238 = vunpack.c.l.s4 1983009808
      %v3239 = vunpack.c.0.s8 %v3238
      %v3240 = vlaneseq
      %v3241 = vshrl.u32 %v3240, 7
      %v3242 = vsub.s32 %v3239, %v3241
      %v3243 = vrot.slane %v3032, %v3242
      %v3244 = vcombine.low %v3040, %v3039
      %v3245 = vcombine.low %v3041, %v3049
      %v3247 = vunpack.c.l.s4 1983009808
      %v3248 = vunpack.c.0.s8 %v3247
      %v3249 = vlaneseq
      %v3250 = vshrl.u32 %v3249, 7
      %v3251 = vsub.s32 %v3248, %v3250
      %v3252 = vrot.slane %v3244, %v3251
      %v3254 = vunpack.c.l.s4 1983009808
      %v3255 = vunpack.c.0.s8 %v3254
      %v3256 = vlaneseq
      %v3257 = vshrl.u32 %v3256, 7
      %v3258 = vsub.s32 %v3255, %v3257
      %v3259 = vrot.slane %v3245, %v3258
      %v3260 = vcombine.low %v3252, %v3259
      %v3262 = vunpack.c.l.s4 1983009808
      %v3263 = vunpack.c.0.s8 %v3262
      %v3264 = vlaneseq
      %v3265 = vshrl.u32 %v3264, 7
      %v3266 = vsub.s32 %v3263, %v3265
      %v3267 = vrot.slane %v3057, %v3266
      %v3268 = vcombine.low %v3056, %v3058
      %v3269 = vcombine.low %v3066, %v3074
      %v3271 = vunpack.c.l.s4 1983009808
      %v3272 = vunpack.c.0.s8 %v3271
      %v3273 = vlaneseq
      %v3274 = vshrl.u32 %v3273, 7
      %v3275 = vsub.s32 %v3272, %v3274
      %v3276 = vrot.slane %v3268, %v3275
      %v3278 = vunpack.c.l.s4 1983009808
      %v3279 = vunpack.c.0.s8 %v3278
      %v3280 = vlaneseq
      %v3281 = vshrl.u32 %v3280, 7
      %v3282 = vsub.s32 %v3279, %v3281
      %v3283 = vrot.slane %v3269, %v3282
      %v3284 = vcombine.low %v3276, %v3283
      %v3286 = vunpack.c.l.s4 1983009808
      %v3287 = vunpack.c.0.s8 %v3286
      %v3288 = vlaneseq
      %v3289 = vshrl.u32 %v3288, 7
      %v3290 = vsub.s32 %v3287, %v3289
      %v3291 = vrot.slane %v3073, %v3290
      %v3292 = vcombine.low %v3075, %v3083
      %v3293 = vcombine.low %v3091, %v3090
      %v3295 = vunpack.c.l.s4 1983009808
      %v3296 = vunpack.c.0.s8 %v3295
      %v3297 = vlaneseq
      %v3298 = vshrl.u32 %v3297, 7
      %v3299 = vsub.s32 %v3296, %v3298
      %v3300 = vrot.slane %v3292, %v3299
      %v3302 = vunpack.c.l.s4 1983009808
      %v3303 = vunpack.c.0.s8 %v3302
      %v3304 = vlaneseq
      %v3305 = vshrl.u32 %v3304, 7
      %v3306 = vsub.s32 %v3303, %v3305
      %v3307 = vrot.slane %v3293, %v3306
      %v3308 = vcombine.low %v3300, %v3307
      %v3310 = vunpack.c.l.s4 1983009808
      %v3311 = vunpack.c.0.s8 %v3310
      %v3312 = vlaneseq
      %v3313 = vshrl.u32 %v3312, 7
      %v3314 = vsub.s32 %v3311, %v3313
      %v3315 = vrot.slane %v3092, %v3314
      %v3316 = vcombine.low %v3100, %v3108
      %v3317 = vcombine.low %v3107, %v3109
      %v3319 = vunpack.c.l.s4 1983009808
      %v3320 = vunpack.c.0.s8 %v3319
      %v3321 = vlaneseq
      %v3322 = vshrl.u32 %v3321, 7
      %v3323 = vsub.s32 %v3320, %v3322
      %v3324 = vrot.slane %v3316, %v3323
      %v3326 = vunpack.c.l.s4 1983009808
      %v3327 = vunpack.c.0.s8 %v3326
      %v3328 = vlaneseq
      %v3329 = vshrl.u32 %v3328, 7
      %v3330 = vsub.s32 %v3327, %v3329
      %v3331 = vrot.slane %v3317, %v3330
      %v3332 = vcombine.low %v3324, %v3331
      %v3334 = vunpack.c.l.s4 1983009808
      %v3335 = vunpack.c.0.s8 %v3334
      %v3336 = vlaneseq
      %v3337 = vshrl.u32 %v3336, 7
      %v3338 = vsub.s32 %v3335, %v3337
      %v3339 = vrot.slane %v3117, %v3338
      %v3340 = vcombine.low %v3125, %v3124
      %v3341 = vcombine.low %v3126, %v3134
      %v3343 = vunpack.c.l.s4 1983009808
      %v3344 = vunpack.c.0.s8 %v3343
      %v3345 = vlaneseq
      %v3346 = vshrl.u32 %v3345, 7
      %v3347 = vsub.s32 %v3344, %v3346
      %v3348 = vrot.slane %v3340, %v3347
      %v3350 = vunpack.c.l.s4 1983009808
      %v3351 = vunpack.c.0.s8 %v3350
      %v3352 = vlaneseq
      %v3353 = vshrl.u32 %v3352, 7
      %v3354 = vsub.s32 %v3351, %v3353
      %v3355 = vrot.slane %v3341, %v3354
      %v3356 = vcombine.low %v3348, %v3355
      %v3358 = vunpack.c.l.s4 1983009808
      %v3359 = vunpack.c.0.s8 %v3358
      %v3360 = vlaneseq
      %v3361 = vshrl.u32 %v3360, 7
      %v3362 = vsub.s32 %v3359, %v3361
      %v3363 = vrot.slane %v3142, %v3362
      %v3364 = vcombine.low %v3141, %v3143
      %v3365 = vcombine.low %v3151, %v3159
      %v3367 = vunpack.c.l.s4 1983009808
      %v3368 = vunpack.c.0.s8 %v3367
      %v3369 = vlaneseq
      %v3370 = vshrl.u32 %v3369, 7
      %v3371 = vsub.s32 %v3368, %v3370
      %v3372 = vrot.slane %v3364, %v3371
      %v3374 = vunpack.c.l.s4 1983009808
      %v3375 = vunpack.c.0.s8 %v3374
      %v3376 = vlaneseq
      %v3377 = vshrl.u32 %v3376, 7
      %v3378 = vsub.s32 %v3375, %v3377
      %v3379 = vrot.slane %v3365, %v3378
      %v3380 = vcombine.low %v3372, %v3379
      %v3382 = vunpack.c.l.s4 1983009808
      %v3383 = vunpack.c.0.s8 %v3382
      %v3384 = vlaneseq
      %v3385 = vshrl.u32 %v3384, 7
      %v3386 = vsub.s32 %v3383, %v3385
      %v3387 = vrot.slane %v3158, %v3386
      %v3388 = vcombine.low %v3160, %v3168
      %v3389 = vcombine.low %v3176, %v3175
      %v3391 = vunpack.c.l.s4 1983009808
      %v3392 = vunpack.c.0.s8 %v3391
      %v3393 = vlaneseq
      %v3394 = vshrl.u32 %v3393, 7
      %v3395 = vsub.s32 %v3392, %v3394
      %v3396 = vrot.slane %v3388, %v3395
      %v3398 = vunpack.c.l.s4 1983009808
      %v3399 = vunpack.c.0.s8 %v3398
      %v3400 = vlaneseq
      %v3401 = vshrl.u32 %v3400, 7
      %v3402 = vsub.s32 %v3399, %v3401
      %v3403 = vrot.slane %v3389, %v3402
      %v3404 = vcombine.low %v3396, %v3403
      %v3406 = vunpack.c.l.s4 1983009808
      %v3407 = vunpack.c.0.s8 %v3406
      %v3408 = vlaneseq
      %v3409 = vshrl.u32 %v3408, 7
      %v3410 = vsub.s32 %v3407, %v3409
      %v3411 = vrot.slane %v3177, %v3410
      %v3412 = vcombine.low %v3185, %v3193
      %v3413 = vcombine.low %v3192, %v3194
      %v3415 = vunpack.c.l.s4 1983009808
      %v3416 = vunpack.c.0.s8 %v3415
      %v3417 = vlaneseq
      %v3418 = vshrl.u32 %v3417, 7
      %v3419 = vsub.s32 %v3416, %v3418
      %v3420 = vrot.slane %v3412, %v3419
      %v3422 = vunpack.c.l.s4 1983009808
      %v3423 = vunpack.c.0.s8 %v3422
      %v3424 = vlaneseq
      %v3425 = vshrl.u32 %v3424, 7
      %v3426 = vsub.s32 %v3423, %v3425
      %v3427 = vrot.slane %v3413, %v3426
      %v3428 = vcombine.low %v3420, %v3427
      %v3430 = vunpack.c.l.s4 1983009808
      %v3431 = vunpack.c.0.s8 %v3430
      %v3432 = vlaneseq
      %v3433 = vshrl.u32 %v3432, 7
      %v3434 = vsub.s32 %v3431, %v3433
      %v3435 = vrot.slane %v3202, %v3434
      %v3436 = vcombine.low %v3210, %v3209
      %v3437 = vcombine.low %v3211, %v3218
      %v3439 = vunpack.c.l.s4 1983009808
      %v3440 = vunpack.c.0.s8 %v3439
      %v3441 = vlaneseq
      %v3442 = vshrl.u32 %v3441, 7
      %v3443 = vsub.s32 %v3440, %v3442
      %v3444 = vrot.slane %v3436, %v3443
      %v3446 = vunpack.c.l.s4 1983009808
      %v3447 = vunpack.c.0.s8 %v3446
      %v3448 = vlaneseq
      %v3449 = vshrl.u32 %v3448, 7
      %v3450 = vsub.s32 %v3447, %v3449
      %v3451 = vrot.slane %v3437, %v3450
      %v3452 = vcombine.low %v3444, %v3451
      %v3454 = vunpack.c.l.s4 1983009808
      %v3455 = vunpack.c.0.s8 %v3454
      %v3456 = vlaneseq
      %v3457 = vshrl.u32 %v3456, 7
      %v3458 = vsub.s32 %v3455, %v3457
      %v3459 = vrot.slane %v3219, %v3458
      %v3480 = vadd.f32 %v2975, %v3236
      %v3481 = vadd.f32 %v2976, %v3243
      %v3482 = vadd.f32 %v2977, %v3260
      %v3483 = vadd.f32 %v2978, %v3267
      %v3484 = vadd.f32 %v2979, %v3284
      %v3485 = vadd.f32 %v2980, %v3291
      %v3486 = vadd.f32 %v2981, %v3308
      %v3487 = vadd.f32 %v2982, %v3315
      %v3488 = vadd.f32 %v2983, %v3332
      %v3489 = vadd.f32 %v2984, %v3339
      %v3490 = vadd.f32 %v2985, %v3356
      %v3491 = vadd.f32 %v2986, %v3363
      %v3492 = vadd.f32 %v2987, %v3380
      %v3493 = vadd.f32 %v2988, %v3387
      %v3494 = vadd.f32 %v2989, %v3404
      %v3495 = vadd.f32 %v2990, %v3411
      %v3496 = vadd.f32 %v2991, %v3428
      %v3497 = vadd.f32 %v2992, %v3435
      %v3498 = vadd.f32 %v2993, %v3452
      %v3499 = vadd.f32 %v2994, %v3459
      %3500 = vst [vmem:[%s1598] sm:$0xff] %v3480
      %3501 = vst [vmem:[%s1598 + $0x8] sm:$0x3] %v3481
      %3502 = vst [vmem:[%s1598 + $0x10] sm:$0xff] %v3482
      %3503 = vst [vmem:[%s1598 + $0x18] sm:$0x3] %v3483
      %3504 = vst [vmem:[%s1598 + $0x20] sm:$0xff] %v3484
      %3505 = vst [vmem:[%s1598 + $0x28] sm:$0x3] %v3485
      %3506 = vst [vmem:[%s1598 + $0x30] sm:$0xff] %v3486
      %3507 = vst [vmem:[%s1598 + $0x38] sm:$0x3] %v3487
      %3508 = vst [vmem:[%s1598 + $0x40] sm:$0xff] %v3488
      %3509 = vst [vmem:[%s1598 + $0x48] sm:$0x3] %v3489
      %3510 = vst [vmem:[%s1598 + $0x50] sm:$0xff] %v3490
      %3511 = vst [vmem:[%s1598 + $0x58] sm:$0x3] %v3491
      %3512 = vst [vmem:[%s1598 + $0x60] sm:$0xff] %v3492
      %3513 = vst [vmem:[%s1598 + $0x68] sm:$0x3] %v3493
      %3514 = vst [vmem:[%s1598 + $0x70] sm:$0xff] %v3494
      %3515 = vst [vmem:[%s1598 + $0x78] sm:$0x3] %v3495
      %3516 = vst [vmem:[%s1598 + $0x80] sm:$0xff] %v3496
      %3517 = vst [vmem:[%s1598 + $0x88] sm:$0x3] %v3497
      %3518 = vst [vmem:[%s1598 + $0x90] sm:$0xff] %v3498
      %3519 = vst [vmem:[%s1598 + $0x98] sm:$0x3] %v3499
      %s3520 = scalar_lea.vmem %s1, 384
      %v3521 = vld [vmem:[%s3520] sm:$0xf]
      %v3522 = vld [vmem:[%s3520 + $0x4] sm:$0xf]
      %v3523 = vld [vmem:[%s3520 + $0x8] sm:$0xf]
      %v3524 = vld [vmem:[%s3520 + $0xc] sm:$0xf]
      %v3525 = vld [vmem:[%s3520 + $0x10] sm:$0xf]
      %v3526 = vld [vmem:[%s3520 + $0x14] sm:$0xf]
      %v3527 = vld [vmem:[%s3520 + $0x18] sm:$0xf]
      %v3528 = vld [vmem:[%s3520 + $0x1c] sm:$0xf]
      %v3529 = vld [vmem:[%s3520 + $0x20] sm:$0xf]
      %v3530 = vld [vmem:[%s3520 + $0x24] sm:$0xf]
      %v3531 = vld [vmem:[%s3520 + $0x28] sm:$0xf]
      %v3532 = vld [vmem:[%s3520 + $0x2c] sm:$0xf]
      %v3533 = vld [vmem:[%s3520 + $0x30] sm:$0xf]
      %v3534 = vld [vmem:[%s3520 + $0x34] sm:$0xf]
      %v3535 = vld [vmem:[%s3520 + $0x38] sm:$0xf]
      %v3536 = vld [vmem:[%s3520 + $0x3c] sm:$0xf]
      %v3543 = vcombine.low %v219, %v221
      %v3544 = vcombine.low %v223, %v225
      %v3546 = vunpack.c.l.s4 1983009808
      %v3547 = vunpack.c.0.s8 %v3546
      %v3548 = vlaneseq
      %v3549 = vshrl.u32 %v3548, 7
      %v3550 = vsub.s32 %v3547, %v3549
      %v3551 = vrot.slane %v3543, %v3550
      %v3553 = vunpack.c.l.s4 1983009808
      %v3554 = vunpack.c.0.s8 %v3553
      %v3555 = vlaneseq
      %v3556 = vshrl.u32 %v3555, 7
      %v3557 = vsub.s32 %v3554, %v3556
      %v3558 = vrot.slane %v3544, %v3557
      %v3559 = vcombine.low %v3551, %v3558
      %v3560 = vcombine.low %v227, %v229
      %v3561 = vcombine.low %v231, %v233
      %v3563 = vunpack.c.l.s4 1983009808
      %v3564 = vunpack.c.0.s8 %v3563
      %v3565 = vlaneseq
      %v3566 = vshrl.u32 %v3565, 7
      %v3567 = vsub.s32 %v3564, %v3566
      %v3568 = vrot.slane %v3560, %v3567
      %v3570 = vunpack.c.l.s4 1983009808
      %v3571 = vunpack.c.0.s8 %v3570
      %v3572 = vlaneseq
      %v3573 = vshrl.u32 %v3572, 7
      %v3574 = vsub.s32 %v3571, %v3573
      %v3575 = vrot.slane %v3561, %v3574
      %v3576 = vcombine.low %v3568, %v3575
      %v3577 = vcombine.low %v235, %v237
      %v3578 = vcombine.low %v239, %v241
      %v3580 = vunpack.c.l.s4 1983009808
      %v3581 = vunpack.c.0.s8 %v3580
      %v3582 = vlaneseq
      %v3583 = vshrl.u32 %v3582, 7
      %v3584 = vsub.s32 %v3581, %v3583
      %v3585 = vrot.slane %v3577, %v3584
      %v3587 = vunpack.c.l.s4 1983009808
      %v3588 = vunpack.c.0.s8 %v3587
      %v3589 = vlaneseq
      %v3590 = vshrl.u32 %v3589, 7
      %v3591 = vsub.s32 %v3588, %v3590
      %v3592 = vrot.slane %v3578, %v3591
      %v3593 = vcombine.low %v3585, %v3592
      %v3613 = vunpack.c.l.b16 %v3521
      %v3614 = vunpack.c.l.b16 %v3522
      %v3615 = vunpack.c.l.b16 %v3523
      %v3616 = vunpack.c.l.b16 %v3524
      %v3617 = vunpack.c.l.b16 %v3525
      %v3618 = vunpack.c.l.b16 %v3526
      %v3619 = vunpack.c.l.b16 %v3527
      %v3620 = vunpack.c.l.b16 %v3528
      %v3621 = vunpack.c.l.b16 %v3529
      %v3622 = vunpack.c.l.b16 %v3530
      %v3623 = vunpack.c.l.b16 %v3531
      %v3624 = vunpack.c.l.b16 %v3532
      %v3625 = vunpack.c.l.b16 %v3533
      %v3626 = vunpack.c.l.b16 %v3534
      %v3627 = vunpack.c.l.b16 %v3535
      %v3628 = vunpack.c.l.b16 %v3536
      %v3629 = vpack.c.b16 %v3614, %v3613
      %v3630 = vpack.c.b16 %v3616, %v3615
      %v3631 = vpack.c.b16 %v3618, %v3617
      %v3632 = vpack.c.b16 %v3620, %v3619
      %v3633 = vpack.c.b16 %v3622, %v3621
      %v3634 = vpack.c.b16 %v3624, %v3623
      %v3635 = vpack.c.b16 %v3626, %v3625
      %v3636 = vpack.c.b16 %v3628, %v3627
      %3645 = vmatprep.subr.bf16.mxu0 0
      %3646 = vmatpush1.bf16.msra.mxu0 %v3629
      %3647 = vmatprep.subr.bf16.mxu0 0
      %3648 = vmatpush1.bf16.msra.mxu0 %v3630
      %3649 = vmatprep.subr.bf16.mxu0 0
      %3650 = vmatpush1.bf16.msra.mxu0 %v3631
      %3651 = vmatprep.subr.bf16.mxu0 0
      %3652 = vmatpush1.bf16.msra.mxu0 %v3632
      %3653 = vmatprep.subr.bf16.mxu0 0
      %3654 = vmatpush1.bf16.msra.mxu0 %v3633
      %3655 = vmatprep.subr.bf16.mxu0 0
      %3656 = vmatpush1.bf16.msra.mxu0 %v3634
      %3657 = vmatprep.subr.bf16.mxu0 0
      %3658 = vmatpush1.bf16.msra.mxu0 %v3635
      %3659 = vmatprep.subr.bf16.mxu0 0
      %3660 = vmatpush1.bf16.msra.mxu0 %v3636
      %3661 = vmatprep.subr.bf16.mxu0 0
      %3662 = vmatpush1.bf16.msra.mxu0 0
      %3663 = vmatprep.subr.bf16.mxu0 0
      %3664 = vmatpush1.bf16.msra.mxu0 0
      %3665 = vmatprep.subr.bf16.mxu0 0
      %3666 = vmatpush1.bf16.msra.mxu0 0
      %3667 = vmatprep.subr.bf16.mxu0 0
      %3668 = vmatpush1.bf16.msra.mxu0 0
      %3669 = vmatprep.subr.bf16.mxu0 0
      %3670 = vmatpush1.bf16.msra.mxu0 0
      %3671 = vmatprep.subr.bf16.mxu0 0
      %3672 = vmatpush1.bf16.msra.mxu0 0
      %3673 = vmatprep.subr.bf16.mxu0 0
      %3674 = vmatpush1.bf16.msra.mxu0 0
      %3675 = vmatprep.subr.bf16.mxu0 0
      %3676 = vmatpush1.bf16.msra.mxu0 0
      %3677 = vmatprep.mubr.bf16.mxu0 0
      %3678 = vmatmul.mubr.bf16.gmra.mrb[0].mxu0 %v279
      %v3679 = vpop.f32.mrb[0].mxu0
      %v3680 = vadd.f32 0.0, %v3679
      %v3681 = vpop.f32.mrb[0].mxu0
      %v3682 = vpop.f32.mrb[0].mxu0
      %v3683 = vadd.f32 0.0, %v3682
      %v3684 = vpop.f32.mrb[0].mxu0
      %3685 = vmatprep.mubr.bf16.mxu0 0
      %3686 = vmatmul.mubr.bf16.gmra.mrb[0].mxu0 %v3559
      %v3687 = vpop.f32.mrb[0].mxu0
      %v3688 = vadd.f32 0.0, %v3687
      %v3689 = vpop.f32.mrb[0].mxu0
      %v3690 = vpop.f32.mrb[0].mxu0
      %v3691 = vadd.f32 0.0, %v3690
      %v3692 = vpop.f32.mrb[0].mxu0
      %3693 = vmatprep.mubr.bf16.mxu0 0
      %3694 = vmatmul.mubr.bf16.gmra.mrb[0].mxu0 %v3576
      %v3695 = vpop.f32.mrb[0].mxu0
      %v3696 = vadd.f32 0.0, %v3695
      %v3697 = vpop.f32.mrb[0].mxu0
      %v3698 = vpop.f32.mrb[0].mxu0
      %v3699 = vadd.f32 0.0, %v3698
      %v3700 = vpop.f32.mrb[0].mxu0
      %3701 = vmatprep.mubr.bf16.mxu0 0
      %3702 = vmatmul.mubr.bf16.gmra.mrb[0].mxu0 %v3593
      %v3703 = vpop.f32.mrb[0].mxu0
      %v3704 = vadd.f32 0.0, %v3703
      %v3705 = vpop.f32.mrb[0].mxu0
      %v3706 = vpop.f32.mrb[0].mxu0
      %v3707 = vadd.f32 0.0, %v3706
      %v3708 = vpop.f32.mrb[0].mxu0
      %3709 = vdwg.mxu0
      %v3710 = vld [vmem:[#allocation2 + $0xc] sm:$0xf]
      %v3711 = vld [vmem:[#allocation2 + $0x1c] sm:$0xf]
      %v3712 = vld [vmem:[#allocation2 + $0x2c] sm:$0xf]
      %v3713 = vld [vmem:[#allocation2 + $0x3c] sm:$0xf]
      %v3714 = vld [vmem:[#allocation2 + $0x4c] sm:$0xf]
      %v3715 = vld [vmem:[#allocation2 + $0x5c] sm:$0xf]
      %v3716 = vld [vmem:[#allocation2 + $0x6c] sm:$0xf]
      %v3717 = vld [vmem:[#allocation2 + $0x7c] sm:$0xf]
      %v3718 = vld [vmem:[#allocation2 + $0x8c] sm:$0xf]
      %v3719 = vld [vmem:[#allocation2 + $0x9c] sm:$0xf]
      %v3720 = vld [vmem:[#allocation2 + $0xac] sm:$0xf]
      %v3721 = vld [vmem:[#allocation2 + $0xbc] sm:$0xf]
      %v3722 = vld [vmem:[#allocation2 + $0xcc] sm:$0xf]
      %v3723 = vld [vmem:[#allocation2 + $0xdc] sm:$0xf]
      %v3724 = vld [vmem:[#allocation2 + $0xec] sm:$0xf]
      %v3725 = vld [vmem:[#allocation2 + $0xfc] sm:$0xf]
      %v3734 = vcombine.high %v3680, %v3680
      %v3735 = vcombine.high %v3683, %v3683
      %v3736 = vcombine.high %v3688, %v3688
      %v3737 = vcombine.high %v3691, %v3691
      %v3738 = vcombine.high %v3696, %v3696
      %v3739 = vcombine.high %v3699, %v3699
      %v3740 = vcombine.high %v3704, %v3704
      %v3741 = vcombine.high %v3707, %v3707
      %v3750 = vadd.f32 %v3710, %v3680
      %v3751 = vadd.f32 %v3711, %v3734
      %v3752 = vadd.f32 %v3712, %v3683
      %v3753 = vadd.f32 %v3713, %v3735
      %v3754 = vadd.f32 %v3714, %v3688
      %v3755 = vadd.f32 %v3715, %v3736
      %v3756 = vadd.f32 %v3716, %v3691
      %v3757 = vadd.f32 %v3717, %v3737
      %v3758 = vadd.f32 %v3718, %v3696
      %v3759 = vadd.f32 %v3719, %v3738
      %v3760 = vadd.f32 %v3720, %v3699
      %v3761 = vadd.f32 %v3721, %v3739
      %v3762 = vadd.f32 %v3722, %v3704
      %v3763 = vadd.f32 %v3723, %v3740
      %v3764 = vadd.f32 %v3724, %v3707
      %v3765 = vadd.f32 %v3725, %v3741
      %3766 = vst [vmem:[#allocation2 + $0xc] sm:$0xf] %v3750
      %3767 = vst [vmem:[#allocation2 + $0x1c] sm:$0xf] %v3751
      %3768 = vst [vmem:[#allocation2 + $0x2c] sm:$0xf] %v3752
      %3769 = vst [vmem:[#allocation2 + $0x3c] sm:$0xf] %v3753
      %3770 = vst [vmem:[#allocation2 + $0x4c] sm:$0xf] %v3754
      %3771 = vst [vmem:[#allocation2 + $0x5c] sm:$0xf] %v3755
      %3772 = vst [vmem:[#allocation2 + $0x6c] sm:$0xf] %v3756
      %3773 = vst [vmem:[#allocation2 + $0x7c] sm:$0xf] %v3757
      %3774 = vst [vmem:[#allocation2 + $0x8c] sm:$0xf] %v3758
      %3775 = vst [vmem:[#allocation2 + $0x9c] sm:$0xf] %v3759
      %3776 = vst [vmem:[#allocation2 + $0xac] sm:$0xf] %v3760
      %3777 = vst [vmem:[#allocation2 + $0xbc] sm:$0xf] %v3761
      %3778 = vst [vmem:[#allocation2 + $0xcc] sm:$0xf] %v3762
      %3779 = vst [vmem:[#allocation2 + $0xdc] sm:$0xf] %v3763
      %3780 = vst [vmem:[#allocation2 + $0xec] sm:$0xf] %v3764
      %3781 = vst [vmem:[#allocation2 + $0xfc] sm:$0xf] %v3765
      %v3789 = vunpack.c.l.s4 1966171168
      %v3790 = vunpack.c.0.s8 %v3789
      %v3791 = vlaneseq
      %v3792 = vshrl.u32 %v3791, 7
      %v3793 = vsub.s32 %v3790, %v3792
      %v3794 = vrot.slane %v231, %v3793
      %v3795 = vcombine.high %v3794, %v3794
      %v3797 = vunpack.c.l.s4 1966171168
      %v3798 = vunpack.c.0.s8 %v3797
      %v3799 = vlaneseq
      %v3800 = vshrl.u32 %v3799, 7
      %v3801 = vsub.s32 %v3798, %v3800
      %v3802 = vrot.slane %v3794, %v3801
      %v3804 = vunpack.c.l.s4 1966171168
      %v3805 = vunpack.c.0.s8 %v3804
      %v3806 = vlaneseq
      %v3807 = vshrl.u32 %v3806, 7
      %v3808 = vsub.s32 %v3805, %v3807
      %v3809 = vrot.slane %v3795, %v3808
      %v3810 = vcombine.high %v3802, %v3802
      %v3811 = vcombine.high %v3809, %v3809
      %v3813 = vunpack.c.l.s4 1966171168
      %v3814 = vunpack.c.0.s8 %v3813
      %v3815 = vlaneseq
      %v3816 = vshrl.u32 %v3815, 7
      %v3817 = vsub.s32 %v3814, %v3816
      %v3818 = vrot.slane %v232, %v3817
      %v3820 = vunpack.c.l.s4 1966171168
      %v3821 = vunpack.c.0.s8 %v3820
      %v3822 = vlaneseq
      %v3823 = vshrl.u32 %v3822, 7
      %v3824 = vsub.s32 %v3821, %v3823
      %v3825 = vrot.slane %v3818, %v3824
      %v3827 = vunpack.c.l.s4 1966171168
      %v3828 = vunpack.c.0.s8 %v3827
      %v3829 = vlaneseq
      %v3830 = vshrl.u32 %v3829, 7
      %v3831 = vsub.s32 %v3828, %v3830
      %v3832 = vrot.slane %v233, %v3831
      %v3833 = vcombine.high %v3832, %v3832
      %v3835 = vunpack.c.l.s4 1966171168
      %v3836 = vunpack.c.0.s8 %v3835
      %v3837 = vlaneseq
      %v3838 = vshrl.u32 %v3837, 7
      %v3839 = vsub.s32 %v3836, %v3838
      %v3840 = vrot.slane %v3832, %v3839
      %v3842 = vunpack.c.l.s4 1966171168
      %v3843 = vunpack.c.0.s8 %v3842
      %v3844 = vlaneseq
      %v3845 = vshrl.u32 %v3844, 7
      %v3846 = vsub.s32 %v3843, %v3845
      %v3847 = vrot.slane %v3833, %v3846
      %v3848 = vcombine.high %v3840, %v3840
      %v3849 = vcombine.high %v3847, %v3847
      %v3851 = vunpack.c.l.s4 1966171168
      %v3852 = vunpack.c.0.s8 %v3851
      %v3853 = vlaneseq
      %v3854 = vshrl.u32 %v3853, 7
      %v3855 = vsub.s32 %v3852, %v3854
      %v3856 = vrot.slane %v234, %v3855
      %v3858 = vunpack.c.l.s4 1966171168
      %v3859 = vunpack.c.0.s8 %v3858
      %v3860 = vlaneseq
      %v3861 = vshrl.u32 %v3860, 7
      %v3862 = vsub.s32 %v3859, %v3861
      %v3863 = vrot.slane %v3856, %v3862
      %v3865 = vunpack.c.l.s4 1966171168
      %v3866 = vunpack.c.0.s8 %v3865
      %v3867 = vlaneseq
      %v3868 = vshrl.u32 %v3867, 7
      %v3869 = vsub.s32 %v3866, %v3868
      %v3870 = vrot.slane %v235, %v3869
      %v3871 = vcombine.high %v3870, %v3870
      %v3873 = vunpack.c.l.s4 1966171168
      %v3874 = vunpack.c.0.s8 %v3873
      %v3875 = vlaneseq
      %v3876 = vshrl.u32 %v3875, 7
      %v3877 = vsub.s32 %v3874, %v3876
      %v3878 = vrot.slane %v3870, %v3877
      %v3880 = vunpack.c.l.s4 1966171168
      %v3881 = vunpack.c.0.s8 %v3880
      %v3882 = vlaneseq
      %v3883 = vshrl.u32 %v3882, 7
      %v3884 = vsub.s32 %v3881, %v3883
      %v3885 = vrot.slane %v3871, %v3884
      %v3886 = vcombine.high %v3878, %v3878
      %v3887 = vcombine.high %v3885, %v3885
      %v3889 = vunpack.c.l.s4 1966171168
      %v3890 = vunpack.c.0.s8 %v3889
      %v3891 = vlaneseq
      %v3892 = vshrl.u32 %v3891, 7
      %v3893 = vsub.s32 %v3890, %v3892
      %v3894 = vrot.slane %v236, %v3893
      %v3896 = vunpack.c.l.s4 1966171168
      %v3897 = vunpack.c.0.s8 %v3896
      %v3898 = vlaneseq
      %v3899 = vshrl.u32 %v3898, 7
      %v3900 = vsub.s32 %v3897, %v3899
      %v3901 = vrot.slane %v3894, %v3900
      %v3903 = vunpack.c.l.s4 1966171168
      %v3904 = vunpack.c.0.s8 %v3903
      %v3905 = vlaneseq
      %v3906 = vshrl.u32 %v3905, 7
      %v3907 = vsub.s32 %v3904, %v3906
      %v3908 = vrot.slane %v237, %v3907
      %v3909 = vcombine.high %v3908, %v3908
      %v3911 = vunpack.c.l.s4 1966171168
      %v3912 = vunpack.c.0.s8 %v3911
      %v3913 = vlaneseq
      %v3914 = vshrl.u32 %v3913, 7
      %v3915 = vsub.s32 %v3912, %v3914
      %v3916 = vrot.slane %v3908, %v3915
      %v3918 = vunpack.c.l.s4 1966171168
      %v3919 = vunpack.c.0.s8 %v3918
      %v3920 = vlaneseq
      %v3921 = vshrl.u32 %v3920, 7
      %v3922 = vsub.s32 %v3919, %v3921
      %v3923 = vrot.slane %v3909, %v3922
      %v3924 = vcombine.high %v3916, %v3916
      %v3925 = vcombine.high %v3923, %v3923
      %v3927 = vunpack.c.l.s4 1966171168
      %v3928 = vunpack.c.0.s8 %v3927
      %v3929 = vlaneseq
      %v3930 = vshrl.u32 %v3929, 7
      %v3931 = vsub.s32 %v3928, %v3930
      %v3932 = vrot.slane %v238, %v3931
      %v3934 = vunpack.c.l.s4 1966171168
      %v3935 = vunpack.c.0.s8 %v3934
      %v3936 = vlaneseq
      %v3937 = vshrl.u32 %v3936, 7
      %v3938 = vsub.s32 %v3935, %v3937
      %v3939 = vrot.slane %v3932, %v3938
      %v3941 = vunpack.c.l.s4 1966171168
      %v3942 = vunpack.c.0.s8 %v3941
      %v3943 = vlaneseq
      %v3944 = vshrl.u32 %v3943, 7
      %v3945 = vsub.s32 %v3942, %v3944
      %v3946 = vrot.slane %v239, %v3945
      %v3947 = vcombine.high %v3946, %v3946
      %v3949 = vunpack.c.l.s4 1966171168
      %v3950 = vunpack.c.0.s8 %v3949
      %v3951 = vlaneseq
      %v3952 = vshrl.u32 %v3951, 7
      %v3953 = vsub.s32 %v3950, %v3952
      %v3954 = vrot.slane %v3946, %v3953
      %v3956 = vunpack.c.l.s4 1966171168
      %v3957 = vunpack.c.0.s8 %v3956
      %v3958 = vlaneseq
      %v3959 = vshrl.u32 %v3958, 7
      %v3960 = vsub.s32 %v3957, %v3959
      %v3961 = vrot.slane %v3947, %v3960
      %v3962 = vcombine.high %v3954, %v3954
      %v3963 = vcombine.high %v3961, %v3961
      %v3965 = vunpack.c.l.s4 1966171168
      %v3966 = vunpack.c.0.s8 %v3965
      %v3967 = vlaneseq
      %v3968 = vshrl.u32 %v3967, 7
      %v3969 = vsub.s32 %v3966, %v3968
      %v3970 = vrot.slane %v240, %v3969
      %v3972 = vunpack.c.l.s4 1966171168
      %v3973 = vunpack.c.0.s8 %v3972
      %v3974 = vlaneseq
      %v3975 = vshrl.u32 %v3974, 7
      %v3976 = vsub.s32 %v3973, %v3975
      %v3977 = vrot.slane %v3970, %v3976
      %v3979 = vunpack.c.l.s4 1966171168
      %v3980 = vunpack.c.0.s8 %v3979
      %v3981 = vlaneseq
      %v3982 = vshrl.u32 %v3981, 7
      %v3983 = vsub.s32 %v3980, %v3982
      %v3984 = vrot.slane %v241, %v3983
      %v3985 = vcombine.high %v3984, %v3984
      %v3987 = vunpack.c.l.s4 1966171168
      %v3988 = vunpack.c.0.s8 %v3987
      %v3989 = vlaneseq
      %v3990 = vshrl.u32 %v3989, 7
      %v3991 = vsub.s32 %v3988, %v3990
      %v3992 = vrot.slane %v3984, %v3991
      %v3994 = vunpack.c.l.s4 1966171168
      %v3995 = vunpack.c.0.s8 %v3994
      %v3996 = vlaneseq
      %v3997 = vshrl.u32 %v3996, 7
      %v3998 = vsub.s32 %v3995, %v3997
      %v3999 = vrot.slane %v3985, %v3998
      %v4000 = vcombine.high %v3992, %v3992
      %v4001 = vcombine.high %v3999, %v3999
      %v4003 = vunpack.c.l.s4 1966171168
      %v4004 = vunpack.c.0.s8 %v4003
      %v4005 = vlaneseq
      %v4006 = vshrl.u32 %v4005, 7
      %v4007 = vsub.s32 %v4004, %v4006
      %v4008 = vrot.slane %v242, %v4007
      %v4010 = vunpack.c.l.s4 1966171168
      %v4011 = vunpack.c.0.s8 %v4010
      %v4012 = vlaneseq
      %v4013 = vshrl.u32 %v4012, 7
      %v4014 = vsub.s32 %v4011, %v4013
      %v4015 = vrot.slane %v4008, %v4014
      %s4016 = scalar_lea.vmem %s1, 448
      %v4017 = vld [vmem:[%s4016] sm:$0xf]
      %v4018 = vld [vmem:[%s4016 + $0x4] sm:$0xf]
      %v4019 = vld [vmem:[%s4016 + $0x8] sm:$0xf]
      %v4020 = vld [vmem:[%s4016 + $0xc] sm:$0xf]
      %v4021 = vld [vmem:[%s4016 + $0x10] sm:$0xf]
      %v4022 = vld [vmem:[%s4016 + $0x14] sm:$0xf]
      %v4023 = vld [vmem:[%s4016 + $0x18] sm:$0xf]
      %v4024 = vld [vmem:[%s4016 + $0x1c] sm:$0xf]
      %v4025 = vld [vmem:[%s4016 + $0x20] sm:$0xf]
      %v4026 = vld [vmem:[%s4016 + $0x24] sm:$0xf]
      %v4027 = vld [vmem:[%s4016 + $0x28] sm:$0xf]
      %v4028 = vld [vmem:[%s4016 + $0x2c] sm:$0xf]
      %v4029 = vld [vmem:[%s4016 + $0x30] sm:$0xf]
      %v4030 = vld [vmem:[%s4016 + $0x34] sm:$0xf]
      %v4031 = vld [vmem:[%s4016 + $0x38] sm:$0xf]
      %v4032 = vld [vmem:[%s4016 + $0x3c] sm:$0xf]
      %v4033 = vcombine.low %v3802, %v3809
      %v4034 = vcombine.low %v3810, %v3811
      %v4035 = vcombine.low %v3825, %v3840
      %v4037 = vunpack.c.l.s4 1966171168
      %v4038 = vunpack.c.0.s8 %v4037
      %v4039 = vlaneseq
      %v4040 = vshrl.u32 %v4039, 7
      %v4041 = vsub.s32 %v4038, %v4040
      %v4042 = vrot.slane %v4033, %v4041
      %v4044 = vunpack.c.l.s4 1966171168
      %v4045 = vunpack.c.0.s8 %v4044
      %v4046 = vlaneseq
      %v4047 = vshrl.u32 %v4046, 7
      %v4048 = vsub.s32 %v4045, %v4047
      %v4049 = vrot.slane %v4034, %v4048
      %v4051 = vunpack.c.l.s4 1966171168
      %v4052 = vunpack.c.0.s8 %v4051
      %v4053 = vlaneseq
      %v4054 = vshrl.u32 %v4053, 7
      %v4055 = vsub.s32 %v4052, %v4054
      %v4056 = vrot.slane %v4035, %v4055
      %v4057 = vcombine.low %v1447, %v4042
      %v4058 = vcombine.low %v4049, %v4056
      %v4060 = vunpack.c.l.s4 1966171168
      %v4061 = vunpack.c.0.s8 %v4060
      %v4062 = vlaneseq
      %v4063 = vshrl.u32 %v4062, 7
      %v4064 = vsub.s32 %v4061, %v4063
      %v4065 = vrot.slane %v4057, %v4064
      %v4067 = vunpack.c.l.s4 1966171168
      %v4068 = vunpack.c.0.s8 %v4067
      %v4069 = vlaneseq
      %v4070 = vshrl.u32 %v4069, 7
      %v4071 = vsub.s32 %v4068, %v4070
      %v4072 = vrot.slane %v4058, %v4071
      %v4073 = vcombine.low %v4065, %v4072
      %v4074 = vcombine.low %v3847, %v3848
      %v4075 = vcombine.low %v3849, %v3863
      %v4076 = vcombine.low %v3878, %v3885
      %v4077 = vcombine.low %v3886, %v3887
      %v4079 = vunpack.c.l.s4 1966171168
      %v4080 = vunpack.c.0.s8 %v4079
      %v4081 = vlaneseq
      %v4082 = vshrl.u32 %v4081, 7
      %v4083 = vsub.s32 %v4080, %v4082
      %v4084 = vrot.slane %v4074, %v4083
      %v4086 = vunpack.c.l.s4 1966171168
      %v4087 = vunpack.c.0.s8 %v4086
      %v4088 = vlaneseq
      %v4089 = vshrl.u32 %v4088, 7
      %v4090 = vsub.s32 %v4087, %v4089
      %v4091 = vrot.slane %v4075, %v4090
      %v4093 = vunpack.c.l.s4 1966171168
      %v4094 = vunpack.c.0.s8 %v4093
      %v4095 = vlaneseq
      %v4096 = vshrl.u32 %v4095, 7
      %v4097 = vsub.s32 %v4094, %v4096
      %v4098 = vrot.slane %v4076, %v4097
      %v4100 = vunpack.c.l.s4 1966171168
      %v4101 = vunpack.c.0.s8 %v4100
      %v4102 = vlaneseq
      %v4103 = vshrl.u32 %v4102, 7
      %v4104 = vsub.s32 %v4101, %v4103
      %v4105 = vrot.slane %v4077, %v4104
      %v4106 = vcombine.low %v4084, %v4091
      %v4107 = vcombine.low %v4098, %v4105
      %v4109 = vunpack.c.l.s4 1966171168
      %v4110 = vunpack.c.0.s8 %v4109
      %v4111 = vlaneseq
      %v4112 = vshrl.u32 %v4111, 7
      %v4113 = vsub.s32 %v4110, %v4112
      %v4114 = vrot.slane %v4106, %v4113
      %v4116 = vunpack.c.l.s4 1966171168
      %v4117 = vunpack.c.0.s8 %v4116
      %v4118 = vlaneseq
      %v4119 = vshrl.u32 %v4118, 7
      %v4120 = vsub.s32 %v4117, %v4119
      %v4121 = vrot.slane %v4107, %v4120
      %v4122 = vcombine.low %v4114, %v4121
      %v4123 = vcombine.low %v3901, %v3916
      %v4124 = vcombine.low %v3923, %v3924
      %v4125 = vcombine.low %v3925, %v3939
      %v4126 = vcombine.low %v3954, %v3961
      %v4128 = vunpack.c.l.s4 1966171168
      %v4129 = vunpack.c.0.s8 %v4128
      %v4130 = vlaneseq
      %v4131 = vshrl.u32 %v4130, 7
      %v4132 = vsub.s32 %v4129, %v4131
      %v4133 = vrot.slane %v4123, %v4132
      %v4135 = vunpack.c.l.s4 1966171168
      %v4136 = vunpack.c.0.s8 %v4135
      %v4137 = vlaneseq
      %v4138 = vshrl.u32 %v4137, 7
      %v4139 = vsub.s32 %v4136, %v4138
      %v4140 = vrot.slane %v4124, %v4139
      %v4142 = vunpack.c.l.s4 1966171168
      %v4143 = vunpack.c.0.s8 %v4142
      %v4144 = vlaneseq
      %v4145 = vshrl.u32 %v4144, 7
      %v4146 = vsub.s32 %v4143, %v4145
      %v4147 = vrot.slane %v4125, %v4146
      %v4149 = vunpack.c.l.s4 1966171168
      %v4150 = vunpack.c.0.s8 %v4149
      %v4151 = vlaneseq
      %v4152 = vshrl.u32 %v4151, 7
      %v4153 = vsub.s32 %v4150, %v4152
      %v4154 = vrot.slane %v4126, %v4153
      %v4155 = vcombine.low %v4133, %v4140
      %v4156 = vcombine.low %v4147, %v4154
      %v4158 = vunpack.c.l.s4 1966171168
      %v4159 = vunpack.c.0.s8 %v4158
      %v4160 = vlaneseq
      %v4161 = vshrl.u32 %v4160, 7
      %v4162 = vsub.s32 %v4159, %v4161
      %v4163 = vrot.slane %v4155, %v4162
      %v4165 = vunpack.c.l.s4 1966171168
      %v4166 = vunpack.c.0.s8 %v4165
      %v4167 = vlaneseq
      %v4168 = vshrl.u32 %v4167, 7
      %v4169 = vsub.s32 %v4166, %v4168
      %v4170 = vrot.slane %v4156, %v4169
      %v4171 = vcombine.low %v4163, %v4170
      %v4172 = vcombine.low %v3962, %v3963
      %v4173 = vcombine.low %v3977, %v3992
      %v4174 = vcombine.low %v3999, %v4000
      %v4175 = vcombine.low %v4001, %v4015
      %v4177 = vunpack.c.l.s4 1966171168
      %v4178 = vunpack.c.0.s8 %v4177
      %v4179 = vlaneseq
      %v4180 = vshrl.u32 %v4179, 7
      %v4181 = vsub.s32 %v4178, %v4180
      %v4182 = vrot.slane %v4172, %v4181
      %v4184 = vunpack.c.l.s4 1966171168
      %v4185 = vunpack.c.0.s8 %v4184
      %v4186 = vlaneseq
      %v4187 = vshrl.u32 %v4186, 7
      %v4188 = vsub.s32 %v4185, %v4187
      %v4189 = vrot.slane %v4173, %v4188
      %v4191 = vunpack.c.l.s4 1966171168
      %v4192 = vunpack.c.0.s8 %v4191
      %v4193 = vlaneseq
      %v4194 = vshrl.u32 %v4193, 7
      %v4195 = vsub.s32 %v4192, %v4194
      %v4196 = vrot.slane %v4174, %v4195
      %v4198 = vunpack.c.l.s4 1966171168
      %v4199 = vunpack.c.0.s8 %v4198
      %v4200 = vlaneseq
      %v4201 = vshrl.u32 %v4200, 7
      %v4202 = vsub.s32 %v4199, %v4201
      %v4203 = vrot.slane %v4175, %v4202
      %v4204 = vcombine.low %v4182, %v4189
      %v4205 = vcombine.low %v4196, %v4203
      %v4207 = vunpack.c.l.s4 1966171168
      %v4208 = vunpack.c.0.s8 %v4207
      %v4209 = vlaneseq
      %v4210 = vshrl.u32 %v4209, 7
      %v4211 = vsub.s32 %v4208, %v4210
      %v4212 = vrot.slane %v4204, %v4211
      %v4214 = vunpack.c.l.s4 1966171168
      %v4215 = vunpack.c.0.s8 %v4214
      %v4216 = vlaneseq
      %v4217 = vshrl.u32 %v4216, 7
      %v4218 = vsub.s32 %v4215, %v4217
      %v4219 = vrot.slane %v4205, %v4218
      %v4220 = vcombine.low %v4212, %v4219
      %v4241 = vunpack.c.l.b16 %v4017
      %v4242 = vunpack.c.l.b16 %v4018
      %v4243 = vunpack.c.l.b16 %v4019
      %v4244 = vunpack.c.l.b16 %v4020
      %v4245 = vunpack.c.l.b16 %v4021
      %v4246 = vunpack.c.l.b16 %v4022
      %v4247 = vunpack.c.l.b16 %v4023
      %v4248 = vunpack.c.l.b16 %v4024
      %v4249 = vunpack.c.l.b16 %v4025
      %v4250 = vunpack.c.l.b16 %v4026
      %v4251 = vunpack.c.l.b16 %v4027
      %v4252 = vunpack.c.l.b16 %v4028
      %v4253 = vunpack.c.l.b16 %v4029
      %v4254 = vunpack.c.l.b16 %v4030
      %v4255 = vunpack.c.l.b16 %v4031
      %v4256 = vunpack.c.l.b16 %v4032
      %v4257 = vpack.c.b16 %v4242, %v4241
      %v4258 = vpack.c.b16 %v4244, %v4243
      %v4259 = vpack.c.b16 %v4246, %v4245
      %v4260 = vpack.c.b16 %v4248, %v4247
      %v4261 = vpack.c.b16 %v4250, %v4249
      %v4262 = vpack.c.b16 %v4252, %v4251
      %v4263 = vpack.c.b16 %v4254, %v4253
      %v4264 = vpack.c.b16 %v4256, %v4255
      %4273 = vmatprep.subr.bf16.mxu0 0
      %4274 = vmatpush1.bf16.msra.mxu0 %v4257
      %4275 = vmatprep.subr.bf16.mxu0 0
      %4276 = vmatpush1.bf16.msra.mxu0 %v4258
      %4277 = vmatprep.subr.bf16.mxu0 0
      %4278 = vmatpush1.bf16.msra.mxu0 %v4259
      %4279 = vmatprep.subr.bf16.mxu0 0
      %4280 = vmatpush1.bf16.msra.mxu0 %v4260
      %4281 = vmatprep.subr.bf16.mxu0 0
      %4282 = vmatpush1.bf16.msra.mxu0 %v4261
      %4283 = vmatprep.subr.bf16.mxu0 0
      %4284 = vmatpush1.bf16.msra.mxu0 %v4262
      %4285 = vmatprep.subr.bf16.mxu0 0
      %4286 = vmatpush1.bf16.msra.mxu0 %v4263
      %4287 = vmatprep.subr.bf16.mxu0 0
      %4288 = vmatpush1.bf16.msra.mxu0 %v4264
      %4289 = vmatprep.subr.bf16.mxu0 0
      %4290 = vmatpush1.bf16.msra.mxu0 0
      %4291 = vmatprep.subr.bf16.mxu0 0
      %4292 = vmatpush1.bf16.msra.mxu0 0
      %4293 = vmatprep.subr.bf16.mxu0 0
      %4294 = vmatpush1.bf16.msra.mxu0 0
      %4295 = vmatprep.subr.bf16.mxu0 0
      %4296 = vmatpush1.bf16.msra.mxu0 0
      %4297 = vmatprep.subr.bf16.mxu0 0
      %4298 = vmatpush1.bf16.msra.mxu0 0
      %4299 = vmatprep.subr.bf16.mxu0 0
      %4300 = vmatpush1.bf16.msra.mxu0 0
      %4301 = vmatprep.subr.bf16.mxu0 0
      %4302 = vmatpush1.bf16.msra.mxu0 0
      %4303 = vmatprep.subr.bf16.mxu0 0
      %4304 = vmatpush1.bf16.msra.mxu0 0
      %4305 = vmatprep.mubr.bf16.mxu0 0
      %4306 = vmatmul.mubr.bf16.gmra.mrb[0].mxu0 %v1194
      %v4307 = vpop.f32.mrb[0].mxu0
      %v4308 = vadd.f32 0.0, %v4307
      %v4309 = vpop.f32.mrb[0].mxu0
      %v4310 = vpop.f32.mrb[0].mxu0
      %v4311 = vadd.f32 0.0, %v4310
      %v4312 = vpop.f32.mrb[0].mxu0
      %4313 = vmatprep.mubr.bf16.mxu0 0
      %4314 = vmatmul.mubr.bf16.gmra.mrb[0].mxu0 %v1243
      %v4315 = vpop.f32.mrb[0].mxu0
      %v4316 = vadd.f32 0.0, %v4315
      %v4317 = vpop.f32.mrb[0].mxu0
      %v4318 = vpop.f32.mrb[0].mxu0
      %v4319 = vadd.f32 0.0, %v4318
      %v4320 = vpop.f32.mrb[0].mxu0
      %4321 = vmatprep.mubr.bf16.mxu0 0
      %4322 = vmatmul.mubr.bf16.gmra.mrb[0].mxu0 %v1292
      %v4323 = vpop.f32.mrb[0].mxu0
      %v4324 = vadd.f32 0.0, %v4323
      %v4325 = vpop.f32.mrb[0].mxu0
      %v4326 = vpop.f32.mrb[0].mxu0
      %v4327 = vadd.f32 0.0, %v4326
      %v4328 = vpop.f32.mrb[0].mxu0
      %4329 = vmatprep.mubr.bf16.mxu0 0
      %4330 = vmatmul.mubr.bf16.gmra.mrb[0].mxu0 %v1341
      %v4331 = vpop.f32.mrb[0].mxu0
      %v4332 = vadd.f32 0.0, %v4331
      %v4333 = vpop.f32.mrb[0].mxu0
      %v4334 = vpop.f32.mrb[0].mxu0
      %v4335 = vadd.f32 0.0, %v4334
      %v4336 = vpop.f32.mrb[0].mxu0
      %4337 = vmatprep.mubr.bf16.mxu0 0
      %4338 = vmatmul.mubr.bf16.gmra.mrb[0].mxu0 %v1390
      %v4339 = vpop.f32.mrb[0].mxu0
      %v4340 = vadd.f32 0.0, %v4339
      %v4341 = vpop.f32.mrb[0].mxu0
      %v4342 = vpop.f32.mrb[0].mxu0
      %v4343 = vadd.f32 0.0, %v4342
      %v4344 = vpop.f32.mrb[0].mxu0
      %4345 = vmatprep.mubr.bf16.mxu0 0
      %4346 = vmatmul.mubr.bf16.gmra.mrb[0].mxu0 %v1439
      %v4347 = vpop.f32.mrb[0].mxu0
      %v4348 = vadd.f32 0.0, %v4347
      %v4349 = vpop.f32.mrb[0].mxu0
      %v4350 = vpop.f32.mrb[0].mxu0
      %v4351 = vadd.f32 0.0, %v4350
      %v4352 = vpop.f32.mrb[0].mxu0
      %4353 = vmatprep.mubr.bf16.mxu0 0
      %4354 = vmatmul.mubr.bf16.gmra.mrb[0].mxu0 %v4073
      %v4355 = vpop.f32.mrb[0].mxu0
      %v4356 = vadd.f32 0.0, %v4355
      %v4357 = vpop.f32.mrb[0].mxu0
      %v4358 = vpop.f32.mrb[0].mxu0
      %v4359 = vadd.f32 0.0, %v4358
      %v4360 = vpop.f32.mrb[0].mxu0
      %4361 = vmatprep.mubr.bf16.mxu0 0
      %4362 = vmatmul.mubr.bf16.gmra.mrb[0].mxu0 %v4122
      %v4363 = vpop.f32.mrb[0].mxu0
      %v4364 = vadd.f32 0.0, %v4363
      %v4365 = vpop.f32.mrb[0].mxu0
      %v4366 = vpop.f32.mrb[0].mxu0
      %v4367 = vadd.f32 0.0, %v4366
      %v4368 = vpop.f32.mrb[0].mxu0
      %4369 = vmatprep.mubr.bf16.mxu0 0
      %4370 = vmatmul.mubr.bf16.gmra.mrb[0].mxu0 %v4171
      %v4371 = vpop.f32.mrb[0].mxu0
      %v4372 = vadd.f32 0.0, %v4371
      %v4373 = vpop.f32.mrb[0].mxu0
      %v4374 = vpop.f32.mrb[0].mxu0
      %v4375 = vadd.f32 0.0, %v4374
      %v4376 = vpop.f32.mrb[0].mxu0
      %4377 = vmatprep.mubr.bf16.mxu0 0
      %4378 = vmatmul.mubr.bf16.gmra.mrb[0].mxu0 %v4220
      %v4379 = vpop.f32.mrb[0].mxu0
      %v4380 = vadd.f32 0.0, %v4379
      %v4381 = vpop.f32.mrb[0].mxu0
      %v4382 = vpop.f32.mrb[0].mxu0
      %v4383 = vadd.f32 0.0, %v4382
      %v4384 = vpop.f32.mrb[0].mxu0
      %4385 = vdwg.mxu0
      %v4386 = vld [vmem:[#allocation2 + $0x6] sm:$0xff]
      %v4387 = vld [vmem:[#allocation2 + $0xe] sm:$0x3]
      %v4388 = vld [vmem:[#allocation2 + $0x16] sm:$0xff]
      %v4389 = vld [vmem:[#allocation2 + $0x1e] sm:$0x3]
      %v4390 = vld [vmem:[#allocation2 + $0x26] sm:$0xff]
      %v4391 = vld [vmem:[#allocation2 + $0x2e] sm:$0x3]
      %v4392 = vld [vmem:[#allocation2 + $0x36] sm:$0xff]
      %v4393 = vld [vmem:[#allocation2 + $0x3e] sm:$0x3]
      %v4394 = vld [vmem:[#allocation2 + $0x46] sm:$0xff]
      %v4395 = vld [vmem:[#allocation2 + $0x4e] sm:$0x3]
      %v4396 = vld [vmem:[#allocation2 + $0x56] sm:$0xff]
      %v4397 = vld [vmem:[#allocation2 + $0x5e] sm:$0x3]
      %v4398 = vld [vmem:[#allocation2 + $0x66] sm:$0xff]
      %v4399 = vld [vmem:[#allocation2 + $0x6e] sm:$0x3]
      %v4400 = vld [vmem:[#allocation2 + $0x76] sm:$0xff]
      %v4401 = vld [vmem:[#allocation2 + $0x7e] sm:$0x3]
      %v4402 = vld [vmem:[#allocation2 + $0x86] sm:$0xff]
      %v4403 = vld [vmem:[#allocation2 + $0x8e] sm:$0x3]
      %v4404 = vld [vmem:[#allocation2 + $0x96] sm:$0xff]
      %v4405 = vld [vmem:[#allocation2 + $0x9e] sm:$0x3]
      %v4406 = vld [vmem:[#allocation2 + $0xa6] sm:$0xff]
      %v4407 = vld [vmem:[#allocation2 + $0xae] sm:$0x3]
      %v4408 = vld [vmem:[#allocation2 + $0xb6] sm:$0xff]
      %v4409 = vld [vmem:[#allocation2 + $0xbe] sm:$0x3]
      %v4410 = vld [vmem:[#allocation2 + $0xc6] sm:$0xff]
      %v4411 = vld [vmem:[#allocation2 + $0xce] sm:$0x3]
      %v4412 = vld [vmem:[#allocation2 + $0xd6] sm:$0xff]
      %v4413 = vld [vmem:[#allocation2 + $0xde] sm:$0x3]
      %v4414 = vld [vmem:[#allocation2 + $0xe6] sm:$0xff]
      %v4415 = vld [vmem:[#allocation2 + $0xee] sm:$0x3]
      %v4416 = vld [vmem:[#allocation2 + $0xf6] sm:$0xff]
      %v4417 = vld [vmem:[#allocation2 + $0xfe] sm:$0x3]
      %v4438 = vcombine.high %v4308, %v4308
      %v4440 = vunpack.c.l.s4 1983009808
      %v4441 = vunpack.c.0.s8 %v4440
      %v4442 = vlaneseq
      %v4443 = vshrl.u32 %v4442, 7
      %v4444 = vsub.s32 %v4441, %v4443
      %v4445 = vrot.slane %v4308, %v4444
      %v4447 = vunpack.c.l.s4 1983009808
      %v4448 = vunpack.c.0.s8 %v4447
      %v4449 = vlaneseq
      %v4450 = vshrl.u32 %v4449, 7
      %v4451 = vsub.s32 %v4448, %v4450
      %v4452 = vrot.slane %v4438, %v4451
      %v4453 = vcombine.high %v4445, %v4445
      %v4454 = vcombine.high %v4452, %v4452
      %v4455 = vcombine.high %v4311, %v4311
      %v4457 = vunpack.c.l.s4 1983009808
      %v4458 = vunpack.c.0.s8 %v4457
      %v4459 = vlaneseq
      %v4460 = vshrl.u32 %v4459, 7
      %v4461 = vsub.s32 %v4458, %v4460
      %v4462 = vrot.slane %v4311, %v4461
      %v4464 = vunpack.c.l.s4 1983009808
      %v4465 = vunpack.c.0.s8 %v4464
      %v4466 = vlaneseq
      %v4467 = vshrl.u32 %v4466, 7
      %v4468 = vsub.s32 %v4465, %v4467
      %v4469 = vrot.slane %v4455, %v4468
      %v4470 = vcombine.high %v4462, %v4462
      %v4471 = vcombine.high %v4469, %v4469
      %v4472 = vcombine.high %v4316, %v4316
      %v4474 = vunpack.c.l.s4 1983009808
      %v4475 = vunpack.c.0.s8 %v4474
      %v4476 = vlaneseq
      %v4477 = vshrl.u32 %v4476, 7
      %v4478 = vsub.s32 %v4475, %v4477
      %v4479 = vrot.slane %v4316, %v4478
      %v4481 = vunpack.c.l.s4 1983009808
      %v4482 = vunpack.c.0.s8 %v4481
      %v4483 = vlaneseq
      %v4484 = vshrl.u32 %v4483, 7
      %v4485 = vsub.s32 %v4482, %v4484
      %v4486 = vrot.slane %v4472, %v4485
      %v4487 = vcombine.high %v4479, %v4479
      %v4488 = vcombine.high %v4486, %v4486
      %v4489 = vcombine.high %v4319, %v4319
      %v4491 = vunpack.c.l.s4 1983009808
      %v4492 = vunpack.c.0.s8 %v4491
      %v4493 = vlaneseq
      %v4494 = vshrl.u32 %v4493, 7
      %v4495 = vsub.s32 %v4492, %v4494
      %v4496 = vrot.slane %v4319, %v4495
      %v4498 = vunpack.c.l.s4 1983009808
      %v4499 = vunpack.c.0.s8 %v4498
      %v4500 = vlaneseq
      %v4501 = vshrl.u32 %v4500, 7
      %v4502 = vsub.s32 %v4499, %v4501
      %v4503 = vrot.slane %v4489, %v4502
      %v4504 = vcombine.high %v4496, %v4496
      %v4505 = vcombine.high %v4503, %v4503
      %v4506 = vcombine.high %v4324, %v4324
      %v4508 = vunpack.c.l.s4 1983009808
      %v4509 = vunpack.c.0.s8 %v4508
      %v4510 = vlaneseq
      %v4511 = vshrl.u32 %v4510, 7
      %v4512 = vsub.s32 %v4509, %v4511
      %v4513 = vrot.slane %v4324, %v4512
      %v4515 = vunpack.c.l.s4 1983009808
      %v4516 = vunpack.c.0.s8 %v4515
      %v4517 = vlaneseq
      %v4518 = vshrl.u32 %v4517, 7
      %v4519 = vsub.s32 %v4516, %v4518
      %v4520 = vrot.slane %v4506, %v4519
      %v4521 = vcombine.high %v4513, %v4513
      %v4522 = vcombine.high %v4520, %v4520
      %v4523 = vcombine.high %v4327, %v4327
      %v4525 = vunpack.c.l.s4 1983009808
      %v4526 = vunpack.c.0.s8 %v4525
      %v4527 = vlaneseq
      %v4528 = vshrl.u32 %v4527, 7
      %v4529 = vsub.s32 %v4526, %v4528
      %v4530 = vrot.slane %v4327, %v4529
      %v4532 = vunpack.c.l.s4 1983009808
      %v4533 = vunpack.c.0.s8 %v4532
      %v4534 = vlaneseq
      %v4535 = vshrl.u32 %v4534, 7
      %v4536 = vsub.s32 %v4533, %v4535
      %v4537 = vrot.slane %v4523, %v4536
      %v4538 = vcombine.high %v4530, %v4530
      %v4539 = vcombine.high %v4537, %v4537
      %v4540 = vcombine.high %v4332, %v4332
      %v4542 = vunpack.c.l.s4 1983009808
      %v4543 = vunpack.c.0.s8 %v4542
      %v4544 = vlaneseq
      %v4545 = vshrl.u32 %v4544, 7
      %v4546 = vsub.s32 %v4543, %v4545
      %v4547 = vrot.slane %v4332, %v4546
      %v4549 = vunpack.c.l.s4 1983009808
      %v4550 = vunpack.c.0.s8 %v4549
      %v4551 = vlaneseq
      %v4552 = vshrl.u32 %v4551, 7
      %v4553 = vsub.s32 %v4550, %v4552
      %v4554 = vrot.slane %v4540, %v4553
      %v4555 = vcombine.high %v4547, %v4547
      %v4556 = vcombine.high %v4554, %v4554
      %v4557 = vcombine.high %v4335, %v4335
      %v4559 = vunpack.c.l.s4 1983009808
      %v4560 = vunpack.c.0.s8 %v4559
      %v4561 = vlaneseq
      %v4562 = vshrl.u32 %v4561, 7
      %v4563 = vsub.s32 %v4560, %v4562
      %v4564 = vrot.slane %v4335, %v4563
      %v4566 = vunpack.c.l.s4 1983009808
      %v4567 = vunpack.c.0.s8 %v4566
      %v4568 = vlaneseq
      %v4569 = vshrl.u32 %v4568, 7
      %v4570 = vsub.s32 %v4567, %v4569
      %v4571 = vrot.slane %v4557, %v4570
      %v4572 = vcombine.high %v4564, %v4564
      %v4573 = vcombine.high %v4571, %v4571
      %v4574 = vcombine.high %v4340, %v4340
      %v4576 = vunpack.c.l.s4 1983009808
      %v4577 = vunpack.c.0.s8 %v4576
      %v4578 = vlaneseq
      %v4579 = vshrl.u32 %v4578, 7
      %v4580 = vsub.s32 %v4577, %v4579
      %v4581 = vrot.slane %v4340, %v4580
      %v4583 = vunpack.c.l.s4 1983009808
      %v4584 = vunpack.c.0.s8 %v4583
      %v4585 = vlaneseq
      %v4586 = vshrl.u32 %v4585, 7
      %v4587 = vsub.s32 %v4584, %v4586
      %v4588 = vrot.slane %v4574, %v4587
      %v4589 = vcombine.high %v4581, %v4581
      %v4590 = vcombine.high %v4588, %v4588
      %v4591 = vcombine.high %v4343, %v4343
      %v4593 = vunpack.c.l.s4 1983009808
      %v4594 = vunpack.c.0.s8 %v4593
      %v4595 = vlaneseq
      %v4596 = vshrl.u32 %v4595, 7
      %v4597 = vsub.s32 %v4594, %v4596
      %v4598 = vrot.slane %v4343, %v4597
      %v4600 = vunpack.c.l.s4 1983009808
      %v4601 = vunpack.c.0.s8 %v4600
      %v4602 = vlaneseq
      %v4603 = vshrl.u32 %v4602, 7
      %v4604 = vsub.s32 %v4601, %v4603
      %v4605 = vrot.slane %v4591, %v4604
      %v4606 = vcombine.high %v4598, %v4598
      %v4607 = vcombine.high %v4605, %v4605
      %v4608 = vcombine.high %v4348, %v4348
      %v4610 = vunpack.c.l.s4 1983009808
      %v4611 = vunpack.c.0.s8 %v4610
      %v4612 = vlaneseq
      %v4613 = vshrl.u32 %v4612, 7
      %v4614 = vsub.s32 %v4611, %v4613
      %v4615 = vrot.slane %v4348, %v4614
      %v4617 = vunpack.c.l.s4 1983009808
      %v4618 = vunpack.c.0.s8 %v4617
      %v4619 = vlaneseq
      %v4620 = vshrl.u32 %v4619, 7
      %v4621 = vsub.s32 %v4618, %v4620
      %v4622 = vrot.slane %v4608, %v4621
      %v4623 = vcombine.high %v4615, %v4615
      %v4624 = vcombine.high %v4622, %v4622
      %v4625 = vcombine.high %v4351, %v4351
      %v4627 = vunpack.c.l.s4 1983009808
      %v4628 = vunpack.c.0.s8 %v4627
      %v4629 = vlaneseq
      %v4630 = vshrl.u32 %v4629, 7
      %v4631 = vsub.s32 %v4628, %v4630
      %v4632 = vrot.slane %v4351, %v4631
      %v4634 = vunpack.c.l.s4 1983009808
      %v4635 = vunpack.c.0.s8 %v4634
      %v4636 = vlaneseq
      %v4637 = vshrl.u32 %v4636, 7
      %v4638 = vsub.s32 %v4635, %v4637
      %v4639 = vrot.slane %v4625, %v4638
      %v4640 = vcombine.high %v4632, %v4632
      %v4641 = vcombine.high %v4639, %v4639
      %v4642 = vcombine.high %v4356, %v4356
      %v4644 = vunpack.c.l.s4 1983009808
      %v4645 = vunpack.c.0.s8 %v4644
      %v4646 = vlaneseq
      %v4647 = vshrl.u32 %v4646, 7
      %v4648 = vsub.s32 %v4645, %v4647
      %v4649 = vrot.slane %v4356, %v4648
      %v4651 = vunpack.c.l.s4 1983009808
      %v4652 = vunpack.c.0.s8 %v4651
      %v4653 = vlaneseq
      %v4654 = vshrl.u32 %v4653, 7
      %v4655 = vsub.s32 %v4652, %v4654
      %v4656 = vrot.slane %v4642, %v4655
      %v4657 = vcombine.high %v4649, %v4649
      %v4658 = vcombine.high %v4656, %v4656
      %v4659 = vcombine.high %v4359, %v4359
      %v4661 = vunpack.c.l.s4 1983009808
      %v4662 = vunpack.c.0.s8 %v4661
      %v4663 = vlaneseq
      %v4664 = vshrl.u32 %v4663, 7
      %v4665 = vsub.s32 %v4662, %v4664
      %v4666 = vrot.slane %v4359, %v4665
      %v4668 = vunpack.c.l.s4 1983009808
      %v4669 = vunpack.c.0.s8 %v4668
      %v4670 = vlaneseq
      %v4671 = vshrl.u32 %v4670, 7
      %v4672 = vsub.s32 %v4669, %v4671
      %v4673 = vrot.slane %v4659, %v4672
      %v4674 = vcombine.high %v4666, %v4666
      %v4675 = vcombine.high %v4673, %v4673
      %v4676 = vcombine.high %v4364, %v4364
      %v4678 = vunpack.c.l.s4 1983009808
      %v4679 = vunpack.c.0.s8 %v4678
      %v4680 = vlaneseq
      %v4681 = vshrl.u32 %v4680, 7
      %v4682 = vsub.s32 %v4679, %v4681
      %v4683 = vrot.slane %v4364, %v4682
      %v4685 = vunpack.c.l.s4 1983009808
      %v4686 = vunpack.c.0.s8 %v4685
      %v4687 = vlaneseq
      %v4688 = vshrl.u32 %v4687, 7
      %v4689 = vsub.s32 %v4686, %v4688
      %v4690 = vrot.slane %v4676, %v4689
      %v4691 = vcombine.high %v4683, %v4683
      %v4692 = vcombine.high %v4690, %v4690
      %v4693 = vcombine.high %v4367, %v4367
      %v4695 = vunpack.c.l.s4 1983009808
      %v4696 = vunpack.c.0.s8 %v4695
      %v4697 = vlaneseq
      %v4698 = vshrl.u32 %v4697, 7
      %v4699 = vsub.s32 %v4696, %v4698
      %v4700 = vrot.slane %v4367, %v4699
      %v4702 = vunpack.c.l.s4 1983009808
      %v4703 = vunpack.c.0.s8 %v4702
      %v4704 = vlaneseq
      %v4705 = vshrl.u32 %v4704, 7
      %v4706 = vsub.s32 %v4703, %v4705
      %v4707 = vrot.slane %v4693, %v4706
      %v4708 = vcombine.high %v4700, %v4700
      %v4709 = vcombine.high %v4707, %v4707
      %v4710 = vcombine.high %v4372, %v4372
      %v4712 = vunpack.c.l.s4 1983009808
      %v4713 = vunpack.c.0.s8 %v4712
      %v4714 = vlaneseq
      %v4715 = vshrl.u32 %v4714, 7
      %v4716 = vsub.s32 %v4713, %v4715
      %v4717 = vrot.slane %v4372, %v4716
      %v4719 = vunpack.c.l.s4 1983009808
      %v4720 = vunpack.c.0.s8 %v4719
      %v4721 = vlaneseq
      %v4722 = vshrl.u32 %v4721, 7
      %v4723 = vsub.s32 %v4720, %v4722
      %v4724 = vrot.slane %v4710, %v4723
      %v4725 = vcombine.high %v4717, %v4717
      %v4726 = vcombine.high %v4724, %v4724
      %v4727 = vcombine.high %v4375, %v4375
      %v4729 = vunpack.c.l.s4 1983009808
      %v4730 = vunpack.c.0.s8 %v4729
      %v4731 = vlaneseq
      %v4732 = vshrl.u32 %v4731, 7
      %v4733 = vsub.s32 %v4730, %v4732
      %v4734 = vrot.slane %v4375, %v4733
      %v4736 = vunpack.c.l.s4 1983009808
      %v4737 = vunpack.c.0.s8 %v4736
      %v4738 = vlaneseq
      %v4739 = vshrl.u32 %v4738, 7
      %v4740 = vsub.s32 %v4737, %v4739
      %v4741 = vrot.slane %v4727, %v4740
      %v4742 = vcombine.high %v4734, %v4734
      %v4743 = vcombine.high %v4741, %v4741
      %v4744 = vcombine.high %v4380, %v4380
      %v4746 = vunpack.c.l.s4 1983009808
      %v4747 = vunpack.c.0.s8 %v4746
      %v4748 = vlaneseq
      %v4749 = vshrl.u32 %v4748, 7
      %v4750 = vsub.s32 %v4747, %v4749
      %v4751 = vrot.slane %v4380, %v4750
      %v4753 = vunpack.c.l.s4 1983009808
      %v4754 = vunpack.c.0.s8 %v4753
      %v4755 = vlaneseq
      %v4756 = vshrl.u32 %v4755, 7
      %v4757 = vsub.s32 %v4754, %v4756
      %v4758 = vrot.slane %v4744, %v4757
      %v4759 = vcombine.high %v4751, %v4751
      %v4760 = vcombine.high %v4758, %v4758
      %v4761 = vcombine.high %v4383, %v4383
      %v4763 = vunpack.c.l.s4 1983009808
      %v4764 = vunpack.c.0.s8 %v4763
      %v4765 = vlaneseq
      %v4766 = vshrl.u32 %v4765, 7
      %v4767 = vsub.s32 %v4764, %v4766
      %v4768 = vrot.slane %v4383, %v4767
      %v4770 = vunpack.c.l.s4 1983009808
      %v4771 = vunpack.c.0.s8 %v4770
      %v4772 = vlaneseq
      %v4773 = vshrl.u32 %v4772, 7
      %v4774 = vsub.s32 %v4771, %v4773
      %v4775 = vrot.slane %v4761, %v4774
      %v4776 = vcombine.high %v4768, %v4768
      %v4777 = vcombine.high %v4775, %v4775
      %v4778 = vcombine.low %v4445, %v4453
      %v4779 = vcombine.low %v4452, %v4454
      %v4781 = vunpack.c.l.s4 1983009808
      %v4782 = vunpack.c.0.s8 %v4781
      %v4783 = vlaneseq
      %v4784 = vshrl.u32 %v4783, 7
      %v4785 = vsub.s32 %v4782, %v4784
      %v4786 = vrot.slane %v4778, %v4785
      %v4788 = vunpack.c.l.s4 1983009808
      %v4789 = vunpack.c.0.s8 %v4788
      %v4790 = vlaneseq
      %v4791 = vshrl.u32 %v4790, 7
      %v4792 = vsub.s32 %v4789, %v4791
      %v4793 = vrot.slane %v4779, %v4792
      %v4794 = vcombine.low %v4786, %v4793
      %v4796 = vunpack.c.l.s4 1983009808
      %v4797 = vunpack.c.0.s8 %v4796
      %v4798 = vlaneseq
      %v4799 = vshrl.u32 %v4798, 7
      %v4800 = vsub.s32 %v4797, %v4799
      %v4801 = vrot.slane %v4462, %v4800
      %v4802 = vcombine.low %v4470, %v4469
      %v4803 = vcombine.low %v4471, %v4479
      %v4805 = vunpack.c.l.s4 1983009808
      %v4806 = vunpack.c.0.s8 %v4805
      %v4807 = vlaneseq
      %v4808 = vshrl.u32 %v4807, 7
      %v4809 = vsub.s32 %v4806, %v4808
      %v4810 = vrot.slane %v4802, %v4809
      %v4812 = vunpack.c.l.s4 1983009808
      %v4813 = vunpack.c.0.s8 %v4812
      %v4814 = vlaneseq
      %v4815 = vshrl.u32 %v4814, 7
      %v4816 = vsub.s32 %v4813, %v4815
      %v4817 = vrot.slane %v4803, %v4816
      %v4818 = vcombine.low %v4810, %v4817
      %v4820 = vunpack.c.l.s4 1983009808
      %v4821 = vunpack.c.0.s8 %v4820
      %v4822 = vlaneseq
      %v4823 = vshrl.u32 %v4822, 7
      %v4824 = vsub.s32 %v4821, %v4823
      %v4825 = vrot.slane %v4487, %v4824
      %v4826 = vcombine.low %v4486, %v4488
      %v4827 = vcombine.low %v4496, %v4504
      %v4829 = vunpack.c.l.s4 1983009808
      %v4830 = vunpack.c.0.s8 %v4829
      %v4831 = vlaneseq
      %v4832 = vshrl.u32 %v4831, 7
      %v4833 = vsub.s32 %v4830, %v4832
      %v4834 = vrot.slane %v4826, %v4833
      %v4836 = vunpack.c.l.s4 1983009808
      %v4837 = vunpack.c.0.s8 %v4836
      %v4838 = vlaneseq
      %v4839 = vshrl.u32 %v4838, 7
      %v4840 = vsub.s32 %v4837, %v4839
      %v4841 = vrot.slane %v4827, %v4840
      %v4842 = vcombine.low %v4834, %v4841
      %v4844 = vunpack.c.l.s4 1983009808
      %v4845 = vunpack.c.0.s8 %v4844
      %v4846 = vlaneseq
      %v4847 = vshrl.u32 %v4846, 7
      %v4848 = vsub.s32 %v4845, %v4847
      %v4849 = vrot.slane %v4503, %v4848
      %v4850 = vcombine.low %v4505, %v4513
      %v4851 = vcombine.low %v4521, %v4520
      %v4853 = vunpack.c.l.s4 1983009808
      %v4854 = vunpack.c.0.s8 %v4853
      %v4855 = vlaneseq
      %v4856 = vshrl.u32 %v4855, 7
      %v4857 = vsub.s32 %v4854, %v4856
      %v4858 = vrot.slane %v4850, %v4857
      %v4860 = vunpack.c.l.s4 1983009808
      %v4861 = vunpack.c.0.s8 %v4860
      %v4862 = vlaneseq
      %v4863 = vshrl.u32 %v4862, 7
      %v4864 = vsub.s32 %v4861, %v4863
      %v4865 = vrot.slane %v4851, %v4864
      %v4866 = vcombine.low %v4858, %v4865
      %v4868 = vunpack.c.l.s4 1983009808
      %v4869 = vunpack.c.0.s8 %v4868
      %v4870 = vlaneseq
      %v4871 = vshrl.u32 %v4870, 7
      %v4872 = vsub.s32 %v4869, %v4871
      %v4873 = vrot.slane %v4522, %v4872
      %v4874 = vcombine.low %v4530, %v4538
      %v4875 = vcombine.low %v4537, %v4539
      %v4877 = vunpack.c.l.s4 1983009808
      %v4878 = vunpack.c.0.s8 %v4877
      %v4879 = vlaneseq
      %v4880 = vshrl.u32 %v4879, 7
      %v4881 = vsub.s32 %v4878, %v4880
      %v4882 = vrot.slane %v4874, %v4881
      %v4884 = vunpack.c.l.s4 1983009808
      %v4885 = vunpack.c.0.s8 %v4884
      %v4886 = vlaneseq
      %v4887 = vshrl.u32 %v4886, 7
      %v4888 = vsub.s32 %v4885, %v4887
      %v4889 = vrot.slane %v4875, %v4888
      %v4890 = vcombine.low %v4882, %v4889
      %v4892 = vunpack.c.l.s4 1983009808
      %v4893 = vunpack.c.0.s8 %v4892
      %v4894 = vlaneseq
      %v4895 = vshrl.u32 %v4894, 7
      %v4896 = vsub.s32 %v4893, %v4895
      %v4897 = vrot.slane %v4547, %v4896
      %v4898 = vcombine.low %v4555, %v4554
      %v4899 = vcombine.low %v4556, %v4564
      %v4901 = vunpack.c.l.s4 1983009808
      %v4902 = vunpack.c.0.s8 %v4901
      %v4903 = vlaneseq
      %v4904 = vshrl.u32 %v4903, 7
      %v4905 = vsub.s32 %v4902, %v4904
      %v4906 = vrot.slane %v4898, %v4905
      %v4908 = vunpack.c.l.s4 1983009808
      %v4909 = vunpack.c.0.s8 %v4908
      %v4910 = vlaneseq
      %v4911 = vshrl.u32 %v4910, 7
      %v4912 = vsub.s32 %v4909, %v4911
      %v4913 = vrot.slane %v4899, %v4912
      %v4914 = vcombine.low %v4906, %v4913
      %v4916 = vunpack.c.l.s4 1983009808
      %v4917 = vunpack.c.0.s8 %v4916
      %v4918 = vlaneseq
      %v4919 = vshrl.u32 %v4918, 7
      %v4920 = vsub.s32 %v4917, %v4919
      %v4921 = vrot.slane %v4572, %v4920
      %v4922 = vcombine.low %v4571, %v4573
      %v4923 = vcombine.low %v4581, %v4589
      %v4925 = vunpack.c.l.s4 1983009808
      %v4926 = vunpack.c.0.s8 %v4925
      %v4927 = vlaneseq
      %v4928 = vshrl.u32 %v4927, 7
      %v4929 = vsub.s32 %v4926, %v4928
      %v4930 = vrot.slane %v4922, %v4929
      %v4932 = vunpack.c.l.s4 1983009808
      %v4933 = vunpack.c.0.s8 %v4932
      %v4934 = vlaneseq
      %v4935 = vshrl.u32 %v4934, 7
      %v4936 = vsub.s32 %v4933, %v4935
      %v4937 = vrot.slane %v4923, %v4936
      %v4938 = vcombine.low %v4930, %v4937
      %v4940 = vunpack.c.l.s4 1983009808
      %v4941 = vunpack.c.0.s8 %v4940
      %v4942 = vlaneseq
      %v4943 = vshrl.u32 %v4942, 7
      %v4944 = vsub.s32 %v4941, %v4943
      %v4945 = vrot.slane %v4588, %v4944
      %v4946 = vcombine.low %v4590, %v4598
      %v4947 = vcombine.low %v4606, %v4605
      %v4949 = vunpack.c.l.s4 1983009808
      %v4950 = vunpack.c.0.s8 %v4949
      %v4951 = vlaneseq
      %v4952 = vshrl.u32 %v4951, 7
      %v4953 = vsub.s32 %v4950, %v4952
      %v4954 = vrot.slane %v4946, %v4953
      %v4956 = vunpack.c.l.s4 1983009808
      %v4957 = vunpack.c.0.s8 %v4956
      %v4958 = vlaneseq
      %v4959 = vshrl.u32 %v4958, 7
      %v4960 = vsub.s32 %v4957, %v4959
      %v4961 = vrot.slane %v4947, %v4960
      %v4962 = vcombine.low %v4954, %v4961
      %v4964 = vunpack.c.l.s4 1983009808
      %v4965 = vunpack.c.0.s8 %v4964
      %v4966 = vlaneseq
      %v4967 = vshrl.u32 %v4966, 7
      %v4968 = vsub.s32 %v4965, %v4967
      %v4969 = vrot.slane %v4607, %v4968
      %v4970 = vcombine.low %v4615, %v4623
      %v4971 = vcombine.low %v4622, %v4624
      %v4973 = vunpack.c.l.s4 1983009808
      %v4974 = vunpack.c.0.s8 %v4973
      %v4975 = vlaneseq
      %v4976 = vshrl.u32 %v4975, 7
      %v4977 = vsub.s32 %v4974, %v4976
      %v4978 = vrot.slane %v4970, %v4977
      %v4980 = vunpack.c.l.s4 1983009808
      %v4981 = vunpack.c.0.s8 %v4980
      %v4982 = vlaneseq
      %v4983 = vshrl.u32 %v4982, 7
      %v4984 = vsub.s32 %v4981, %v4983
      %v4985 = vrot.slane %v4971, %v4984
      %v4986 = vcombine.low %v4978, %v4985
      %v4988 = vunpack.c.l.s4 1983009808
      %v4989 = vunpack.c.0.s8 %v4988
      %v4990 = vlaneseq
      %v4991 = vshrl.u32 %v4990, 7
      %v4992 = vsub.s32 %v4989, %v4991
      %v4993 = vrot.slane %v4632, %v4992
      %v4994 = vcombine.low %v4640, %v4639
      %v4995 = vcombine.low %v4641, %v4649
      %v4997 = vunpack.c.l.s4 1983009808
      %v4998 = vunpack.c.0.s8 %v4997
      %v4999 = vlaneseq
      %v5000 = vshrl.u32 %v4999, 7
      %v5001 = vsub.s32 %v4998, %v5000
      %v5002 = vrot.slane %v4994, %v5001
      %v5004 = vunpack.c.l.s4 1983009808
      %v5005 = vunpack.c.0.s8 %v5004
      %v5006 = vlaneseq
      %v5007 = vshrl.u32 %v5006, 7
      %v5008 = vsub.s32 %v5005, %v5007
      %v5009 = vrot.slane %v4995, %v5008
      %v5010 = vcombine.low %v5002, %v5009
      %v5012 = vunpack.c.l.s4 1983009808
      %v5013 = vunpack.c.0.s8 %v5012
      %v5014 = vlaneseq
      %v5015 = vshrl.u32 %v5014, 7
      %v5016 = vsub.s32 %v5013, %v5015
      %v5017 = vrot.slane %v4657, %v5016
      %v5018 = vcombine.low %v4656, %v4658
      %v5019 = vcombine.low %v4666, %v4674
      %v5021 = vunpack.c.l.s4 1983009808
      %v5022 = vunpack.c.0.s8 %v5021
      %v5023 = vlaneseq
      %v5024 = vshrl.u32 %v5023, 7
      %v5025 = vsub.s32 %v5022, %v5024
      %v5026 = vrot.slane %v5018, %v5025
      %v5028 = vunpack.c.l.s4 1983009808
      %v5029 = vunpack.c.0.s8 %v5028
      %v5030 = vlaneseq
      %v5031 = vshrl.u32 %v5030, 7
      %v5032 = vsub.s32 %v5029, %v5031
      %v5033 = vrot.slane %v5019, %v5032
      %v5034 = vcombine.low %v5026, %v5033
      %v5036 = vunpack.c.l.s4 1983009808
      %v5037 = vunpack.c.0.s8 %v5036
      %v5038 = vlaneseq
      %v5039 = vshrl.u32 %v5038, 7
      %v5040 = vsub.s32 %v5037, %v5039
      %v5041 = vrot.slane %v4673, %v5040
      %v5042 = vcombine.low %v4675, %v4683
      %v5043 = vcombine.low %v4691, %v4690
      %v5045 = vunpack.c.l.s4 1983009808
      %v5046 = vunpack.c.0.s8 %v5045
      %v5047 = vlaneseq
      %v5048 = vshrl.u32 %v5047, 7
      %v5049 = vsub.s32 %v5046, %v5048
      %v5050 = vrot.slane %v5042, %v5049
      %v5052 = vunpack.c.l.s4 1983009808
      %v5053 = vunpack.c.0.s8 %v5052
      %v5054 = vlaneseq
      %v5055 = vshrl.u32 %v5054, 7
      %v5056 = vsub.s32 %v5053, %v5055
      %v5057 = vrot.slane %v5043, %v5056
      %v5058 = vcombine.low %v5050, %v5057
      %v5060 = vunpack.c.l.s4 1983009808
      %v5061 = vunpack.c.0.s8 %v5060
      %v5062 = vlaneseq
      %v5063 = vshrl.u32 %v5062, 7
      %v5064 = vsub.s32 %v5061, %v5063
      %v5065 = vrot.slane %v4692, %v5064
      %v5066 = vcombine.low %v4700, %v4708
      %v5067 = vcombine.low %v4707, %v4709
      %v5069 = vunpack.c.l.s4 1983009808
      %v5070 = vunpack.c.0.s8 %v5069
      %v5071 = vlaneseq
      %v5072 = vshrl.u32 %v5071, 7
      %v5073 = vsub.s32 %v5070, %v5072
      %v5074 = vrot.slane %v5066, %v5073
      %v5076 = vunpack.c.l.s4 1983009808
      %v5077 = vunpack.c.0.s8 %v5076
      %v5078 = vlaneseq
      %v5079 = vshrl.u32 %v5078, 7
      %v5080 = vsub.s32 %v5077, %v5079
      %v5081 = vrot.slane %v5067, %v5080
      %v5082 = vcombine.low %v5074, %v5081
      %v5084 = vunpack.c.l.s4 1983009808
      %v5085 = vunpack.c.0.s8 %v5084
      %v5086 = vlaneseq
      %v5087 = vshrl.u32 %v5086, 7
      %v5088 = vsub.s32 %v5085, %v5087
      %v5089 = vrot.slane %v4717, %v5088
      %v5090 = vcombine.low %v4725, %v4724
      %v5091 = vcombine.low %v4726, %v4734
      %v5093 = vunpack.c.l.s4 1983009808
      %v5094 = vunpack.c.0.s8 %v5093
      %v5095 = vlaneseq
      %v5096 = vshrl.u32 %v5095, 7
      %v5097 = vsub.s32 %v5094, %v5096
      %v5098 = vrot.slane %v5090, %v5097
      %v5100 = vunpack.c.l.s4 1983009808
      %v5101 = vunpack.c.0.s8 %v5100
      %v5102 = vlaneseq
      %v5103 = vshrl.u32 %v5102, 7
      %v5104 = vsub.s32 %v5101, %v5103
      %v5105 = vrot.slane %v5091, %v5104
      %v5106 = vcombine.low %v5098, %v5105
      %v5108 = vunpack.c.l.s4 1983009808
      %v5109 = vunpack.c.0.s8 %v5108
      %v5110 = vlaneseq
      %v5111 = vshrl.u32 %v5110, 7
      %v5112 = vsub.s32 %v5109, %v5111
      %v5113 = vrot.slane %v4742, %v5112
      %v5114 = vcombine.low %v4741, %v4743
      %v5115 = vcombine.low %v4751, %v4759
      %v5117 = vunpack.c.l.s4 1983009808
      %v5118 = vunpack.c.0.s8 %v5117
      %v5119 = vlaneseq
      %v5120 = vshrl.u32 %v5119, 7
      %v5121 = vsub.s32 %v5118, %v5120
      %v5122 = vrot.slane %v5114, %v5121
      %v5124 = vunpack.c.l.s4 1983009808
      %v5125 = vunpack.c.0.s8 %v5124
      %v5126 = vlaneseq
      %v5127 = vshrl.u32 %v5126, 7
      %v5128 = vsub.s32 %v5125, %v5127
      %v5129 = vrot.slane %v5115, %v5128
      %v5130 = vcombine.low %v5122, %v5129
      %v5132 = vunpack.c.l.s4 1983009808
      %v5133 = vunpack.c.0.s8 %v5132
      %v5134 = vlaneseq
      %v5135 = vshrl.u32 %v5134, 7
      %v5136 = vsub.s32 %v5133, %v5135
      %v5137 = vrot.slane %v4758, %v5136
      %v5138 = vcombine.low %v4760, %v4768
      %v5139 = vcombine.low %v4776, %v4775
      %v5141 = vunpack.c.l.s4 1983009808
      %v5142 = vunpack.c.0.s8 %v5141
      %v5143 = vlaneseq
      %v5144 = vshrl.u32 %v5143, 7
      %v5145 = vsub.s32 %v5142, %v5144
      %v5146 = vrot.slane %v5138, %v5145
      %v5148 = vunpack.c.l.s4 1983009808
      %v5149 = vunpack.c.0.s8 %v5148
      %v5150 = vlaneseq
      %v5151 = vshrl.u32 %v5150, 7
      %v5152 = vsub.s32 %v5149, %v5151
      %v5153 = vrot.slane %v5139, %v5152
      %v5154 = vcombine.low %v5146, %v5153
      %v5156 = vunpack.c.l.s4 1983009808
      %v5157 = vunpack.c.0.s8 %v5156
      %v5158 = vlaneseq
      %v5159 = vshrl.u32 %v5158, 7
      %v5160 = vsub.s32 %v5157, %v5159
      %v5161 = vrot.slane %v4777, %v5160
      %v5194 = vadd.f32 %v4386, %v4794
      %v5195 = vadd.f32 %v4387, %v4801
      %v5196 = vadd.f32 %v4388, %v4818
      %v5197 = vadd.f32 %v4389, %v4825
      %v5198 = vadd.f32 %v4390, %v4842
      %v5199 = vadd.f32 %v4391, %v4849
      %v5200 = vadd.f32 %v4392, %v4866
      %v5201 = vadd.f32 %v4393, %v4873
      %v5202 = vadd.f32 %v4394, %v4890
      %v5203 = vadd.f32 %v4395, %v4897
      %v5204 = vadd.f32 %v4396, %v4914
      %v5205 = vadd.f32 %v4397, %v4921
      %v5206 = vadd.f32 %v4398, %v4938
      %v5207 = vadd.f32 %v4399, %v4945
      %v5208 = vadd.f32 %v4400, %v4962
      %v5209 = vadd.f32 %v4401, %v4969
      %v5210 = vadd.f32 %v4402, %v4986
      %v5211 = vadd.f32 %v4403, %v4993
      %v5212 = vadd.f32 %v4404, %v5010
      %v5213 = vadd.f32 %v4405, %v5017
      %v5214 = vadd.f32 %v4406, %v5034
      %v5215 = vadd.f32 %v4407, %v5041
      %v5216 = vadd.f32 %v4408, %v5058
      %v5217 = vadd.f32 %v4409, %v5065
      %v5218 = vadd.f32 %v4410, %v5082
      %v5219 = vadd.f32 %v4411, %v5089
      %v5220 = vadd.f32 %v4412, %v5106
      %v5221 = vadd.f32 %v4413, %v5113
      %v5222 = vadd.f32 %v4414, %v5130
      %v5223 = vadd.f32 %v4415, %v5137
      %v5224 = vadd.f32 %v4416, %v5154
      %v5225 = vadd.f32 %v4417, %v5161
      %5226 = vst [vmem:[#allocation2 + $0x6] sm:$0xff] %v5194
      %5227 = vst [vmem:[#allocation2 + $0xe] sm:$0x3] %v5195
      %5228 = vst [vmem:[#allocation2 + $0x16] sm:$0xff] %v5196
      %5229 = vst [vmem:[#allocation2 + $0x1e] sm:$0x3] %v5197
      %5230 = vst [vmem:[#allocation2 + $0x26] sm:$0xff] %v5198
      %5231 = vst [vmem:[#allocation2 + $0x2e] sm:$0x3] %v5199
      %5232 = vst [vmem:[#allocation2 + $0x36] sm:$0xff] %v5200
      %5233 = vst [vmem:[#allocation2 + $0x3e] sm:$0x3] %v5201
      %5234 = vst [vmem:[#allocation2 + $0x46] sm:$0xff] %v5202
      %5235 = vst [vmem:[#allocation2 + $0x4e] sm:$0x3] %v5203
      %5236 = vst [vmem:[#allocation2 + $0x56] sm:$0xff] %v5204
      %5237 = vst [vmem:[#allocation2 + $0x5e] sm:$0x3] %v5205
      %5238 = vst [vmem:[#allocation2 + $0x66] sm:$0xff] %v5206
      %5239 = vst [vmem:[#allocation2 + $0x6e] sm:$0x3] %v5207
      %5240 = vst [vmem:[#allocation2 + $0x76] sm:$0xff] %v5208
      %5241 = vst [vmem:[#allocation2 + $0x7e] sm:$0x3] %v5209
      %5242 = vst [vmem:[#allocation2 + $0x86] sm:$0xff] %v5210
      %5243 = vst [vmem:[#allocation2 + $0x8e] sm:$0x3] %v5211
      %5244 = vst [vmem:[#allocation2 + $0x96] sm:$0xff] %v5212
      %5245 = vst [vmem:[#allocation2 + $0x9e] sm:$0x3] %v5213
      %5246 = vst [vmem:[#allocation2 + $0xa6] sm:$0xff] %v5214
      %5247 = vst [vmem:[#allocation2 + $0xae] sm:$0x3] %v5215
      %5248 = vst [vmem:[#allocation2 + $0xb6] sm:$0xff] %v5216
      %5249 = vst [vmem:[#allocation2 + $0xbe] sm:$0x3] %v5217
      %5250 = vst [vmem:[#allocation2 + $0xc6] sm:$0xff] %v5218
      %5251 = vst [vmem:[#allocation2 + $0xce] sm:$0x3] %v5219
      %5252 = vst [vmem:[#allocation2 + $0xd6] sm:$0xff] %v5220
      %5253 = vst [vmem:[#allocation2 + $0xde] sm:$0x3] %v5221
      %5254 = vst [vmem:[#allocation2 + $0xe6] sm:$0xff] %v5222
      %5255 = vst [vmem:[#allocation2 + $0xee] sm:$0x3] %v5223
      %5256 = vst [vmem:[#allocation2 + $0xf6] sm:$0xff] %v5224
      %5257 = vst [vmem:[#allocation2 + $0xfe] sm:$0x3] %v5225
      %s5258 = scalar_lea.vmem %s1, 512
      %v5259 = vld [vmem:[%s5258] sm:$0xf]
      %v5260 = vld [vmem:[%s5258 + $0x4] sm:$0xf]
      %v5261 = vld [vmem:[%s5258 + $0x8] sm:$0xf]
      %v5262 = vld [vmem:[%s5258 + $0xc] sm:$0xf]
      %v5263 = vld [vmem:[%s5258 + $0x10] sm:$0xf]
      %v5264 = vld [vmem:[%s5258 + $0x14] sm:$0xf]
      %v5265 = vld [vmem:[%s5258 + $0x18] sm:$0xf]
      %v5266 = vld [vmem:[%s5258 + $0x1c] sm:$0xf]
      %v5267 = vld [vmem:[%s5258 + $0x20] sm:$0xf]
      %v5268 = vld [vmem:[%s5258 + $0x24] sm:$0xf]
      %v5269 = vld [vmem:[%s5258 + $0x28] sm:$0xf]
      %v5270 = vld [vmem:[%s5258 + $0x2c] sm:$0xf]
      %v5271 = vld [vmem:[%s5258 + $0x30] sm:$0xf]
      %v5272 = vld [vmem:[%s5258 + $0x34] sm:$0xf]
      %v5273 = vld [vmem:[%s5258 + $0x38] sm:$0xf]
      %v5274 = vld [vmem:[%s5258 + $0x3c] sm:$0xf]
      %v5275 = vunpack.c.l.b16 %v231
      %v5276 = vunpack.c.l.b16 %v232
      %v5277 = vunpack.c.l.b16 %v233
      %v5278 = vunpack.c.l.b16 %v234
      %v5279 = vunpack.c.l.b16 %v235
      %v5280 = vunpack.c.l.b16 %v236
      %v5281 = vunpack.c.l.b16 %v237
      %v5282 = vunpack.c.l.b16 %v238
      %v5283 = vunpack.c.l.b16 %v239
      %v5284 = vunpack.c.l.b16 %v240
      %v5285 = vunpack.c.l.b16 %v241
      %v5286 = vunpack.c.l.b16 %v242
      %v5287 = vpack.c.b16 %v5276, %v5275
      %v5288 = vpack.c.b16 %v5278, %v5277
      %v5289 = vpack.c.b16 %v5280, %v5279
      %v5290 = vpack.c.b16 %v5282, %v5281
      %v5291 = vpack.c.b16 %v5284, %v5283
      %v5292 = vpack.c.b16 %v5286, %v5285
      %v5315 = vunpack.c.l.b16 %v5259
      %v5316 = vunpack.c.l.b16 %v5260
      %v5317 = vunpack.c.l.b16 %v5261
      %v5318 = vunpack.c.l.b16 %v5262
      %v5319 = vunpack.c.l.b16 %v5263
      %v5320 = vunpack.c.l.b16 %v5264
      %v5321 = vunpack.c.l.b16 %v5265
      %v5322 = vunpack.c.l.b16 %v5266
      %v5323 = vunpack.c.l.b16 %v5267
      %v5324 = vunpack.c.l.b16 %v5268
      %v5325 = vunpack.c.l.b16 %v5269
      %v5326 = vunpack.c.l.b16 %v5270
      %v5327 = vunpack.c.l.b16 %v5271
      %v5328 = vunpack.c.l.b16 %v5272
      %v5329 = vunpack.c.l.b16 %v5273
      %v5330 = vunpack.c.l.b16 %v5274
      %v5331 = vpack.c.b16 %v5316, %v5315
      %v5332 = vpack.c.b16 %v5318, %v5317
      %v5333 = vpack.c.b16 %v5320, %v5319
      %v5334 = vpack.c.b16 %v5322, %v5321
      %v5335 = vpack.c.b16 %v5324, %v5323
      %v5336 = vpack.c.b16 %v5326, %v5325
      %v5337 = vpack.c.b16 %v5328, %v5327
      %v5338 = vpack.c.b16 %v5330, %v5329
      %5347 = vmatprep.subr.bf16.mxu0 0
      %5348 = vmatpush1.bf16.msra.mxu0 %v5331
      %5349 = vmatprep.subr.bf16.mxu0 0
      %5350 = vmatpush1.bf16.msra.mxu0 %v5332
      %5351 = vmatprep.subr.bf16.mxu0 0
      %5352 = vmatpush1.bf16.msra.mxu0 %v5333
      %5353 = vmatprep.subr.bf16.mxu0 0
      %5354 = vmatpush1.bf16.msra.mxu0 %v5334
      %5355 = vmatprep.subr.bf16.mxu0 0
      %5356 = vmatpush1.bf16.msra.mxu0 %v5335
      %5357 = vmatprep.subr.bf16.mxu0 0
      %5358 = vmatpush1.bf16.msra.mxu0 %v5336
      %5359 = vmatprep.subr.bf16.mxu0 0
      %5360 = vmatpush1.bf16.msra.mxu0 %v5337
      %5361 = vmatprep.subr.bf16.mxu0 0
      %5362 = vmatpush1.bf16.msra.mxu0 %v5338
      %5363 = vmatprep.subr.bf16.mxu0 0
      %5364 = vmatpush1.bf16.msra.mxu0 0
      %5365 = vmatprep.subr.bf16.mxu0 0
      %5366 = vmatpush1.bf16.msra.mxu0 0
      %5367 = vmatprep.subr.bf16.mxu0 0
      %5368 = vmatpush1.bf16.msra.mxu0 0
      %5369 = vmatprep.subr.bf16.mxu0 0
      %5370 = vmatpush1.bf16.msra.mxu0 0
      %5371 = vmatprep.subr.bf16.mxu0 0
      %5372 = vmatpush1.bf16.msra.mxu0 0
      %5373 = vmatprep.subr.bf16.mxu0 0
      %5374 = vmatpush1.bf16.msra.mxu0 0
      %5375 = vmatprep.subr.bf16.mxu0 0
      %5376 = vmatpush1.bf16.msra.mxu0 0
      %5377 = vmatprep.subr.bf16.mxu0 0
      %5378 = vmatpush1.bf16.msra.mxu0 0
      %5379 = vmatprep.mubr.bf16.mxu0 0
      %5380 = vmatmul.mubr.bf16.gmra.mrb[0].mxu0 %v418
      %v5381 = vpop.f32.mrb[0].mxu0
      %v5382 = vadd.f32 0.0, %v5381
      %v5383 = vpop.f32.mrb[0].mxu0
      %v5384 = vpop.f32.mrb[0].mxu0
      %v5385 = vadd.f32 0.0, %v5384
      %v5386 = vpop.f32.mrb[0].mxu0
      %5387 = vmatprep.mubr.bf16.mxu0 0
      %5388 = vmatmul.mubr.bf16.gmra.mrb[0].mxu0 %v419
      %v5389 = vpop.f32.mrb[0].mxu0
      %v5390 = vadd.f32 0.0, %v5389
      %v5391 = vpop.f32.mrb[0].mxu0
      %v5392 = vpop.f32.mrb[0].mxu0
      %v5393 = vadd.f32 0.0, %v5392
      %v5394 = vpop.f32.mrb[0].mxu0
      %5395 = vmatprep.mubr.bf16.mxu0 0
      %5396 = vmatmul.mubr.bf16.gmra.mrb[0].mxu0 %v420
      %v5397 = vpop.f32.mrb[0].mxu0
      %v5398 = vadd.f32 0.0, %v5397
      %v5399 = vpop.f32.mrb[0].mxu0
      %v5400 = vpop.f32.mrb[0].mxu0
      %v5401 = vadd.f32 0.0, %v5400
      %v5402 = vpop.f32.mrb[0].mxu0
      %5403 = vmatprep.mubr.bf16.mxu0 0
      %5404 = vmatmul.mubr.bf16.gmra.mrb[0].mxu0 %v421
      %v5405 = vpop.f32.mrb[0].mxu0
      %v5406 = vadd.f32 0.0, %v5405
      %v5407 = vpop.f32.mrb[0].mxu0
      %v5408 = vpop.f32.mrb[0].mxu0
      %v5409 = vadd.f32 0.0, %v5408
      %v5410 = vpop.f32.mrb[0].mxu0
      %5411 = vmatprep.mubr.bf16.mxu0 0
      %5412 = vmatmul.mubr.bf16.gmra.mrb[0].mxu0 %v2173
      %v5413 = vpop.f32.mrb[0].mxu0
      %v5414 = vadd.f32 0.0, %v5413
      %v5415 = vpop.f32.mrb[0].mxu0
      %v5416 = vpop.f32.mrb[0].mxu0
      %v5417 = vadd.f32 0.0, %v5416
      %v5418 = vpop.f32.mrb[0].mxu0
      %5419 = vmatprep.mubr.bf16.mxu0 0
      %5420 = vmatmul.mubr.bf16.gmra.mrb[0].mxu0 %v2174
      %v5421 = vpop.f32.mrb[0].mxu0
      %v5422 = vadd.f32 0.0, %v5421
      %v5423 = vpop.f32.mrb[0].mxu0
      %v5424 = vpop.f32.mrb[0].mxu0
      %v5425 = vadd.f32 0.0, %v5424
      %v5426 = vpop.f32.mrb[0].mxu0
      %5427 = vmatprep.mubr.bf16.mxu0 0
      %5428 = vmatmul.mubr.bf16.gmra.mrb[0].mxu0 %v2175
      %v5429 = vpop.f32.mrb[0].mxu0
      %v5430 = vadd.f32 0.0, %v5429
      %v5431 = vpop.f32.mrb[0].mxu0
      %v5432 = vpop.f32.mrb[0].mxu0
      %v5433 = vadd.f32 0.0, %v5432
      %v5434 = vpop.f32.mrb[0].mxu0
      %5435 = vmatprep.mubr.bf16.mxu0 0
      %5436 = vmatmul.mubr.bf16.gmra.mrb[0].mxu0 %v2176
      %v5437 = vpop.f32.mrb[0].mxu0
      %v5438 = vadd.f32 0.0, %v5437
      %v5439 = vpop.f32.mrb[0].mxu0
      %v5440 = vpop.f32.mrb[0].mxu0
      %v5441 = vadd.f32 0.0, %v5440
      %v5442 = vpop.f32.mrb[0].mxu0
      %5443 = vmatprep.mubr.bf16.mxu0 0
      %5444 = vmatmul.mubr.bf16.gmra.mrb[0].mxu0 %v2177
      %v5445 = vpop.f32.mrb[0].mxu0
      %v5446 = vadd.f32 0.0, %v5445
      %v5447 = vpop.f32.mrb[0].mxu0
      %v5448 = vpop.f32.mrb[0].mxu0
      %v5449 = vadd.f32 0.0, %v5448
      %v5450 = vpop.f32.mrb[0].mxu0
      %5451 = vmatprep.mubr.bf16.mxu0 0
      %5452 = vmatmul.mubr.bf16.gmra.mrb[0].mxu0 %v2178
      %v5453 = vpop.f32.mrb[0].mxu0
      %v5454 = vadd.f32 0.0, %v5453
      %v5455 = vpop.f32.mrb[0].mxu0
      %v5456 = vpop.f32.mrb[0].mxu0
      %v5457 = vadd.f32 0.0, %v5456
      %v5458 = vpop.f32.mrb[0].mxu0
      %5459 = vmatprep.mubr.bf16.mxu0 0
      %5460 = vmatmul.mubr.bf16.gmra.mrb[0].mxu0 %v5287
      %v5461 = vpop.f32.mrb[0].mxu0
      %v5462 = vadd.f32 0.0, %v5461
      %v5463 = vpop.f32.mrb[0].mxu0
      %v5464 = vpop.f32.mrb[0].mxu0
      %v5465 = vadd.f32 0.0, %v5464
      %v5466 = vpop.f32.mrb[0].mxu0
      %5467 = vmatprep.mubr.bf16.mxu0 0
      %5468 = vmatmul.mubr.bf16.gmra.mrb[0].mxu0 %v5288
      %v5469 = vpop.f32.mrb[0].mxu0
      %v5470 = vadd.f32 0.0, %v5469
      %v5471 = vpop.f32.mrb[0].mxu0
      %v5472 = vpop.f32.mrb[0].mxu0
      %v5473 = vadd.f32 0.0, %v5472
      %v5474 = vpop.f32.mrb[0].mxu0
      %5475 = vmatprep.mubr.bf16.mxu0 0
      %5476 = vmatmul.mubr.bf16.gmra.mrb[0].mxu0 %v5289
      %v5477 = vpop.f32.mrb[0].mxu0
      %v5478 = vadd.f32 0.0, %v5477
      %v5479 = vpop.f32.mrb[0].mxu0
      %v5480 = vpop.f32.mrb[0].mxu0
      %v5481 = vadd.f32 0.0, %v5480
      %v5482 = vpop.f32.mrb[0].mxu0
      %5483 = vmatprep.mubr.bf16.mxu0 0
      %5484 = vmatmul.mubr.bf16.gmra.mrb[0].mxu0 %v5290
      %v5485 = vpop.f32.mrb[0].mxu0
      %v5486 = vadd.f32 0.0, %v5485
      %v5487 = vpop.f32.mrb[0].mxu0
      %v5488 = vpop.f32.mrb[0].mxu0
      %v5489 = vadd.f32 0.0, %v5488
      %v5490 = vpop.f32.mrb[0].mxu0
      %5491 = vmatprep.mubr.bf16.mxu0 0
      %5492 = vmatmul.mubr.bf16.gmra.mrb[0].mxu0 %v5291
      %v5493 = vpop.f32.mrb[0].mxu0
      %v5494 = vadd.f32 0.0, %v5493
      %v5495 = vpop.f32.mrb[0].mxu0
      %v5496 = vpop.f32.mrb[0].mxu0
      %v5497 = vadd.f32 0.0, %v5496
      %v5498 = vpop.f32.mrb[0].mxu0
      %5499 = vmatprep.mubr.bf16.mxu0 0
      %5500 = vmatmul.mubr.bf16.gmra.mrb[0].mxu0 %v5292
      %v5501 = vpop.f32.mrb[0].mxu0
      %v5502 = vadd.f32 0.0, %v5501
      %v5503 = vpop.f32.mrb[0].mxu0
      %v5504 = vpop.f32.mrb[0].mxu0
      %v5505 = vadd.f32 0.0, %v5504
      %v5506 = vpop.f32.mrb[0].mxu0
      %5507 = vdwg.mxu0
      %v5508 = vld [vmem:[#allocation2] sm:$0xff]
      %v5509 = vld [vmem:[#allocation2 + $0x8] sm:$0xff]
      %v5510 = vld [vmem:[#allocation2 + $0x10] sm:$0xff]
      %v5511 = vld [vmem:[#allocation2 + $0x18] sm:$0xff]
      %v5512 = vld [vmem:[#allocation2 + $0x20] sm:$0xff]
      %v5513 = vld [vmem:[#allocation2 + $0x28] sm:$0xff]
      %v5514 = vld [vmem:[#allocation2 + $0x30] sm:$0xff]
      %v5515 = vld [vmem:[#allocation2 + $0x38] sm:$0xff]
      %v5516 = vld [vmem:[#allocation2 + $0x40] sm:$0xff]
      %v5517 = vld [vmem:[#allocation2 + $0x48] sm:$0xff]
      %v5518 = vld [vmem:[#allocation2 + $0x50] sm:$0xff]
      %v5519 = vld [vmem:[#allocation2 + $0x58] sm:$0xff]
      %v5520 = vld [vmem:[#allocation2 + $0x60] sm:$0xff]
      %v5521 = vld [vmem:[#allocation2 + $0x68] sm:$0xff]
      %v5522 = vld [vmem:[#allocation2 + $0x70] sm:$0xff]
      %v5523 = vld [vmem:[#allocation2 + $0x78] sm:$0xff]
      %v5524 = vld [vmem:[#allocation2 + $0x80] sm:$0xff]
      %v5525 = vld [vmem:[#allocation2 + $0x88] sm:$0xff]
      %v5526 = vld [vmem:[#allocation2 + $0x90] sm:$0xff]
      %v5527 = vld [vmem:[#allocation2 + $0x98] sm:$0xff]
      %v5528 = vld [vmem:[#allocation2 + $0xa0] sm:$0xff]
      %v5529 = vld [vmem:[#allocation2 + $0xa8] sm:$0xff]
      %v5530 = vld [vmem:[#allocation2 + $0xb0] sm:$0xff]
      %v5531 = vld [vmem:[#allocation2 + $0xb8] sm:$0xff]
      %v5532 = vld [vmem:[#allocation2 + $0xc0] sm:$0xff]
      %v5533 = vld [vmem:[#allocation2 + $0xc8] sm:$0xff]
      %v5534 = vld [vmem:[#allocation2 + $0xd0] sm:$0xff]
      %v5535 = vld [vmem:[#allocation2 + $0xd8] sm:$0xff]
      %v5536 = vld [vmem:[#allocation2 + $0xe0] sm:$0xff]
      %v5537 = vld [vmem:[#allocation2 + $0xe8] sm:$0xff]
      %v5538 = vld [vmem:[#allocation2 + $0xf0] sm:$0xff]
      %v5539 = vld [vmem:[#allocation2 + $0xf8] sm:$0xff]
      %v5540 = vadd.f32 %v5508, %v5382
      %v5541 = vadd.f32 %v5509, %v5385
      %v5542 = vadd.f32 %v5510, %v5390
      %v5543 = vadd.f32 %v5511, %v5393
      %v5544 = vadd.f32 %v5512, %v5398
      %v5545 = vadd.f32 %v5513, %v5401
      %v5546 = vadd.f32 %v5514, %v5406
      %v5547 = vadd.f32 %v5515, %v5409
      %v5548 = vadd.f32 %v5516, %v5414
      %v5549 = vadd.f32 %v5517, %v5417
      %v5550 = vadd.f32 %v5518, %v5422
      %v5551 = vadd.f32 %v5519, %v5425
      %v5552 = vadd.f32 %v5520, %v5430
      %v5553 = vadd.f32 %v5521, %v5433
      %v5554 = vadd.f32 %v5522, %v5438
      %v5555 = vadd.f32 %v5523, %v5441
      %v5556 = vadd.f32 %v5524, %v5446
      %v5557 = vadd.f32 %v5525, %v5449
      %v5558 = vadd.f32 %v5526, %v5454
      %v5559 = vadd.f32 %v5527, %v5457
      %v5560 = vadd.f32 %v5528, %v5462
      %v5561 = vadd.f32 %v5529, %v5465
      %v5562 = vadd.f32 %v5530, %v5470
      %v5563 = vadd.f32 %v5531, %v5473
      %v5564 = vadd.f32 %v5532, %v5478
      %v5565 = vadd.f32 %v5533, %v5481
      %v5566 = vadd.f32 %v5534, %v5486
      %v5567 = vadd.f32 %v5535, %v5489
      %v5568 = vadd.f32 %v5536, %v5494
      %v5569 = vadd.f32 %v5537, %v5497
      %v5570 = vadd.f32 %v5538, %v5502
      %v5571 = vadd.f32 %v5539, %v5505
      %5572 = vst [vmem:[#allocation2] sm:$0xff] %v5540
      %5573 = vst [vmem:[#allocation2 + $0x8] sm:$0xff] %v5541
      %5574 = vst [vmem:[#allocation2 + $0x10] sm:$0xff] %v5542
      %5575 = vst [vmem:[#allocation2 + $0x18] sm:$0xff] %v5543
      %5576 = vst [vmem:[#allocation2 + $0x20] sm:$0xff] %v5544
      %5577 = vst [vmem:[#allocation2 + $0x28] sm:$0xff] %v5545
      %5578 = vst [vmem:[#allocation2 + $0x30] sm:$0xff] %v5546
      %5579 = vst [vmem:[#allocation2 + $0x38] sm:$0xff] %v5547
      %5580 = vst [vmem:[#allocation2 + $0x40] sm:$0xff] %v5548
      %5581 = vst [vmem:[#allocation2 + $0x48] sm:$0xff] %v5549
      %5582 = vst [vmem:[#allocation2 + $0x50] sm:$0xff] %v5550
      %5583 = vst [vmem:[#allocation2 + $0x58] sm:$0xff] %v5551
      %5584 = vst [vmem:[#allocation2 + $0x60] sm:$0xff] %v5552
      %5585 = vst [vmem:[#allocation2 + $0x68] sm:$0xff] %v5553
      %5586 = vst [vmem:[#allocation2 + $0x70] sm:$0xff] %v5554
      %5587 = vst [vmem:[#allocation2 + $0x78] sm:$0xff] %v5555
      %5588 = vst [vmem:[#allocation2 + $0x80] sm:$0xff] %v5556
      %5589 = vst [vmem:[#allocation2 + $0x88] sm:$0xff] %v5557
      %5590 = vst [vmem:[#allocation2 + $0x90] sm:$0xff] %v5558
      %5591 = vst [vmem:[#allocation2 + $0x98] sm:$0xff] %v5559
      %5592 = vst [vmem:[#allocation2 + $0xa0] sm:$0xff] %v5560
      %5593 = vst [vmem:[#allocation2 + $0xa8] sm:$0xff] %v5561
      %5594 = vst [vmem:[#allocation2 + $0xb0] sm:$0xff] %v5562
      %5595 = vst [vmem:[#allocation2 + $0xb8] sm:$0xff] %v5563
      %5596 = vst [vmem:[#allocation2 + $0xc0] sm:$0xff] %v5564
      %5597 = vst [vmem:[#allocation2 + $0xc8] sm:$0xff] %v5565
      %5598 = vst [vmem:[#allocation2 + $0xd0] sm:$0xff] %v5566
      %5599 = vst [vmem:[#allocation2 + $0xd8] sm:$0xff] %v5567
      %5600 = vst [vmem:[#allocation2 + $0xe0] sm:$0xff] %v5568
      %5601 = vst [vmem:[#allocation2 + $0xe8] sm:$0xff] %v5569
      %5602 = vst [vmem:[#allocation2 + $0xf0] sm:$0xff] %v5570
      %5603 = vst [vmem:[#allocation2 + $0xf8] sm:$0xff] %v5571
      %v5604 = vcombine.high %v3818, %v3818
      %v5606 = vunpack.c.l.s4 1966171168
      %v5607 = vunpack.c.0.s8 %v5606
      %v5608 = vlaneseq
      %v5609 = vshrl.u32 %v5608, 7
      %v5610 = vsub.s32 %v5607, %v5609
      %v5611 = vrot.slane %v5604, %v5610
      %v5612 = vcombine.high %v3825, %v3825
      %v5613 = vcombine.high %v5611, %v5611
      %v5614 = vcombine.high %v3856, %v3856
      %v5616 = vunpack.c.l.s4 1966171168
      %v5617 = vunpack.c.0.s8 %v5616
      %v5618 = vlaneseq
      %v5619 = vshrl.u32 %v5618, 7
      %v5620 = vsub.s32 %v5617, %v5619
      %v5621 = vrot.slane %v5614, %v5620
      %v5622 = vcombine.high %v3863, %v3863
      %v5623 = vcombine.high %v5621, %v5621
      %v5624 = vcombine.high %v3894, %v3894
      %v5626 = vunpack.c.l.s4 1966171168
      %v5627 = vunpack.c.0.s8 %v5626
      %v5628 = vlaneseq
      %v5629 = vshrl.u32 %v5628, 7
      %v5630 = vsub.s32 %v5627, %v5629
      %v5631 = vrot.slane %v5624, %v5630
      %v5632 = vcombine.high %v3901, %v3901
      %v5633 = vcombine.high %v5631, %v5631
      %v5634 = vcombine.high %v3932, %v3932
      %v5636 = vunpack.c.l.s4 1966171168
      %v5637 = vunpack.c.0.s8 %v5636
      %v5638 = vlaneseq
      %v5639 = vshrl.u32 %v5638, 7
      %v5640 = vsub.s32 %v5637, %v5639
      %v5641 = vrot.slane %v5634, %v5640
      %v5642 = vcombine.high %v3939, %v3939
      %v5643 = vcombine.high %v5641, %v5641
      %v5644 = vcombine.high %v3970, %v3970
      %v5646 = vunpack.c.l.s4 1966171168
      %v5647 = vunpack.c.0.s8 %v5646
      %v5648 = vlaneseq
      %v5649 = vshrl.u32 %v5648, 7
      %v5650 = vsub.s32 %v5647, %v5649
      %v5651 = vrot.slane %v5644, %v5650
      %v5652 = vcombine.high %v3977, %v3977
      %v5653 = vcombine.high %v5651, %v5651
      %v5654 = vcombine.high %v4008, %v4008
      %v5656 = vunpack.c.l.s4 1966171168
      %v5657 = vunpack.c.0.s8 %v5656
      %v5658 = vlaneseq
      %v5659 = vshrl.u32 %v5658, 7
      %v5660 = vsub.s32 %v5657, %v5659
      %v5661 = vrot.slane %v5654, %v5660
      %v5662 = vcombine.high %v4015, %v4015
      %v5663 = vcombine.high %v5661, %v5661
      %s5664 = scalar_lea.vmem %s1, 576
      %v5665 = vld [vmem:[%s5664] sm:$0xf]
      %v5666 = vld [vmem:[%s5664 + $0x4] sm:$0xf]
      %v5667 = vld [vmem:[%s5664 + $0x8] sm:$0xf]
      %v5668 = vld [vmem:[%s5664 + $0xc] sm:$0xf]
      %v5669 = vld [vmem:[%s5664 + $0x10] sm:$0xf]
      %v5670 = vld [vmem:[%s5664 + $0x14] sm:$0xf]
      %v5671 = vld [vmem:[%s5664 + $0x18] sm:$0xf]
      %v5672 = vld [vmem:[%s5664 + $0x1c] sm:$0xf]
      %v5673 = vld [vmem:[%s5664 + $0x20] sm:$0xf]
      %v5674 = vld [vmem:[%s5664 + $0x24] sm:$0xf]
      %v5675 = vld [vmem:[%s5664 + $0x28] sm:$0xf]
      %v5676 = vld [vmem:[%s5664 + $0x2c] sm:$0xf]
      %v5677 = vld [vmem:[%s5664 + $0x30] sm:$0xf]
      %v5678 = vld [vmem:[%s5664 + $0x34] sm:$0xf]
      %v5679 = vld [vmem:[%s5664 + $0x38] sm:$0xf]
      %v5680 = vld [vmem:[%s5664 + $0x3c] sm:$0xf]
      %v5681 = vcombine.low %v3811, %v3825
      %v5682 = vcombine.low %v5611, %v5612
      %v5683 = vcombine.low %v5613, %v3849
      %v5685 = vunpack.c.l.s4 1966171168
      %v5686 = vunpack.c.0.s8 %v5685
      %v5687 = vlaneseq
      %v5688 = vshrl.u32 %v5687, 7
      %v5689 = vsub.s32 %v5686, %v5688
      %v5690 = vrot.slane %v5681, %v5689
      %v5692 = vunpack.c.l.s4 1966171168
      %v5693 = vunpack.c.0.s8 %v5692
      %v5694 = vlaneseq
      %v5695 = vshrl.u32 %v5694, 7
      %v5696 = vsub.s32 %v5693, %v5695
      %v5697 = vrot.slane %v5682, %v5696
      %v5699 = vunpack.c.l.s4 1966171168
      %v5700 = vunpack.c.0.s8 %v5699
      %v5701 = vlaneseq
      %v5702 = vshrl.u32 %v5701, 7
      %v5703 = vsub.s32 %v5700, %v5702
      %v5704 = vrot.slane %v5683, %v5703
      %v5705 = vcombine.low %v2824, %v5690
      %v5706 = vcombine.low %v5697, %v5704
      %v5708 = vunpack.c.l.s4 1966171168
      %v5709 = vunpack.c.0.s8 %v5708
      %v5710 = vlaneseq
      %v5711 = vshrl.u32 %v5710, 7
      %v5712 = vsub.s32 %v5709, %v5711
      %v5713 = vrot.slane %v5705, %v5712
      %v5715 = vunpack.c.l.s4 1966171168
      %v5716 = vunpack.c.0.s8 %v5715
      %v5717 = vlaneseq
      %v5718 = vshrl.u32 %v5717, 7
      %v5719 = vsub.s32 %v5716, %v5718
      %v5720 = vrot.slane %v5706, %v5719
      %v5721 = vcombine.low %v5713, %v5720
      %v5722 = vcombine.low %v3863, %v5621
      %v5723 = vcombine.low %v5622, %v5623
      %v5724 = vcombine.low %v3887, %v3901
      %v5725 = vcombine.low %v5631, %v5632
      %v5727 = vunpack.c.l.s4 1966171168
      %v5728 = vunpack.c.0.s8 %v5727
      %v5729 = vlaneseq
      %v5730 = vshrl.u32 %v5729, 7
      %v5731 = vsub.s32 %v5728, %v5730
      %v5732 = vrot.slane %v5722, %v5731
      %v5734 = vunpack.c.l.s4 1966171168
      %v5735 = vunpack.c.0.s8 %v5734
      %v5736 = vlaneseq
      %v5737 = vshrl.u32 %v5736, 7
      %v5738 = vsub.s32 %v5735, %v5737
      %v5739 = vrot.slane %v5723, %v5738
      %v5741 = vunpack.c.l.s4 1966171168
      %v5742 = vunpack.c.0.s8 %v5741
      %v5743 = vlaneseq
      %v5744 = vshrl.u32 %v5743, 7
      %v5745 = vsub.s32 %v5742, %v5744
      %v5746 = vrot.slane %v5724, %v5745
      %v5748 = vunpack.c.l.s4 1966171168
      %v5749 = vunpack.c.0.s8 %v5748
      %v5750 = vlaneseq
      %v5751 = vshrl.u32 %v5750, 7
      %v5752 = vsub.s32 %v5749, %v5751
      %v5753 = vrot.slane %v5725, %v5752
      %v5754 = vcombine.low %v5732, %v5739
      %v5755 = vcombine.low %v5746, %v5753
      %v5757 = vunpack.c.l.s4 1966171168
      %v5758 = vunpack.c.0.s8 %v5757
      %v5759 = vlaneseq
      %v5760 = vshrl.u32 %v5759, 7
      %v5761 = vsub.s32 %v5758, %v5760
      %v5762 = vrot.slane %v5754, %v5761
      %v5764 = vunpack.c.l.s4 1966171168
      %v5765 = vunpack.c.0.s8 %v5764
      %v5766 = vlaneseq
      %v5767 = vshrl.u32 %v5766, 7
      %v5768 = vsub.s32 %v5765, %v5767
      %v5769 = vrot.slane %v5755, %v5768
      %v5770 = vcombine.low %v5762, %v5769
      %v5771 = vcombine.low %v5633, %v3925
      %v5772 = vcombine.low %v3939, %v5641
      %v5773 = vcombine.low %v5642, %v5643
      %v5774 = vcombine.low %v3963, %v3977
      %v5776 = vunpack.c.l.s4 1966171168
      %v5777 = vunpack.c.0.s8 %v5776
      %v5778 = vlaneseq
      %v5779 = vshrl.u32 %v5778, 7
      %v5780 = vsub.s32 %v5777, %v5779
      %v5781 = vrot.slane %v5771, %v5780
      %v5783 = vunpack.c.l.s4 1966171168
      %v5784 = vunpack.c.0.s8 %v5783
      %v5785 = vlaneseq
      %v5786 = vshrl.u32 %v5785, 7
      %v5787 = vsub.s32 %v5784, %v5786
      %v5788 = vrot.slane %v5772, %v5787
      %v5790 = vunpack.c.l.s4 1966171168
      %v5791 = vunpack.c.0.s8 %v5790
      %v5792 = vlaneseq
      %v5793 = vshrl.u32 %v5792, 7
      %v5794 = vsub.s32 %v5791, %v5793
      %v5795 = vrot.slane %v5773, %v5794
      %v5797 = vunpack.c.l.s4 1966171168
      %v5798 = vunpack.c.0.s8 %v5797
      %v5799 = vlaneseq
      %v5800 = vshrl.u32 %v5799, 7
      %v5801 = vsub.s32 %v5798, %v5800
      %v5802 = vrot.slane %v5774, %v5801
      %v5803 = vcombine.low %v5781, %v5788
      %v5804 = vcombine.low %v5795, %v5802
      %v5806 = vunpack.c.l.s4 1966171168
      %v5807 = vunpack.c.0.s8 %v5806
      %v5808 = vlaneseq
      %v5809 = vshrl.u32 %v5808, 7
      %v5810 = vsub.s32 %v5807, %v5809
      %v5811 = vrot.slane %v5803, %v5810
      %v5813 = vunpack.c.l.s4 1966171168
      %v5814 = vunpack.c.0.s8 %v5813
      %v5815 = vlaneseq
      %v5816 = vshrl.u32 %v5815, 7
      %v5817 = vsub.s32 %v5814, %v5816
      %v5818 = vrot.slane %v5804, %v5817
      %v5819 = vcombine.low %v5811, %v5818
      %v5820 = vcombine.low %v5651, %v5652
      %v5821 = vcombine.low %v5653, %v4001
      %v5822 = vcombine.low %v4015, %v5661
      %v5823 = vcombine.low %v5662, %v5663
      %v5825 = vunpack.c.l.s4 1966171168
      %v5826 = vunpack.c.0.s8 %v5825
      %v5827 = vlaneseq
      %v5828 = vshrl.u32 %v5827, 7
      %v5829 = vsub.s32 %v5826, %v5828
      %v5830 = vrot.slane %v5820, %v5829
      %v5832 = vunpack.c.l.s4 1966171168
      %v5833 = vunpack.c.0.s8 %v5832
      %v5834 = vlaneseq
      %v5835 = vshrl.u32 %v5834, 7
      %v5836 = vsub.s32 %v5833, %v5835
      %v5837 = vrot.slane %v5821, %v5836
      %v5839 = vunpack.c.l.s4 1966171168
      %v5840 = vunpack.c.0.s8 %v5839
      %v5841 = vlaneseq
      %v5842 = vshrl.u32 %v5841, 7
      %v5843 = vsub.s32 %v5840, %v5842
      %v5844 = vrot.slane %v5822, %v5843
      %v5846 = vunpack.c.l.s4 1966171168
      %v5847 = vunpack.c.0.s8 %v5846
      %v5848 = vlaneseq
      %v5849 = vshrl.u32 %v5848, 7
      %v5850 = vsub.s32 %v5847, %v5849
      %v5851 = vrot.slane %v5823, %v5850
      %v5852 = vcombine.low %v5830, %v5837
      %v5853 = vcombine.low %v5844, %v5851
      %v5855 = vunpack.c.l.s4 1966171168
      %v5856 = vunpack.c.0.s8 %v5855
      %v5857 = vlaneseq
      %v5858 = vshrl.u32 %v5857, 7
      %v5859 = vsub.s32 %v5856, %v5858
      %v5860 = vrot.slane %v5852, %v5859
      %v5862 = vunpack.c.l.s4 1966171168
      %v5863 = vunpack.c.0.s8 %v5862
      %v5864 = vlaneseq
      %v5865 = vshrl.u32 %v5864, 7
      %v5866 = vsub.s32 %v5863, %v5865
      %v5867 = vrot.slane %v5853, %v5866
      %v5868 = vcombine.low %v5860, %v5867
      %v5889 = vunpack.c.l.b16 %v5665
      %v5890 = vunpack.c.l.b16 %v5666
      %v5891 = vunpack.c.l.b16 %v5667
      %v5892 = vunpack.c.l.b16 %v5668
      %v5893 = vunpack.c.l.b16 %v5669
      %v5894 = vunpack.c.l.b16 %v5670
      %v5895 = vunpack.c.l.b16 %v5671
      %v5896 = vunpack.c.l.b16 %v5672
      %v5897 = vunpack.c.l.b16 %v5673
      %v5898 = vunpack.c.l.b16 %v5674
      %v5899 = vunpack.c.l.b16 %v5675
      %v5900 = vunpack.c.l.b16 %v5676
      %v5901 = vunpack.c.l.b16 %v5677
      %v5902 = vunpack.c.l.b16 %v5678
      %v5903 = vunpack.c.l.b16 %v5679
      %v5904 = vunpack.c.l.b16 %v5680
      %v5905 = vpack.c.b16 %v5890, %v5889
      %v5906 = vpack.c.b16 %v5892, %v5891
      %v5907 = vpack.c.b16 %v5894, %v5893
      %v5908 = vpack.c.b16 %v5896, %v5895
      %v5909 = vpack.c.b16 %v5898, %v5897
      %v5910 = vpack.c.b16 %v5900, %v5899
      %v5911 = vpack.c.b16 %v5902, %v5901
      %v5912 = vpack.c.b16 %v5904, %v5903
      %5921 = vmatprep.subr.bf16.mxu0 0
      %5922 = vmatpush1.bf16.msra.mxu0 %v5905
      %5923 = vmatprep.subr.bf16.mxu0 0
      %5924 = vmatpush1.bf16.msra.mxu0 %v5906
      %5925 = vmatprep.subr.bf16.mxu0 0
      %5926 = vmatpush1.bf16.msra.mxu0 %v5907
      %5927 = vmatprep.subr.bf16.mxu0 0
      %5928 = vmatpush1.bf16.msra.mxu0 %v5908
      %5929 = vmatprep.subr.bf16.mxu0 0
      %5930 = vmatpush1.bf16.msra.mxu0 %v5909
      %5931 = vmatprep.subr.bf16.mxu0 0
      %5932 = vmatpush1.bf16.msra.mxu0 %v5910
      %5933 = vmatprep.subr.bf16.mxu0 0
      %5934 = vmatpush1.bf16.msra.mxu0 %v5911
      %5935 = vmatprep.subr.bf16.mxu0 0
      %5936 = vmatpush1.bf16.msra.mxu0 %v5912
      %5937 = vmatprep.subr.bf16.mxu0 0
      %5938 = vmatpush1.bf16.msra.mxu0 0
      %5939 = vmatprep.subr.bf16.mxu0 0
      %5940 = vmatpush1.bf16.msra.mxu0 0
      %5941 = vmatprep.subr.bf16.mxu0 0
      %5942 = vmatpush1.bf16.msra.mxu0 0
      %5943 = vmatprep.subr.bf16.mxu0 0
      %5944 = vmatpush1.bf16.msra.mxu0 0
      %5945 = vmatprep.subr.bf16.mxu0 0
      %5946 = vmatpush1.bf16.msra.mxu0 0
      %5947 = vmatprep.subr.bf16.mxu0 0
      %5948 = vmatpush1.bf16.msra.mxu0 0
      %5949 = vmatprep.subr.bf16.mxu0 0
      %5950 = vmatpush1.bf16.msra.mxu0 0
      %5951 = vmatprep.subr.bf16.mxu0 0
      %5952 = vmatpush1.bf16.msra.mxu0 0
      %5953 = vmatprep.mubr.bf16.mxu0 0
      %5954 = vmatmul.mubr.bf16.gmra.mrb[0].mxu0 %v2571
      %v5955 = vpop.f32.mrb[0].mxu0
      %v5956 = vadd.f32 0.0, %v5955
      %v5957 = vpop.f32.mrb[0].mxu0
      %v5958 = vpop.f32.mrb[0].mxu0
      %v5959 = vadd.f32 0.0, %v5958
      %v5960 = vpop.f32.mrb[0].mxu0
      %5961 = vmatprep.mubr.bf16.mxu0 0
      %5962 = vmatmul.mubr.bf16.gmra.mrb[0].mxu0 %v2620
      %v5963 = vpop.f32.mrb[0].mxu0
      %v5964 = vadd.f32 0.0, %v5963
      %v5965 = vpop.f32.mrb[0].mxu0
      %v5966 = vpop.f32.mrb[0].mxu0
      %v5967 = vadd.f32 0.0, %v5966
      %v5968 = vpop.f32.mrb[0].mxu0
      %5969 = vmatprep.mubr.bf16.mxu0 0
      %5970 = vmatmul.mubr.bf16.gmra.mrb[0].mxu0 %v2669
      %v5971 = vpop.f32.mrb[0].mxu0
      %v5972 = vadd.f32 0.0, %v5971
      %v5973 = vpop.f32.mrb[0].mxu0
      %v5974 = vpop.f32.mrb[0].mxu0
      %v5975 = vadd.f32 0.0, %v5974
      %v5976 = vpop.f32.mrb[0].mxu0
      %5977 = vmatprep.mubr.bf16.mxu0 0
      %5978 = vmatmul.mubr.bf16.gmra.mrb[0].mxu0 %v2718
      %v5979 = vpop.f32.mrb[0].mxu0
      %v5980 = vadd.f32 0.0, %v5979
      %v5981 = vpop.f32.mrb[0].mxu0
      %v5982 = vpop.f32.mrb[0].mxu0
      %v5983 = vadd.f32 0.0, %v5982
      %v5984 = vpop.f32.mrb[0].mxu0
      %5985 = vmatprep.mubr.bf16.mxu0 0
      %5986 = vmatmul.mubr.bf16.gmra.mrb[0].mxu0 %v2767
      %v5987 = vpop.f32.mrb[0].mxu0
      %v5988 = vadd.f32 0.0, %v5987
      %v5989 = vpop.f32.mrb[0].mxu0
      %v5990 = vpop.f32.mrb[0].mxu0
      %v5991 = vadd.f32 0.0, %v5990
      %v5992 = vpop.f32.mrb[0].mxu0
      %5993 = vmatprep.mubr.bf16.mxu0 0
      %5994 = vmatmul.mubr.bf16.gmra.mrb[0].mxu0 %v2816
      %v5995 = vpop.f32.mrb[0].mxu0
      %v5996 = vadd.f32 0.0, %v5995
      %v5997 = vpop.f32.mrb[0].mxu0
      %v5998 = vpop.f32.mrb[0].mxu0
      %v5999 = vadd.f32 0.0, %v5998
      %v6000 = vpop.f32.mrb[0].mxu0
      %6001 = vmatprep.mubr.bf16.mxu0 0
      %6002 = vmatmul.mubr.bf16.gmra.mrb[0].mxu0 %v5721
      %v6003 = vpop.f32.mrb[0].mxu0
      %v6004 = vadd.f32 0.0, %v6003
      %v6005 = vpop.f32.mrb[0].mxu0
      %v6006 = vpop.f32.mrb[0].mxu0
      %v6007 = vadd.f32 0.0, %v6006
      %v6008 = vpop.f32.mrb[0].mxu0
      %6009 = vmatprep.mubr.bf16.mxu0 0
      %6010 = vmatmul.mubr.bf16.gmra.mrb[0].mxu0 %v5770
      %v6011 = vpop.f32.mrb[0].mxu0
      %v6012 = vadd.f32 0.0, %v6011
      %v6013 = vpop.f32.mrb[0].mxu0
      %v6014 = vpop.f32.mrb[0].mxu0
      %v6015 = vadd.f32 0.0, %v6014
      %v6016 = vpop.f32.mrb[0].mxu0
      %6017 = vmatprep.mubr.bf16.mxu0 0
      %6018 = vmatmul.mubr.bf16.gmra.mrb[0].mxu0 %v5819
      %v6019 = vpop.f32.mrb[0].mxu0
      %v6020 = vadd.f32 0.0, %v6019
      %v6021 = vpop.f32.mrb[0].mxu0
      %v6022 = vpop.f32.mrb[0].mxu0
      %v6023 = vadd.f32 0.0, %v6022
      %v6024 = vpop.f32.mrb[0].mxu0
      %6025 = vmatprep.mubr.bf16.mxu0 0
      %6026 = vmatmul.mubr.bf16.gmra.mrb[0].mxu0 %v5868
      %v6027 = vpop.f32.mrb[0].mxu0
      %v6028 = vadd.f32 0.0, %v6027
      %v6029 = vpop.f32.mrb[0].mxu0
      %v6030 = vpop.f32.mrb[0].mxu0
      %v6031 = vadd.f32 0.0, %v6030
      %v6032 = vpop.f32.mrb[0].mxu0
      %6033 = vdwg.mxu0
      %v6034 = vld [vmem:[#allocation2] sm:$0xff]
      %v6035 = vld [vmem:[#allocation2 + $0x8] sm:$0x3]
      %v6036 = vld [vmem:[#allocation2 + $0x10] sm:$0xff]
      %v6037 = vld [vmem:[#allocation2 + $0x18] sm:$0x3]
      %v6038 = vld [vmem:[#allocation2 + $0x20] sm:$0xff]
      %v6039 = vld [vmem:[#allocation2 + $0x28] sm:$0x3]
      %v6040 = vld [vmem:[#allocation2 + $0x30] sm:$0xff]
      %v6041 = vld [vmem:[#allocation2 + $0x38] sm:$0x3]
      %v6042 = vld [vmem:[#allocation2 + $0x40] sm:$0xff]
      %v6043 = vld [vmem:[#allocation2 + $0x48] sm:$0x3]
      %v6044 = vld [vmem:[#allocation2 + $0x50] sm:$0xff]
      %v6045 = vld [vmem:[#allocation2 + $0x58] sm:$0x3]
      %v6046 = vld [vmem:[#allocation2 + $0x60] sm:$0xff]
      %v6047 = vld [vmem:[#allocation2 + $0x68] sm:$0x3]
      %v6048 = vld [vmem:[#allocation2 + $0x70] sm:$0xff]
      %v6049 = vld [vmem:[#allocation2 + $0x78] sm:$0x3]
      %v6050 = vld [vmem:[#allocation2 + $0x80] sm:$0xff]
      %v6051 = vld [vmem:[#allocation2 + $0x88] sm:$0x3]
      %v6052 = vld [vmem:[#allocation2 + $0x90] sm:$0xff]
      %v6053 = vld [vmem:[#allocation2 + $0x98] sm:$0x3]
      %v6054 = vld [vmem:[#allocation2 + $0xa0] sm:$0xff]
      %v6055 = vld [vmem:[#allocation2 + $0xa8] sm:$0x3]
      %v6056 = vld [vmem:[#allocation2 + $0xb0] sm:$0xff]
      %v6057 = vld [vmem:[#allocation2 + $0xb8] sm:$0x3]
      %v6058 = vld [vmem:[#allocation2 + $0xc0] sm:$0xff]
      %v6059 = vld [vmem:[#allocation2 + $0xc8] sm:$0x3]
      %v6060 = vld [vmem:[#allocation2 + $0xd0] sm:$0xff]
      %v6061 = vld [vmem:[#allocation2 + $0xd8] sm:$0x3]
      %v6062 = vld [vmem:[#allocation2 + $0xe0] sm:$0xff]
      %v6063 = vld [vmem:[#allocation2 + $0xe8] sm:$0x3]
      %v6064 = vld [vmem:[#allocation2 + $0xf0] sm:$0xff]
      %v6065 = vld [vmem:[#allocation2 + $0xf8] sm:$0x3]
      %v6086 = vcombine.high %v5956, %v5956
      %v6088 = vunpack.c.l.s4 1983009808
      %v6089 = vunpack.c.0.s8 %v6088
      %v6090 = vlaneseq
      %v6091 = vshrl.u32 %v6090, 7
      %v6092 = vsub.s32 %v6089, %v6091
      %v6093 = vrot.slane %v5956, %v6092
      %v6095 = vunpack.c.l.s4 1983009808
      %v6096 = vunpack.c.0.s8 %v6095
      %v6097 = vlaneseq
      %v6098 = vshrl.u32 %v6097, 7
      %v6099 = vsub.s32 %v6096, %v6098
      %v6100 = vrot.slane %v6086, %v6099
      %v6101 = vcombine.high %v6093, %v6093
      %v6102 = vcombine.high %v6100, %v6100
      %v6103 = vcombine.high %v5959, %v5959
      %v6105 = vunpack.c.l.s4 1983009808
      %v6106 = vunpack.c.0.s8 %v6105
      %v6107 = vlaneseq
      %v6108 = vshrl.u32 %v6107, 7
      %v6109 = vsub.s32 %v6106, %v6108
      %v6110 = vrot.slane %v5959, %v6109
      %v6112 = vunpack.c.l.s4 1983009808
      %v6113 = vunpack.c.0.s8 %v6112
      %v6114 = vlaneseq
      %v6115 = vshrl.u32 %v6114, 7
      %v6116 = vsub.s32 %v6113, %v6115
      %v6117 = vrot.slane %v6103, %v6116
      %v6118 = vcombine.high %v6110, %v6110
      %v6119 = vcombine.high %v6117, %v6117
      %v6120 = vcombine.high %v5964, %v5964
      %v6122 = vunpack.c.l.s4 1983009808
      %v6123 = vunpack.c.0.s8 %v6122
      %v6124 = vlaneseq
      %v6125 = vshrl.u32 %v6124, 7
      %v6126 = vsub.s32 %v6123, %v6125
      %v6127 = vrot.slane %v5964, %v6126
      %v6129 = vunpack.c.l.s4 1983009808
      %v6130 = vunpack.c.0.s8 %v6129
      %v6131 = vlaneseq
      %v6132 = vshrl.u32 %v6131, 7
      %v6133 = vsub.s32 %v6130, %v6132
      %v6134 = vrot.slane %v6120, %v6133
      %v6135 = vcombine.high %v6127, %v6127
      %v6136 = vcombine.high %v6134, %v6134
      %v6137 = vcombine.high %v5967, %v5967
      %v6139 = vunpack.c.l.s4 1983009808
      %v6140 = vunpack.c.0.s8 %v6139
      %v6141 = vlaneseq
      %v6142 = vshrl.u32 %v6141, 7
      %v6143 = vsub.s32 %v6140, %v6142
      %v6144 = vrot.slane %v5967, %v6143
      %v6146 = vunpack.c.l.s4 1983009808
      %v6147 = vunpack.c.0.s8 %v6146
      %v6148 = vlaneseq
      %v6149 = vshrl.u32 %v6148, 7
      %v6150 = vsub.s32 %v6147, %v6149
      %v6151 = vrot.slane %v6137, %v6150
      %v6152 = vcombine.high %v6144, %v6144
      %v6153 = vcombine.high %v6151, %v6151
      %v6154 = vcombine.high %v5972, %v5972
      %v6156 = vunpack.c.l.s4 1983009808
      %v6157 = vunpack.c.0.s8 %v6156
      %v6158 = vlaneseq
      %v6159 = vshrl.u32 %v6158, 7
      %v6160 = vsub.s32 %v6157, %v6159
      %v6161 = vrot.slane %v5972, %v6160
      %v6163 = vunpack.c.l.s4 1983009808
      %v6164 = vunpack.c.0.s8 %v6163
      %v6165 = vlaneseq
      %v6166 = vshrl.u32 %v6165, 7
      %v6167 = vsub.s32 %v6164, %v6166
      %v6168 = vrot.slane %v6154, %v6167
      %v6169 = vcombine.high %v6161, %v6161
      %v6170 = vcombine.high %v6168, %v6168
      %v6171 = vcombine.high %v5975, %v5975
      %v6173 = vunpack.c.l.s4 1983009808
      %v6174 = vunpack.c.0.s8 %v6173
      %v6175 = vlaneseq
      %v6176 = vshrl.u32 %v6175, 7
      %v6177 = vsub.s32 %v6174, %v6176
      %v6178 = vrot.slane %v5975, %v6177
      %v6180 = vunpack.c.l.s4 1983009808
      %v6181 = vunpack.c.0.s8 %v6180
      %v6182 = vlaneseq
      %v6183 = vshrl.u32 %v6182, 7
      %v6184 = vsub.s32 %v6181, %v6183
      %v6185 = vrot.slane %v6171, %v6184
      %v6186 = vcombine.high %v6178, %v6178
      %v6187 = vcombine.high %v6185, %v6185
      %v6188 = vcombine.high %v5980, %v5980
      %v6190 = vunpack.c.l.s4 1983009808
      %v6191 = vunpack.c.0.s8 %v6190
      %v6192 = vlaneseq
      %v6193 = vshrl.u32 %v6192, 7
      %v6194 = vsub.s32 %v6191, %v6193
      %v6195 = vrot.slane %v5980, %v6194
      %v6197 = vunpack.c.l.s4 1983009808
      %v6198 = vunpack.c.0.s8 %v6197
      %v6199 = vlaneseq
      %v6200 = vshrl.u32 %v6199, 7
      %v6201 = vsub.s32 %v6198, %v6200
      %v6202 = vrot.slane %v6188, %v6201
      %v6203 = vcombine.high %v6195, %v6195
      %v6204 = vcombine.high %v6202, %v6202
      %v6205 = vcombine.high %v5983, %v5983
      %v6207 = vunpack.c.l.s4 1983009808
      %v6208 = vunpack.c.0.s8 %v6207
      %v6209 = vlaneseq
      %v6210 = vshrl.u32 %v6209, 7
      %v6211 = vsub.s32 %v6208, %v6210
      %v6212 = vrot.slane %v5983, %v6211
      %v6214 = vunpack.c.l.s4 1983009808
      %v6215 = vunpack.c.0.s8 %v6214
      %v6216 = vlaneseq
      %v6217 = vshrl.u32 %v6216, 7
      %v6218 = vsub.s32 %v6215, %v6217
      %v6219 = vrot.slane %v6205, %v6218
      %v6220 = vcombine.high %v6212, %v6212
      %v6221 = vcombine.high %v6219, %v6219
      %v6222 = vcombine.high %v5988, %v5988
      %v6224 = vunpack.c.l.s4 1983009808
      %v6225 = vunpack.c.0.s8 %v6224
      %v6226 = vlaneseq
      %v6227 = vshrl.u32 %v6226, 7
      %v6228 = vsub.s32 %v6225, %v6227
      %v6229 = vrot.slane %v5988, %v6228
      %v6231 = vunpack.c.l.s4 1983009808
      %v6232 = vunpack.c.0.s8 %v6231
      %v6233 = vlaneseq
      %v6234 = vshrl.u32 %v6233, 7
      %v6235 = vsub.s32 %v6232, %v6234
      %v6236 = vrot.slane %v6222, %v6235
      %v6237 = vcombine.high %v6229, %v6229
      %v6238 = vcombine.high %v6236, %v6236
      %v6239 = vcombine.high %v5991, %v5991
      %v6241 = vunpack.c.l.s4 1983009808
      %v6242 = vunpack.c.0.s8 %v6241
      %v6243 = vlaneseq
      %v6244 = vshrl.u32 %v6243, 7
      %v6245 = vsub.s32 %v6242, %v6244
      %v6246 = vrot.slane %v5991, %v6245
      %v6248 = vunpack.c.l.s4 1983009808
      %v6249 = vunpack.c.0.s8 %v6248
      %v6250 = vlaneseq
      %v6251 = vshrl.u32 %v6250, 7
      %v6252 = vsub.s32 %v6249, %v6251
      %v6253 = vrot.slane %v6239, %v6252
      %v6254 = vcombine.high %v6246, %v6246
      %v6255 = vcombine.high %v6253, %v6253
      %v6256 = vcombine.high %v5996, %v5996
      %v6258 = vunpack.c.l.s4 1983009808
      %v6259 = vunpack.c.0.s8 %v6258
      %v6260 = vlaneseq
      %v6261 = vshrl.u32 %v6260, 7
      %v6262 = vsub.s32 %v6259, %v6261
      %v6263 = vrot.slane %v5996, %v6262
      %v6265 = vunpack.c.l.s4 1983009808
      %v6266 = vunpack.c.0.s8 %v6265
      %v6267 = vlaneseq
      %v6268 = vshrl.u32 %v6267, 7
      %v6269 = vsub.s32 %v6266, %v6268
      %v6270 = vrot.slane %v6256, %v6269
      %v6271 = vcombine.high %v6263, %v6263
      %v6272 = vcombine.high %v6270, %v6270
      %v6273 = vcombine.high %v5999, %v5999
      %v6275 = vunpack.c.l.s4 1983009808
      %v6276 = vunpack.c.0.s8 %v6275
      %v6277 = vlaneseq
      %v6278 = vshrl.u32 %v6277, 7
      %v6279 = vsub.s32 %v6276, %v6278
      %v6280 = vrot.slane %v5999, %v6279
      %v6282 = vunpack.c.l.s4 1983009808
      %v6283 = vunpack.c.0.s8 %v6282
      %v6284 = vlaneseq
      %v6285 = vshrl.u32 %v6284, 7
      %v6286 = vsub.s32 %v6283, %v6285
      %v6287 = vrot.slane %v6273, %v6286
      %v6288 = vcombine.high %v6280, %v6280
      %v6289 = vcombine.high %v6287, %v6287
      %v6290 = vcombine.high %v6004, %v6004
      %v6292 = vunpack.c.l.s4 1983009808
      %v6293 = vunpack.c.0.s8 %v6292
      %v6294 = vlaneseq
      %v6295 = vshrl.u32 %v6294, 7
      %v6296 = vsub.s32 %v6293, %v6295
      %v6297 = vrot.slane %v6004, %v6296
      %v6299 = vunpack.c.l.s4 1983009808
      %v6300 = vunpack.c.0.s8 %v6299
      %v6301 = vlaneseq
      %v6302 = vshrl.u32 %v6301, 7
      %v6303 = vsub.s32 %v6300, %v6302
      %v6304 = vrot.slane %v6290, %v6303
      %v6305 = vcombine.high %v6297, %v6297
      %v6306 = vcombine.high %v6304, %v6304
      %v6307 = vcombine.high %v6007, %v6007
      %v6309 = vunpack.c.l.s4 1983009808
      %v6310 = vunpack.c.0.s8 %v6309
      %v6311 = vlaneseq
      %v6312 = vshrl.u32 %v6311, 7
      %v6313 = vsub.s32 %v6310, %v6312
      %v6314 = vrot.slane %v6007, %v6313
      %v6316 = vunpack.c.l.s4 1983009808
      %v6317 = vunpack.c.0.s8 %v6316
      %v6318 = vlaneseq
      %v6319 = vshrl.u32 %v6318, 7
      %v6320 = vsub.s32 %v6317, %v6319
      %v6321 = vrot.slane %v6307, %v6320
      %v6322 = vcombine.high %v6314, %v6314
      %v6323 = vcombine.high %v6321, %v6321
      %v6324 = vcombine.high %v6012, %v6012
      %v6326 = vunpack.c.l.s4 1983009808
      %v6327 = vunpack.c.0.s8 %v6326
      %v6328 = vlaneseq
      %v6329 = vshrl.u32 %v6328, 7
      %v6330 = vsub.s32 %v6327, %v6329
      %v6331 = vrot.slane %v6012, %v6330
      %v6333 = vunpack.c.l.s4 1983009808
      %v6334 = vunpack.c.0.s8 %v6333
      %v6335 = vlaneseq
      %v6336 = vshrl.u32 %v6335, 7
      %v6337 = vsub.s32 %v6334, %v6336
      %v6338 = vrot.slane %v6324, %v6337
      %v6339 = vcombine.high %v6331, %v6331
      %v6340 = vcombine.high %v6338, %v6338
      %v6341 = vcombine.high %v6015, %v6015
      %v6343 = vunpack.c.l.s4 1983009808
      %v6344 = vunpack.c.0.s8 %v6343
      %v6345 = vlaneseq
      %v6346 = vshrl.u32 %v6345, 7
      %v6347 = vsub.s32 %v6344, %v6346
      %v6348 = vrot.slane %v6015, %v6347
      %v6350 = vunpack.c.l.s4 1983009808
      %v6351 = vunpack.c.0.s8 %v6350
      %v6352 = vlaneseq
      %v6353 = vshrl.u32 %v6352, 7
      %v6354 = vsub.s32 %v6351, %v6353
      %v6355 = vrot.slane %v6341, %v6354
      %v6356 = vcombine.high %v6348, %v6348
      %v6357 = vcombine.high %v6355, %v6355
      %v6358 = vcombine.high %v6020, %v6020
      %v6360 = vunpack.c.l.s4 1983009808
      %v6361 = vunpack.c.0.s8 %v6360
      %v6362 = vlaneseq
      %v6363 = vshrl.u32 %v6362, 7
      %v6364 = vsub.s32 %v6361, %v6363
      %v6365 = vrot.slane %v6020, %v6364
      %v6367 = vunpack.c.l.s4 1983009808
      %v6368 = vunpack.c.0.s8 %v6367
      %v6369 = vlaneseq
      %v6370 = vshrl.u32 %v6369, 7
      %v6371 = vsub.s32 %v6368, %v6370
      %v6372 = vrot.slane %v6358, %v6371
      %v6373 = vcombine.high %v6365, %v6365
      %v6374 = vcombine.high %v6372, %v6372
      %v6375 = vcombine.high %v6023, %v6023
      %v6377 = vunpack.c.l.s4 1983009808
      %v6378 = vunpack.c.0.s8 %v6377
      %v6379 = vlaneseq
      %v6380 = vshrl.u32 %v6379, 7
      %v6381 = vsub.s32 %v6378, %v6380
      %v6382 = vrot.slane %v6023, %v6381
      %v6384 = vunpack.c.l.s4 1983009808
      %v6385 = vunpack.c.0.s8 %v6384
      %v6386 = vlaneseq
      %v6387 = vshrl.u32 %v6386, 7
      %v6388 = vsub.s32 %v6385, %v6387
      %v6389 = vrot.slane %v6375, %v6388
      %v6390 = vcombine.high %v6382, %v6382
      %v6391 = vcombine.high %v6389, %v6389
      %v6392 = vcombine.high %v6028, %v6028
      %v6394 = vunpack.c.l.s4 1983009808
      %v6395 = vunpack.c.0.s8 %v6394
      %v6396 = vlaneseq
      %v6397 = vshrl.u32 %v6396, 7
      %v6398 = vsub.s32 %v6395, %v6397
      %v6399 = vrot.slane %v6028, %v6398
      %v6401 = vunpack.c.l.s4 1983009808
      %v6402 = vunpack.c.0.s8 %v6401
      %v6403 = vlaneseq
      %v6404 = vshrl.u32 %v6403, 7
      %v6405 = vsub.s32 %v6402, %v6404
      %v6406 = vrot.slane %v6392, %v6405
      %v6407 = vcombine.high %v6399, %v6399
      %v6408 = vcombine.high %v6406, %v6406
      %v6409 = vcombine.high %v6031, %v6031
      %v6411 = vunpack.c.l.s4 1983009808
      %v6412 = vunpack.c.0.s8 %v6411
      %v6413 = vlaneseq
      %v6414 = vshrl.u32 %v6413, 7
      %v6415 = vsub.s32 %v6412, %v6414
      %v6416 = vrot.slane %v6031, %v6415
      %v6418 = vunpack.c.l.s4 1983009808
      %v6419 = vunpack.c.0.s8 %v6418
      %v6420 = vlaneseq
      %v6421 = vshrl.u32 %v6420, 7
      %v6422 = vsub.s32 %v6419, %v6421
      %v6423 = vrot.slane %v6409, %v6422
      %v6424 = vcombine.high %v6416, %v6416
      %v6425 = vcombine.high %v6423, %v6423
      %v6426 = vcombine.low %v6093, %v6101
      %v6427 = vcombine.low %v6100, %v6102
      %v6429 = vunpack.c.l.s4 1983009808
      %v6430 = vunpack.c.0.s8 %v6429
      %v6431 = vlaneseq
      %v6432 = vshrl.u32 %v6431, 7
      %v6433 = vsub.s32 %v6430, %v6432
      %v6434 = vrot.slane %v6426, %v6433
      %v6436 = vunpack.c.l.s4 1983009808
      %v6437 = vunpack.c.0.s8 %v6436
      %v6438 = vlaneseq
      %v6439 = vshrl.u32 %v6438, 7
      %v6440 = vsub.s32 %v6437, %v6439
      %v6441 = vrot.slane %v6427, %v6440
      %v6442 = vcombine.low %v6434, %v6441
      %v6444 = vunpack.c.l.s4 1983009808
      %v6445 = vunpack.c.0.s8 %v6444
      %v6446 = vlaneseq
      %v6447 = vshrl.u32 %v6446, 7
      %v6448 = vsub.s32 %v6445, %v6447
      %v6449 = vrot.slane %v6110, %v6448
      %v6450 = vcombine.low %v6118, %v6117
      %v6451 = vcombine.low %v6119, %v6127
      %v6453 = vunpack.c.l.s4 1983009808
      %v6454 = vunpack.c.0.s8 %v6453
      %v6455 = vlaneseq
      %v6456 = vshrl.u32 %v6455, 7
      %v6457 = vsub.s32 %v6454, %v6456
      %v6458 = vrot.slane %v6450, %v6457
      %v6460 = vunpack.c.l.s4 1983009808
      %v6461 = vunpack.c.0.s8 %v6460
      %v6462 = vlaneseq
      %v6463 = vshrl.u32 %v6462, 7
      %v6464 = vsub.s32 %v6461, %v6463
      %v6465 = vrot.slane %v6451, %v6464
      %v6466 = vcombine.low %v6458, %v6465
      %v6468 = vunpack.c.l.s4 1983009808
      %v6469 = vunpack.c.0.s8 %v6468
      %v6470 = vlaneseq
      %v6471 = vshrl.u32 %v6470, 7
      %v6472 = vsub.s32 %v6469, %v6471
      %v6473 = vrot.slane %v6135, %v6472
      %v6474 = vcombine.low %v6134, %v6136
      %v6475 = vcombine.low %v6144, %v6152
      %v6477 = vunpack.c.l.s4 1983009808
      %v6478 = vunpack.c.0.s8 %v6477
      %v6479 = vlaneseq
      %v6480 = vshrl.u32 %v6479, 7
      %v6481 = vsub.s32 %v6478, %v6480
      %v6482 = vrot.slane %v6474, %v6481
      %v6484 = vunpack.c.l.s4 1983009808
      %v6485 = vunpack.c.0.s8 %v6484
      %v6486 = vlaneseq
      %v6487 = vshrl.u32 %v6486, 7
      %v6488 = vsub.s32 %v6485, %v6487
      %v6489 = vrot.slane %v6475, %v6488
      %v6490 = vcombine.low %v6482, %v6489
      %v6492 = vunpack.c.l.s4 1983009808
      %v6493 = vunpack.c.0.s8 %v6492
      %v6494 = vlaneseq
      %v6495 = vshrl.u32 %v6494, 7
      %v6496 = vsub.s32 %v6493, %v6495
      %v6497 = vrot.slane %v6151, %v6496
      %v6498 = vcombine.low %v6153, %v6161
      %v6499 = vcombine.low %v6169, %v6168
      %v6501 = vunpack.c.l.s4 1983009808
      %v6502 = vunpack.c.0.s8 %v6501
      %v6503 = vlaneseq
      %v6504 = vshrl.u32 %v6503, 7
      %v6505 = vsub.s32 %v6502, %v6504
      %v6506 = vrot.slane %v6498, %v6505
      %v6508 = vunpack.c.l.s4 1983009808
      %v6509 = vunpack.c.0.s8 %v6508
      %v6510 = vlaneseq
      %v6511 = vshrl.u32 %v6510, 7
      %v6512 = vsub.s32 %v6509, %v6511
      %v6513 = vrot.slane %v6499, %v6512
      %v6514 = vcombine.low %v6506, %v6513
      %v6516 = vunpack.c.l.s4 1983009808
      %v6517 = vunpack.c.0.s8 %v6516
      %v6518 = vlaneseq
      %v6519 = vshrl.u32 %v6518, 7
      %v6520 = vsub.s32 %v6517, %v6519
      %v6521 = vrot.slane %v6170, %v6520
      %v6522 = vcombine.low %v6178, %v6186
      %v6523 = vcombine.low %v6185, %v6187
      %v6525 = vunpack.c.l.s4 1983009808
      %v6526 = vunpack.c.0.s8 %v6525
      %v6527 = vlaneseq
      %v6528 = vshrl.u32 %v6527, 7
      %v6529 = vsub.s32 %v6526, %v6528
      %v6530 = vrot.slane %v6522, %v6529
      %v6532 = vunpack.c.l.s4 1983009808
      %v6533 = vunpack.c.0.s8 %v6532
      %v6534 = vlaneseq
      %v6535 = vshrl.u32 %v6534, 7
      %v6536 = vsub.s32 %v6533, %v6535
      %v6537 = vrot.slane %v6523, %v6536
      %v6538 = vcombine.low %v6530, %v6537
      %v6540 = vunpack.c.l.s4 1983009808
      %v6541 = vunpack.c.0.s8 %v6540
      %v6542 = vlaneseq
      %v6543 = vshrl.u32 %v6542, 7
      %v6544 = vsub.s32 %v6541, %v6543
      %v6545 = vrot.slane %v6195, %v6544
      %v6546 = vcombine.low %v6203, %v6202
      %v6547 = vcombine.low %v6204, %v6212
      %v6549 = vunpack.c.l.s4 1983009808
      %v6550 = vunpack.c.0.s8 %v6549
      %v6551 = vlaneseq
      %v6552 = vshrl.u32 %v6551, 7
      %v6553 = vsub.s32 %v6550, %v6552
      %v6554 = vrot.slane %v6546, %v6553
      %v6556 = vunpack.c.l.s4 1983009808
      %v6557 = vunpack.c.0.s8 %v6556
      %v6558 = vlaneseq
      %v6559 = vshrl.u32 %v6558, 7
      %v6560 = vsub.s32 %v6557, %v6559
      %v6561 = vrot.slane %v6547, %v6560
      %v6562 = vcombine.low %v6554, %v6561
      %v6564 = vunpack.c.l.s4 1983009808
      %v6565 = vunpack.c.0.s8 %v6564
      %v6566 = vlaneseq
      %v6567 = vshrl.u32 %v6566, 7
      %v6568 = vsub.s32 %v6565, %v6567
      %v6569 = vrot.slane %v6220, %v6568
      %v6570 = vcombine.low %v6219, %v6221
      %v6571 = vcombine.low %v6229, %v6237
      %v6573 = vunpack.c.l.s4 1983009808
      %v6574 = vunpack.c.0.s8 %v6573
      %v6575 = vlaneseq
      %v6576 = vshrl.u32 %v6575, 7
      %v6577 = vsub.s32 %v6574, %v6576
      %v6578 = vrot.slane %v6570, %v6577
      %v6580 = vunpack.c.l.s4 1983009808
      %v6581 = vunpack.c.0.s8 %v6580
      %v6582 = vlaneseq
      %v6583 = vshrl.u32 %v6582, 7
      %v6584 = vsub.s32 %v6581, %v6583
      %v6585 = vrot.slane %v6571, %v6584
      %v6586 = vcombine.low %v6578, %v6585
      %v6588 = vunpack.c.l.s4 1983009808
      %v6589 = vunpack.c.0.s8 %v6588
      %v6590 = vlaneseq
      %v6591 = vshrl.u32 %v6590, 7
      %v6592 = vsub.s32 %v6589, %v6591
      %v6593 = vrot.slane %v6236, %v6592
      %v6594 = vcombine.low %v6238, %v6246
      %v6595 = vcombine.low %v6254, %v6253
      %v6597 = vunpack.c.l.s4 1983009808
      %v6598 = vunpack.c.0.s8 %v6597
      %v6599 = vlaneseq
      %v6600 = vshrl.u32 %v6599, 7
      %v6601 = vsub.s32 %v6598, %v6600
      %v6602 = vrot.slane %v6594, %v6601
      %v6604 = vunpack.c.l.s4 1983009808
      %v6605 = vunpack.c.0.s8 %v6604
      %v6606 = vlaneseq
      %v6607 = vshrl.u32 %v6606, 7
      %v6608 = vsub.s32 %v6605, %v6607
      %v6609 = vrot.slane %v6595, %v6608
      %v6610 = vcombine.low %v6602, %v6609
      %v6612 = vunpack.c.l.s4 1983009808
      %v6613 = vunpack.c.0.s8 %v6612
      %v6614 = vlaneseq
      %v6615 = vshrl.u32 %v6614, 7
      %v6616 = vsub.s32 %v6613, %v6615
      %v6617 = vrot.slane %v6255, %v6616
      %v6618 = vcombine.low %v6263, %v6271
      %v6619 = vcombine.low %v6270, %v6272
      %v6621 = vunpack.c.l.s4 1983009808
      %v6622 = vunpack.c.0.s8 %v6621
      %v6623 = vlaneseq
      %v6624 = vshrl.u32 %v6623, 7
      %v6625 = vsub.s32 %v6622, %v6624
      %v6626 = vrot.slane %v6618, %v6625
      %v6628 = vunpack.c.l.s4 1983009808
      %v6629 = vunpack.c.0.s8 %v6628
      %v6630 = vlaneseq
      %v6631 = vshrl.u32 %v6630, 7
      %v6632 = vsub.s32 %v6629, %v6631
      %v6633 = vrot.slane %v6619, %v6632
      %v6634 = vcombine.low %v6626, %v6633
      %v6636 = vunpack.c.l.s4 1983009808
      %v6637 = vunpack.c.0.s8 %v6636
      %v6638 = vlaneseq
      %v6639 = vshrl.u32 %v6638, 7
      %v6640 = vsub.s32 %v6637, %v6639
      %v6641 = vrot.slane %v6280, %v6640
      %v6642 = vcombine.low %v6288, %v6287
      %v6643 = vcombine.low %v6289, %v6297
      %v6645 = vunpack.c.l.s4 1983009808
      %v6646 = vunpack.c.0.s8 %v6645
      %v6647 = vlaneseq
      %v6648 = vshrl.u32 %v6647, 7
      %v6649 = vsub.s32 %v6646, %v6648
      %v6650 = vrot.slane %v6642, %v6649
      %v6652 = vunpack.c.l.s4 1983009808
      %v6653 = vunpack.c.0.s8 %v6652
      %v6654 = vlaneseq
      %v6655 = vshrl.u32 %v6654, 7
      %v6656 = vsub.s32 %v6653, %v6655
      %v6657 = vrot.slane %v6643, %v6656
      %v6658 = vcombine.low %v6650, %v6657
      %v6660 = vunpack.c.l.s4 1983009808
      %v6661 = vunpack.c.0.s8 %v6660
      %v6662 = vlaneseq
      %v6663 = vshrl.u32 %v6662, 7
      %v6664 = vsub.s32 %v6661, %v6663
      %v6665 = vrot.slane %v6305, %v6664
      %v6666 = vcombine.low %v6304, %v6306
      %v6667 = vcombine.low %v6314, %v6322
      %v6669 = vunpack.c.l.s4 1983009808
      %v6670 = vunpack.c.0.s8 %v6669
      %v6671 = vlaneseq
      %v6672 = vshrl.u32 %v6671, 7
      %v6673 = vsub.s32 %v6670, %v6672
      %v6674 = vrot.slane %v6666, %v6673
      %v6676 = vunpack.c.l.s4 1983009808
      %v6677 = vunpack.c.0.s8 %v6676
      %v6678 = vlaneseq
      %v6679 = vshrl.u32 %v6678, 7
      %v6680 = vsub.s32 %v6677, %v6679
      %v6681 = vrot.slane %v6667, %v6680
      %v6682 = vcombine.low %v6674, %v6681
      %v6684 = vunpack.c.l.s4 1983009808
      %v6685 = vunpack.c.0.s8 %v6684
      %v6686 = vlaneseq
      %v6687 = vshrl.u32 %v6686, 7
      %v6688 = vsub.s32 %v6685, %v6687
      %v6689 = vrot.slane %v6321, %v6688
      %v6690 = vcombine.low %v6323, %v6331
      %v6691 = vcombine.low %v6339, %v6338
      %v6693 = vunpack.c.l.s4 1983009808
      %v6694 = vunpack.c.0.s8 %v6693
      %v6695 = vlaneseq
      %v6696 = vshrl.u32 %v6695, 7
      %v6697 = vsub.s32 %v6694, %v6696
      %v6698 = vrot.slane %v6690, %v6697
      %v6700 = vunpack.c.l.s4 1983009808
      %v6701 = vunpack.c.0.s8 %v6700
      %v6702 = vlaneseq
      %v6703 = vshrl.u32 %v6702, 7
      %v6704 = vsub.s32 %v6701, %v6703
      %v6705 = vrot.slane %v6691, %v6704
      %v6706 = vcombine.low %v6698, %v6705
      %v6708 = vunpack.c.l.s4 1983009808
      %v6709 = vunpack.c.0.s8 %v6708
      %v6710 = vlaneseq
      %v6711 = vshrl.u32 %v6710, 7
      %v6712 = vsub.s32 %v6709, %v6711
      %v6713 = vrot.slane %v6340, %v6712
      %v6714 = vcombine.low %v6348, %v6356
      %v6715 = vcombine.low %v6355, %v6357
      %v6717 = vunpack.c.l.s4 1983009808
      %v6718 = vunpack.c.0.s8 %v6717
      %v6719 = vlaneseq
      %v6720 = vshrl.u32 %v6719, 7
      %v6721 = vsub.s32 %v6718, %v6720
      %v6722 = vrot.slane %v6714, %v6721
      %v6724 = vunpack.c.l.s4 1983009808
      %v6725 = vunpack.c.0.s8 %v6724
      %v6726 = vlaneseq
      %v6727 = vshrl.u32 %v6726, 7
      %v6728 = vsub.s32 %v6725, %v6727
      %v6729 = vrot.slane %v6715, %v6728
      %v6730 = vcombine.low %v6722, %v6729
      %v6732 = vunpack.c.l.s4 1983009808
      %v6733 = vunpack.c.0.s8 %v6732
      %v6734 = vlaneseq
      %v6735 = vshrl.u32 %v6734, 7
      %v6736 = vsub.s32 %v6733, %v6735
      %v6737 = vrot.slane %v6365, %v6736
      %v6738 = vcombine.low %v6373, %v6372
      %v6739 = vcombine.low %v6374, %v6382
      %v6741 = vunpack.c.l.s4 1983009808
      %v6742 = vunpack.c.0.s8 %v6741
      %v6743 = vlaneseq
      %v6744 = vshrl.u32 %v6743, 7
      %v6745 = vsub.s32 %v6742, %v6744
      %v6746 = vrot.slane %v6738, %v6745
      %v6748 = vunpack.c.l.s4 1983009808
      %v6749 = vunpack.c.0.s8 %v6748
      %v6750 = vlaneseq
      %v6751 = vshrl.u32 %v6750, 7
      %v6752 = vsub.s32 %v6749, %v6751
      %v6753 = vrot.slane %v6739, %v6752
      %v6754 = vcombine.low %v6746, %v6753
      %v6756 = vunpack.c.l.s4 1983009808
      %v6757 = vunpack.c.0.s8 %v6756
      %v6758 = vlaneseq
      %v6759 = vshrl.u32 %v6758, 7
      %v6760 = vsub.s32 %v6757, %v6759
      %v6761 = vrot.slane %v6390, %v6760
      %v6762 = vcombine.low %v6389, %v6391
      %v6763 = vcombine.low %v6399, %v6407
      %v6765 = vunpack.c.l.s4 1983009808
      %v6766 = vunpack.c.0.s8 %v6765
      %v6767 = vlaneseq
      %v6768 = vshrl.u32 %v6767, 7
      %v6769 = vsub.s32 %v6766, %v6768
      %v6770 = vrot.slane %v6762, %v6769
      %v6772 = vunpack.c.l.s4 1983009808
      %v6773 = vunpack.c.0.s8 %v6772
      %v6774 = vlaneseq
      %v6775 = vshrl.u32 %v6774, 7
      %v6776 = vsub.s32 %v6773, %v6775
      %v6777 = vrot.slane %v6763, %v6776
      %v6778 = vcombine.low %v6770, %v6777
      %v6780 = vunpack.c.l.s4 1983009808
      %v6781 = vunpack.c.0.s8 %v6780
      %v6782 = vlaneseq
      %v6783 = vshrl.u32 %v6782, 7
      %v6784 = vsub.s32 %v6781, %v6783
      %v6785 = vrot.slane %v6406, %v6784
      %v6786 = vcombine.low %v6408, %v6416
      %v6787 = vcombine.low %v6424, %v6423
      %v6789 = vunpack.c.l.s4 1983009808
      %v6790 = vunpack.c.0.s8 %v6789
      %v6791 = vlaneseq
      %v6792 = vshrl.u32 %v6791, 7
      %v6793 = vsub.s32 %v6790, %v6792
      %v6794 = vrot.slane %v6786, %v6793
      %v6796 = vunpack.c.l.s4 1983009808
      %v6797 = vunpack.c.0.s8 %v6796
      %v6798 = vlaneseq
      %v6799 = vshrl.u32 %v6798, 7
      %v6800 = vsub.s32 %v6797, %v6799
      %v6801 = vrot.slane %v6787, %v6800
      %v6802 = vcombine.low %v6794, %v6801
      %v6804 = vunpack.c.l.s4 1983009808
      %v6805 = vunpack.c.0.s8 %v6804
      %v6806 = vlaneseq
      %v6807 = vshrl.u32 %v6806, 7
      %v6808 = vsub.s32 %v6805, %v6807
      %v6809 = vrot.slane %v6425, %v6808
      %v6842 = vadd.f32 %v6034, %v6442
      %v6843 = vadd.f32 %v6035, %v6449
      %v6844 = vadd.f32 %v6036, %v6466
      %v6845 = vadd.f32 %v6037, %v6473
      %v6846 = vadd.f32 %v6038, %v6490
      %v6847 = vadd.f32 %v6039, %v6497
      %v6848 = vadd.f32 %v6040, %v6514
      %v6849 = vadd.f32 %v6041, %v6521
      %v6850 = vadd.f32 %v6042, %v6538
      %v6851 = vadd.f32 %v6043, %v6545
      %v6852 = vadd.f32 %v6044, %v6562
      %v6853 = vadd.f32 %v6045, %v6569
      %v6854 = vadd.f32 %v6046, %v6586
      %v6855 = vadd.f32 %v6047, %v6593
      %v6856 = vadd.f32 %v6048, %v6610
      %v6857 = vadd.f32 %v6049, %v6617
      %v6858 = vadd.f32 %v6050, %v6634
      %v6859 = vadd.f32 %v6051, %v6641
      %v6860 = vadd.f32 %v6052, %v6658
      %v6861 = vadd.f32 %v6053, %v6665
      %v6862 = vadd.f32 %v6054, %v6682
      %v6863 = vadd.f32 %v6055, %v6689
      %v6864 = vadd.f32 %v6056, %v6706
      %v6865 = vadd.f32 %v6057, %v6713
      %v6866 = vadd.f32 %v6058, %v6730
      %v6867 = vadd.f32 %v6059, %v6737
      %v6868 = vadd.f32 %v6060, %v6754
      %v6869 = vadd.f32 %v6061, %v6761
      %v6870 = vadd.f32 %v6062, %v6778
      %v6871 = vadd.f32 %v6063, %v6785
      %v6872 = vadd.f32 %v6064, %v6802
      %v6873 = vadd.f32 %v6065, %v6809
      %6874 = vst [vmem:[#allocation2] sm:$0xff] %v6842
      %6875 = vst [vmem:[#allocation2 + $0x8] sm:$0x3] %v6843
      %6876 = vst [vmem:[#allocation2 + $0x10] sm:$0xff] %v6844
      %6877 = vst [vmem:[#allocation2 + $0x18] sm:$0x3] %v6845
      %6878 = vst [vmem:[#allocation2 + $0x20] sm:$0xff] %v6846
      %6879 = vst [vmem:[#allocation2 + $0x28] sm:$0x3] %v6847
      %6880 = vst [vmem:[#allocation2 + $0x30] sm:$0xff] %v6848
      %6881 = vst [vmem:[#allocation2 + $0x38] sm:$0x3] %v6849
      %6882 = vst [vmem:[#allocation2 + $0x40] sm:$0xff] %v6850
      %6883 = vst [vmem:[#allocation2 + $0x48] sm:$0x3] %v6851
      %6884 = vst [vmem:[#allocation2 + $0x50] sm:$0xff] %v6852
      %6885 = vst [vmem:[#allocation2 + $0x58] sm:$0x3] %v6853
      %6886 = vst [vmem:[#allocation2 + $0x60] sm:$0xff] %v6854
      %6887 = vst [vmem:[#allocation2 + $0x68] sm:$0x3] %v6855
      %6888 = vst [vmem:[#allocation2 + $0x70] sm:$0xff] %v6856
      %6889 = vst [vmem:[#allocation2 + $0x78] sm:$0x3] %v6857
      %6890 = vst [vmem:[#allocation2 + $0x80] sm:$0xff] %v6858
      %6891 = vst [vmem:[#allocation2 + $0x88] sm:$0x3] %v6859
      %6892 = vst [vmem:[#allocation2 + $0x90] sm:$0xff] %v6860
      %6893 = vst [vmem:[#allocation2 + $0x98] sm:$0x3] %v6861
      %6894 = vst [vmem:[#allocation2 + $0xa0] sm:$0xff] %v6862
      %6895 = vst [vmem:[#allocation2 + $0xa8] sm:$0x3] %v6863
      %6896 = vst [vmem:[#allocation2 + $0xb0] sm:$0xff] %v6864
      %6897 = vst [vmem:[#allocation2 + $0xb8] sm:$0x3] %v6865
      %6898 = vst [vmem:[#allocation2 + $0xc0] sm:$0xff] %v6866
      %6899 = vst [vmem:[#allocation2 + $0xc8] sm:$0x3] %v6867
      %6900 = vst [vmem:[#allocation2 + $0xd0] sm:$0xff] %v6868
      %6901 = vst [vmem:[#allocation2 + $0xd8] sm:$0x3] %v6869
      %6902 = vst [vmem:[#allocation2 + $0xe0] sm:$0xff] %v6870
      %6903 = vst [vmem:[#allocation2 + $0xe8] sm:$0x3] %v6871
      %6904 = vst [vmem:[#allocation2 + $0xf0] sm:$0xff] %v6872
      %6905 = vst [vmem:[#allocation2 + $0xf8] sm:$0x3] %v6873
      %v6907 = vunpack.c.l.s4 1983009808
      %v6908 = vunpack.c.0.s8 %v6907
      %v6909 = vlaneseq
      %v6910 = vshrl.u32 %v6909, 7
      %v6911 = vsub.s32 %v6908, %v6910
      %v6912 = vrot.slane %v220, %v6911
      %v6913 = vcombine.high %v6912, %v6912
      %v6915 = vunpack.c.l.s4 1983009808
      %v6916 = vunpack.c.0.s8 %v6915
      %v6917 = vlaneseq
      %v6918 = vshrl.u32 %v6917, 7
      %v6919 = vsub.s32 %v6916, %v6918
      %v6920 = vrot.slane %v222, %v6919
      %v6921 = vcombine.high %v6920, %v6920
      %v6923 = vunpack.c.l.s4 1983009808
      %v6924 = vunpack.c.0.s8 %v6923
      %v6925 = vlaneseq
      %v6926 = vshrl.u32 %v6925, 7
      %v6927 = vsub.s32 %v6924, %v6926
      %v6928 = vrot.slane %v224, %v6927
      %v6929 = vcombine.high %v6928, %v6928
      %v6931 = vunpack.c.l.s4 1983009808
      %v6932 = vunpack.c.0.s8 %v6931
      %v6933 = vlaneseq
      %v6934 = vshrl.u32 %v6933, 7
      %v6935 = vsub.s32 %v6932, %v6934
      %v6936 = vrot.slane %v226, %v6935
      %v6937 = vcombine.high %v6936, %v6936
      %v6939 = vunpack.c.l.s4 1983009808
      %v6940 = vunpack.c.0.s8 %v6939
      %v6941 = vlaneseq
      %v6942 = vshrl.u32 %v6941, 7
      %v6943 = vsub.s32 %v6940, %v6942
      %v6944 = vrot.slane %v228, %v6943
      %v6945 = vcombine.high %v6944, %v6944
      %v6947 = vunpack.c.l.s4 1983009808
      %v6948 = vunpack.c.0.s8 %v6947
      %v6949 = vlaneseq
      %v6950 = vshrl.u32 %v6949, 7
      %v6951 = vsub.s32 %v6948, %v6950
      %v6952 = vrot.slane %v230, %v6951
      %v6953 = vcombine.high %v6952, %v6952
      %v6955 = vunpack.c.l.s4 1983009808
      %v6956 = vunpack.c.0.s8 %v6955
      %v6957 = vlaneseq
      %v6958 = vshrl.u32 %v6957, 7
      %v6959 = vsub.s32 %v6956, %v6958
      %v6960 = vrot.slane %v232, %v6959
      %v6961 = vcombine.high %v6960, %v6960
      %v6963 = vunpack.c.l.s4 1983009808
      %v6964 = vunpack.c.0.s8 %v6963
      %v6965 = vlaneseq
      %v6966 = vshrl.u32 %v6965, 7
      %v6967 = vsub.s32 %v6964, %v6966
      %v6968 = vrot.slane %v234, %v6967
      %v6969 = vcombine.high %v6968, %v6968
      %v6971 = vunpack.c.l.s4 1983009808
      %v6972 = vunpack.c.0.s8 %v6971
      %v6973 = vlaneseq
      %v6974 = vshrl.u32 %v6973, 7
      %v6975 = vsub.s32 %v6972, %v6974
      %v6976 = vrot.slane %v236, %v6975
      %v6977 = vcombine.high %v6976, %v6976
      %v6979 = vunpack.c.l.s4 1983009808
      %v6980 = vunpack.c.0.s8 %v6979
      %v6981 = vlaneseq
      %v6982 = vshrl.u32 %v6981, 7
      %v6983 = vsub.s32 %v6980, %v6982
      %v6984 = vrot.slane %v238, %v6983
      %v6985 = vcombine.high %v6984, %v6984
      %v6987 = vunpack.c.l.s4 1983009808
      %v6988 = vunpack.c.0.s8 %v6987
      %v6989 = vlaneseq
      %v6990 = vshrl.u32 %v6989, 7
      %v6991 = vsub.s32 %v6988, %v6990
      %v6992 = vrot.slane %v240, %v6991
      %v6993 = vcombine.high %v6992, %v6992
      %v6995 = vunpack.c.l.s4 1983009808
      %v6996 = vunpack.c.0.s8 %v6995
      %v6997 = vlaneseq
      %v6998 = vshrl.u32 %v6997, 7
      %v6999 = vsub.s32 %v6996, %v6998
      %v7000 = vrot.slane %v242, %v6999
      %v7001 = vcombine.high %v7000, %v7000
      %s7002 = scalar_lea.vmem %s1, 640
      %v7003 = vld [vmem:[%s7002] sm:$0xf]
      %v7004 = vld [vmem:[%s7002 + $0x4] sm:$0xf]
      %v7005 = vld [vmem:[%s7002 + $0x8] sm:$0xf]
      %v7006 = vld [vmem:[%s7002 + $0xc] sm:$0xf]
      %v7007 = vld [vmem:[%s7002 + $0x10] sm:$0xf]
      %v7008 = vld [vmem:[%s7002 + $0x14] sm:$0xf]
      %v7009 = vld [vmem:[%s7002 + $0x18] sm:$0xf]
      %v7010 = vld [vmem:[%s7002 + $0x1c] sm:$0xf]
      %v7011 = vld [vmem:[%s7002 + $0x20] sm:$0xf]
      %v7012 = vld [vmem:[%s7002 + $0x24] sm:$0xf]
      %v7013 = vld [vmem:[%s7002 + $0x28] sm:$0xf]
      %v7014 = vld [vmem:[%s7002 + $0x2c] sm:$0xf]
      %v7015 = vld [vmem:[%s7002 + $0x30] sm:$0xf]
      %v7016 = vld [vmem:[%s7002 + $0x34] sm:$0xf]
      %v7017 = vld [vmem:[%s7002 + $0x38] sm:$0xf]
      %v7018 = vld [vmem:[%s7002 + $0x3c] sm:$0xf]
      %v7019 = vcombine.low %v6913, %v6921
      %v7020 = vcombine.low %v6929, %v6937
      %v7022 = vunpack.c.l.s4 1983009808
      %v7023 = vunpack.c.0.s8 %v7022
      %v7024 = vlaneseq
      %v7025 = vshrl.u32 %v7024, 7
      %v7026 = vsub.s32 %v7023, %v7025
      %v7027 = vrot.slane %v7019, %v7026
      %v7029 = vunpack.c.l.s4 1983009808
      %v7030 = vunpack.c.0.s8 %v7029
      %v7031 = vlaneseq
      %v7032 = vshrl.u32 %v7031, 7
      %v7033 = vsub.s32 %v7030, %v7032
      %v7034 = vrot.slane %v7020, %v7033
      %v7035 = vcombine.low %v7027, %v7034
      %v7036 = vcombine.low %v6945, %v6953
      %v7037 = vcombine.low %v6961, %v6969
      %v7039 = vunpack.c.l.s4 1983009808
      %v7040 = vunpack.c.0.s8 %v7039
      %v7041 = vlaneseq
      %v7042 = vshrl.u32 %v7041, 7
      %v7043 = vsub.s32 %v7040, %v7042
      %v7044 = vrot.slane %v7036, %v7043
      %v7046 = vunpack.c.l.s4 1983009808
      %v7047 = vunpack.c.0.s8 %v7046
      %v7048 = vlaneseq
      %v7049 = vshrl.u32 %v7048, 7
      %v7050 = vsub.s32 %v7047, %v7049
      %v7051 = vrot.slane %v7037, %v7050
      %v7052 = vcombine.low %v7044, %v7051
      %v7053 = vcombine.low %v6977, %v6985
      %v7054 = vcombine.low %v6993, %v7001
      %v7056 = vunpack.c.l.s4 1983009808
      %v7057 = vunpack.c.0.s8 %v7056
      %v7058 = vlaneseq
      %v7059 = vshrl.u32 %v7058, 7
      %v7060 = vsub.s32 %v7057, %v7059
      %v7061 = vrot.slane %v7053, %v7060
      %v7063 = vunpack.c.l.s4 1983009808
      %v7064 = vunpack.c.0.s8 %v7063
      %v7065 = vlaneseq
      %v7066 = vshrl.u32 %v7065, 7
      %v7067 = vsub.s32 %v7064, %v7066
      %v7068 = vrot.slane %v7054, %v7067
      %v7069 = vcombine.low %v7061, %v7068
      %v7089 = vunpack.c.l.b16 %v7003
      %v7090 = vunpack.c.l.b16 %v7004
      %v7091 = vunpack.c.l.b16 %v7005
      %v7092 = vunpack.c.l.b16 %v7006
      %v7093 = vunpack.c.l.b16 %v7007
      %v7094 = vunpack.c.l.b16 %v7008
      %v7095 = vunpack.c.l.b16 %v7009
      %v7096 = vunpack.c.l.b16 %v7010
      %v7097 = vunpack.c.l.b16 %v7011
      %v7098 = vunpack.c.l.b16 %v7012
      %v7099 = vunpack.c.l.b16 %v7013
      %v7100 = vunpack.c.l.b16 %v7014
      %v7101 = vunpack.c.l.b16 %v7015
      %v7102 = vunpack.c.l.b16 %v7016
      %v7103 = vunpack.c.l.b16 %v7017
      %v7104 = vunpack.c.l.b16 %v7018
      %v7105 = vpack.c.b16 %v7090, %v7089
      %v7106 = vpack.c.b16 %v7092, %v7091
      %v7107 = vpack.c.b16 %v7094, %v7093
      %v7108 = vpack.c.b16 %v7096, %v7095
      %v7109 = vpack.c.b16 %v7098, %v7097
      %v7110 = vpack.c.b16 %v7100, %v7099
      %v7111 = vpack.c.b16 %v7102, %v7101
      %v7112 = vpack.c.b16 %v7104, %v7103
      %7121 = vmatprep.subr.bf16.mxu0 0
      %7122 = vmatpush1.bf16.msra.mxu0 %v7105
      %7123 = vmatprep.subr.bf16.mxu0 0
      %7124 = vmatpush1.bf16.msra.mxu0 %v7106
      %7125 = vmatprep.subr.bf16.mxu0 0
      %7126 = vmatpush1.bf16.msra.mxu0 %v7107
      %7127 = vmatprep.subr.bf16.mxu0 0
      %7128 = vmatpush1.bf16.msra.mxu0 %v7108
      %7129 = vmatprep.subr.bf16.mxu0 0
      %7130 = vmatpush1.bf16.msra.mxu0 %v7109
      %7131 = vmatprep.subr.bf16.mxu0 0
      %7132 = vmatpush1.bf16.msra.mxu0 %v7110
      %7133 = vmatprep.subr.bf16.mxu0 0
      %7134 = vmatpush1.bf16.msra.mxu0 %v7111
      %7135 = vmatprep.subr.bf16.mxu0 0
      %7136 = vmatpush1.bf16.msra.mxu0 %v7112
      %7137 = vmatprep.subr.bf16.mxu0 0
      %7138 = vmatpush1.bf16.msra.mxu0 0
      %7139 = vmatprep.subr.bf16.mxu0 0
      %7140 = vmatpush1.bf16.msra.mxu0 0
      %7141 = vmatprep.subr.bf16.mxu0 0
      %7142 = vmatpush1.bf16.msra.mxu0 0
      %7143 = vmatprep.subr.bf16.mxu0 0
      %7144 = vmatpush1.bf16.msra.mxu0 0
      %7145 = vmatprep.subr.bf16.mxu0 0
      %7146 = vmatpush1.bf16.msra.mxu0 0
      %7147 = vmatprep.subr.bf16.mxu0 0
      %7148 = vmatpush1.bf16.msra.mxu0 0
      %7149 = vmatprep.subr.bf16.mxu0 0
      %7150 = vmatpush1.bf16.msra.mxu0 0
      %7151 = vmatprep.subr.bf16.mxu0 0
      %7152 = vmatpush1.bf16.msra.mxu0 0
      %7153 = vmatprep.mubr.bf16.mxu0 0
      %7154 = vmatmul.mubr.bf16.gmra.mrb[0].mxu0 %v628
      %v7155 = vpop.f32.mrb[0].mxu0
      %v7156 = vadd.f32 0.0, %v7155
      %v7157 = vpop.f32.mrb[0].mxu0
      %v7158 = vpop.f32.mrb[0].mxu0
      %v7159 = vadd.f32 0.0, %v7158
      %v7160 = vpop.f32.mrb[0].mxu0
      %7161 = vmatprep.mubr.bf16.mxu0 0
      %7162 = vmatmul.mubr.bf16.gmra.mrb[0].mxu0 %v7035
      %v7163 = vpop.f32.mrb[0].mxu0
      %v7164 = vadd.f32 0.0, %v7163
      %v7165 = vpop.f32.mrb[0].mxu0
      %v7166 = vpop.f32.mrb[0].mxu0
      %v7167 = vadd.f32 0.0, %v7166
      %v7168 = vpop.f32.mrb[0].mxu0
      %7169 = vmatprep.mubr.bf16.mxu0 0
      %7170 = vmatmul.mubr.bf16.gmra.mrb[0].mxu0 %v7052
      %v7171 = vpop.f32.mrb[0].mxu0
      %v7172 = vadd.f32 0.0, %v7171
      %v7173 = vpop.f32.mrb[0].mxu0
      %v7174 = vpop.f32.mrb[0].mxu0
      %v7175 = vadd.f32 0.0, %v7174
      %v7176 = vpop.f32.mrb[0].mxu0
      %7177 = vmatprep.mubr.bf16.mxu0 0
      %7178 = vmatmul.mubr.bf16.gmra.mrb[0].mxu0 %v7069
      %v7179 = vpop.f32.mrb[0].mxu0
      %v7180 = vadd.f32 0.0, %v7179
      %v7181 = vpop.f32.mrb[0].mxu0
      %v7182 = vpop.f32.mrb[0].mxu0
      %v7183 = vadd.f32 0.0, %v7182
      %v7184 = vpop.f32.mrb[0].mxu0
      %7185 = vdwg.mxu0
      %v7186 = vld [vmem:[#allocation2] sm:$0xf]
      %v7187 = vld [vmem:[#allocation2 + $0x10] sm:$0xf]
      %v7188 = vld [vmem:[#allocation2 + $0x20] sm:$0xf]
      %v7189 = vld [vmem:[#allocation2 + $0x30] sm:$0xf]
      %v7190 = vld [vmem:[#allocation2 + $0x40] sm:$0xf]
      %v7191 = vld [vmem:[#allocation2 + $0x50] sm:$0xf]
      %v7192 = vld [vmem:[#allocation2 + $0x60] sm:$0xf]
      %v7193 = vld [vmem:[#allocation2 + $0x70] sm:$0xf]
      %v7194 = vld [vmem:[#allocation2 + $0x80] sm:$0xf]
      %v7195 = vld [vmem:[#allocation2 + $0x90] sm:$0xf]
      %v7196 = vld [vmem:[#allocation2 + $0xa0] sm:$0xf]
      %v7197 = vld [vmem:[#allocation2 + $0xb0] sm:$0xf]
      %v7198 = vld [vmem:[#allocation2 + $0xc0] sm:$0xf]
      %v7199 = vld [vmem:[#allocation2 + $0xd0] sm:$0xf]
      %v7200 = vld [vmem:[#allocation2 + $0xe0] sm:$0xf]
      %v7201 = vld [vmem:[#allocation2 + $0xf0] sm:$0xf]
      %v7210 = vcombine.high %v7156, %v7156
      %v7211 = vcombine.high %v7159, %v7159
      %v7212 = vcombine.high %v7164, %v7164
      %v7213 = vcombine.high %v7167, %v7167
      %v7214 = vcombine.high %v7172, %v7172
      %v7215 = vcombine.high %v7175, %v7175
      %v7216 = vcombine.high %v7180, %v7180
      %v7217 = vcombine.high %v7183, %v7183
      %v7226 = vadd.f32 %v7186, %v7156
      %v7227 = vadd.f32 %v7187, %v7210
      %v7228 = vadd.f32 %v7188, %v7159
      %v7229 = vadd.f32 %v7189, %v7211
      %v7230 = vadd.f32 %v7190, %v7164
      %v7231 = vadd.f32 %v7191, %v7212
      %v7232 = vadd.f32 %v7192, %v7167
      %v7233 = vadd.f32 %v7193, %v7213
      %v7234 = vadd.f32 %v7194, %v7172
      %v7235 = vadd.f32 %v7195, %v7214
      %v7236 = vadd.f32 %v7196, %v7175
      %v7237 = vadd.f32 %v7197, %v7215
      %v7238 = vadd.f32 %v7198, %v7180
      %v7239 = vadd.f32 %v7199, %v7216
      %v7240 = vadd.f32 %v7200, %v7183
      %v7241 = vadd.f32 %v7201, %v7217
      %7242 = vst [vmem:[#allocation2] sm:$0xf] %v7226
      %7243 = vst [vmem:[#allocation2 + $0x10] sm:$0xf] %v7227
      %7244 = vst [vmem:[#allocation2 + $0x20] sm:$0xf] %v7228
      %7245 = vst [vmem:[#allocation2 + $0x30] sm:$0xf] %v7229
      %7246 = vst [vmem:[#allocation2 + $0x40] sm:$0xf] %v7230
      %7247 = vst [vmem:[#allocation2 + $0x50] sm:$0xf] %v7231
      %7248 = vst [vmem:[#allocation2 + $0x60] sm:$0xf] %v7232
      %7249 = vst [vmem:[#allocation2 + $0x70] sm:$0xf] %v7233
      %7250 = vst [vmem:[#allocation2 + $0x80] sm:$0xf] %v7234
      %7251 = vst [vmem:[#allocation2 + $0x90] sm:$0xf] %v7235
      %7252 = vst [vmem:[#allocation2 + $0xa0] sm:$0xf] %v7236
      %7253 = vst [vmem:[#allocation2 + $0xb0] sm:$0xf] %v7237
      %7254 = vst [vmem:[#allocation2 + $0xc0] sm:$0xf] %v7238
      %7255 = vst [vmem:[#allocation2 + $0xd0] sm:$0xf] %v7239
      %7256 = vst [vmem:[#allocation2 + $0xe0] sm:$0xf] %v7240
      %7257 = vst [vmem:[#allocation2 + $0xf0] sm:$0xf] %v7241
      %s7258 = scalar_lea.vmem %s1, 704
      %v7259 = vld [vmem:[%s7258] sm:$0xf]
      %v7260 = vld [vmem:[%s7258 + $0x4] sm:$0xf]
      %v7261 = vld [vmem:[%s7258 + $0x8] sm:$0xf]
      %v7262 = vld [vmem:[%s7258 + $0xc] sm:$0xf]
      %v7263 = vld [vmem:[%s7258 + $0x10] sm:$0xf]
      %v7264 = vld [vmem:[%s7258 + $0x14] sm:$0xf]
      %v7265 = vld [vmem:[%s7258 + $0x18] sm:$0xf]
      %v7266 = vld [vmem:[%s7258 + $0x1c] sm:$0xf]
      %v7267 = vld [vmem:[%s7258 + $0x20] sm:$0xf]
      %v7268 = vld [vmem:[%s7258 + $0x24] sm:$0xf]
      %v7269 = vld [vmem:[%s7258 + $0x28] sm:$0xf]
      %v7270 = vld [vmem:[%s7258 + $0x2c] sm:$0xf]
      %v7271 = vld [vmem:[%s7258 + $0x30] sm:$0xf]
      %v7272 = vld [vmem:[%s7258 + $0x34] sm:$0xf]
      %v7273 = vld [vmem:[%s7258 + $0x38] sm:$0xf]
      %v7274 = vld [vmem:[%s7258 + $0x3c] sm:$0xf]
      %v7275 = vcombine.low %v1324, %v1352
      %v7276 = vcombine.low %v1359, %v1366
      %v7278 = vunpack.c.l.s4 1966171168
      %v7279 = vunpack.c.0.s8 %v7278
      %v7280 = vlaneseq
      %v7281 = vshrl.u32 %v7280, 7
      %v7282 = vsub.s32 %v7279, %v7281
      %v7283 = vrot.slane %v7275, %v7282
      %v7285 = vunpack.c.l.s4 1966171168
      %v7286 = vunpack.c.0.s8 %v7285
      %v7287 = vlaneseq
      %v7288 = vshrl.u32 %v7287, 7
      %v7289 = vsub.s32 %v7286, %v7288
      %v7290 = vrot.slane %v7276, %v7289
      %v7291 = vcombine.low %v7283, %v7290
      %v7292 = vcombine.low %v1373, %v1401
      %v7293 = vcombine.low %v1408, %v1415
      %v7295 = vunpack.c.l.s4 1966171168
      %v7296 = vunpack.c.0.s8 %v7295
      %v7297 = vlaneseq
      %v7298 = vshrl.u32 %v7297, 7
      %v7299 = vsub.s32 %v7296, %v7298
      %v7300 = vrot.slane %v7292, %v7299
      %v7302 = vunpack.c.l.s4 1966171168
      %v7303 = vunpack.c.0.s8 %v7302
      %v7304 = vlaneseq
      %v7305 = vshrl.u32 %v7304, 7
      %v7306 = vsub.s32 %v7303, %v7305
      %v7307 = vrot.slane %v7293, %v7306
      %v7308 = vcombine.low %v7300, %v7307
      %v7309 = vcombine.low %v1422, %v1447
      %v7310 = vcombine.low %v4042, %v4049
      %v7312 = vunpack.c.l.s4 1966171168
      %v7313 = vunpack.c.0.s8 %v7312
      %v7314 = vlaneseq
      %v7315 = vshrl.u32 %v7314, 7
      %v7316 = vsub.s32 %v7313, %v7315
      %v7317 = vrot.slane %v7309, %v7316
      %v7319 = vunpack.c.l.s4 1966171168
      %v7320 = vunpack.c.0.s8 %v7319
      %v7321 = vlaneseq
      %v7322 = vshrl.u32 %v7321, 7
      %v7323 = vsub.s32 %v7320, %v7322
      %v7324 = vrot.slane %v7310, %v7323
      %v7325 = vcombine.low %v7317, %v7324
      %v7326 = vcombine.low %v4056, %v4084
      %v7327 = vcombine.low %v4091, %v4098
      %v7329 = vunpack.c.l.s4 1966171168
      %v7330 = vunpack.c.0.s8 %v7329
      %v7331 = vlaneseq
      %v7332 = vshrl.u32 %v7331, 7
      %v7333 = vsub.s32 %v7330, %v7332
      %v7334 = vrot.slane %v7326, %v7333
      %v7336 = vunpack.c.l.s4 1966171168
      %v7337 = vunpack.c.0.s8 %v7336
      %v7338 = vlaneseq
      %v7339 = vshrl.u32 %v7338, 7
      %v7340 = vsub.s32 %v7337, %v7339
      %v7341 = vrot.slane %v7327, %v7340
      %v7342 = vcombine.low %v7334, %v7341
      %v7343 = vcombine.low %v4105, %v4133
      %v7344 = vcombine.low %v4140, %v4147
      %v7346 = vunpack.c.l.s4 1966171168
      %v7347 = vunpack.c.0.s8 %v7346
      %v7348 = vlaneseq
      %v7349 = vshrl.u32 %v7348, 7
      %v7350 = vsub.s32 %v7347, %v7349
      %v7351 = vrot.slane %v7343, %v7350
      %v7353 = vunpack.c.l.s4 1966171168
      %v7354 = vunpack.c.0.s8 %v7353
      %v7355 = vlaneseq
      %v7356 = vshrl.u32 %v7355, 7
      %v7357 = vsub.s32 %v7354, %v7356
      %v7358 = vrot.slane %v7344, %v7357
      %v7359 = vcombine.low %v7351, %v7358
      %v7360 = vcombine.low %v4154, %v4182
      %v7361 = vcombine.low %v4189, %v4196
      %v7363 = vunpack.c.l.s4 1966171168
      %v7364 = vunpack.c.0.s8 %v7363
      %v7365 = vlaneseq
      %v7366 = vshrl.u32 %v7365, 7
      %v7367 = vsub.s32 %v7364, %v7366
      %v7368 = vrot.slane %v7360, %v7367
      %v7370 = vunpack.c.l.s4 1966171168
      %v7371 = vunpack.c.0.s8 %v7370
      %v7372 = vlaneseq
      %v7373 = vshrl.u32 %v7372, 7
      %v7374 = vsub.s32 %v7371, %v7373
      %v7375 = vrot.slane %v7361, %v7374
      %v7376 = vcombine.low %v7368, %v7375
      %v7378 = vunpack.c.l.s4 1966171168
      %v7379 = vunpack.c.0.s8 %v7378
      %v7380 = vlaneseq
      %v7381 = vshrl.u32 %v7380, 7
      %v7382 = vsub.s32 %v7379, %v7381
      %v7383 = vrot.slane %v4203, %v7382
      %v7407 = vunpack.c.l.b16 %v7259
      %v7408 = vunpack.c.l.b16 %v7260
      %v7409 = vunpack.c.l.b16 %v7261
      %v7410 = vunpack.c.l.b16 %v7262
      %v7411 = vunpack.c.l.b16 %v7263
      %v7412 = vunpack.c.l.b16 %v7264
      %v7413 = vunpack.c.l.b16 %v7265
      %v7414 = vunpack.c.l.b16 %v7266
      %v7415 = vunpack.c.l.b16 %v7267
      %v7416 = vunpack.c.l.b16 %v7268
      %v7417 = vunpack.c.l.b16 %v7269
      %v7418 = vunpack.c.l.b16 %v7270
      %v7419 = vunpack.c.l.b16 %v7271
      %v7420 = vunpack.c.l.b16 %v7272
      %v7421 = vunpack.c.l.b16 %v7273
      %v7422 = vunpack.c.l.b16 %v7274
      %v7423 = vpack.c.b16 %v7408, %v7407
      %v7424 = vpack.c.b16 %v7410, %v7409
      %v7425 = vpack.c.b16 %v7412, %v7411
      %v7426 = vpack.c.b16 %v7414, %v7413
      %v7427 = vpack.c.b16 %v7416, %v7415
      %v7428 = vpack.c.b16 %v7418, %v7417
      %v7429 = vpack.c.b16 %v7420, %v7419
      %v7430 = vpack.c.b16 %v7422, %v7421
      %7439 = vmatprep.subr.bf16.mxu0 0
      %7440 = vmatpush1.bf16.msra.mxu0 %v7423
      %7441 = vmatprep.subr.bf16.mxu0 0
      %7442 = vmatpush1.bf16.msra.mxu0 %v7424
      %7443 = vmatprep.subr.bf16.mxu0 0
      %7444 = vmatpush1.bf16.msra.mxu0 %v7425
      %7445 = vmatprep.subr.bf16.mxu0 0
      %7446 = vmatpush1.bf16.msra.mxu0 %v7426
      %7447 = vmatprep.subr.bf16.mxu0 0
      %7448 = vmatpush1.bf16.msra.mxu0 %v7427
      %7449 = vmatprep.subr.bf16.mxu0 0
      %7450 = vmatpush1.bf16.msra.mxu0 %v7428
      %7451 = vmatprep.subr.bf16.mxu0 0
      %7452 = vmatpush1.bf16.msra.mxu0 %v7429
      %7453 = vmatprep.subr.bf16.mxu0 0
      %7454 = vmatpush1.bf16.msra.mxu0 %v7430
      %7455 = vmatprep.subr.bf16.mxu0 0
      %7456 = vmatpush1.bf16.msra.mxu0 0
      %7457 = vmatprep.subr.bf16.mxu0 0
      %7458 = vmatpush1.bf16.msra.mxu0 0
      %7459 = vmatprep.subr.bf16.mxu0 0
      %7460 = vmatpush1.bf16.msra.mxu0 0
      %7461 = vmatprep.subr.bf16.mxu0 0
      %7462 = vmatpush1.bf16.msra.mxu0 0
      %7463 = vmatprep.subr.bf16.mxu0 0
      %7464 = vmatpush1.bf16.msra.mxu0 0
      %7465 = vmatprep.subr.bf16.mxu0 0
      %7466 = vmatpush1.bf16.msra.mxu0 0
      %7467 = vmatprep.subr.bf16.mxu0 0
      %7468 = vmatpush1.bf16.msra.mxu0 0
      %7469 = vmatprep.subr.bf16.mxu0 0
      %7470 = vmatpush1.bf16.msra.mxu0 0
      %7471 = vmatprep.mubr.bf16.mxu0 0
      %7472 = vmatmul.mubr.bf16.gmra.mrb[0].mxu0 %v7291
      %v7473 = vpop.f32.mrb[0].mxu0
      %v7474 = vadd.f32 0.0, %v7473
      %v7475 = vpop.f32.mrb[0].mxu0
      %v7476 = vpop.f32.mrb[0].mxu0
      %v7477 = vadd.f32 0.0, %v7476
      %v7478 = vpop.f32.mrb[0].mxu0
      %7479 = vmatprep.mubr.bf16.mxu0 0
      %7480 = vmatmul.mubr.bf16.gmra.mrb[0].mxu0 %v7308
      %v7481 = vpop.f32.mrb[0].mxu0
      %v7482 = vadd.f32 0.0, %v7481
      %v7483 = vpop.f32.mrb[0].mxu0
      %v7484 = vpop.f32.mrb[0].mxu0
      %v7485 = vadd.f32 0.0, %v7484
      %v7486 = vpop.f32.mrb[0].mxu0
      %7487 = vmatprep.mubr.bf16.mxu0 0
      %7488 = vmatmul.mubr.bf16.gmra.mrb[0].mxu0 %v7325
      %v7489 = vpop.f32.mrb[0].mxu0
      %v7490 = vadd.f32 0.0, %v7489
      %v7491 = vpop.f32.mrb[0].mxu0
      %v7492 = vpop.f32.mrb[0].mxu0
      %v7493 = vadd.f32 0.0, %v7492
      %v7494 = vpop.f32.mrb[0].mxu0
      %7495 = vmatprep.mubr.bf16.mxu0 0
      %7496 = vmatmul.mubr.bf16.gmra.mrb[0].mxu0 %v7342
      %v7497 = vpop.f32.mrb[0].mxu0
      %v7498 = vadd.f32 0.0, %v7497
      %v7499 = vpop.f32.mrb[0].mxu0
      %v7500 = vpop.f32.mrb[0].mxu0
      %v7501 = vadd.f32 0.0, %v7500
      %v7502 = vpop.f32.mrb[0].mxu0
      %7503 = vmatprep.mubr.bf16.mxu0 0
      %7504 = vmatmul.mubr.bf16.gmra.mrb[0].mxu0 %v7359
      %v7505 = vpop.f32.mrb[0].mxu0
      %v7506 = vadd.f32 0.0, %v7505
      %v7507 = vpop.f32.mrb[0].mxu0
      %v7508 = vpop.f32.mrb[0].mxu0
      %v7509 = vadd.f32 0.0, %v7508
      %v7510 = vpop.f32.mrb[0].mxu0
      %7511 = vmatprep.mubr.bf16.mxu0 0
      %7512 = vmatmul.mubr.bf16.gmra.mrb[0].mxu0 %v7376
      %v7513 = vpop.f32.mrb[0].mxu0
      %v7514 = vadd.f32 0.0, %v7513
      %v7515 = vpop.f32.mrb[0].mxu0
      %v7516 = vpop.f32.mrb[0].mxu0
      %v7517 = vadd.f32 0.0, %v7516
      %v7518 = vpop.f32.mrb[0].mxu0
      %7519 = vmatprep.mubr.bf16.mxu0 0
      %7520 = vmatmul.mubr.bf16.gmra.mrb[0].mxu0 %v7383
      %v7521 = vpop.f32.mrb[0].mxu0
      %v7522 = vadd.f32 0.0, %v7521
      %v7523 = vpop.f32.mrb[0].mxu0
      %v7524 = vpop.f32.mrb[0].mxu0
      %v7525 = vpop.f32.mrb[0].mxu0
      %7526 = vdwg.mxu0
      %v7527 = vld [vmem:[#allocation2 + $0x6] sm:$0xff]
      %v7528 = vld [vmem:[#allocation2 + $0xe] sm:$0x3]
      %v7529 = vld [vmem:[#allocation2 + $0x16] sm:$0xff]
      %v7530 = vld [vmem:[#allocation2 + $0x1e] sm:$0x3]
      %v7531 = vld [vmem:[#allocation2 + $0x26] sm:$0xff]
      %v7532 = vld [vmem:[#allocation2 + $0x2e] sm:$0x3]
      %v7533 = vld [vmem:[#allocation2 + $0x36] sm:$0xff]
      %v7534 = vld [vmem:[#allocation2 + $0x3e] sm:$0x3]
      %v7535 = vld [vmem:[#allocation2 + $0x46] sm:$0xff]
      %v7536 = vld [vmem:[#allocation2 + $0x4e] sm:$0x3]
      %v7537 = vld [vmem:[#allocation2 + $0x56] sm:$0xff]
      %v7538 = vld [vmem:[#allocation2 + $0x5e] sm:$0x3]
      %v7539 = vld [vmem:[#allocation2 + $0x66] sm:$0xff]
      %v7540 = vld [vmem:[#allocation2 + $0x6e] sm:$0x3]
      %v7541 = vld [vmem:[#allocation2 + $0x76] sm:$0xff]
      %v7542 = vld [vmem:[#allocation2 + $0x7e] sm:$0x3]
      %v7543 = vld [vmem:[#allocation2 + $0x86] sm:$0xff]
      %v7544 = vld [vmem:[#allocation2 + $0x8e] sm:$0x3]
      %v7545 = vld [vmem:[#allocation2 + $0x96] sm:$0xff]
      %v7546 = vld [vmem:[#allocation2 + $0x9e] sm:$0x3]
      %v7560 = vcombine.high %v7474, %v7474
      %v7562 = vunpack.c.l.s4 1983009808
      %v7563 = vunpack.c.0.s8 %v7562
      %v7564 = vlaneseq
      %v7565 = vshrl.u32 %v7564, 7
      %v7566 = vsub.s32 %v7563, %v7565
      %v7567 = vrot.slane %v7474, %v7566
      %v7569 = vunpack.c.l.s4 1983009808
      %v7570 = vunpack.c.0.s8 %v7569
      %v7571 = vlaneseq
      %v7572 = vshrl.u32 %v7571, 7
      %v7573 = vsub.s32 %v7570, %v7572
      %v7574 = vrot.slane %v7560, %v7573
      %v7575 = vcombine.high %v7567, %v7567
      %v7576 = vcombine.high %v7574, %v7574
      %v7577 = vcombine.high %v7477, %v7477
      %v7579 = vunpack.c.l.s4 1983009808
      %v7580 = vunpack.c.0.s8 %v7579
      %v7581 = vlaneseq
      %v7582 = vshrl.u32 %v7581, 7
      %v7583 = vsub.s32 %v7580, %v7582
      %v7584 = vrot.slane %v7477, %v7583
      %v7586 = vunpack.c.l.s4 1983009808
      %v7587 = vunpack.c.0.s8 %v7586
      %v7588 = vlaneseq
      %v7589 = vshrl.u32 %v7588, 7
      %v7590 = vsub.s32 %v7587, %v7589
      %v7591 = vrot.slane %v7577, %v7590
      %v7592 = vcombine.high %v7584, %v7584
      %v7593 = vcombine.high %v7591, %v7591
      %v7594 = vcombine.high %v7482, %v7482
      %v7596 = vunpack.c.l.s4 1983009808
      %v7597 = vunpack.c.0.s8 %v7596
      %v7598 = vlaneseq
      %v7599 = vshrl.u32 %v7598, 7
      %v7600 = vsub.s32 %v7597, %v7599
      %v7601 = vrot.slane %v7482, %v7600
      %v7603 = vunpack.c.l.s4 1983009808
      %v7604 = vunpack.c.0.s8 %v7603
      %v7605 = vlaneseq
      %v7606 = vshrl.u32 %v7605, 7
      %v7607 = vsub.s32 %v7604, %v7606
      %v7608 = vrot.slane %v7594, %v7607
      %v7609 = vcombine.high %v7601, %v7601
      %v7610 = vcombine.high %v7608, %v7608
      %v7611 = vcombine.high %v7485, %v7485
      %v7613 = vunpack.c.l.s4 1983009808
      %v7614 = vunpack.c.0.s8 %v7613
      %v7615 = vlaneseq
      %v7616 = vshrl.u32 %v7615, 7
      %v7617 = vsub.s32 %v7614, %v7616
      %v7618 = vrot.slane %v7485, %v7617
      %v7620 = vunpack.c.l.s4 1983009808
      %v7621 = vunpack.c.0.s8 %v7620
      %v7622 = vlaneseq
      %v7623 = vshrl.u32 %v7622, 7
      %v7624 = vsub.s32 %v7621, %v7623
      %v7625 = vrot.slane %v7611, %v7624
      %v7626 = vcombine.high %v7618, %v7618
      %v7627 = vcombine.high %v7625, %v7625
      %v7628 = vcombine.high %v7490, %v7490
      %v7630 = vunpack.c.l.s4 1983009808
      %v7631 = vunpack.c.0.s8 %v7630
      %v7632 = vlaneseq
      %v7633 = vshrl.u32 %v7632, 7
      %v7634 = vsub.s32 %v7631, %v7633
      %v7635 = vrot.slane %v7490, %v7634
      %v7637 = vunpack.c.l.s4 1983009808
      %v7638 = vunpack.c.0.s8 %v7637
      %v7639 = vlaneseq
      %v7640 = vshrl.u32 %v7639, 7
      %v7641 = vsub.s32 %v7638, %v7640
      %v7642 = vrot.slane %v7628, %v7641
      %v7643 = vcombine.high %v7635, %v7635
      %v7644 = vcombine.high %v7642, %v7642
      %v7645 = vcombine.high %v7493, %v7493
      %v7647 = vunpack.c.l.s4 1983009808
      %v7648 = vunpack.c.0.s8 %v7647
      %v7649 = vlaneseq
      %v7650 = vshrl.u32 %v7649, 7
      %v7651 = vsub.s32 %v7648, %v7650
      %v7652 = vrot.slane %v7493, %v7651
      %v7654 = vunpack.c.l.s4 1983009808
      %v7655 = vunpack.c.0.s8 %v7654
      %v7656 = vlaneseq
      %v7657 = vshrl.u32 %v7656, 7
      %v7658 = vsub.s32 %v7655, %v7657
      %v7659 = vrot.slane %v7645, %v7658
      %v7660 = vcombine.high %v7652, %v7652
      %v7661 = vcombine.high %v7659, %v7659
      %v7662 = vcombine.high %v7498, %v7498
      %v7664 = vunpack.c.l.s4 1983009808
      %v7665 = vunpack.c.0.s8 %v7664
      %v7666 = vlaneseq
      %v7667 = vshrl.u32 %v7666, 7
      %v7668 = vsub.s32 %v7665, %v7667
      %v7669 = vrot.slane %v7498, %v7668
      %v7671 = vunpack.c.l.s4 1983009808
      %v7672 = vunpack.c.0.s8 %v7671
      %v7673 = vlaneseq
      %v7674 = vshrl.u32 %v7673, 7
      %v7675 = vsub.s32 %v7672, %v7674
      %v7676 = vrot.slane %v7662, %v7675
      %v7677 = vcombine.high %v7669, %v7669
      %v7678 = vcombine.high %v7676, %v7676
      %v7679 = vcombine.high %v7501, %v7501
      %v7681 = vunpack.c.l.s4 1983009808
      %v7682 = vunpack.c.0.s8 %v7681
      %v7683 = vlaneseq
      %v7684 = vshrl.u32 %v7683, 7
      %v7685 = vsub.s32 %v7682, %v7684
      %v7686 = vrot.slane %v7501, %v7685
      %v7688 = vunpack.c.l.s4 1983009808
      %v7689 = vunpack.c.0.s8 %v7688
      %v7690 = vlaneseq
      %v7691 = vshrl.u32 %v7690, 7
      %v7692 = vsub.s32 %v7689, %v7691
      %v7693 = vrot.slane %v7679, %v7692
      %v7694 = vcombine.high %v7686, %v7686
      %v7695 = vcombine.high %v7693, %v7693
      %v7696 = vcombine.high %v7506, %v7506
      %v7698 = vunpack.c.l.s4 1983009808
      %v7699 = vunpack.c.0.s8 %v7698
      %v7700 = vlaneseq
      %v7701 = vshrl.u32 %v7700, 7
      %v7702 = vsub.s32 %v7699, %v7701
      %v7703 = vrot.slane %v7506, %v7702
      %v7705 = vunpack.c.l.s4 1983009808
      %v7706 = vunpack.c.0.s8 %v7705
      %v7707 = vlaneseq
      %v7708 = vshrl.u32 %v7707, 7
      %v7709 = vsub.s32 %v7706, %v7708
      %v7710 = vrot.slane %v7696, %v7709
      %v7711 = vcombine.high %v7703, %v7703
      %v7712 = vcombine.high %v7710, %v7710
      %v7713 = vcombine.high %v7509, %v7509
      %v7715 = vunpack.c.l.s4 1983009808
      %v7716 = vunpack.c.0.s8 %v7715
      %v7717 = vlaneseq
      %v7718 = vshrl.u32 %v7717, 7
      %v7719 = vsub.s32 %v7716, %v7718
      %v7720 = vrot.slane %v7509, %v7719
      %v7722 = vunpack.c.l.s4 1983009808
      %v7723 = vunpack.c.0.s8 %v7722
      %v7724 = vlaneseq
      %v7725 = vshrl.u32 %v7724, 7
      %v7726 = vsub.s32 %v7723, %v7725
      %v7727 = vrot.slane %v7713, %v7726
      %v7728 = vcombine.high %v7720, %v7720
      %v7729 = vcombine.high %v7727, %v7727
      %v7730 = vcombine.high %v7514, %v7514
      %v7732 = vunpack.c.l.s4 1983009808
      %v7733 = vunpack.c.0.s8 %v7732
      %v7734 = vlaneseq
      %v7735 = vshrl.u32 %v7734, 7
      %v7736 = vsub.s32 %v7733, %v7735
      %v7737 = vrot.slane %v7514, %v7736
      %v7739 = vunpack.c.l.s4 1983009808
      %v7740 = vunpack.c.0.s8 %v7739
      %v7741 = vlaneseq
      %v7742 = vshrl.u32 %v7741, 7
      %v7743 = vsub.s32 %v7740, %v7742
      %v7744 = vrot.slane %v7730, %v7743
      %v7745 = vcombine.high %v7737, %v7737
      %v7746 = vcombine.high %v7744, %v7744
      %v7747 = vcombine.high %v7517, %v7517
      %v7749 = vunpack.c.l.s4 1983009808
      %v7750 = vunpack.c.0.s8 %v7749
      %v7751 = vlaneseq
      %v7752 = vshrl.u32 %v7751, 7
      %v7753 = vsub.s32 %v7750, %v7752
      %v7754 = vrot.slane %v7517, %v7753
      %v7756 = vunpack.c.l.s4 1983009808
      %v7757 = vunpack.c.0.s8 %v7756
      %v7758 = vlaneseq
      %v7759 = vshrl.u32 %v7758, 7
      %v7760 = vsub.s32 %v7757, %v7759
      %v7761 = vrot.slane %v7747, %v7760
      %v7762 = vcombine.high %v7754, %v7754
      %v7763 = vcombine.high %v7761, %v7761
      %v7765 = vunpack.c.l.s4 1983009808
      %v7766 = vunpack.c.0.s8 %v7765
      %v7767 = vlaneseq
      %v7768 = vshrl.u32 %v7767, 7
      %v7769 = vsub.s32 %v7766, %v7768
      %v7770 = vrot.slane %v7522, %v7769
      %v7771 = vcombine.high %v7770, %v7770
      %v7772 = vcombine.low %v7567, %v7575
      %v7773 = vcombine.low %v7574, %v7576
      %v7775 = vunpack.c.l.s4 1983009808
      %v7776 = vunpack.c.0.s8 %v7775
      %v7777 = vlaneseq
      %v7778 = vshrl.u32 %v7777, 7
      %v7779 = vsub.s32 %v7776, %v7778
      %v7780 = vrot.slane %v7772, %v7779
      %v7782 = vunpack.c.l.s4 1983009808
      %v7783 = vunpack.c.0.s8 %v7782
      %v7784 = vlaneseq
      %v7785 = vshrl.u32 %v7784, 7
      %v7786 = vsub.s32 %v7783, %v7785
      %v7787 = vrot.slane %v7773, %v7786
      %v7788 = vcombine.low %v7780, %v7787
      %v7790 = vunpack.c.l.s4 1983009808
      %v7791 = vunpack.c.0.s8 %v7790
      %v7792 = vlaneseq
      %v7793 = vshrl.u32 %v7792, 7
      %v7794 = vsub.s32 %v7791, %v7793
      %v7795 = vrot.slane %v7584, %v7794
      %v7796 = vcombine.low %v7592, %v7591
      %v7797 = vcombine.low %v7593, %v7601
      %v7799 = vunpack.c.l.s4 1983009808
      %v7800 = vunpack.c.0.s8 %v7799
      %v7801 = vlaneseq
      %v7802 = vshrl.u32 %v7801, 7
      %v7803 = vsub.s32 %v7800, %v7802
      %v7804 = vrot.slane %v7796, %v7803
      %v7806 = vunpack.c.l.s4 1983009808
      %v7807 = vunpack.c.0.s8 %v7806
      %v7808 = vlaneseq
      %v7809 = vshrl.u32 %v7808, 7
      %v7810 = vsub.s32 %v7807, %v7809
      %v7811 = vrot.slane %v7797, %v7810
      %v7812 = vcombine.low %v7804, %v7811
      %v7814 = vunpack.c.l.s4 1983009808
      %v7815 = vunpack.c.0.s8 %v7814
      %v7816 = vlaneseq
      %v7817 = vshrl.u32 %v7816, 7
      %v7818 = vsub.s32 %v7815, %v7817
      %v7819 = vrot.slane %v7609, %v7818
      %v7820 = vcombine.low %v7608, %v7610
      %v7821 = vcombine.low %v7618, %v7626
      %v7823 = vunpack.c.l.s4 1983009808
      %v7824 = vunpack.c.0.s8 %v7823
      %v7825 = vlaneseq
      %v7826 = vshrl.u32 %v7825, 7
      %v7827 = vsub.s32 %v7824, %v7826
      %v7828 = vrot.slane %v7820, %v7827
      %v7830 = vunpack.c.l.s4 1983009808
      %v7831 = vunpack.c.0.s8 %v7830
      %v7832 = vlaneseq
      %v7833 = vshrl.u32 %v7832, 7
      %v7834 = vsub.s32 %v7831, %v7833
      %v7835 = vrot.slane %v7821, %v7834
      %v7836 = vcombine.low %v7828, %v7835
      %v7838 = vunpack.c.l.s4 1983009808
      %v7839 = vunpack.c.0.s8 %v7838
      %v7840 = vlaneseq
      %v7841 = vshrl.u32 %v7840, 7
      %v7842 = vsub.s32 %v7839, %v7841
      %v7843 = vrot.slane %v7625, %v7842
      %v7844 = vcombine.low %v7627, %v7635
      %v7845 = vcombine.low %v7643, %v7642
      %v7847 = vunpack.c.l.s4 1983009808
      %v7848 = vunpack.c.0.s8 %v7847
      %v7849 = vlaneseq
      %v7850 = vshrl.u32 %v7849, 7
      %v7851 = vsub.s32 %v7848, %v7850
      %v7852 = vrot.slane %v7844, %v7851
      %v7854 = vunpack.c.l.s4 1983009808
      %v7855 = vunpack.c.0.s8 %v7854
      %v7856 = vlaneseq
      %v7857 = vshrl.u32 %v7856, 7
      %v7858 = vsub.s32 %v7855, %v7857
      %v7859 = vrot.slane %v7845, %v7858
      %v7860 = vcombine.low %v7852, %v7859
      %v7862 = vunpack.c.l.s4 1983009808
      %v7863 = vunpack.c.0.s8 %v7862
      %v7864 = vlaneseq
      %v7865 = vshrl.u32 %v7864, 7
      %v7866 = vsub.s32 %v7863, %v7865
      %v7867 = vrot.slane %v7644, %v7866
      %v7868 = vcombine.low %v7652, %v7660
      %v7869 = vcombine.low %v7659, %v7661
      %v7871 = vunpack.c.l.s4 1983009808
      %v7872 = vunpack.c.0.s8 %v7871
      %v7873 = vlaneseq
      %v7874 = vshrl.u32 %v7873, 7
      %v7875 = vsub.s32 %v7872, %v7874
      %v7876 = vrot.slane %v7868, %v7875
      %v7878 = vunpack.c.l.s4 1983009808
      %v7879 = vunpack.c.0.s8 %v7878
      %v7880 = vlaneseq
      %v7881 = vshrl.u32 %v7880, 7
      %v7882 = vsub.s32 %v7879, %v7881
      %v7883 = vrot.slane %v7869, %v7882
      %v7884 = vcombine.low %v7876, %v7883
      %v7886 = vunpack.c.l.s4 1983009808
      %v7887 = vunpack.c.0.s8 %v7886
      %v7888 = vlaneseq
      %v7889 = vshrl.u32 %v7888, 7
      %v7890 = vsub.s32 %v7887, %v7889
      %v7891 = vrot.slane %v7669, %v7890
      %v7892 = vcombine.low %v7677, %v7676
      %v7893 = vcombine.low %v7678, %v7686
      %v7895 = vunpack.c.l.s4 1983009808
      %v7896 = vunpack.c.0.s8 %v7895
      %v7897 = vlaneseq
      %v7898 = vshrl.u32 %v7897, 7
      %v7899 = vsub.s32 %v7896, %v7898
      %v7900 = vrot.slane %v7892, %v7899
      %v7902 = vunpack.c.l.s4 1983009808
      %v7903 = vunpack.c.0.s8 %v7902
      %v7904 = vlaneseq
      %v7905 = vshrl.u32 %v7904, 7
      %v7906 = vsub.s32 %v7903, %v7905
      %v7907 = vrot.slane %v7893, %v7906
      %v7908 = vcombine.low %v7900, %v7907
      %v7910 = vunpack.c.l.s4 1983009808
      %v7911 = vunpack.c.0.s8 %v7910
      %v7912 = vlaneseq
      %v7913 = vshrl.u32 %v7912, 7
      %v7914 = vsub.s32 %v7911, %v7913
      %v7915 = vrot.slane %v7694, %v7914
      %v7916 = vcombine.low %v7693, %v7695
      %v7917 = vcombine.low %v7703, %v7711
      %v7919 = vunpack.c.l.s4 1983009808
      %v7920 = vunpack.c.0.s8 %v7919
      %v7921 = vlaneseq
      %v7922 = vshrl.u32 %v7921, 7
      %v7923 = vsub.s32 %v7920, %v7922
      %v7924 = vrot.slane %v7916, %v7923
      %v7926 = vunpack.c.l.s4 1983009808
      %v7927 = vunpack.c.0.s8 %v7926
      %v7928 = vlaneseq
      %v7929 = vshrl.u32 %v7928, 7
      %v7930 = vsub.s32 %v7927, %v7929
      %v7931 = vrot.slane %v7917, %v7930
      %v7932 = vcombine.low %v7924, %v7931
      %v7934 = vunpack.c.l.s4 1983009808
      %v7935 = vunpack.c.0.s8 %v7934
      %v7936 = vlaneseq
      %v7937 = vshrl.u32 %v7936, 7
      %v7938 = vsub.s32 %v7935, %v7937
      %v7939 = vrot.slane %v7710, %v7938
      %v7940 = vcombine.low %v7712, %v7720
      %v7941 = vcombine.low %v7728, %v7727
      %v7943 = vunpack.c.l.s4 1983009808
      %v7944 = vunpack.c.0.s8 %v7943
      %v7945 = vlaneseq
      %v7946 = vshrl.u32 %v7945, 7
      %v7947 = vsub.s32 %v7944, %v7946
      %v7948 = vrot.slane %v7940, %v7947
      %v7950 = vunpack.c.l.s4 1983009808
      %v7951 = vunpack.c.0.s8 %v7950
      %v7952 = vlaneseq
      %v7953 = vshrl.u32 %v7952, 7
      %v7954 = vsub.s32 %v7951, %v7953
      %v7955 = vrot.slane %v7941, %v7954
      %v7956 = vcombine.low %v7948, %v7955
      %v7958 = vunpack.c.l.s4 1983009808
      %v7959 = vunpack.c.0.s8 %v7958
      %v7960 = vlaneseq
      %v7961 = vshrl.u32 %v7960, 7
      %v7962 = vsub.s32 %v7959, %v7961
      %v7963 = vrot.slane %v7729, %v7962
      %v7964 = vcombine.low %v7737, %v7745
      %v7965 = vcombine.low %v7744, %v7746
      %v7967 = vunpack.c.l.s4 1983009808
      %v7968 = vunpack.c.0.s8 %v7967
      %v7969 = vlaneseq
      %v7970 = vshrl.u32 %v7969, 7
      %v7971 = vsub.s32 %v7968, %v7970
      %v7972 = vrot.slane %v7964, %v7971
      %v7974 = vunpack.c.l.s4 1983009808
      %v7975 = vunpack.c.0.s8 %v7974
      %v7976 = vlaneseq
      %v7977 = vshrl.u32 %v7976, 7
      %v7978 = vsub.s32 %v7975, %v7977
      %v7979 = vrot.slane %v7965, %v7978
      %v7980 = vcombine.low %v7972, %v7979
      %v7982 = vunpack.c.l.s4 1983009808
      %v7983 = vunpack.c.0.s8 %v7982
      %v7984 = vlaneseq
      %v7985 = vshrl.u32 %v7984, 7
      %v7986 = vsub.s32 %v7983, %v7985
      %v7987 = vrot.slane %v7754, %v7986
      %v7988 = vcombine.low %v7762, %v7761
      %v7989 = vcombine.low %v7763, %v7770
      %v7991 = vunpack.c.l.s4 1983009808
      %v7992 = vunpack.c.0.s8 %v7991
      %v7993 = vlaneseq
      %v7994 = vshrl.u32 %v7993, 7
      %v7995 = vsub.s32 %v7992, %v7994
      %v7996 = vrot.slane %v7988, %v7995
      %v7998 = vunpack.c.l.s4 1983009808
      %v7999 = vunpack.c.0.s8 %v7998
      %v8000 = vlaneseq
      %v8001 = vshrl.u32 %v8000, 7
      %v8002 = vsub.s32 %v7999, %v8001
      %v8003 = vrot.slane %v7989, %v8002
      %v8004 = vcombine.low %v7996, %v8003
      %v8006 = vunpack.c.l.s4 1983009808
      %v8007 = vunpack.c.0.s8 %v8006
      %v8008 = vlaneseq
      %v8009 = vshrl.u32 %v8008, 7
      %v8010 = vsub.s32 %v8007, %v8009
      %v8011 = vrot.slane %v7771, %v8010
      %v8032 = vadd.f32 %v7527, %v7788
      %v8033 = vadd.f32 %v7528, %v7795
      %v8034 = vadd.f32 %v7529, %v7812
      %v8035 = vadd.f32 %v7530, %v7819
      %v8036 = vadd.f32 %v7531, %v7836
      %v8037 = vadd.f32 %v7532, %v7843
      %v8038 = vadd.f32 %v7533, %v7860
      %v8039 = vadd.f32 %v7534, %v7867
      %v8040 = vadd.f32 %v7535, %v7884
      %v8041 = vadd.f32 %v7536, %v7891
      %v8042 = vadd.f32 %v7537, %v7908
      %v8043 = vadd.f32 %v7538, %v7915
      %v8044 = vadd.f32 %v7539, %v7932
      %v8045 = vadd.f32 %v7540, %v7939
      %v8046 = vadd.f32 %v7541, %v7956
      %v8047 = vadd.f32 %v7542, %v7963
      %v8048 = vadd.f32 %v7543, %v7980
      %v8049 = vadd.f32 %v7544, %v7987
      %v8050 = vadd.f32 %v7545, %v8004
      %v8051 = vadd.f32 %v7546, %v8011
      %8052 = vst [vmem:[#allocation2 + $0x6] sm:$0xff] %v8032
      %8053 = vst [vmem:[#allocation2 + $0xe] sm:$0x3] %v8033
      %8054 = vst [vmem:[#allocation2 + $0x16] sm:$0xff] %v8034
      %8055 = vst [vmem:[#allocation2 + $0x1e] sm:$0x3] %v8035
      %8056 = vst [vmem:[#allocation2 + $0x26] sm:$0xff] %v8036
      %8057 = vst [vmem:[#allocation2 + $0x2e] sm:$0x3] %v8037
      %8058 = vst [vmem:[#allocation2 + $0x36] sm:$0xff] %v8038
      %8059 = vst [vmem:[#allocation2 + $0x3e] sm:$0x3] %v8039
      %8060 = vst [vmem:[#allocation2 + $0x46] sm:$0xff] %v8040
      %8061 = vst [vmem:[#allocation2 + $0x4e] sm:$0x3] %v8041
      %8062 = vst [vmem:[#allocation2 + $0x56] sm:$0xff] %v8042
      %8063 = vst [vmem:[#allocation2 + $0x5e] sm:$0x3] %v8043
      %8064 = vst [vmem:[#allocation2 + $0x66] sm:$0xff] %v8044
      %8065 = vst [vmem:[#allocation2 + $0x6e] sm:$0x3] %v8045
      %8066 = vst [vmem:[#allocation2 + $0x76] sm:$0xff] %v8046
      %8067 = vst [vmem:[#allocation2 + $0x7e] sm:$0x3] %v8047
      %8068 = vst [vmem:[#allocation2 + $0x86] sm:$0xff] %v8048
      %8069 = vst [vmem:[#allocation2 + $0x8e] sm:$0x3] %v8049
      %8070 = vst [vmem:[#allocation2 + $0x96] sm:$0xff] %v8050
      %8071 = vst [vmem:[#allocation2 + $0x9e] sm:$0x3] %v8051
      %s8072 = scalar_lea.vmem %s1, 768
      %v8073 = vld [vmem:[%s8072] sm:$0xf]
      %v8074 = vld [vmem:[%s8072 + $0x4] sm:$0xf]
      %v8075 = vld [vmem:[%s8072 + $0x8] sm:$0xf]
      %v8076 = vld [vmem:[%s8072 + $0xc] sm:$0xf]
      %v8077 = vld [vmem:[%s8072 + $0x10] sm:$0xf]
      %v8078 = vld [vmem:[%s8072 + $0x14] sm:$0xf]
      %v8079 = vld [vmem:[%s8072 + $0x18] sm:$0xf]
      %v8080 = vld [vmem:[%s8072 + $0x1c] sm:$0xf]
      %v8081 = vld [vmem:[%s8072 + $0x20] sm:$0xf]
      %v8082 = vld [vmem:[%s8072 + $0x24] sm:$0xf]
      %v8083 = vld [vmem:[%s8072 + $0x28] sm:$0xf]
      %v8084 = vld [vmem:[%s8072 + $0x2c] sm:$0xf]
      %v8085 = vld [vmem:[%s8072 + $0x30] sm:$0xf]
      %v8086 = vld [vmem:[%s8072 + $0x34] sm:$0xf]
      %v8087 = vld [vmem:[%s8072 + $0x38] sm:$0xf]
      %v8088 = vld [vmem:[%s8072 + $0x3c] sm:$0xf]
      %v8105 = vunpack.c.l.b16 %v8073
      %v8106 = vunpack.c.l.b16 %v8074
      %v8107 = vunpack.c.l.b16 %v8075
      %v8108 = vunpack.c.l.b16 %v8076
      %v8109 = vunpack.c.l.b16 %v8077
      %v8110 = vunpack.c.l.b16 %v8078
      %v8111 = vunpack.c.l.b16 %v8079
      %v8112 = vunpack.c.l.b16 %v8080
      %v8113 = vunpack.c.l.b16 %v8081
      %v8114 = vunpack.c.l.b16 %v8082
      %v8115 = vunpack.c.l.b16 %v8083
      %v8116 = vunpack.c.l.b16 %v8084
      %v8117 = vunpack.c.l.b16 %v8085
      %v8118 = vunpack.c.l.b16 %v8086
      %v8119 = vunpack.c.l.b16 %v8087
      %v8120 = vunpack.c.l.b16 %v8088
      %v8121 = vpack.c.b16 %v8106, %v8105
      %v8122 = vpack.c.b16 %v8108, %v8107
      %v8123 = vpack.c.b16 %v8110, %v8109
      %v8124 = vpack.c.b16 %v8112, %v8111
      %v8125 = vpack.c.b16 %v8114, %v8113
      %v8126 = vpack.c.b16 %v8116, %v8115
      %v8127 = vpack.c.b16 %v8118, %v8117
      %v8128 = vpack.c.b16 %v8120, %v8119
      %8137 = vmatprep.subr.bf16.mxu0 0
      %8138 = vmatpush1.bf16.msra.mxu0 %v8121
      %8139 = vmatprep.subr.bf16.mxu0 0
      %8140 = vmatpush1.bf16.msra.mxu0 %v8122
      %8141 = vmatprep.subr.bf16.mxu0 0
      %8142 = vmatpush1.bf16.msra.mxu0 %v8123
      %8143 = vmatprep.subr.bf16.mxu0 0
      %8144 = vmatpush1.bf16.msra.mxu0 %v8124
      %8145 = vmatprep.subr.bf16.mxu0 0
      %8146 = vmatpush1.bf16.msra.mxu0 %v8125
      %8147 = vmatprep.subr.bf16.mxu0 0
      %8148 = vmatpush1.bf16.msra.mxu0 %v8126
      %8149 = vmatprep.subr.bf16.mxu0 0
      %8150 = vmatpush1.bf16.msra.mxu0 %v8127
      %8151 = vmatprep.subr.bf16.mxu0 0
      %8152 = vmatpush1.bf16.msra.mxu0 %v8128
      %8153 = vmatprep.subr.bf16.mxu0 0
      %8154 = vmatpush1.bf16.msra.mxu0 0
      %8155 = vmatprep.subr.bf16.mxu0 0
      %8156 = vmatpush1.bf16.msra.mxu0 0
      %8157 = vmatprep.subr.bf16.mxu0 0
      %8158 = vmatpush1.bf16.msra.mxu0 0
      %8159 = vmatprep.subr.bf16.mxu0 0
      %8160 = vmatpush1.bf16.msra.mxu0 0
      %8161 = vmatprep.subr.bf16.mxu0 0
      %8162 = vmatpush1.bf16.msra.mxu0 0
      %8163 = vmatprep.subr.bf16.mxu0 0
      %8164 = vmatpush1.bf16.msra.mxu0 0
      %8165 = vmatprep.subr.bf16.mxu0 0
      %8166 = vmatpush1.bf16.msra.mxu0 0
      %8167 = vmatprep.subr.bf16.mxu0 0
      %8168 = vmatpush1.bf16.msra.mxu0 0
      %8169 = vmatprep.mubr.bf16.mxu0 0
      %8170 = vmatmul.mubr.bf16.gmra.mrb[0].mxu0 %v2175
      %v8171 = vpop.f32.mrb[0].mxu0
      %v8172 = vadd.f32 0.0, %v8171
      %v8173 = vpop.f32.mrb[0].mxu0
      %v8174 = vpop.f32.mrb[0].mxu0
      %v8175 = vadd.f32 0.0, %v8174
      %v8176 = vpop.f32.mrb[0].mxu0
      %8177 = vmatprep.mubr.bf16.mxu0 0
      %8178 = vmatmul.mubr.bf16.gmra.mrb[0].mxu0 %v2176
      %v8179 = vpop.f32.mrb[0].mxu0
      %v8180 = vadd.f32 0.0, %v8179
      %v8181 = vpop.f32.mrb[0].mxu0
      %v8182 = vpop.f32.mrb[0].mxu0
      %v8183 = vadd.f32 0.0, %v8182
      %v8184 = vpop.f32.mrb[0].mxu0
      %8185 = vmatprep.mubr.bf16.mxu0 0
      %8186 = vmatmul.mubr.bf16.gmra.mrb[0].mxu0 %v2177
      %v8187 = vpop.f32.mrb[0].mxu0
      %v8188 = vadd.f32 0.0, %v8187
      %v8189 = vpop.f32.mrb[0].mxu0
      %v8190 = vpop.f32.mrb[0].mxu0
      %v8191 = vadd.f32 0.0, %v8190
      %v8192 = vpop.f32.mrb[0].mxu0
      %8193 = vmatprep.mubr.bf16.mxu0 0
      %8194 = vmatmul.mubr.bf16.gmra.mrb[0].mxu0 %v2178
      %v8195 = vpop.f32.mrb[0].mxu0
      %v8196 = vadd.f32 0.0, %v8195
      %v8197 = vpop.f32.mrb[0].mxu0
      %v8198 = vpop.f32.mrb[0].mxu0
      %v8199 = vadd.f32 0.0, %v8198
      %v8200 = vpop.f32.mrb[0].mxu0
      %8201 = vmatprep.mubr.bf16.mxu0 0
      %8202 = vmatmul.mubr.bf16.gmra.mrb[0].mxu0 %v5287
      %v8203 = vpop.f32.mrb[0].mxu0
      %v8204 = vadd.f32 0.0, %v8203
      %v8205 = vpop.f32.mrb[0].mxu0
      %v8206 = vpop.f32.mrb[0].mxu0
      %v8207 = vadd.f32 0.0, %v8206
      %v8208 = vpop.f32.mrb[0].mxu0
      %8209 = vmatprep.mubr.bf16.mxu0 0
      %8210 = vmatmul.mubr.bf16.gmra.mrb[0].mxu0 %v5288
      %v8211 = vpop.f32.mrb[0].mxu0
      %v8212 = vadd.f32 0.0, %v8211
      %v8213 = vpop.f32.mrb[0].mxu0
      %v8214 = vpop.f32.mrb[0].mxu0
      %v8215 = vadd.f32 0.0, %v8214
      %v8216 = vpop.f32.mrb[0].mxu0
      %8217 = vmatprep.mubr.bf16.mxu0 0
      %8218 = vmatmul.mubr.bf16.gmra.mrb[0].mxu0 %v5289
      %v8219 = vpop.f32.mrb[0].mxu0
      %v8220 = vadd.f32 0.0, %v8219
      %v8221 = vpop.f32.mrb[0].mxu0
      %v8222 = vpop.f32.mrb[0].mxu0
      %v8223 = vadd.f32 0.0, %v8222
      %v8224 = vpop.f32.mrb[0].mxu0
      %8225 = vmatprep.mubr.bf16.mxu0 0
      %8226 = vmatmul.mubr.bf16.gmra.mrb[0].mxu0 %v5290
      %v8227 = vpop.f32.mrb[0].mxu0
      %v8228 = vadd.f32 0.0, %v8227
      %v8229 = vpop.f32.mrb[0].mxu0
      %v8230 = vpop.f32.mrb[0].mxu0
      %v8231 = vadd.f32 0.0, %v8230
      %v8232 = vpop.f32.mrb[0].mxu0
      %8233 = vmatprep.mubr.bf16.mxu0 0
      %8234 = vmatmul.mubr.bf16.gmra.mrb[0].mxu0 %v5291
      %v8235 = vpop.f32.mrb[0].mxu0
      %v8236 = vadd.f32 0.0, %v8235
      %v8237 = vpop.f32.mrb[0].mxu0
      %v8238 = vpop.f32.mrb[0].mxu0
      %v8239 = vadd.f32 0.0, %v8238
      %v8240 = vpop.f32.mrb[0].mxu0
      %8241 = vmatprep.mubr.bf16.mxu0 0
      %8242 = vmatmul.mubr.bf16.gmra.mrb[0].mxu0 %v5292
      %v8243 = vpop.f32.mrb[0].mxu0
      %v8244 = vadd.f32 0.0, %v8243
      %v8245 = vpop.f32.mrb[0].mxu0
      %v8246 = vpop.f32.mrb[0].mxu0
      %v8247 = vadd.f32 0.0, %v8246
      %v8248 = vpop.f32.mrb[0].mxu0
      %8249 = vdwg.mxu0
      %v8250 = vld [vmem:[#allocation2] sm:$0xff]
      %v8251 = vld [vmem:[#allocation2 + $0x8] sm:$0xff]
      %v8252 = vld [vmem:[#allocation2 + $0x10] sm:$0xff]
      %v8253 = vld [vmem:[#allocation2 + $0x18] sm:$0xff]
      %v8254 = vld [vmem:[#allocation2 + $0x20] sm:$0xff]
      %v8255 = vld [vmem:[#allocation2 + $0x28] sm:$0xff]
      %v8256 = vld [vmem:[#allocation2 + $0x30] sm:$0xff]
      %v8257 = vld [vmem:[#allocation2 + $0x38] sm:$0xff]
      %v8258 = vld [vmem:[#allocation2 + $0x40] sm:$0xff]
      %v8259 = vld [vmem:[#allocation2 + $0x48] sm:$0xff]
      %v8260 = vld [vmem:[#allocation2 + $0x50] sm:$0xff]
      %v8261 = vld [vmem:[#allocation2 + $0x58] sm:$0xff]
      %v8262 = vld [vmem:[#allocation2 + $0x60] sm:$0xff]
      %v8263 = vld [vmem:[#allocation2 + $0x68] sm:$0xff]
      %v8264 = vld [vmem:[#allocation2 + $0x70] sm:$0xff]
      %v8265 = vld [vmem:[#allocation2 + $0x78] sm:$0xff]
      %v8266 = vld [vmem:[#allocation2 + $0x80] sm:$0xff]
      %v8267 = vld [vmem:[#allocation2 + $0x88] sm:$0xff]
      %v8268 = vld [vmem:[#allocation2 + $0x90] sm:$0xff]
      %v8269 = vld [vmem:[#allocation2 + $0x98] sm:$0xff]
      %v8270 = vadd.f32 %v8250, %v8172
      %v8271 = vadd.f32 %v8251, %v8175
      %v8272 = vadd.f32 %v8252, %v8180
      %v8273 = vadd.f32 %v8253, %v8183
      %v8274 = vadd.f32 %v8254, %v8188
      %v8275 = vadd.f32 %v8255, %v8191
      %v8276 = vadd.f32 %v8256, %v8196
      %v8277 = vadd.f32 %v8257, %v8199
      %v8278 = vadd.f32 %v8258, %v8204
      %v8279 = vadd.f32 %v8259, %v8207
      %v8280 = vadd.f32 %v8260, %v8212
      %v8281 = vadd.f32 %v8261, %v8215
      %v8282 = vadd.f32 %v8262, %v8220
      %v8283 = vadd.f32 %v8263, %v8223
      %v8284 = vadd.f32 %v8264, %v8228
      %v8285 = vadd.f32 %v8265, %v8231
      %v8286 = vadd.f32 %v8266, %v8236
      %v8287 = vadd.f32 %v8267, %v8239
      %v8288 = vadd.f32 %v8268, %v8244
      %v8289 = vadd.f32 %v8269, %v8247
      %8290 = vst [vmem:[#allocation2] sm:$0xff] %v8270
      %8291 = vst [vmem:[#allocation2 + $0x8] sm:$0xff] %v8271
      %8292 = vst [vmem:[#allocation2 + $0x10] sm:$0xff] %v8272
      %8293 = vst [vmem:[#allocation2 + $0x18] sm:$0xff] %v8273
      %8294 = vst [vmem:[#allocation2 + $0x20] sm:$0xff] %v8274
      %8295 = vst [vmem:[#allocation2 + $0x28] sm:$0xff] %v8275
      %8296 = vst [vmem:[#allocation2 + $0x30] sm:$0xff] %v8276
      %8297 = vst [vmem:[#allocation2 + $0x38] sm:$0xff] %v8277
      %8298 = vst [vmem:[#allocation2 + $0x40] sm:$0xff] %v8278
      %8299 = vst [vmem:[#allocation2 + $0x48] sm:$0xff] %v8279
      %8300 = vst [vmem:[#allocation2 + $0x50] sm:$0xff] %v8280
      %8301 = vst [vmem:[#allocation2 + $0x58] sm:$0xff] %v8281
      %8302 = vst [vmem:[#allocation2 + $0x60] sm:$0xff] %v8282
      %8303 = vst [vmem:[#allocation2 + $0x68] sm:$0xff] %v8283
      %8304 = vst [vmem:[#allocation2 + $0x70] sm:$0xff] %v8284
      %8305 = vst [vmem:[#allocation2 + $0x78] sm:$0xff] %v8285
      %8306 = vst [vmem:[#allocation2 + $0x80] sm:$0xff] %v8286
      %8307 = vst [vmem:[#allocation2 + $0x88] sm:$0xff] %v8287
      %8308 = vst [vmem:[#allocation2 + $0x90] sm:$0xff] %v8288
      %8309 = vst [vmem:[#allocation2 + $0x98] sm:$0xff] %v8289
      %s8310 = scalar_lea.vmem %s1, 832
      %v8311 = vld [vmem:[%s8310] sm:$0xf]
      %v8312 = vld [vmem:[%s8310 + $0x4] sm:$0xf]
      %v8313 = vld [vmem:[%s8310 + $0x8] sm:$0xf]
      %v8314 = vld [vmem:[%s8310 + $0xc] sm:$0xf]
      %v8315 = vld [vmem:[%s8310 + $0x10] sm:$0xf]
      %v8316 = vld [vmem:[%s8310 + $0x14] sm:$0xf]
      %v8317 = vld [vmem:[%s8310 + $0x18] sm:$0xf]
      %v8318 = vld [vmem:[%s8310 + $0x1c] sm:$0xf]
      %v8319 = vld [vmem:[%s8310 + $0x20] sm:$0xf]
      %v8320 = vld [vmem:[%s8310 + $0x24] sm:$0xf]
      %v8321 = vld [vmem:[%s8310 + $0x28] sm:$0xf]
      %v8322 = vld [vmem:[%s8310 + $0x2c] sm:$0xf]
      %v8323 = vld [vmem:[%s8310 + $0x30] sm:$0xf]
      %v8324 = vld [vmem:[%s8310 + $0x34] sm:$0xf]
      %v8325 = vld [vmem:[%s8310 + $0x38] sm:$0xf]
      %v8326 = vld [vmem:[%s8310 + $0x3c] sm:$0xf]
      %v8327 = vcombine.low %v2701, %v2729
      %v8328 = vcombine.low %v2736, %v2743
      %v8330 = vunpack.c.l.s4 1966171168
      %v8331 = vunpack.c.0.s8 %v8330
      %v8332 = vlaneseq
      %v8333 = vshrl.u32 %v8332, 7
      %v8334 = vsub.s32 %v8331, %v8333
      %v8335 = vrot.slane %v8327, %v8334
      %v8337 = vunpack.c.l.s4 1966171168
      %v8338 = vunpack.c.0.s8 %v8337
      %v8339 = vlaneseq
      %v8340 = vshrl.u32 %v8339, 7
      %v8341 = vsub.s32 %v8338, %v8340
      %v8342 = vrot.slane %v8328, %v8341
      %v8343 = vcombine.low %v8335, %v8342
      %v8344 = vcombine.low %v2750, %v2778
      %v8345 = vcombine.low %v2785, %v2792
      %v8347 = vunpack.c.l.s4 1966171168
      %v8348 = vunpack.c.0.s8 %v8347
      %v8349 = vlaneseq
      %v8350 = vshrl.u32 %v8349, 7
      %v8351 = vsub.s32 %v8348, %v8350
      %v8352 = vrot.slane %v8344, %v8351
      %v8354 = vunpack.c.l.s4 1966171168
      %v8355 = vunpack.c.0.s8 %v8354
      %v8356 = vlaneseq
      %v8357 = vshrl.u32 %v8356, 7
      %v8358 = vsub.s32 %v8355, %v8357
      %v8359 = vrot.slane %v8345, %v8358
      %v8360 = vcombine.low %v8352, %v8359
      %v8361 = vcombine.low %v2799, %v2824
      %v8362 = vcombine.low %v5690, %v5697
      %v8364 = vunpack.c.l.s4 1966171168
      %v8365 = vunpack.c.0.s8 %v8364
      %v8366 = vlaneseq
      %v8367 = vshrl.u32 %v8366, 7
      %v8368 = vsub.s32 %v8365, %v8367
      %v8369 = vrot.slane %v8361, %v8368
      %v8371 = vunpack.c.l.s4 1966171168
      %v8372 = vunpack.c.0.s8 %v8371
      %v8373 = vlaneseq
      %v8374 = vshrl.u32 %v8373, 7
      %v8375 = vsub.s32 %v8372, %v8374
      %v8376 = vrot.slane %v8362, %v8375
      %v8377 = vcombine.low %v8369, %v8376
      %v8378 = vcombine.low %v5704, %v5732
      %v8379 = vcombine.low %v5739, %v5746
      %v8381 = vunpack.c.l.s4 1966171168
      %v8382 = vunpack.c.0.s8 %v8381
      %v8383 = vlaneseq
      %v8384 = vshrl.u32 %v8383, 7
      %v8385 = vsub.s32 %v8382, %v8384
      %v8386 = vrot.slane %v8378, %v8385
      %v8388 = vunpack.c.l.s4 1966171168
      %v8389 = vunpack.c.0.s8 %v8388
      %v8390 = vlaneseq
      %v8391 = vshrl.u32 %v8390, 7
      %v8392 = vsub.s32 %v8389, %v8391
      %v8393 = vrot.slane %v8379, %v8392
      %v8394 = vcombine.low %v8386, %v8393
      %v8395 = vcombine.low %v5753, %v5781
      %v8396 = vcombine.low %v5788, %v5795
      %v8398 = vunpack.c.l.s4 1966171168
      %v8399 = vunpack.c.0.s8 %v8398
      %v8400 = vlaneseq
      %v8401 = vshrl.u32 %v8400, 7
      %v8402 = vsub.s32 %v8399, %v8401
      %v8403 = vrot.slane %v8395, %v8402
      %v8405 = vunpack.c.l.s4 1966171168
      %v8406 = vunpack.c.0.s8 %v8405
      %v8407 = vlaneseq
      %v8408 = vshrl.u32 %v8407, 7
      %v8409 = vsub.s32 %v8406, %v8408
      %v8410 = vrot.slane %v8396, %v8409
      %v8411 = vcombine.low %v8403, %v8410
      %v8412 = vcombine.low %v5802, %v5830
      %v8413 = vcombine.low %v5837, %v5844
      %v8415 = vunpack.c.l.s4 1966171168
      %v8416 = vunpack.c.0.s8 %v8415
      %v8417 = vlaneseq
      %v8418 = vshrl.u32 %v8417, 7
      %v8419 = vsub.s32 %v8416, %v8418
      %v8420 = vrot.slane %v8412, %v8419
      %v8422 = vunpack.c.l.s4 1966171168
      %v8423 = vunpack.c.0.s8 %v8422
      %v8424 = vlaneseq
      %v8425 = vshrl.u32 %v8424, 7
      %v8426 = vsub.s32 %v8423, %v8425
      %v8427 = vrot.slane %v8413, %v8426
      %v8428 = vcombine.low %v8420, %v8427
      %v8430 = vunpack.c.l.s4 1966171168
      %v8431 = vunpack.c.0.s8 %v8430
      %v8432 = vlaneseq
      %v8433 = vshrl.u32 %v8432, 7
      %v8434 = vsub.s32 %v8431, %v8433
      %v8435 = vrot.slane %v5851, %v8434
      %v8459 = vunpack.c.l.b16 %v8311
      %v8460 = vunpack.c.l.b16 %v8312
      %v8461 = vunpack.c.l.b16 %v8313
      %v8462 = vunpack.c.l.b16 %v8314
      %v8463 = vunpack.c.l.b16 %v8315
      %v8464 = vunpack.c.l.b16 %v8316
      %v8465 = vunpack.c.l.b16 %v8317
      %v8466 = vunpack.c.l.b16 %v8318
      %v8467 = vunpack.c.l.b16 %v8319
      %v8468 = vunpack.c.l.b16 %v8320
      %v8469 = vunpack.c.l.b16 %v8321
      %v8470 = vunpack.c.l.b16 %v8322
      %v8471 = vunpack.c.l.b16 %v8323
      %v8472 = vunpack.c.l.b16 %v8324
      %v8473 = vunpack.c.l.b16 %v8325
      %v8474 = vunpack.c.l.b16 %v8326
      %v8475 = vpack.c.b16 %v8460, %v8459
      %v8476 = vpack.c.b16 %v8462, %v8461
      %v8477 = vpack.c.b16 %v8464, %v8463
      %v8478 = vpack.c.b16 %v8466, %v8465
      %v8479 = vpack.c.b16 %v8468, %v8467
      %v8480 = vpack.c.b16 %v8470, %v8469
      %v8481 = vpack.c.b16 %v8472, %v8471
      %v8482 = vpack.c.b16 %v8474, %v8473
      %8491 = vmatprep.subr.bf16.mxu0 0
      %8492 = vmatpush1.bf16.msra.mxu0 %v8475
      %8493 = vmatprep.subr.bf16.mxu0 0
      %8494 = vmatpush1.bf16.msra.mxu0 %v8476
      %8495 = vmatprep.subr.bf16.mxu0 0
      %8496 = vmatpush1.bf16.msra.mxu0 %v8477
      %8497 = vmatprep.subr.bf16.mxu0 0
      %8498 = vmatpush1.bf16.msra.mxu0 %v8478
      %8499 = vmatprep.subr.bf16.mxu0 0
      %8500 = vmatpush1.bf16.msra.mxu0 %v8479
      %8501 = vmatprep.subr.bf16.mxu0 0
      %8502 = vmatpush1.bf16.msra.mxu0 %v8480
      %8503 = vmatprep.subr.bf16.mxu0 0
      %8504 = vmatpush1.bf16.msra.mxu0 %v8481
      %8505 = vmatprep.subr.bf16.mxu0 0
      %8506 = vmatpush1.bf16.msra.mxu0 %v8482
      %8507 = vmatprep.subr.bf16.mxu0 0
      %8508 = vmatpush1.bf16.msra.mxu0 0
      %8509 = vmatprep.subr.bf16.mxu0 0
      %8510 = vmatpush1.bf16.msra.mxu0 0
      %8511 = vmatprep.subr.bf16.mxu0 0
      %8512 = vmatpush1.bf16.msra.mxu0 0
      %8513 = vmatprep.subr.bf16.mxu0 0
      %8514 = vmatpush1.bf16.msra.mxu0 0
      %8515 = vmatprep.subr.bf16.mxu0 0
      %8516 = vmatpush1.bf16.msra.mxu0 0
      %8517 = vmatprep.subr.bf16.mxu0 0
      %8518 = vmatpush1.bf16.msra.mxu0 0
      %8519 = vmatprep.subr.bf16.mxu0 0
      %8520 = vmatpush1.bf16.msra.mxu0 0
      %8521 = vmatprep.subr.bf16.mxu0 0
      %8522 = vmatpush1.bf16.msra.mxu0 0
      %8523 = vmatprep.mubr.bf16.mxu0 0
      %8524 = vmatmul.mubr.bf16.gmra.mrb[0].mxu0 %v8343
      %v8525 = vpop.f32.mrb[0].mxu0
      %v8526 = vadd.f32 0.0, %v8525
      %v8527 = vpop.f32.mrb[0].mxu0
      %v8528 = vpop.f32.mrb[0].mxu0
      %v8529 = vadd.f32 0.0, %v8528
      %v8530 = vpop.f32.mrb[0].mxu0
      %8531 = vmatprep.mubr.bf16.mxu0 0
      %8532 = vmatmul.mubr.bf16.gmra.mrb[0].mxu0 %v8360
      %v8533 = vpop.f32.mrb[0].mxu0
      %v8534 = vadd.f32 0.0, %v8533
      %v8535 = vpop.f32.mrb[0].mxu0
      %v8536 = vpop.f32.mrb[0].mxu0
      %v8537 = vadd.f32 0.0, %v8536
      %v8538 = vpop.f32.mrb[0].mxu0
      %8539 = vmatprep.mubr.bf16.mxu0 0
      %8540 = vmatmul.mubr.bf16.gmra.mrb[0].mxu0 %v8377
      %v8541 = vpop.f32.mrb[0].mxu0
      %v8542 = vadd.f32 0.0, %v8541
      %v8543 = vpop.f32.mrb[0].mxu0
      %v8544 = vpop.f32.mrb[0].mxu0
      %v8545 = vadd.f32 0.0, %v8544
      %v8546 = vpop.f32.mrb[0].mxu0
      %8547 = vmatprep.mubr.bf16.mxu0 0
      %8548 = vmatmul.mubr.bf16.gmra.mrb[0].mxu0 %v8394
      %v8549 = vpop.f32.mrb[0].mxu0
      %v8550 = vadd.f32 0.0, %v8549
      %v8551 = vpop.f32.mrb[0].mxu0
      %v8552 = vpop.f32.mrb[0].mxu0
      %v8553 = vadd.f32 0.0, %v8552
      %v8554 = vpop.f32.mrb[0].mxu0
      %8555 = vmatprep.mubr.bf16.mxu0 0
      %8556 = vmatmul.mubr.bf16.gmra.mrb[0].mxu0 %v8411
      %v8557 = vpop.f32.mrb[0].mxu0
      %v8558 = vadd.f32 0.0, %v8557
      %v8559 = vpop.f32.mrb[0].mxu0
      %v8560 = vpop.f32.mrb[0].mxu0
      %v8561 = vadd.f32 0.0, %v8560
      %v8562 = vpop.f32.mrb[0].mxu0
      %8563 = vmatprep.mubr.bf16.mxu0 0
      %8564 = vmatmul.mubr.bf16.gmra.mrb[0].mxu0 %v8428
      %v8565 = vpop.f32.mrb[0].mxu0
      %v8566 = vadd.f32 0.0, %v8565
      %v8567 = vpop.f32.mrb[0].mxu0
      %v8568 = vpop.f32.mrb[0].mxu0
      %v8569 = vadd.f32 0.0, %v8568
      %v8570 = vpop.f32.mrb[0].mxu0
      %8571 = vmatprep.mubr.bf16.mxu0 0
      %8572 = vmatmul.mubr.bf16.gmra.mrb[0].mxu0 %v8435
      %v8573 = vpop.f32.mrb[0].mxu0
      %v8574 = vadd.f32 0.0, %v8573
      %v8575 = vpop.f32.mrb[0].mxu0
      %v8576 = vpop.f32.mrb[0].mxu0
      %v8577 = vpop.f32.mrb[0].mxu0
      %8578 = vdwg.mxu0
      %v8579 = vld [vmem:[#allocation2] sm:$0xff]
      %v8580 = vld [vmem:[#allocation2 + $0x8] sm:$0x3]
      %v8581 = vld [vmem:[#allocation2 + $0x10] sm:$0xff]
      %v8582 = vld [vmem:[#allocation2 + $0x18] sm:$0x3]
      %v8583 = vld [vmem:[#allocation2 + $0x20] sm:$0xff]
      %v8584 = vld [vmem:[#allocation2 + $0x28] sm:$0x3]
      %v8585 = vld [vmem:[#allocation2 + $0x30] sm:$0xff]
      %v8586 = vld [vmem:[#allocation2 + $0x38] sm:$0x3]
      %v8587 = vld [vmem:[#allocation2 + $0x40] sm:$0xff]
      %v8588 = vld [vmem:[#allocation2 + $0x48] sm:$0x3]
      %v8589 = vld [vmem:[#allocation2 + $0x50] sm:$0xff]
      %v8590 = vld [vmem:[#allocation2 + $0x58] sm:$0x3]
      %v8591 = vld [vmem:[#allocation2 + $0x60] sm:$0xff]
      %v8592 = vld [vmem:[#allocation2 + $0x68] sm:$0x3]
      %v8593 = vld [vmem:[#allocation2 + $0x70] sm:$0xff]
      %v8594 = vld [vmem:[#allocation2 + $0x78] sm:$0x3]
      %v8595 = vld [vmem:[#allocation2 + $0x80] sm:$0xff]
      %v8596 = vld [vmem:[#allocation2 + $0x88] sm:$0x3]
      %v8597 = vld [vmem:[#allocation2 + $0x90] sm:$0xff]
      %v8598 = vld [vmem:[#allocation2 + $0x98] sm:$0x3]
      %v8612 = vcombine.high %v8526, %v8526
      %v8614 = vunpack.c.l.s4 1983009808
      %v8615 = vunpack.c.0.s8 %v8614
      %v8616 = vlaneseq
      %v8617 = vshrl.u32 %v8616, 7
      %v8618 = vsub.s32 %v8615, %v8617
      %v8619 = vrot.slane %v8526, %v8618
      %v8621 = vunpack.c.l.s4 1983009808
      %v8622 = vunpack.c.0.s8 %v8621
      %v8623 = vlaneseq
      %v8624 = vshrl.u32 %v8623, 7
      %v8625 = vsub.s32 %v8622, %v8624
      %v8626 = vrot.slane %v8612, %v8625
      %v8627 = vcombine.high %v8619, %v8619
      %v8628 = vcombine.high %v8626, %v8626
      %v8629 = vcombine.high %v8529, %v8529
      %v8631 = vunpack.c.l.s4 1983009808
      %v8632 = vunpack.c.0.s8 %v8631
      %v8633 = vlaneseq
      %v8634 = vshrl.u32 %v8633, 7
      %v8635 = vsub.s32 %v8632, %v8634
      %v8636 = vrot.slane %v8529, %v8635
      %v8638 = vunpack.c.l.s4 1983009808
      %v8639 = vunpack.c.0.s8 %v8638
      %v8640 = vlaneseq
      %v8641 = vshrl.u32 %v8640, 7
      %v8642 = vsub.s32 %v8639, %v8641
      %v8643 = vrot.slane %v8629, %v8642
      %v8644 = vcombine.high %v8636, %v8636
      %v8645 = vcombine.high %v8643, %v8643
      %v8646 = vcombine.high %v8534, %v8534
      %v8648 = vunpack.c.l.s4 1983009808
      %v8649 = vunpack.c.0.s8 %v8648
      %v8650 = vlaneseq
      %v8651 = vshrl.u32 %v8650, 7
      %v8652 = vsub.s32 %v8649, %v8651
      %v8653 = vrot.slane %v8534, %v8652
      %v8655 = vunpack.c.l.s4 1983009808
      %v8656 = vunpack.c.0.s8 %v8655
      %v8657 = vlaneseq
      %v8658 = vshrl.u32 %v8657, 7
      %v8659 = vsub.s32 %v8656, %v8658
      %v8660 = vrot.slane %v8646, %v8659
      %v8661 = vcombine.high %v8653, %v8653
      %v8662 = vcombine.high %v8660, %v8660
      %v8663 = vcombine.high %v8537, %v8537
      %v8665 = vunpack.c.l.s4 1983009808
      %v8666 = vunpack.c.0.s8 %v8665
      %v8667 = vlaneseq
      %v8668 = vshrl.u32 %v8667, 7
      %v8669 = vsub.s32 %v8666, %v8668
      %v8670 = vrot.slane %v8537, %v8669
      %v8672 = vunpack.c.l.s4 1983009808
      %v8673 = vunpack.c.0.s8 %v8672
      %v8674 = vlaneseq
      %v8675 = vshrl.u32 %v8674, 7
      %v8676 = vsub.s32 %v8673, %v8675
      %v8677 = vrot.slane %v8663, %v8676
      %v8678 = vcombine.high %v8670, %v8670
      %v8679 = vcombine.high %v8677, %v8677
      %v8680 = vcombine.high %v8542, %v8542
      %v8682 = vunpack.c.l.s4 1983009808
      %v8683 = vunpack.c.0.s8 %v8682
      %v8684 = vlaneseq
      %v8685 = vshrl.u32 %v8684, 7
      %v8686 = vsub.s32 %v8683, %v8685
      %v8687 = vrot.slane %v8542, %v8686
      %v8689 = vunpack.c.l.s4 1983009808
      %v8690 = vunpack.c.0.s8 %v8689
      %v8691 = vlaneseq
      %v8692 = vshrl.u32 %v8691, 7
      %v8693 = vsub.s32 %v8690, %v8692
      %v8694 = vrot.slane %v8680, %v8693
      %v8695 = vcombine.high %v8687, %v8687
      %v8696 = vcombine.high %v8694, %v8694
      %v8697 = vcombine.high %v8545, %v8545
      %v8699 = vunpack.c.l.s4 1983009808
      %v8700 = vunpack.c.0.s8 %v8699
      %v8701 = vlaneseq
      %v8702 = vshrl.u32 %v8701, 7
      %v8703 = vsub.s32 %v8700, %v8702
      %v8704 = vrot.slane %v8545, %v8703
      %v8706 = vunpack.c.l.s4 1983009808
      %v8707 = vunpack.c.0.s8 %v8706
      %v8708 = vlaneseq
      %v8709 = vshrl.u32 %v8708, 7
      %v8710 = vsub.s32 %v8707, %v8709
      %v8711 = vrot.slane %v8697, %v8710
      %v8712 = vcombine.high %v8704, %v8704
      %v8713 = vcombine.high %v8711, %v8711
      %v8714 = vcombine.high %v8550, %v8550
      %v8716 = vunpack.c.l.s4 1983009808
      %v8717 = vunpack.c.0.s8 %v8716
      %v8718 = vlaneseq
      %v8719 = vshrl.u32 %v8718, 7
      %v8720 = vsub.s32 %v8717, %v8719
      %v8721 = vrot.slane %v8550, %v8720
      %v8723 = vunpack.c.l.s4 1983009808
      %v8724 = vunpack.c.0.s8 %v8723
      %v8725 = vlaneseq
      %v8726 = vshrl.u32 %v8725, 7
      %v8727 = vsub.s32 %v8724, %v8726
      %v8728 = vrot.slane %v8714, %v8727
      %v8729 = vcombine.high %v8721, %v8721
      %v8730 = vcombine.high %v8728, %v8728
      %v8731 = vcombine.high %v8553, %v8553
      %v8733 = vunpack.c.l.s4 1983009808
      %v8734 = vunpack.c.0.s8 %v8733
      %v8735 = vlaneseq
      %v8736 = vshrl.u32 %v8735, 7
      %v8737 = vsub.s32 %v8734, %v8736
      %v8738 = vrot.slane %v8553, %v8737
      %v8740 = vunpack.c.l.s4 1983009808
      %v8741 = vunpack.c.0.s8 %v8740
      %v8742 = vlaneseq
      %v8743 = vshrl.u32 %v8742, 7
      %v8744 = vsub.s32 %v8741, %v8743
      %v8745 = vrot.slane %v8731, %v8744
      %v8746 = vcombine.high %v8738, %v8738
      %v8747 = vcombine.high %v8745, %v8745
      %v8748 = vcombine.high %v8558, %v8558
      %v8750 = vunpack.c.l.s4 1983009808
      %v8751 = vunpack.c.0.s8 %v8750
      %v8752 = vlaneseq
      %v8753 = vshrl.u32 %v8752, 7
      %v8754 = vsub.s32 %v8751, %v8753
      %v8755 = vrot.slane %v8558, %v8754
      %v8757 = vunpack.c.l.s4 1983009808
      %v8758 = vunpack.c.0.s8 %v8757
      %v8759 = vlaneseq
      %v8760 = vshrl.u32 %v8759, 7
      %v8761 = vsub.s32 %v8758, %v8760
      %v8762 = vrot.slane %v8748, %v8761
      %v8763 = vcombine.high %v8755, %v8755
      %v8764 = vcombine.high %v8762, %v8762
      %v8765 = vcombine.high %v8561, %v8561
      %v8767 = vunpack.c.l.s4 1983009808
      %v8768 = vunpack.c.0.s8 %v8767
      %v8769 = vlaneseq
      %v8770 = vshrl.u32 %v8769, 7
      %v8771 = vsub.s32 %v8768, %v8770
      %v8772 = vrot.slane %v8561, %v8771
      %v8774 = vunpack.c.l.s4 1983009808
      %v8775 = vunpack.c.0.s8 %v8774
      %v8776 = vlaneseq
      %v8777 = vshrl.u32 %v8776, 7
      %v8778 = vsub.s32 %v8775, %v8777
      %v8779 = vrot.slane %v8765, %v8778
      %v8780 = vcombine.high %v8772, %v8772
      %v8781 = vcombine.high %v8779, %v8779
      %v8782 = vcombine.high %v8566, %v8566
      %v8784 = vunpack.c.l.s4 1983009808
      %v8785 = vunpack.c.0.s8 %v8784
      %v8786 = vlaneseq
      %v8787 = vshrl.u32 %v8786, 7
      %v8788 = vsub.s32 %v8785, %v8787
      %v8789 = vrot.slane %v8566, %v8788
      %v8791 = vunpack.c.l.s4 1983009808
      %v8792 = vunpack.c.0.s8 %v8791
      %v8793 = vlaneseq
      %v8794 = vshrl.u32 %v8793, 7
      %v8795 = vsub.s32 %v8792, %v8794
      %v8796 = vrot.slane %v8782, %v8795
      %v8797 = vcombine.high %v8789, %v8789
      %v8798 = vcombine.high %v8796, %v8796
      %v8799 = vcombine.high %v8569, %v8569
      %v8801 = vunpack.c.l.s4 1983009808
      %v8802 = vunpack.c.0.s8 %v8801
      %v8803 = vlaneseq
      %v8804 = vshrl.u32 %v8803, 7
      %v8805 = vsub.s32 %v8802, %v8804
      %v8806 = vrot.slane %v8569, %v8805
      %v8808 = vunpack.c.l.s4 1983009808
      %v8809 = vunpack.c.0.s8 %v8808
      %v8810 = vlaneseq
      %v8811 = vshrl.u32 %v8810, 7
      %v8812 = vsub.s32 %v8809, %v8811
      %v8813 = vrot.slane %v8799, %v8812
      %v8814 = vcombine.high %v8806, %v8806
      %v8815 = vcombine.high %v8813, %v8813
      %v8817 = vunpack.c.l.s4 1983009808
      %v8818 = vunpack.c.0.s8 %v8817
      %v8819 = vlaneseq
      %v8820 = vshrl.u32 %v8819, 7
      %v8821 = vsub.s32 %v8818, %v8820
      %v8822 = vrot.slane %v8574, %v8821
      %v8823 = vcombine.high %v8822, %v8822
      %v8824 = vcombine.low %v8619, %v8627
      %v8825 = vcombine.low %v8626, %v8628
      %v8827 = vunpack.c.l.s4 1983009808
      %v8828 = vunpack.c.0.s8 %v8827
      %v8829 = vlaneseq
      %v8830 = vshrl.u32 %v8829, 7
      %v8831 = vsub.s32 %v8828, %v8830
      %v8832 = vrot.slane %v8824, %v8831
      %v8834 = vunpack.c.l.s4 1983009808
      %v8835 = vunpack.c.0.s8 %v8834
      %v8836 = vlaneseq
      %v8837 = vshrl.u32 %v8836, 7
      %v8838 = vsub.s32 %v8835, %v8837
      %v8839 = vrot.slane %v8825, %v8838
      %v8840 = vcombine.low %v8832, %v8839
      %v8842 = vunpack.c.l.s4 1983009808
      %v8843 = vunpack.c.0.s8 %v8842
      %v8844 = vlaneseq
      %v8845 = vshrl.u32 %v8844, 7
      %v8846 = vsub.s32 %v8843, %v8845
      %v8847 = vrot.slane %v8636, %v8846
      %v8848 = vcombine.low %v8644, %v8643
      %v8849 = vcombine.low %v8645, %v8653
      %v8851 = vunpack.c.l.s4 1983009808
      %v8852 = vunpack.c.0.s8 %v8851
      %v8853 = vlaneseq
      %v8854 = vshrl.u32 %v8853, 7
      %v8855 = vsub.s32 %v8852, %v8854
      %v8856 = vrot.slane %v8848, %v8855
      %v8858 = vunpack.c.l.s4 1983009808
      %v8859 = vunpack.c.0.s8 %v8858
      %v8860 = vlaneseq
      %v8861 = vshrl.u32 %v8860, 7
      %v8862 = vsub.s32 %v8859, %v8861
      %v8863 = vrot.slane %v8849, %v8862
      %v8864 = vcombine.low %v8856, %v8863
      %v8866 = vunpack.c.l.s4 1983009808
      %v8867 = vunpack.c.0.s8 %v8866
      %v8868 = vlaneseq
      %v8869 = vshrl.u32 %v8868, 7
      %v8870 = vsub.s32 %v8867, %v8869
      %v8871 = vrot.slane %v8661, %v8870
      %v8872 = vcombine.low %v8660, %v8662
      %v8873 = vcombine.low %v8670, %v8678
      %v8875 = vunpack.c.l.s4 1983009808
      %v8876 = vunpack.c.0.s8 %v8875
      %v8877 = vlaneseq
      %v8878 = vshrl.u32 %v8877, 7
      %v8879 = vsub.s32 %v8876, %v8878
      %v8880 = vrot.slane %v8872, %v8879
      %v8882 = vunpack.c.l.s4 1983009808
      %v8883 = vunpack.c.0.s8 %v8882
      %v8884 = vlaneseq
      %v8885 = vshrl.u32 %v8884, 7
      %v8886 = vsub.s32 %v8883, %v8885
      %v8887 = vrot.slane %v8873, %v8886
      %v8888 = vcombine.low %v8880, %v8887
      %v8890 = vunpack.c.l.s4 1983009808
      %v8891 = vunpack.c.0.s8 %v8890
      %v8892 = vlaneseq
      %v8893 = vshrl.u32 %v8892, 7
      %v8894 = vsub.s32 %v8891, %v8893
      %v8895 = vrot.slane %v8677, %v8894
      %v8896 = vcombine.low %v8679, %v8687
      %v8897 = vcombine.low %v8695, %v8694
      %v8899 = vunpack.c.l.s4 1983009808
      %v8900 = vunpack.c.0.s8 %v8899
      %v8901 = vlaneseq
      %v8902 = vshrl.u32 %v8901, 7
      %v8903 = vsub.s32 %v8900, %v8902
      %v8904 = vrot.slane %v8896, %v8903
      %v8906 = vunpack.c.l.s4 1983009808
      %v8907 = vunpack.c.0.s8 %v8906
      %v8908 = vlaneseq
      %v8909 = vshrl.u32 %v8908, 7
      %v8910 = vsub.s32 %v8907, %v8909
      %v8911 = vrot.slane %v8897, %v8910
      %v8912 = vcombine.low %v8904, %v8911
      %v8914 = vunpack.c.l.s4 1983009808
      %v8915 = vunpack.c.0.s8 %v8914
      %v8916 = vlaneseq
      %v8917 = vshrl.u32 %v8916, 7
      %v8918 = vsub.s32 %v8915, %v8917
      %v8919 = vrot.slane %v8696, %v8918
      %v8920 = vcombine.low %v8704, %v8712
      %v8921 = vcombine.low %v8711, %v8713
      %v8923 = vunpack.c.l.s4 1983009808
      %v8924 = vunpack.c.0.s8 %v8923
      %v8925 = vlaneseq
      %v8926 = vshrl.u32 %v8925, 7
      %v8927 = vsub.s32 %v8924, %v8926
      %v8928 = vrot.slane %v8920, %v8927
      %v8930 = vunpack.c.l.s4 1983009808
      %v8931 = vunpack.c.0.s8 %v8930
      %v8932 = vlaneseq
      %v8933 = vshrl.u32 %v8932, 7
      %v8934 = vsub.s32 %v8931, %v8933
      %v8935 = vrot.slane %v8921, %v8934
      %v8936 = vcombine.low %v8928, %v8935
      %v8938 = vunpack.c.l.s4 1983009808
      %v8939 = vunpack.c.0.s8 %v8938
      %v8940 = vlaneseq
      %v8941 = vshrl.u32 %v8940, 7
      %v8942 = vsub.s32 %v8939, %v8941
      %v8943 = vrot.slane %v8721, %v8942
      %v8944 = vcombine.low %v8729, %v8728
      %v8945 = vcombine.low %v8730, %v8738
      %v8947 = vunpack.c.l.s4 1983009808
      %v8948 = vunpack.c.0.s8 %v8947
      %v8949 = vlaneseq
      %v8950 = vshrl.u32 %v8949, 7
      %v8951 = vsub.s32 %v8948, %v8950
      %v8952 = vrot.slane %v8944, %v8951
      %v8954 = vunpack.c.l.s4 1983009808
      %v8955 = vunpack.c.0.s8 %v8954
      %v8956 = vlaneseq
      %v8957 = vshrl.u32 %v8956, 7
      %v8958 = vsub.s32 %v8955, %v8957
      %v8959 = vrot.slane %v8945, %v8958
      %v8960 = vcombine.low %v8952, %v8959
      %v8962 = vunpack.c.l.s4 1983009808
      %v8963 = vunpack.c.0.s8 %v8962
      %v8964 = vlaneseq
      %v8965 = vshrl.u32 %v8964, 7
      %v8966 = vsub.s32 %v8963, %v8965
      %v8967 = vrot.slane %v8746, %v8966
      %v8968 = vcombine.low %v8745, %v8747
      %v8969 = vcombine.low %v8755, %v8763
      %v8971 = vunpack.c.l.s4 1983009808
      %v8972 = vunpack.c.0.s8 %v8971
      %v8973 = vlaneseq
      %v8974 = vshrl.u32 %v8973, 7
      %v8975 = vsub.s32 %v8972, %v8974
      %v8976 = vrot.slane %v8968, %v8975
      %v8978 = vunpack.c.l.s4 1983009808
      %v8979 = vunpack.c.0.s8 %v8978
      %v8980 = vlaneseq
      %v8981 = vshrl.u32 %v8980, 7
      %v8982 = vsub.s32 %v8979, %v8981
      %v8983 = vrot.slane %v8969, %v8982
      %v8984 = vcombine.low %v8976, %v8983
      %v8986 = vunpack.c.l.s4 1983009808
      %v8987 = vunpack.c.0.s8 %v8986
      %v8988 = vlaneseq
      %v8989 = vshrl.u32 %v8988, 7
      %v8990 = vsub.s32 %v8987, %v8989
      %v8991 = vrot.slane %v8762, %v8990
      %v8992 = vcombine.low %v8764, %v8772
      %v8993 = vcombine.low %v8780, %v8779
      %v8995 = vunpack.c.l.s4 1983009808
      %v8996 = vunpack.c.0.s8 %v8995
      %v8997 = vlaneseq
      %v8998 = vshrl.u32 %v8997, 7
      %v8999 = vsub.s32 %v8996, %v8998
      %v9000 = vrot.slane %v8992, %v8999
      %v9002 = vunpack.c.l.s4 1983009808
      %v9003 = vunpack.c.0.s8 %v9002
      %v9004 = vlaneseq
      %v9005 = vshrl.u32 %v9004, 7
      %v9006 = vsub.s32 %v9003, %v9005
      %v9007 = vrot.slane %v8993, %v9006
      %v9008 = vcombine.low %v9000, %v9007
      %v9010 = vunpack.c.l.s4 1983009808
      %v9011 = vunpack.c.0.s8 %v9010
      %v9012 = vlaneseq
      %v9013 = vshrl.u32 %v9012, 7
      %v9014 = vsub.s32 %v9011, %v9013
      %v9015 = vrot.slane %v8781, %v9014
      %v9016 = vcombine.low %v8789, %v8797
      %v9017 = vcombine.low %v8796, %v8798
      %v9019 = vunpack.c.l.s4 1983009808
      %v9020 = vunpack.c.0.s8 %v9019
      %v9021 = vlaneseq
      %v9022 = vshrl.u32 %v9021, 7
      %v9023 = vsub.s32 %v9020, %v9022
      %v9024 = vrot.slane %v9016, %v9023
      %v9026 = vunpack.c.l.s4 1983009808
      %v9027 = vunpack.c.0.s8 %v9026
      %v9028 = vlaneseq
      %v9029 = vshrl.u32 %v9028, 7
      %v9030 = vsub.s32 %v9027, %v9029
      %v9031 = vrot.slane %v9017, %v9030
      %v9032 = vcombine.low %v9024, %v9031
      %v9034 = vunpack.c.l.s4 1983009808
      %v9035 = vunpack.c.0.s8 %v9034
      %v9036 = vlaneseq
      %v9037 = vshrl.u32 %v9036, 7
      %v9038 = vsub.s32 %v9035, %v9037
      %v9039 = vrot.slane %v8806, %v9038
      %v9040 = vcombine.low %v8814, %v8813
      %v9041 = vcombine.low %v8815, %v8822
      %v9043 = vunpack.c.l.s4 1983009808
      %v9044 = vunpack.c.0.s8 %v9043
      %v9045 = vlaneseq
      %v9046 = vshrl.u32 %v9045, 7
      %v9047 = vsub.s32 %v9044, %v9046
      %v9048 = vrot.slane %v9040, %v9047
      %v9050 = vunpack.c.l.s4 1983009808
      %v9051 = vunpack.c.0.s8 %v9050
      %v9052 = vlaneseq
      %v9053 = vshrl.u32 %v9052, 7
      %v9054 = vsub.s32 %v9051, %v9053
      %v9055 = vrot.slane %v9041, %v9054
      %v9056 = vcombine.low %v9048, %v9055
      %v9058 = vunpack.c.l.s4 1983009808
      %v9059 = vunpack.c.0.s8 %v9058
      %v9060 = vlaneseq
      %v9061 = vshrl.u32 %v9060, 7
      %v9062 = vsub.s32 %v9059, %v9061
      %v9063 = vrot.slane %v8823, %v9062
      %v9084 = vadd.f32 %v8579, %v8840
      %v9085 = vadd.f32 %v8580, %v8847
      %v9086 = vadd.f32 %v8581, %v8864
      %v9087 = vadd.f32 %v8582, %v8871
      %v9088 = vadd.f32 %v8583, %v8888
      %v9089 = vadd.f32 %v8584, %v8895
      %v9090 = vadd.f32 %v8585, %v8912
      %v9091 = vadd.f32 %v8586, %v8919
      %v9092 = vadd.f32 %v8587, %v8936
      %v9093 = vadd.f32 %v8588, %v8943
      %v9094 = vadd.f32 %v8589, %v8960
      %v9095 = vadd.f32 %v8590, %v8967
      %v9096 = vadd.f32 %v8591, %v8984
      %v9097 = vadd.f32 %v8592, %v8991
      %v9098 = vadd.f32 %v8593, %v9008
      %v9099 = vadd.f32 %v8594, %v9015
      %v9100 = vadd.f32 %v8595, %v9032
      %v9101 = vadd.f32 %v8596, %v9039
      %v9102 = vadd.f32 %v8597, %v9056
      %v9103 = vadd.f32 %v8598, %v9063
      %9104 = vst [vmem:[#allocation2] sm:$0xff] %v9084
      %9105 = vst [vmem:[#allocation2 + $0x8] sm:$0x3] %v9085
      %9106 = vst [vmem:[#allocation2 + $0x10] sm:$0xff] %v9086
      %9107 = vst [vmem:[#allocation2 + $0x18] sm:$0x3] %v9087
      %9108 = vst [vmem:[#allocation2 + $0x20] sm:$0xff] %v9088
      %9109 = vst [vmem:[#allocation2 + $0x28] sm:$0x3] %v9089
      %9110 = vst [vmem:[#allocation2 + $0x30] sm:$0xff] %v9090
      %9111 = vst [vmem:[#allocation2 + $0x38] sm:$0x3] %v9091
      %9112 = vst [vmem:[#allocation2 + $0x40] sm:$0xff] %v9092
      %9113 = vst [vmem:[#allocation2 + $0x48] sm:$0x3] %v9093
      %9114 = vst [vmem:[#allocation2 + $0x50] sm:$0xff] %v9094
      %9115 = vst [vmem:[#allocation2 + $0x58] sm:$0x3] %v9095
      %9116 = vst [vmem:[#allocation2 + $0x60] sm:$0xff] %v9096
      %9117 = vst [vmem:[#allocation2 + $0x68] sm:$0x3] %v9097
      %9118 = vst [vmem:[#allocation2 + $0x70] sm:$0xff] %v9098
      %9119 = vst [vmem:[#allocation2 + $0x78] sm:$0x3] %v9099
      %9120 = vst [vmem:[#allocation2 + $0x80] sm:$0xff] %v9100
      %9121 = vst [vmem:[#allocation2 + $0x88] sm:$0x3] %v9101
      %9122 = vst [vmem:[#allocation2 + $0x90] sm:$0xff] %v9102
      %9123 = vst [vmem:[#allocation2 + $0x98] sm:$0x3] %v9103
      %s9124 = scalar_lea.vmem %s1, 896
      %v9125 = vld [vmem:[%s9124] sm:$0xf]
      %v9126 = vld [vmem:[%s9124 + $0x4] sm:$0xf]
      %v9127 = vld [vmem:[%s9124 + $0x8] sm:$0xf]
      %v9128 = vld [vmem:[%s9124 + $0xc] sm:$0xf]
      %v9129 = vld [vmem:[%s9124 + $0x10] sm:$0xf]
      %v9130 = vld [vmem:[%s9124 + $0x14] sm:$0xf]
      %v9131 = vld [vmem:[%s9124 + $0x18] sm:$0xf]
      %v9132 = vld [vmem:[%s9124 + $0x1c] sm:$0xf]
      %v9133 = vld [vmem:[%s9124 + $0x20] sm:$0xf]
      %v9134 = vld [vmem:[%s9124 + $0x24] sm:$0xf]
      %v9135 = vld [vmem:[%s9124 + $0x28] sm:$0xf]
      %v9136 = vld [vmem:[%s9124 + $0x2c] sm:$0xf]
      %v9137 = vld [vmem:[%s9124 + $0x30] sm:$0xf]
      %v9138 = vld [vmem:[%s9124 + $0x34] sm:$0xf]
      %v9139 = vld [vmem:[%s9124 + $0x38] sm:$0xf]
      %v9140 = vld [vmem:[%s9124 + $0x3c] sm:$0xf]
      %v9157 = vunpack.c.l.b16 %v9125
      %v9158 = vunpack.c.l.b16 %v9126
      %v9159 = vunpack.c.l.b16 %v9127
      %v9160 = vunpack.c.l.b16 %v9128
      %v9161 = vunpack.c.l.b16 %v9129
      %v9162 = vunpack.c.l.b16 %v9130
      %v9163 = vunpack.c.l.b16 %v9131
      %v9164 = vunpack.c.l.b16 %v9132
      %v9165 = vunpack.c.l.b16 %v9133
      %v9166 = vunpack.c.l.b16 %v9134
      %v9167 = vunpack.c.l.b16 %v9135
      %v9168 = vunpack.c.l.b16 %v9136
      %v9169 = vunpack.c.l.b16 %v9137
      %v9170 = vunpack.c.l.b16 %v9138
      %v9171 = vunpack.c.l.b16 %v9139
      %v9172 = vunpack.c.l.b16 %v9140
      %v9173 = vpack.c.b16 %v9158, %v9157
      %v9174 = vpack.c.b16 %v9160, %v9159
      %v9175 = vpack.c.b16 %v9162, %v9161
      %v9176 = vpack.c.b16 %v9164, %v9163
      %v9177 = vpack.c.b16 %v9166, %v9165
      %v9178 = vpack.c.b16 %v9168, %v9167
      %v9179 = vpack.c.b16 %v9170, %v9169
      %v9180 = vpack.c.b16 %v9172, %v9171
      %9189 = vmatprep.subr.bf16.mxu0 0
      %9190 = vmatpush1.bf16.msra.mxu0 %v9173
      %9191 = vmatprep.subr.bf16.mxu0 0
      %9192 = vmatpush1.bf16.msra.mxu0 %v9174
      %9193 = vmatprep.subr.bf16.mxu0 0
      %9194 = vmatpush1.bf16.msra.mxu0 %v9175
      %9195 = vmatprep.subr.bf16.mxu0 0
      %9196 = vmatpush1.bf16.msra.mxu0 %v9176
      %9197 = vmatprep.subr.bf16.mxu0 0
      %9198 = vmatpush1.bf16.msra.mxu0 %v9177
      %9199 = vmatprep.subr.bf16.mxu0 0
      %9200 = vmatpush1.bf16.msra.mxu0 %v9178
      %9201 = vmatprep.subr.bf16.mxu0 0
      %9202 = vmatpush1.bf16.msra.mxu0 %v9179
      %9203 = vmatprep.subr.bf16.mxu0 0
      %9204 = vmatpush1.bf16.msra.mxu0 %v9180
      %9205 = vmatprep.subr.bf16.mxu0 0
      %9206 = vmatpush1.bf16.msra.mxu0 0
      %9207 = vmatprep.subr.bf16.mxu0 0
      %9208 = vmatpush1.bf16.msra.mxu0 0
      %9209 = vmatprep.subr.bf16.mxu0 0
      %9210 = vmatpush1.bf16.msra.mxu0 0
      %9211 = vmatprep.subr.bf16.mxu0 0
      %9212 = vmatpush1.bf16.msra.mxu0 0
      %9213 = vmatprep.subr.bf16.mxu0 0
      %9214 = vmatpush1.bf16.msra.mxu0 0
      %9215 = vmatprep.subr.bf16.mxu0 0
      %9216 = vmatpush1.bf16.msra.mxu0 0
      %9217 = vmatprep.subr.bf16.mxu0 0
      %9218 = vmatpush1.bf16.msra.mxu0 0
      %9219 = vmatprep.subr.bf16.mxu0 0
      %9220 = vmatpush1.bf16.msra.mxu0 0
      %9221 = vmatprep.mubr.bf16.mxu0 0
      %9222 = vmatmul.mubr.bf16.gmra.mrb[0].mxu0 %v3593
      %v9223 = vpop.f32.mrb[0].mxu0
      %v9224 = vadd.f32 0.0, %v9223
      %v9225 = vpop.f32.mrb[0].mxu0
      %v9226 = vpop.f32.mrb[0].mxu0
      %v9227 = vadd.f32 0.0, %v9226
      %v9228 = vpop.f32.mrb[0].mxu0
      %9229 = vdwg.mxu0
      %v9230 = vld [vmem:[#allocation2 + $0xc] sm:$0xf]
      %v9231 = vld [vmem:[#allocation2 + $0x1c] sm:$0xf]
      %v9232 = vld [vmem:[#allocation2 + $0x2c] sm:$0xf]
      %v9233 = vld [vmem:[#allocation2 + $0x3c] sm:$0xf]
      %v9236 = vcombine.high %v9224, %v9224
      %v9237 = vcombine.high %v9227, %v9227
      %v9240 = vadd.f32 %v9230, %v9224
      %v9241 = vadd.f32 %v9231, %v9236
      %v9242 = vadd.f32 %v9232, %v9227
      %v9243 = vadd.f32 %v9233, %v9237
      %9244 = vst [vmem:[#allocation2 + $0xc] sm:$0xf] %v9240
      %9245 = vst [vmem:[#allocation2 + $0x1c] sm:$0xf] %v9241
      %9246 = vst [vmem:[#allocation2 + $0x2c] sm:$0xf] %v9242
      %9247 = vst [vmem:[#allocation2 + $0x3c] sm:$0xf] %v9243
      %s9248 = scalar_lea.vmem %s1, 960
      %v9249 = vld [vmem:[%s9248] sm:$0xf]
      %v9250 = vld [vmem:[%s9248 + $0x4] sm:$0xf]
      %v9251 = vld [vmem:[%s9248 + $0x8] sm:$0xf]
      %v9252 = vld [vmem:[%s9248 + $0xc] sm:$0xf]
      %v9253 = vld [vmem:[%s9248 + $0x10] sm:$0xf]
      %v9254 = vld [vmem:[%s9248 + $0x14] sm:$0xf]
      %v9255 = vld [vmem:[%s9248 + $0x18] sm:$0xf]
      %v9256 = vld [vmem:[%s9248 + $0x1c] sm:$0xf]
      %v9257 = vld [vmem:[%s9248 + $0x20] sm:$0xf]
      %v9258 = vld [vmem:[%s9248 + $0x24] sm:$0xf]
      %v9259 = vld [vmem:[%s9248 + $0x28] sm:$0xf]
      %v9260 = vld [vmem:[%s9248 + $0x2c] sm:$0xf]
      %v9261 = vld [vmem:[%s9248 + $0x30] sm:$0xf]
      %v9262 = vld [vmem:[%s9248 + $0x34] sm:$0xf]
      %v9263 = vld [vmem:[%s9248 + $0x38] sm:$0xf]
      %v9264 = vld [vmem:[%s9248 + $0x3c] sm:$0xf]
      %v9281 = vunpack.c.l.b16 %v9249
      %v9282 = vunpack.c.l.b16 %v9250
      %v9283 = vunpack.c.l.b16 %v9251
      %v9284 = vunpack.c.l.b16 %v9252
      %v9285 = vunpack.c.l.b16 %v9253
      %v9286 = vunpack.c.l.b16 %v9254
      %v9287 = vunpack.c.l.b16 %v9255
      %v9288 = vunpack.c.l.b16 %v9256
      %v9289 = vunpack.c.l.b16 %v9257
      %v9290 = vunpack.c.l.b16 %v9258
      %v9291 = vunpack.c.l.b16 %v9259
      %v9292 = vunpack.c.l.b16 %v9260
      %v9293 = vunpack.c.l.b16 %v9261
      %v9294 = vunpack.c.l.b16 %v9262
      %v9295 = vunpack.c.l.b16 %v9263
      %v9296 = vunpack.c.l.b16 %v9264
      %v9297 = vpack.c.b16 %v9282, %v9281
      %v9298 = vpack.c.b16 %v9284, %v9283
      %v9299 = vpack.c.b16 %v9286, %v9285
      %v9300 = vpack.c.b16 %v9288, %v9287
      %v9301 = vpack.c.b16 %v9290, %v9289
      %v9302 = vpack.c.b16 %v9292, %v9291
      %v9303 = vpack.c.b16 %v9294, %v9293
      %v9304 = vpack.c.b16 %v9296, %v9295
      %9313 = vmatprep.subr.bf16.mxu0 0
      %9314 = vmatpush1.bf16.msra.mxu0 %v9297
      %9315 = vmatprep.subr.bf16.mxu0 0
      %9316 = vmatpush1.bf16.msra.mxu0 %v9298
      %9317 = vmatprep.subr.bf16.mxu0 0
      %9318 = vmatpush1.bf16.msra.mxu0 %v9299
      %9319 = vmatprep.subr.bf16.mxu0 0
      %9320 = vmatpush1.bf16.msra.mxu0 %v9300
      %9321 = vmatprep.subr.bf16.mxu0 0
      %9322 = vmatpush1.bf16.msra.mxu0 %v9301
      %9323 = vmatprep.subr.bf16.mxu0 0
      %9324 = vmatpush1.bf16.msra.mxu0 %v9302
      %9325 = vmatprep.subr.bf16.mxu0 0
      %9326 = vmatpush1.bf16.msra.mxu0 %v9303
      %9327 = vmatprep.subr.bf16.mxu0 0
      %9328 = vmatpush1.bf16.msra.mxu0 %v9304
      %9329 = vmatprep.subr.bf16.mxu0 0
      %9330 = vmatpush1.bf16.msra.mxu0 0
      %9331 = vmatprep.subr.bf16.mxu0 0
      %9332 = vmatpush1.bf16.msra.mxu0 0
      %9333 = vmatprep.subr.bf16.mxu0 0
      %9334 = vmatpush1.bf16.msra.mxu0 0
      %9335 = vmatprep.subr.bf16.mxu0 0
      %9336 = vmatpush1.bf16.msra.mxu0 0
      %9337 = vmatprep.subr.bf16.mxu0 0
      %9338 = vmatpush1.bf16.msra.mxu0 0
      %9339 = vmatprep.subr.bf16.mxu0 0
      %9340 = vmatpush1.bf16.msra.mxu0 0
      %9341 = vmatprep.subr.bf16.mxu0 0
      %9342 = vmatpush1.bf16.msra.mxu0 0
      %9343 = vmatprep.subr.bf16.mxu0 0
      %9344 = vmatpush1.bf16.msra.mxu0 0
      %9345 = vmatprep.mubr.bf16.mxu0 0
      %9346 = vmatmul.mubr.bf16.gmra.mrb[0].mxu0 %v5289
      %v9347 = vpop.f32.mrb[0].mxu0
      %v9348 = vadd.f32 0.0, %v9347
      %v9349 = vpop.f32.mrb[0].mxu0
      %v9350 = vpop.f32.mrb[0].mxu0
      %v9351 = vadd.f32 0.0, %v9350
      %v9352 = vpop.f32.mrb[0].mxu0
      %9353 = vmatprep.mubr.bf16.mxu0 0
      %9354 = vmatmul.mubr.bf16.gmra.mrb[0].mxu0 %v5290
      %v9355 = vpop.f32.mrb[0].mxu0
      %v9356 = vadd.f32 0.0, %v9355
      %v9357 = vpop.f32.mrb[0].mxu0
      %v9358 = vpop.f32.mrb[0].mxu0
      %v9359 = vadd.f32 0.0, %v9358
      %v9360 = vpop.f32.mrb[0].mxu0
      %9361 = vmatprep.mubr.bf16.mxu0 0
      %9362 = vmatmul.mubr.bf16.gmra.mrb[0].mxu0 %v5291
      %v9363 = vpop.f32.mrb[0].mxu0
      %v9364 = vadd.f32 0.0, %v9363
      %v9365 = vpop.f32.mrb[0].mxu0
      %v9366 = vpop.f32.mrb[0].mxu0
      %v9367 = vadd.f32 0.0, %v9366
      %v9368 = vpop.f32.mrb[0].mxu0
      %9369 = vmatprep.mubr.bf16.mxu0 0
      %9370 = vmatmul.mubr.bf16.gmra.mrb[0].mxu0 %v5292
      %v9371 = vpop.f32.mrb[0].mxu0
      %v9372 = vadd.f32 0.0, %v9371
      %v9373 = vpop.f32.mrb[0].mxu0
      %v9374 = vpop.f32.mrb[0].mxu0
      %v9375 = vadd.f32 0.0, %v9374
      %v9376 = vpop.f32.mrb[0].mxu0
      %9377 = vdwg.mxu0
      %v9378 = vld [vmem:[#allocation2] sm:$0xff]
      %v9379 = vld [vmem:[#allocation2 + $0x8] sm:$0xff]
      %v9380 = vld [vmem:[#allocation2 + $0x10] sm:$0xff]
      %v9381 = vld [vmem:[#allocation2 + $0x18] sm:$0xff]
      %v9382 = vld [vmem:[#allocation2 + $0x20] sm:$0xff]
      %v9383 = vld [vmem:[#allocation2 + $0x28] sm:$0xff]
      %v9384 = vld [vmem:[#allocation2 + $0x30] sm:$0xff]
      %v9385 = vld [vmem:[#allocation2 + $0x38] sm:$0xff]
      %v9386 = vadd.f32 %v9378, %v9348
      %v9387 = vadd.f32 %v9379, %v9351
      %v9388 = vadd.f32 %v9380, %v9356
      %v9389 = vadd.f32 %v9381, %v9359
      %v9390 = vadd.f32 %v9382, %v9364
      %v9391 = vadd.f32 %v9383, %v9367
      %v9392 = vadd.f32 %v9384, %v9372
      %v9393 = vadd.f32 %v9385, %v9375
      %9394 = vst [vmem:[#allocation2] sm:$0xff] %v9386
      %9395 = vst [vmem:[#allocation2 + $0x8] sm:$0xff] %v9387
      %9396 = vst [vmem:[#allocation2 + $0x10] sm:$0xff] %v9388
      %9397 = vst [vmem:[#allocation2 + $0x18] sm:$0xff] %v9389
      %9398 = vst [vmem:[#allocation2 + $0x20] sm:$0xff] %v9390
      %9399 = vst [vmem:[#allocation2 + $0x28] sm:$0xff] %v9391
      %9400 = vst [vmem:[#allocation2 + $0x30] sm:$0xff] %v9392
      %9401 = vst [vmem:[#allocation2 + $0x38] sm:$0xff] %v9393
      %s9402 = scalar_lea.vmem %s1, 1024
      %v9403 = vld [vmem:[%s9402] sm:$0xf]
      %v9404 = vld [vmem:[%s9402 + $0x4] sm:$0xf]
      %v9405 = vld [vmem:[%s9402 + $0x8] sm:$0xf]
      %v9406 = vld [vmem:[%s9402 + $0xc] sm:$0xf]
      %v9407 = vld [vmem:[%s9402 + $0x10] sm:$0xf]
      %v9408 = vld [vmem:[%s9402 + $0x14] sm:$0xf]
      %v9409 = vld [vmem:[%s9402 + $0x18] sm:$0xf]
      %v9410 = vld [vmem:[%s9402 + $0x1c] sm:$0xf]
      %v9411 = vld [vmem:[%s9402 + $0x20] sm:$0xf]
      %v9412 = vld [vmem:[%s9402 + $0x24] sm:$0xf]
      %v9413 = vld [vmem:[%s9402 + $0x28] sm:$0xf]
      %v9414 = vld [vmem:[%s9402 + $0x2c] sm:$0xf]
      %v9415 = vld [vmem:[%s9402 + $0x30] sm:$0xf]
      %v9416 = vld [vmem:[%s9402 + $0x34] sm:$0xf]
      %v9417 = vld [vmem:[%s9402 + $0x38] sm:$0xf]
      %v9418 = vld [vmem:[%s9402 + $0x3c] sm:$0xf]
      %v9435 = vunpack.c.l.b16 %v9403
      %v9436 = vunpack.c.l.b16 %v9404
      %v9437 = vunpack.c.l.b16 %v9405
      %v9438 = vunpack.c.l.b16 %v9406
      %v9439 = vunpack.c.l.b16 %v9407
      %v9440 = vunpack.c.l.b16 %v9408
      %v9441 = vunpack.c.l.b16 %v9409
      %v9442 = vunpack.c.l.b16 %v9410
      %v9443 = vunpack.c.l.b16 %v9411
      %v9444 = vunpack.c.l.b16 %v9412
      %v9445 = vunpack.c.l.b16 %v9413
      %v9446 = vunpack.c.l.b16 %v9414
      %v9447 = vunpack.c.l.b16 %v9415
      %v9448 = vunpack.c.l.b16 %v9416
      %v9449 = vunpack.c.l.b16 %v9417
      %v9450 = vunpack.c.l.b16 %v9418
      %v9451 = vpack.c.b16 %v9436, %v9435
      %v9452 = vpack.c.b16 %v9438, %v9437
      %v9453 = vpack.c.b16 %v9440, %v9439
      %v9454 = vpack.c.b16 %v9442, %v9441
      %v9455 = vpack.c.b16 %v9444, %v9443
      %v9456 = vpack.c.b16 %v9446, %v9445
      %v9457 = vpack.c.b16 %v9448, %v9447
      %v9458 = vpack.c.b16 %v9450, %v9449
      %9467 = vmatprep.subr.bf16.mxu0 0
      %9468 = vmatpush1.bf16.msra.mxu0 %v9451
      %9469 = vmatprep.subr.bf16.mxu0 0
      %9470 = vmatpush1.bf16.msra.mxu0 %v9452
      %9471 = vmatprep.subr.bf16.mxu0 0
      %9472 = vmatpush1.bf16.msra.mxu0 %v9453
      %9473 = vmatprep.subr.bf16.mxu0 0
      %9474 = vmatpush1.bf16.msra.mxu0 %v9454
      %9475 = vmatprep.subr.bf16.mxu0 0
      %9476 = vmatpush1.bf16.msra.mxu0 %v9455
      %9477 = vmatprep.subr.bf16.mxu0 0
      %9478 = vmatpush1.bf16.msra.mxu0 %v9456
      %9479 = vmatprep.subr.bf16.mxu0 0
      %9480 = vmatpush1.bf16.msra.mxu0 %v9457
      %9481 = vmatprep.subr.bf16.mxu0 0
      %9482 = vmatpush1.bf16.msra.mxu0 %v9458
      %9483 = vmatprep.subr.bf16.mxu0 0
      %9484 = vmatpush1.bf16.msra.mxu0 0
      %9485 = vmatprep.subr.bf16.mxu0 0
      %9486 = vmatpush1.bf16.msra.mxu0 0
      %9487 = vmatprep.subr.bf16.mxu0 0
      %9488 = vmatpush1.bf16.msra.mxu0 0
      %9489 = vmatprep.subr.bf16.mxu0 0
      %9490 = vmatpush1.bf16.msra.mxu0 0
      %9491 = vmatprep.subr.bf16.mxu0 0
      %9492 = vmatpush1.bf16.msra.mxu0 0
      %9493 = vmatprep.subr.bf16.mxu0 0
      %9494 = vmatpush1.bf16.msra.mxu0 0
      %9495 = vmatprep.subr.bf16.mxu0 0
      %9496 = vmatpush1.bf16.msra.mxu0 0
      %9497 = vmatprep.subr.bf16.mxu0 0
      %9498 = vmatpush1.bf16.msra.mxu0 0
      %9499 = vmatprep.mubr.bf16.mxu0 0
      %9500 = vmatmul.mubr.bf16.gmra.mrb[0].mxu0 %v7069
      %v9501 = vpop.f32.mrb[0].mxu0
      %v9502 = vadd.f32 0.0, %v9501
      %v9503 = vpop.f32.mrb[0].mxu0
      %v9504 = vpop.f32.mrb[0].mxu0
      %v9505 = vadd.f32 0.0, %v9504
      %v9506 = vpop.f32.mrb[0].mxu0
      %9507 = vdwg.mxu0
      %v9508 = vld [vmem:[#allocation2] sm:$0xf]
      %v9509 = vld [vmem:[#allocation2 + $0x10] sm:$0xf]
      %v9510 = vld [vmem:[#allocation2 + $0x20] sm:$0xf]
      %v9511 = vld [vmem:[#allocation2 + $0x30] sm:$0xf]
      %v9514 = vcombine.high %v9502, %v9502
      %v9515 = vcombine.high %v9505, %v9505
      %v9518 = vadd.f32 %v9508, %v9502
      %v9519 = vadd.f32 %v9509, %v9514
      %v9520 = vadd.f32 %v9510, %v9505
      %v9521 = vadd.f32 %v9511, %v9515
      %9522 = vst [vmem:[#allocation2] sm:$0xf] %v9518
      %9523 = vst [vmem:[#allocation2 + $0x10] sm:$0xf] %v9519
      %9524 = vst [vmem:[#allocation2 + $0x20] sm:$0xf] %v9520
      %9525 = vst [vmem:[#allocation2 + $0x30] sm:$0xf] %v9521
      %v9526 = vld [vmem:[#allocation2] sm:$0xff]
      %v9527 = vld [vmem:[#allocation2 + $0x8] sm:$0xff]
      %v9528 = vld [vmem:[#allocation2 + $0x10] sm:$0xff]
      %v9529 = vld [vmem:[#allocation2 + $0x18] sm:$0xff]
      %v9530 = vld [vmem:[#allocation2 + $0x20] sm:$0xff]
      %v9531 = vld [vmem:[#allocation2 + $0x28] sm:$0xff]
      %v9532 = vld [vmem:[#allocation2 + $0x30] sm:$0xff]
      %v9533 = vld [vmem:[#allocation2 + $0x38] sm:$0xff]
      %v9534 = vld [vmem:[#allocation2 + $0x40] sm:$0xff]
      %v9535 = vld [vmem:[#allocation2 + $0x48] sm:$0xff]
      %v9536 = vld [vmem:[#allocation2 + $0x50] sm:$0xff]
      %v9537 = vld [vmem:[#allocation2 + $0x58] sm:$0xff]
      %v9538 = vld [vmem:[#allocation2 + $0x60] sm:$0xff]
      %v9539 = vld [vmem:[#allocation2 + $0x68] sm:$0xff]
      %v9540 = vld [vmem:[#allocation2 + $0x70] sm:$0xff]
      %v9541 = vld [vmem:[#allocation2 + $0x78] sm:$0xff]
      %v9542 = vld [vmem:[#allocation2 + $0x80] sm:$0xff]
      %v9543 = vld [vmem:[#allocation2 + $0x88] sm:$0xff]
      %v9544 = vld [vmem:[#allocation2 + $0x90] sm:$0xff]
      %v9545 = vld [vmem:[#allocation2 + $0x98] sm:$0xff]
      %v9546 = vld [vmem:[#allocation2 + $0xa0] sm:$0xff]
      %v9547 = vld [vmem:[#allocation2 + $0xa8] sm:$0xff]
      %v9548 = vld [vmem:[#allocation2 + $0xb0] sm:$0xff]
      %v9549 = vld [vmem:[#allocation2 + $0xb8] sm:$0xff]
      %v9550 = vld [vmem:[#allocation2 + $0xc0] sm:$0xff]
      %v9551 = vld [vmem:[#allocation2 + $0xc8] sm:$0xff]
      %v9552 = vld [vmem:[#allocation2 + $0xd0] sm:$0xff]
      %v9553 = vld [vmem:[#allocation2 + $0xd8] sm:$0xff]
      %v9554 = vld [vmem:[#allocation2 + $0xe0] sm:$0xff]
      %v9555 = vld [vmem:[#allocation2 + $0xe8] sm:$0xff]
      %v9556 = vld [vmem:[#allocation2 + $0xf0] sm:$0xff]
      %v9557 = vld [vmem:[#allocation2 + $0xf8] sm:$0xff]
      %9558 = vst [vmem:[%s170] sm:$0xff] %v9526
      %9559 = vst [vmem:[%s170 + $0x8] sm:$0xff] %v9527
      %9560 = vst [vmem:[%s170 + $0x10] sm:$0xff] %v9528
      %9561 = vst [vmem:[%s170 + $0x18] sm:$0xff] %v9529
      %9562 = vst [vmem:[%s170 + $0x20] sm:$0xff] %v9530
      %9563 = vst [vmem:[%s170 + $0x28] sm:$0xff] %v9531
      %9564 = vst [vmem:[%s170 + $0x30] sm:$0xff] %v9532
      %9565 = vst [vmem:[%s170 + $0x38] sm:$0xff] %v9533
      %9566 = vst [vmem:[%s170 + $0x40] sm:$0xff] %v9534
      %9567 = vst [vmem:[%s170 + $0x48] sm:$0xff] %v9535
      %9568 = vst [vmem:[%s170 + $0x50] sm:$0xff] %v9536
      %9569 = vst [vmem:[%s170 + $0x58] sm:$0xff] %v9537
      %9570 = vst [vmem:[%s170 + $0x60] sm:$0xff] %v9538
      %9571 = vst [vmem:[%s170 + $0x68] sm:$0xff] %v9539
      %9572 = vst [vmem:[%s170 + $0x70] sm:$0xff] %v9540
      %9573 = vst [vmem:[%s170 + $0x78] sm:$0xff] %v9541
      %9574 = vst [vmem:[%s170 + $0x80] sm:$0xff] %v9542
      %9575 = vst [vmem:[%s170 + $0x88] sm:$0xff] %v9543
      %9576 = vst [vmem:[%s170 + $0x90] sm:$0xff] %v9544
      %9577 = vst [vmem:[%s170 + $0x98] sm:$0xff] %v9545
      %9578 = vst [vmem:[%s170 + $0xa0] sm:$0xff] %v9546
      %9579 = vst [vmem:[%s170 + $0xa8] sm:$0xff] %v9547
      %9580 = vst [vmem:[%s170 + $0xb0] sm:$0xff] %v9548
      %9581 = vst [vmem:[%s170 + $0xb8] sm:$0xff] %v9549
      %9582 = vst [vmem:[%s170 + $0xc0] sm:$0xff] %v9550
      %9583 = vst [vmem:[%s170 + $0xc8] sm:$0xff] %v9551
      %9584 = vst [vmem:[%s170 + $0xd0] sm:$0xff] %v9552
      %9585 = vst [vmem:[%s170 + $0xd8] sm:$0xff] %v9553
      %9586 = vst [vmem:[%s170 + $0xe0] sm:$0xff] %v9554
      %9587 = vst [vmem:[%s170 + $0xe8] sm:$0xff] %v9555
      %9588 = vst [vmem:[%s170 + $0xf0] sm:$0xff] %v9556
      %9589 = vst [vmem:[%s170 + $0xf8] sm:$0xff] %v9557
      %p9590 = scmp.lt.s32.totalorder %s14, 1
      %s9591 = scalar_select %p9590, %s14, 1
      %s9592 = smul.addr %s9591, 32
      %s9593 = smul.addr %s9592, 8
      %s9594 = scalar_lea.vmem %s3, %s9593
      // Predicated region
      $region33: #{aspp_v2_forward.1} parent=31 // pred_check
        %p9595 = pneg %p100
      $region34: #{aspp_v2_forward.1} parent=31 // pred_check_branch
        %9597 = sbr.rel (%p9595) target = $region36
      $region35: #{aspp_v2_forward.1} parent=31 // pred_region
        _
      $region36: #{aspp_v2_forward.1} parent=31 // pred_fallthru
        _
    $region32: #{aspp_v2_forward.1} parent=5 // pred_fallthru
      _
    %p9598 = scmp.le.s32.totalorder 2, %s9
    // Predicated region
    $region37: #{aspp_v2_forward.1} parent=5 // pred_check
      %p9599 = pneg %p9598
    $region38: #{aspp_v2_forward.1} parent=5 // pred_check_branch
      %9601 = sbr.rel (%p9599) target = $region40
    $region39: #{aspp_v2_forward.1} parent=5 // pred_region
      %s9602 = ssub.s32 %s9, 2
      // Predicated region
      $region41: #{aspp_v2_forward.1} parent=39 // pred_check
        %p9603 = pneg %p106
      $region42: #{aspp_v2_forward.1} parent=39 // pred_check_branch
        %9605 = sbr.rel (%p9603) target = $region44
      $region43: #{aspp_v2_forward.1} parent=39 // pred_region
        %p9606 = scmp.lt.s32.totalorder %s15, 1
        %s9607 = scalar_select %p9606, %s15, 1
        %s9608 = smul.addr %s9607, 32
        %s9609 = smul.addr %s9608, 8
        %s9610 = scalar_lea.vmem %s3, %s9609
      $region44: #{aspp_v2_forward.1} parent=39 // pred_fallthru
        _
    $region40: #{aspp_v2_forward.1} parent=5 // pred_fallthru
      _
  $region6: #{aspp_v2_forward.1} parent=0 // loop_footer
    %s13 = sadd.s32 1, %s9
  $region7: #{aspp_v2_forward.1} parent=0 // loop_footer_branch
    %8 = sbr.rel target = $region3
  $region8: #{aspp_v2_forward.1} parent=0 // loop_exit
    _

</llo_original>
